<compile_context>
chip_gen: v6e
topology: v6e:2x2x1
jax: 0.10.0
libtpu: 0.0.40
codegen_flags: <defaults>
</compile_context>

<pallas_src>
import math
from functools import partial

import numpy as np
import jax
import jax.numpy as jnp
from jax.experimental import pallas as pl
from jax.experimental.pallas import tpu as pltpu  # noqa: F401


# ----------------------------------------------------------------------------
# Host-side parameter packing: one contiguous (rows, 128) f32 VMEM slab.
# ----------------------------------------------------------------------------
_LANES = 128


def pack_params(params):
    """Pack all weights/biases (+ hoisted constant-Q projections) into one slab.

    Returns (slab, layout) where layout maps name -> (row_off, rows, cols)
    with every row_off a multiple of 8 (sublane aligned).
    """
    enc = params["encoder"]
    e0, e1, pma = enc["enc0"], enc["enc1"], enc["pma"]
    entries = []

    def add(name, arr):
        a = np.asarray(jax.device_get(arr), np.float32)
        assert a.ndim == 2 and a.shape[1] <= _LANES, (name, a.shape)
        entries.append((name, a))

    # Hoisted constant-query projections (fc_q applied to learned I / S).
    add("Iq0", e0["I"] @ e0["mab0"]["wq"] + e0["mab0"]["bq"])
    add("Iq1", e1["I"] @ e1["mab0"]["wq"] + e1["mab0"]["bq"])
    add("Sq",  pma["S"] @ pma["mab"]["wq"] + pma["mab"]["bq"])

    # MABs whose Q depends on the data (need fc_q in-kernel).
    for name, m in (("enc0.mab1", e0["mab1"]), ("enc1.mab1", e1["mab1"])):
        add(name + ".wq", m["wq"])
        add(name + ".bq", m["bq"])

    # K/V projection + fc_o for all non-self-attention MABs.
    for name, m in (("enc0.mab0", e0["mab0"]), ("enc0.mab1", e0["mab1"]),
                    ("enc1.mab0", e1["mab0"]), ("enc1.mab1", e1["mab1"]),
                    ("pma", pma["mab"])):
        add(name + ".wkv", m["wkv"])
        add(name + ".bkv", m["bkv"])
        add(name + ".wo", m["wo"])
        add(name + ".bo", m["bo"])

    # Self-attention blocks: Q == K, fuse Wq into a single (D, 3D) projection.
    for name in ("sab0", "sab1"):
        m = enc[name]
        add(name + ".wqkv", np.concatenate([np.asarray(m["wq"]),
                                            np.asarray(m["wkv"])], axis=1))
        add(name + ".bqkv", np.concatenate([np.asarray(m["bq"]),
                                            np.asarray(m["bkv"])], axis=1))
        add(name + ".wo", m["wo"])
        add(name + ".bo", m["bo"])

    add("out_w", enc["out_w"])
    add("out_b", enc["out_b"])

    n_dec = params["dec_w"].shape[0]
    for i in range(n_dec):
        add(f"dec_w{i}", params["dec_w"][i])
        add(f"dec_b{i}", params["dec_b"][i])
    add("agg_w", params["agg_w"])
    add("agg_b", params["agg_b"])

    # Lay out: every entry 8-row aligned so all in-kernel slices are aligned.
    layout = {}
    row = 0
    for name, arr in entries:
        r, c = arr.shape
        layout[name] = (row, r, c)
        row += ((r + 7) // 8) * 8
    total = ((row + 7) // 8) * 8

    slab = np.zeros((total, _LANES), np.float32)
    for name, arr in entries:
        off, r, c = layout[name]
        slab[off:off + r, :c] = arr
    return jnp.asarray(slab), layout


# ----------------------------------------------------------------------------
# The fused forward-pass kernel (one pallas_call for the whole model).
# ----------------------------------------------------------------------------
def make_model_kernel(layout, *, batch, set_size, dim_input, dim_hidden,
                      dim_output, num_heads, num_inds, num_seeds,
                      forward_layers, res_on):
    B, N, Din = batch, set_size, dim_input
    D, Do, H = dim_hidden, dim_output, num_heads
    M, S, L = num_inds, num_seeds, forward_layers
    assert D % H == 0, "dim_V must be divisible by num_heads"
    dh = D // H
    scale = 1.0 / math.sqrt(D)          # PyTorch SetTransformer uses sqrt(dim_V)

    def kernel(x_ref, p_ref, out_ref):
        def P(name):                     # static-slice load from the param slab
            off, r, c = layout[name]
            return p_ref[off:off + r, :c]

        # ---------------- multi-head attention (batched over B) --------------
        def attend(qp3, kp3, vp3):
            # qp3: (B, Nq, D); kp3/vp3: (B, Nk, D).  Per-head residual Q_h + A V_h.
            heads = []
            for h in range(H):
                sl = slice(h * dh, (h + 1) * dh)
                qh, kh, vh = qp3[..., sl], kp3[..., sl], vp3[..., sl]
                s = jnp.einsum("bqd,bkd->bqk", qh, kh,
                               preferred_element_type=jnp.float32) * scale
                s = s - jnp.max(s, axis=-1, keepdims=True)
                e = jnp.exp(s)
                p = e / jnp.sum(e, axis=-1, keepdims=True)
                heads.append(qh + jnp.einsum("bqk,bkd->bqd", p, vh,
                                             preferred_element_type=jnp.float32))
            return jnp.concatenate(heads, axis=-1) if H > 1 else heads[0]

        def ff_out(o3, prefix):          # O + relu(fc_o(O)), batch-stacked 2-D
            nq = o3.shape[1]
            of = o3.reshape(B * nq, D)
            ff = jnp.dot(of, P(prefix + ".wo"),
                         preferred_element_type=jnp.float32) + P(prefix + ".bo")
            return (of + jnp.maximum(ff, 0.0)).reshape(B, nq, D)

        def project_kv(k_flat, nk, prefix):   # fused K/V projection, one matmul
            kv = jnp.dot(k_flat, P(prefix + ".wkv"),
                         preferred_element_type=jnp.float32) + P(prefix + ".bkv")
            return (kv[:, :D].reshape(B, nk, D),
                    kv[:, D:].reshape(B, nk, D))

        def mab_const_q(qname, nq, k_flat, nk, prefix):
            # MAB whose projected Q is batch-invariant (hoisted to pack time).
            kp3, vp3 = project_kv(k_flat, nk, prefix)
            qp3 = jnp.broadcast_to(P(qname)[None], (B, nq, D))
            return ff_out(attend(qp3, kp3, vp3), prefix)

        def mab(q_flat, nq, k_flat, nk, prefix):
            qp = jnp.dot(q_flat, P(prefix + ".wq"),
                         preferred_element_type=jnp.float32) + P(prefix + ".bq")
            kp3, vp3 = project_kv(k_flat, nk, prefix)
            return ff_out(attend(qp.reshape(B, nq, D), kp3, vp3), prefix)

        def sab(z_flat, nq, prefix):     # self-attention: fused QKV projection
            qkv = jnp.dot(z_flat, P(prefix + ".wqkv"),
                          preferred_element_type=jnp.float32) + P(prefix + ".bqkv")
            qp3 = qkv[:, :D].reshape(B, nq, D)
            kp3 = qkv[:, D:2 * D].reshape(B, nq, D)
            vp3 = qkv[:, 2 * D:].reshape(B, nq, D)
            return ff_out(attend(qp3, kp3, vp3), prefix)

        # -------- SetTransformer encoder: 2 x ISAB (useSAB=False path) --------
        x_flat = x_ref[...].reshape(B * N, Din)
        h3 = mab_const_q("Iq0", M, x_flat, N, "enc0.mab0")            # (B, M, D)
        z3 = mab(x_flat, N, h3.reshape(B * M, D), M, "enc0.mab1")     # (B, N, D)
        z_flat = z3.reshape(B * N, D)
        h3 = mab_const_q("Iq1", M, z_flat, N, "enc1.mab0")
        z3 = mab(z_flat, N, h3.reshape(B * M, D), M, "enc1.mab1")

        # -------- SetTransformer decoder: PMA -> SAB -> SAB -> Linear --------
        z3 = mab_const_q("Sq", S, z3.reshape(B * N, D), N, "pma")     # (B, S, D)
        z3 = sab(z3.reshape(B * S, D), S, "sab0")
        z3 = sab(z3.reshape(B * S, D), S, "sab1")
        y = jnp.dot(z3.reshape(B * S, D), P("out_w"),
                    preferred_element_type=jnp.float32) + P("out_b")  # (B*S, Do)

        # torch.sum(out, dim=1): reduce over the num_outputs axis.
        out = y.reshape(B, S, Do).sum(axis=1) if S > 1 else y.reshape(B, Do)

        # -------- MLP decoder: forward_layers x [Linear, ReLU] --------
        # (batchNorm=False -> plain Linear; dropOut=0.0 -> Dropout is identity)
        former = out
        for i in range(2 * L):
            if res_on and i % 4 == 0:
                former = out
            if res_on and i % 4 == 3:
                out = out + former
            if i % 2 == 0:
                li = i // 2
                out = (jnp.dot(out, P(f"dec_w{li}"),
                               preferred_element_type=jnp.float32)
                       + P(f"dec_b{li}"))
            else:
                out = jnp.maximum(out, 0.0)

        # -------- aggregation: Linear(Do, 1) + Sigmoid --------
        logit = (jnp.dot(out, P("agg_w"),
                         preferred_element_type=jnp.float32) + P("agg_b"))
        out_ref[...] = (1.0 / (1.0 + jnp.exp(-logit))).astype(out_ref.dtype)

    return kernel


# ----------------------------------------------------------------------------
# Forward pass: a single pallas_call for the whole model (x + one param slab).
# ----------------------------------------------------------------------------
def approximanet_forward(slab, x, *, layout, config):
    B = x.shape[0]
    kernel = make_model_kernel(layout, batch=B, **config)
    # No grid / BlockSpecs: both operands are full-array VMEM blocks
    # (slab ~0.5 MiB, activations a few KiB) -> exactly two input DMAs and
    # one kernel launch per forward on v5e/v6e/v7x.
    out = pl.pallas_call(
        kernel,
        out_shape=jax.ShapeDtypeStruct((B, 1), jnp.float32),
    )(x, slab)
    return jnp.squeeze(out)                                   # torch.squeeze


# ----------------------------------------------------------------------------
# Deterministic parameter construction (mimics nn.Linear / xavier inits)
# ----------------------------------------------------------------------------
def init_linear_params(key, fan_in, fan_out):
    kw, kb = jax.random.split(key)
    lim = 1.0 / math.sqrt(fan_in)
    w = jax.random.uniform(kw, (fan_in, fan_out), jnp.float32, -lim, lim)
    b = jax.random.uniform(kb, (1, fan_out), jnp.float32, -lim, lim)
    return w, b


def init_mab(key, dim_q, dim_k, dim_v):
    # TODO(synk): MAB ln=True (LayerNorm) variant not implemented; the
    # reference SetTransformer default ln=False is what is reproduced here.
    ks = jax.random.split(key, 4)
    wq, bq = init_linear_params(ks[0], dim_q, dim_v)
    wk, bk = init_linear_params(ks[1], dim_k, dim_v)
    wv, bv = init_linear_params(ks[2], dim_k, dim_v)
    wo, bo = init_linear_params(ks[3], dim_v, dim_v)
    # K and V projection fused into one (dim_k, 2*dim_v) matmul.
    return dict(wq=wq, bq=bq,
                wkv=jnp.concatenate([wk, wv], axis=1),
                bkv=jnp.concatenate([bk, bv], axis=1),
                wo=wo, bo=bo)


def init_isab(key, dim_in, dim_out, num_inds):
    k_i, k0, k1 = jax.random.split(key, 3)
    lim = math.sqrt(6.0 / (num_inds + dim_out))
    I = jax.random.uniform(k_i, (num_inds, dim_out), jnp.float32, -lim, lim)
    return dict(I=I,
                mab0=init_mab(k0, dim_out, dim_in, dim_out),
                mab1=init_mab(k1, dim_in, dim_out, dim_out))


def init_pma(key, dim, num_seeds):
    k_s, k_m = jax.random.split(key)
    lim = math.sqrt(6.0 / (num_seeds + dim))
    S = jax.random.uniform(k_s, (num_seeds, dim), jnp.float32, -lim, lim)
    return dict(S=S, mab=init_mab(k_m, dim, dim, dim))


def init_set_transformer(key, dim_input, num_outputs, dim_output, num_inds, dim_hidden):
    # TODO(synk): useSAB=True encoder variant (SAB-stack encoder) not wired;
    # the default useSAB=False (ISAB) path is implemented.
    ks = jax.random.split(key, 6)
    out_w, out_b = init_linear_params(ks[5], dim_hidden, dim_output)
    return dict(
        enc0=init_isab(ks[0], dim_input, dim_hidden, num_inds),
        enc1=init_isab(ks[1], dim_hidden, dim_hidden, num_inds),
        pma=init_pma(ks[2], dim_hidden, num_outputs),
        sab0=init_mab(ks[3], dim_hidden, dim_hidden, dim_hidden),
        sab1=init_mab(ks[4], dim_hidden, dim_hidden, dim_hidden),
        out_w=out_w, out_b=out_b,
    )


def init_model(key, *, trans_input_dim, hidden_dim, trans_output_dim,
               trans_output_num, isab_inds, forward_layers):
    # TODO(synk): batchNorm=True path (BatchNorm1d inside getTransformLayer)
    # not implemented; default batchNorm=False (plain Linear) is reproduced.
    k_enc, k_dec, k_agg = jax.random.split(key, 3)
    dec_keys = jax.random.split(k_dec, forward_layers)
    dec = [init_linear_params(dk, trans_output_dim, trans_output_dim)
           for dk in dec_keys]
    dec_w = jnp.stack([w for w, _ in dec])          # (L, Do, Do)
    dec_b = jnp.stack([b for _, b in dec])          # (L, 1, Do)
    agg_w, agg_b = init_linear_params(k_agg, trans_output_dim, 1)
    return dict(
        encoder=init_set_transformer(k_enc, trans_input_dim, trans_output_num,
                                     trans_output_dim, isab_inds, hidden_dim),
        dec_w=dec_w, dec_b=dec_b, agg_w=agg_w, agg_b=agg_b,
    )


# ----------------------------------------------------------------------------
if __name__ == "__main__":
    # Small, module-consistent shapes.
    B, N = 2, 8                       # batch of sets, 8 elements per set
    TRANS_INPUT_DIM = 16
    HIDDEN_DIM = 32
    TRANS_OUTPUT_DIM = 32
    TRANS_OUTPUT_NUM = 1
    NUM_HEADS = 4
    ISAB_INDS = 8
    FORWARD_LAYERS = 8
    RES_ON = False

    key = jax.random.PRNGKey(0)
    k_params, k_x = jax.random.split(key)

    params = init_model(k_params,
                        trans_input_dim=TRANS_INPUT_DIM,
                        hidden_dim=HIDDEN_DIM,
                        trans_output_dim=TRANS_OUTPUT_DIM,
                        trans_output_num=TRANS_OUTPUT_NUM,
                        isab_inds=ISAB_INDS,
                        forward_layers=FORWARD_LAYERS)

    x = jax.random.normal(k_x, (B, N, TRANS_INPUT_DIM), dtype=jnp.float32)

    # One-time host-side packing of all parameters into a single VMEM slab.
    slab, layout = pack_params(params)

    config = dict(set_size=N,
                  dim_input=TRANS_INPUT_DIM,
                  dim_hidden=HIDDEN_DIM,
                  dim_output=TRANS_OUTPUT_DIM,
                  num_heads=NUM_HEADS,
                  num_inds=ISAB_INDS,
                  num_seeds=TRANS_OUTPUT_NUM,
                  forward_layers=FORWARD_LAYERS,
                  res_on=RES_ON)

    fwd = jax.jit(partial(approximanet_forward, layout=layout, config=config))
    out = jax.block_until_ready(fwd(slab, x))
    assert out.shape == (B,), out.shape
    assert bool(jnp.all(jnp.isfinite(out)))
    print("KERNEL_OK")
</pallas_src>

<mosaic_0001>
module attributes {stable_mosaic.version = 11 : i64} {
  func.func @kernel(%arg0: memref<2x8x16xf32, #tpu.memory_space<vmem>>, %arg1: memref<1032x128xf32, #tpu.memory_space<vmem>>, %arg2: memref<2x1xf32, #tpu.memory_space<vmem>>) attributes {dimension_semantics = [], scalar_prefetch = 0 : i64, scratch_operands = 0 : i64, tpu.core_type = #tpu.core_type<tc>} {
    %c0 = arith.constant 0 : index
    %c0_0 = arith.constant 0 : index
    %c0_1 = arith.constant 0 : index
    %0 = vector.load %arg0[%c0, %c0_0, %c0_1] : memref<2x8x16xf32, #tpu.memory_space<vmem>>, vector<2x8x16xf32>
    %1 = vector.shape_cast %0 : vector<2x8x16xf32> to vector<16x16xf32>
    %c88 = arith.constant 88 : index
    %c0_2 = arith.constant 0 : index
    %2 = vector.load %arg1[%c88, %c0_2] : memref<1032x128xf32, #tpu.memory_space<vmem>>, vector<16x64xf32>
    %cst = arith.constant dense<0.000000e+00> : vector<16x64xf32>
    %3 = tpu.matmul %1, %2, %cst {dimension_numbers = #tpu.dot_dimension_numbers<[1], [0], [0], [1], [0, 0, 1, 1], [], []>} : vector<16x16xf32>, vector<16x64xf32>, vector<16x64xf32> -> vector<16x64xf32>
    %c104 = arith.constant 104 : index
    %c0_3 = arith.constant 0 : index
    %4 = vector.load %arg1[%c104, %c0_3] : memref<1032x128xf32, #tpu.memory_space<vmem>>, vector<1x64xf32>
    %5 = vector.broadcast %4 : vector<1x64xf32> to vector<16x64xf32>
    %6 = arith.addf %3, %5 : vector<16x64xf32>
    %7 = vector.extract_strided_slice %6 {offsets = [0, 0], sizes = [16, 32], strides = [1, 1]} : vector<16x64xf32> to vector<16x32xf32>
    %8 = vector.shape_cast %7 : vector<16x32xf32> to vector<2x8x32xf32>
    %9 = vector.extract_strided_slice %6 {offsets = [0, 32], sizes = [16, 32], strides = [1, 1]} : vector<16x64xf32> to vector<16x32xf32>
    %10 = vector.shape_cast %9 : vector<16x32xf32> to vector<2x8x32xf32>
    %c0_4 = arith.constant 0 : index
    %c0_5 = arith.constant 0 : index
    %11 = vector.load %arg1[%c0_4, %c0_5] : memref<1032x128xf32, #tpu.memory_space<vmem>>, vector<8x32xf32>
    %12 = vector.shape_cast %11 : vector<8x32xf32> to vector<1x8x32xf32>
    %13 = vector.shape_cast %12 : vector<1x8x32xf32> to vector<1x8x32xf32>
    %14 = vector.broadcast %13 : vector<1x8x32xf32> to vector<2x8x32xf32>
    %15 = vector.extract_strided_slice %14 {offsets = [0, 0, 0], sizes = [2, 8, 8], strides = [1, 1, 1]} : vector<2x8x32xf32> to vector<2x8x8xf32>
    %16 = vector.extract_strided_slice %8 {offsets = [0, 0, 0], sizes = [2, 8, 8], strides = [1, 1, 1]} : vector<2x8x32xf32> to vector<2x8x8xf32>
    %17 = vector.extract_strided_slice %10 {offsets = [0, 0, 0], sizes = [2, 8, 8], strides = [1, 1, 1]} : vector<2x8x32xf32> to vector<2x8x8xf32>
    "tpu.trace_start"() <{level = 10 : i32, message = "bqd,bkd->bqk"}> : () -> ()
    %cst_6 = arith.constant dense<0.000000e+00> : vector<2x8x8xf32>
    %18 = tpu.matmul %15, %16, %cst_6 {dimension_numbers = #tpu.dot_dimension_numbers<[2], [2], [1], [1], [0, 0, 0, 1, 1, 1], [0], [0]>} : vector<2x8x8xf32>, vector<2x8x8xf32>, vector<2x8x8xf32> -> vector<2x8x8xf32>
    "tpu.trace_stop"() : () -> ()
    %cst_7 = arith.constant 0.176776692 : f32
    %19 = vector.broadcast %cst_7 : f32 to vector<2x8x8xf32>
    %20 = arith.mulf %18, %19 : vector<2x8x8xf32>
    %cst_8 = arith.constant dense<0xFF800000> : vector<2x8xf32>
    %21 = vector.multi_reduction <maximumf>, %20, %cst_8 [2] : vector<2x8x8xf32> to vector<2x8xf32>
    %22 = vector.shape_cast %21 : vector<2x8xf32> to vector<2x8x1xf32>
    %23 = vector.broadcast %22 : vector<2x8x1xf32> to vector<2x8x8xf32>
    %24 = arith.subf %20, %23 : vector<2x8x8xf32>
    %25 = math.exp %24 : vector<2x8x8xf32>
    %cst_9 = arith.constant dense<0.000000e+00> : vector<2x8xf32>
    %26 = vector.multi_reduction <add>, %25, %cst_9 [2] : vector<2x8x8xf32> to vector<2x8xf32>
    %27 = vector.shape_cast %26 : vector<2x8xf32> to vector<2x8x1xf32>
    %28 = vector.broadcast %27 : vector<2x8x1xf32> to vector<2x8x8xf32>
    %29 = arith.divf %25, %28 : vector<2x8x8xf32>
    "tpu.trace_start"() <{level = 10 : i32, message = "bqk,bkd->bqd"}> : () -> ()
    %cst_10 = arith.constant dense<0.000000e+00> : vector<2x8x8xf32>
    %30 = tpu.matmul %29, %17, %cst_10 {dimension_numbers = #tpu.dot_dimension_numbers<[2], [1], [1], [2], [0, 0, 0, 1, 1, 2], [0], [0]>} : vector<2x8x8xf32>, vector<2x8x8xf32>, vector<2x8x8xf32> -> vector<2x8x8xf32>
    "tpu.trace_stop"() : () -> ()
    %31 = arith.addf %15, %30 : vector<2x8x8xf32>
    %32 = vector.extract_strided_slice %14 {offsets = [0, 0, 8], sizes = [2, 8, 8], strides = [1, 1, 1]} : vector<2x8x32xf32> to vector<2x8x8xf32>
    %33 = vector.extract_strided_slice %8 {offsets = [0, 0, 8], sizes = [2, 8, 8], strides = [1, 1, 1]} : vector<2x8x32xf32> to vector<2x8x8xf32>
    %34 = vector.extract_strided_slice %10 {offsets = [0, 0, 8], sizes = [2, 8, 8], strides = [1, 1, 1]} : vector<2x8x32xf32> to vector<2x8x8xf32>
    "tpu.trace_start"() <{level = 10 : i32, message = "bqd,bkd->bqk"}> : () -> ()
    %cst_11 = arith.constant dense<0.000000e+00> : vector<2x8x8xf32>
    %35 = tpu.matmul %32, %33, %cst_11 {dimension_numbers = #tpu.dot_dimension_numbers<[2], [2], [1], [1], [0, 0, 0, 1, 1, 1], [0], [0]>} : vector<2x8x8xf32>, vector<2x8x8xf32>, vector<2x8x8xf32> -> vector<2x8x8xf32>
    "tpu.trace_stop"() : () -> ()
    %cst_12 = arith.constant 0.176776692 : f32
    %36 = vector.broadcast %cst_12 : f32 to vector<2x8x8xf32>
    %37 = arith.mulf %35, %36 : vector<2x8x8xf32>
    %cst_13 = arith.constant dense<0xFF800000> : vector<2x8xf32>
    %38 = vector.multi_reduction <maximumf>, %37, %cst_13 [2] : vector<2x8x8xf32> to vector<2x8xf32>
    %39 = vector.shape_cast %38 : vector<2x8xf32> to vector<2x8x1xf32>
    %40 = vector.broadcast %39 : vector<2x8x1xf32> to vector<2x8x8xf32>
    %41 = arith.subf %37, %40 : vector<2x8x8xf32>
    %42 = math.exp %41 : vector<2x8x8xf32>
    %cst_14 = arith.constant dense<0.000000e+00> : vector<2x8xf32>
    %43 = vector.multi_reduction <add>, %42, %cst_14 [2] : vector<2x8x8xf32> to vector<2x8xf32>
    %44 = vector.shape_cast %43 : vector<2x8xf32> to vector<2x8x1xf32>
    %45 = vector.broadcast %44 : vector<2x8x1xf32> to vector<2x8x8xf32>
    %46 = arith.divf %42, %45 : vector<2x8x8xf32>
    "tpu.trace_start"() <{level = 10 : i32, message = "bqk,bkd->bqd"}> : () -> ()
    %cst_15 = arith.constant dense<0.000000e+00> : vector<2x8x8xf32>
    %47 = tpu.matmul %46, %34, %cst_15 {dimension_numbers = #tpu.dot_dimension_numbers<[2], [1], [1], [2], [0, 0, 0, 1, 1, 2], [0], [0]>} : vector<2x8x8xf32>, vector<2x8x8xf32>, vector<2x8x8xf32> -> vector<2x8x8xf32>
    "tpu.trace_stop"() : () -> ()
    %48 = arith.addf %32, %47 : vector<2x8x8xf32>
    %49 = vector.extract_strided_slice %14 {offsets = [0, 0, 16], sizes = [2, 8, 8], strides = [1, 1, 1]} : vector<2x8x32xf32> to vector<2x8x8xf32>
    %50 = vector.extract_strided_slice %8 {offsets = [0, 0, 16], sizes = [2, 8, 8], strides = [1, 1, 1]} : vector<2x8x32xf32> to vector<2x8x8xf32>
    %51 = vector.extract_strided_slice %10 {offsets = [0, 0, 16], sizes = [2, 8, 8], strides = [1, 1, 1]} : vector<2x8x32xf32> to vector<2x8x8xf32>
    "tpu.trace_start"() <{level = 10 : i32, message = "bqd,bkd->bqk"}> : () -> ()
    %cst_16 = arith.constant dense<0.000000e+00> : vector<2x8x8xf32>
    %52 = tpu.matmul %49, %50, %cst_16 {dimension_numbers = #tpu.dot_dimension_numbers<[2], [2], [1], [1], [0, 0, 0, 1, 1, 1], [0], [0]>} : vector<2x8x8xf32>, vector<2x8x8xf32>, vector<2x8x8xf32> -> vector<2x8x8xf32>
    "tpu.trace_stop"() : () -> ()
    %cst_17 = arith.constant 0.176776692 : f32
    %53 = vector.broadcast %cst_17 : f32 to vector<2x8x8xf32>
    %54 = arith.mulf %52, %53 : vector<2x8x8xf32>
    %cst_18 = arith.constant dense<0xFF800000> : vector<2x8xf32>
    %55 = vector.multi_reduction <maximumf>, %54, %cst_18 [2] : vector<2x8x8xf32> to vector<2x8xf32>
    %56 = vector.shape_cast %55 : vector<2x8xf32> to vector<2x8x1xf32>
    %57 = vector.broadcast %56 : vector<2x8x1xf32> to vector<2x8x8xf32>
    %58 = arith.subf %54, %57 : vector<2x8x8xf32>
    %59 = math.exp %58 : vector<2x8x8xf32>
    %cst_19 = arith.constant dense<0.000000e+00> : vector<2x8xf32>
    %60 = vector.multi_reduction <add>, %59, %cst_19 [2] : vector<2x8x8xf32> to vector<2x8xf32>
    %61 = vector.shape_cast %60 : vector<2x8xf32> to vector<2x8x1xf32>
    %62 = vector.broadcast %61 : vector<2x8x1xf32> to vector<2x8x8xf32>
    %63 = arith.divf %59, %62 : vector<2x8x8xf32>
    "tpu.trace_start"() <{level = 10 : i32, message = "bqk,bkd->bqd"}> : () -> ()
    %cst_20 = arith.constant dense<0.000000e+00> : vector<2x8x8xf32>
    %64 = tpu.matmul %63, %51, %cst_20 {dimension_numbers = #tpu.dot_dimension_numbers<[2], [1], [1], [2], [0, 0, 0, 1, 1, 2], [0], [0]>} : vector<2x8x8xf32>, vector<2x8x8xf32>, vector<2x8x8xf32> -> vector<2x8x8xf32>
    "tpu.trace_stop"() : () -> ()
    %65 = arith.addf %49, %64 : vector<2x8x8xf32>
    %66 = vector.extract_strided_slice %14 {offsets = [0, 0, 24], sizes = [2, 8, 8], strides = [1, 1, 1]} : vector<2x8x32xf32> to vector<2x8x8xf32>
    %67 = vector.extract_strided_slice %8 {offsets = [0, 0, 24], sizes = [2, 8, 8], strides = [1, 1, 1]} : vector<2x8x32xf32> to vector<2x8x8xf32>
    %68 = vector.extract_strided_slice %10 {offsets = [0, 0, 24], sizes = [2, 8, 8], strides = [1, 1, 1]} : vector<2x8x32xf32> to vector<2x8x8xf32>
    "tpu.trace_start"() <{level = 10 : i32, message = "bqd,bkd->bqk"}> : () -> ()
    %cst_21 = arith.constant dense<0.000000e+00> : vector<2x8x8xf32>
    %69 = tpu.matmul %66, %67, %cst_21 {dimension_numbers = #tpu.dot_dimension_numbers<[2], [2], [1], [1], [0, 0, 0, 1, 1, 1], [0], [0]>} : vector<2x8x8xf32>, vector<2x8x8xf32>, vector<2x8x8xf32> -> vector<2x8x8xf32>
    "tpu.trace_stop"() : () -> ()
    %cst_22 = arith.constant 0.176776692 : f32
    %70 = vector.broadcast %cst_22 : f32 to vector<2x8x8xf32>
    %71 = arith.mulf %69, %70 : vector<2x8x8xf32>
    %cst_23 = arith.constant dense<0xFF800000> : vector<2x8xf32>
    %72 = vector.multi_reduction <maximumf>, %71, %cst_23 [2] : vector<2x8x8xf32> to vector<2x8xf32>
    %73 = vector.shape_cast %72 : vector<2x8xf32> to vector<2x8x1xf32>
    %74 = vector.broadcast %73 : vector<2x8x1xf32> to vector<2x8x8xf32>
    %75 = arith.subf %71, %74 : vector<2x8x8xf32>
    %76 = math.exp %75 : vector<2x8x8xf32>
    %cst_24 = arith.constant dense<0.000000e+00> : vector<2x8xf32>
    %77 = vector.multi_reduction <add>, %76, %cst_24 [2] : vector<2x8x8xf32> to vector<2x8xf32>
    %78 = vector.shape_cast %77 : vector<2x8xf32> to vector<2x8x1xf32>
    %79 = vector.broadcast %78 : vector<2x8x1xf32> to vector<2x8x8xf32>
    %80 = arith.divf %76, %79 : vector<2x8x8xf32>
    "tpu.trace_start"() <{level = 10 : i32, message = "bqk,bkd->bqd"}> : () -> ()
    %cst_25 = arith.constant dense<0.000000e+00> : vector<2x8x8xf32>
    %81 = tpu.matmul %80, %68, %cst_25 {dimension_numbers = #tpu.dot_dimension_numbers<[2], [1], [1], [2], [0, 0, 0, 1, 1, 2], [0], [0]>} : vector<2x8x8xf32>, vector<2x8x8xf32>, vector<2x8x8xf32> -> vector<2x8x8xf32>
    "tpu.trace_stop"() : () -> ()
    %82 = arith.addf %66, %81 : vector<2x8x8xf32>
    %83 = tpu.concatenate %31, %48, %65, %82 in 2 : vector<2x8x8xf32>, vector<2x8x8xf32>, vector<2x8x8xf32>, vector<2x8x8xf32> -> vector<2x8x32xf32>
    %84 = vector.shape_cast %83 : vector<2x8x32xf32> to vector<16x32xf32>
    %c112 = arith.constant 112 : index
    %c0_26 = arith.constant 0 : index
    %85 = vector.load %arg1[%c112, %c0_26] : memref<1032x128xf32, #tpu.memory_space<vmem>>, vector<32x32xf32>
    %cst_27 = arith.constant dense<0.000000e+00> : vector<16x32xf32>
    %86 = tpu.matmul %84, %85, %cst_27 {dimension_numbers = #tpu.dot_dimension_numbers<[1], [0], [0], [1], [0, 0, 1, 1], [], []>} : vector<16x32xf32>, vector<32x32xf32>, vector<16x32xf32> -> vector<16x32xf32>
    %c144 = arith.constant 144 : index
    %c0_28 = arith.constant 0 : index
    %87 = vector.load %arg1[%c144, %c0_28] : memref<1032x128xf32, #tpu.memory_space<vmem>>, vector<1x32xf32>
    %88 = vector.broadcast %87 : vector<1x32xf32> to vector<16x32xf32>
    %89 = arith.addf %86, %88 : vector<16x32xf32>
    %cst_29 = arith.constant 0.000000e+00 : f32
    %90 = vector.broadcast %cst_29 : f32 to vector<16x32xf32>
    %91 = arith.maximumf %89, %90 : vector<16x32xf32>
    %92 = arith.addf %84, %91 : vector<16x32xf32>
    %93 = vector.shape_cast %92 : vector<16x32xf32> to vector<2x8x32xf32>
    %94 = vector.shape_cast %93 : vector<2x8x32xf32> to vector<16x32xf32>
    %c24 = arith.constant 24 : index
    %c0_30 = arith.constant 0 : index
    %95 = vector.load %arg1[%c24, %c0_30] : memref<1032x128xf32, #tpu.memory_space<vmem>>, vector<16x32xf32>
    %cst_31 = arith.constant dense<0.000000e+00> : vector<16x32xf32>
    %96 = tpu.matmul %1, %95, %cst_31 {dimension_numbers = #tpu.dot_dimension_numbers<[1], [0], [0], [1], [0, 0, 1, 1], [], []>} : vector<16x16xf32>, vector<16x32xf32>, vector<16x32xf32> -> vector<16x32xf32>
    %c40 = arith.constant 40 : index
    %c0_32 = arith.constant 0 : index
    %97 = vector.load %arg1[%c40, %c0_32] : memref<1032x128xf32, #tpu.memory_space<vmem>>, vector<1x32xf32>
    %98 = vector.broadcast %97 : vector<1x32xf32> to vector<16x32xf32>
    %99 = arith.addf %96, %98 : vector<16x32xf32>
    %c152 = arith.constant 152 : index
    %c0_33 = arith.constant 0 : index
    %100 = vector.load %arg1[%c152, %c0_33] : memref<1032x128xf32, #tpu.memory_space<vmem>>, vector<32x64xf32>
    %cst_34 = arith.constant dense<0.000000e+00> : vector<16x64xf32>
    %101 = tpu.matmul %94, %100, %cst_34 {dimension_numbers = #tpu.dot_dimension_numbers<[1], [0], [0], [1], [0, 0, 1, 1], [], []>} : vector<16x32xf32>, vector<32x64xf32>, vector<16x64xf32> -> vector<16x64xf32>
    %c184 = arith.constant 184 : index
    %c0_35 = arith.constant 0 : index
    %102 = vector.load %arg1[%c184, %c0_35] : memref<1032x128xf32, #tpu.memory_space<vmem>>, vector<1x64xf32>
    %103 = vector.broadcast %102 : vector<1x64xf32> to vector<16x64xf32>
    %104 = arith.addf %101, %103 : vector<16x64xf32>
    %105 = vector.extract_strided_slice %104 {offsets = [0, 0], sizes = [16, 32], strides = [1, 1]} : vector<16x64xf32> to vector<16x32xf32>
    %106 = vector.shape_cast %105 : vector<16x32xf32> to vector<2x8x32xf32>
    %107 = vector.extract_strided_slice %104 {offsets = [0, 32], sizes = [16, 32], strides = [1, 1]} : vector<16x64xf32> to vector<16x32xf32>
    %108 = vector.shape_cast %107 : vector<16x32xf32> to vector<2x8x32xf32>
    %109 = vector.shape_cast %99 : vector<16x32xf32> to vector<2x8x32xf32>
    %110 = vector.extract_strided_slice %109 {offsets = [0, 0, 0], sizes = [2, 8, 8], strides = [1, 1, 1]} : vector<2x8x32xf32> to vector<2x8x8xf32>
    %111 = vector.extract_strided_slice %106 {offsets = [0, 0, 0], sizes = [2, 8, 8], strides = [1, 1, 1]} : vector<2x8x32xf32> to vector<2x8x8xf32>
    %112 = vector.extract_strided_slice %108 {offsets = [0, 0, 0], sizes = [2, 8, 8], strides = [1, 1, 1]} : vector<2x8x32xf32> to vector<2x8x8xf32>
    "tpu.trace_start"() <{level = 10 : i32, message = "bqd,bkd->bqk"}> : () -> ()
    %cst_36 = arith.constant dense<0.000000e+00> : vector<2x8x8xf32>
    %113 = tpu.matmul %110, %111, %cst_36 {dimension_numbers = #tpu.dot_dimension_numbers<[2], [2], [1], [1], [0, 0, 0, 1, 1, 1], [0], [0]>} : vector<2x8x8xf32>, vector<2x8x8xf32>, vector<2x8x8xf32> -> vector<2x8x8xf32>
    "tpu.trace_stop"() : () -> ()
    %cst_37 = arith.constant 0.176776692 : f32
    %114 = vector.broadcast %cst_37 : f32 to vector<2x8x8xf32>
    %115 = arith.mulf %113, %114 : vector<2x8x8xf32>
    %cst_38 = arith.constant dense<0xFF800000> : vector<2x8xf32>
    %116 = vector.multi_reduction <maximumf>, %115, %cst_38 [2] : vector<2x8x8xf32> to vector<2x8xf32>
    %117 = vector.shape_cast %116 : vector<2x8xf32> to vector<2x8x1xf32>
    %118 = vector.broadcast %117 : vector<2x8x1xf32> to vector<2x8x8xf32>
    %119 = arith.subf %115, %118 : vector<2x8x8xf32>
    %120 = math.exp %119 : vector<2x8x8xf32>
    %cst_39 = arith.constant dense<0.000000e+00> : vector<2x8xf32>
    %121 = vector.multi_reduction <add>, %120, %cst_39 [2] : vector<2x8x8xf32> to vector<2x8xf32>
    %122 = vector.shape_cast %121 : vector<2x8xf32> to vector<2x8x1xf32>
    %123 = vector.broadcast %122 : vector<2x8x1xf32> to vector<2x8x8xf32>
    %124 = arith.divf %120, %123 : vector<2x8x8xf32>
    "tpu.trace_start"() <{level = 10 : i32, message = "bqk,bkd->bqd"}> : () -> ()
    %cst_40 = arith.constant dense<0.000000e+00> : vector<2x8x8xf32>
    %125 = tpu.matmul %124, %112, %cst_40 {dimension_numbers = #tpu.dot_dimension_numbers<[2], [1], [1], [2], [0, 0, 0, 1, 1, 2], [0], [0]>} : vector<2x8x8xf32>, vector<2x8x8xf32>, vector<2x8x8xf32> -> vector<2x8x8xf32>
    "tpu.trace_stop"() : () -> ()
    %126 = arith.addf %110, %125 : vector<2x8x8xf32>
    %127 = vector.extract_strided_slice %109 {offsets = [0, 0, 8], sizes = [2, 8, 8], strides = [1, 1, 1]} : vector<2x8x32xf32> to vector<2x8x8xf32>
    %128 = vector.extract_strided_slice %106 {offsets = [0, 0, 8], sizes = [2, 8, 8], strides = [1, 1, 1]} : vector<2x8x32xf32> to vector<2x8x8xf32>
    %129 = vector.extract_strided_slice %108 {offsets = [0, 0, 8], sizes = [2, 8, 8], strides = [1, 1, 1]} : vector<2x8x32xf32> to vector<2x8x8xf32>
    "tpu.trace_start"() <{level = 10 : i32, message = "bqd,bkd->bqk"}> : () -> ()
    %cst_41 = arith.constant dense<0.000000e+00> : vector<2x8x8xf32>
    %130 = tpu.matmul %127, %128, %cst_41 {dimension_numbers = #tpu.dot_dimension_numbers<[2], [2], [1], [1], [0, 0, 0, 1, 1, 1], [0], [0]>} : vector<2x8x8xf32>, vector<2x8x8xf32>, vector<2x8x8xf32> -> vector<2x8x8xf32>
    "tpu.trace_stop"() : () -> ()
    %cst_42 = arith.constant 0.176776692 : f32
    %131 = vector.broadcast %cst_42 : f32 to vector<2x8x8xf32>
    %132 = arith.mulf %130, %131 : vector<2x8x8xf32>
    %cst_43 = arith.constant dense<0xFF800000> : vector<2x8xf32>
    %133 = vector.multi_reduction <maximumf>, %132, %cst_43 [2] : vector<2x8x8xf32> to vector<2x8xf32>
    %134 = vector.shape_cast %133 : vector<2x8xf32> to vector<2x8x1xf32>
    %135 = vector.broadcast %134 : vector<2x8x1xf32> to vector<2x8x8xf32>
    %136 = arith.subf %132, %135 : vector<2x8x8xf32>
    %137 = math.exp %136 : vector<2x8x8xf32>
    %cst_44 = arith.constant dense<0.000000e+00> : vector<2x8xf32>
    %138 = vector.multi_reduction <add>, %137, %cst_44 [2] : vector<2x8x8xf32> to vector<2x8xf32>
    %139 = vector.shape_cast %138 : vector<2x8xf32> to vector<2x8x1xf32>
    %140 = vector.broadcast %139 : vector<2x8x1xf32> to vector<2x8x8xf32>
    %141 = arith.divf %137, %140 : vector<2x8x8xf32>
    "tpu.trace_start"() <{level = 10 : i32, message = "bqk,bkd->bqd"}> : () -> ()
    %cst_45 = arith.constant dense<0.000000e+00> : vector<2x8x8xf32>
    %142 = tpu.matmul %141, %129, %cst_45 {dimension_numbers = #tpu.dot_dimension_numbers<[2], [1], [1], [2], [0, 0, 0, 1, 1, 2], [0], [0]>} : vector<2x8x8xf32>, vector<2x8x8xf32>, vector<2x8x8xf32> -> vector<2x8x8xf32>
    "tpu.trace_stop"() : () -> ()
    %143 = arith.addf %127, %142 : vector<2x8x8xf32>
    %144 = vector.extract_strided_slice %109 {offsets = [0, 0, 16], sizes = [2, 8, 8], strides = [1, 1, 1]} : vector<2x8x32xf32> to vector<2x8x8xf32>
    %145 = vector.extract_strided_slice %106 {offsets = [0, 0, 16], sizes = [2, 8, 8], strides = [1, 1, 1]} : vector<2x8x32xf32> to vector<2x8x8xf32>
    %146 = vector.extract_strided_slice %108 {offsets = [0, 0, 16], sizes = [2, 8, 8], strides = [1, 1, 1]} : vector<2x8x32xf32> to vector<2x8x8xf32>
    "tpu.trace_start"() <{level = 10 : i32, message = "bqd,bkd->bqk"}> : () -> ()
    %cst_46 = arith.constant dense<0.000000e+00> : vector<2x8x8xf32>
    %147 = tpu.matmul %144, %145, %cst_46 {dimension_numbers = #tpu.dot_dimension_numbers<[2], [2], [1], [1], [0, 0, 0, 1, 1, 1], [0], [0]>} : vector<2x8x8xf32>, vector<2x8x8xf32>, vector<2x8x8xf32> -> vector<2x8x8xf32>
    "tpu.trace_stop"() : () -> ()
    %cst_47 = arith.constant 0.176776692 : f32
    %148 = vector.broadcast %cst_47 : f32 to vector<2x8x8xf32>
    %149 = arith.mulf %147, %148 : vector<2x8x8xf32>
    %cst_48 = arith.constant dense<0xFF800000> : vector<2x8xf32>
    %150 = vector.multi_reduction <maximumf>, %149, %cst_48 [2] : vector<2x8x8xf32> to vector<2x8xf32>
    %151 = vector.shape_cast %150 : vector<2x8xf32> to vector<2x8x1xf32>
    %152 = vector.broadcast %151 : vector<2x8x1xf32> to vector<2x8x8xf32>
    %153 = arith.subf %149, %152 : vector<2x8x8xf32>
    %154 = math.exp %153 : vector<2x8x8xf32>
    %cst_49 = arith.constant dense<0.000000e+00> : vector<2x8xf32>
    %155 = vector.multi_reduction <add>, %154, %cst_49 [2] : vector<2x8x8xf32> to vector<2x8xf32>
    %156 = vector.shape_cast %155 : vector<2x8xf32> to vector<2x8x1xf32>
    %157 = vector.broadcast %156 : vector<2x8x1xf32> to vector<2x8x8xf32>
    %158 = arith.divf %154, %157 : vector<2x8x8xf32>
    "tpu.trace_start"() <{level = 10 : i32, message = "bqk,bkd->bqd"}> : () -> ()
    %cst_50 = arith.constant dense<0.000000e+00> : vector<2x8x8xf32>
    %159 = tpu.matmul %158, %146, %cst_50 {dimension_numbers = #tpu.dot_dimension_numbers<[2], [1], [1], [2], [0, 0, 0, 1, 1, 2], [0], [0]>} : vector<2x8x8xf32>, vector<2x8x8xf32>, vector<2x8x8xf32> -> vector<2x8x8xf32>
    "tpu.trace_stop"() : () -> ()
    %160 = arith.addf %144, %159 : vector<2x8x8xf32>
    %161 = vector.extract_strided_slice %109 {offsets = [0, 0, 24], sizes = [2, 8, 8], strides = [1, 1, 1]} : vector<2x8x32xf32> to vector<2x8x8xf32>
    %162 = vector.extract_strided_slice %106 {offsets = [0, 0, 24], sizes = [2, 8, 8], strides = [1, 1, 1]} : vector<2x8x32xf32> to vector<2x8x8xf32>
    %163 = vector.extract_strided_slice %108 {offsets = [0, 0, 24], sizes = [2, 8, 8], strides = [1, 1, 1]} : vector<2x8x32xf32> to vector<2x8x8xf32>
    "tpu.trace_start"() <{level = 10 : i32, message = "bqd,bkd->bqk"}> : () -> ()
    %cst_51 = arith.constant dense<0.000000e+00> : vector<2x8x8xf32>
    %164 = tpu.matmul %161, %162, %cst_51 {dimension_numbers = #tpu.dot_dimension_numbers<[2], [2], [1], [1], [0, 0, 0, 1, 1, 1], [0], [0]>} : vector<2x8x8xf32>, vector<2x8x8xf32>, vector<2x8x8xf32> -> vector<2x8x8xf32>
    "tpu.trace_stop"() : () -> ()
    %cst_52 = arith.constant 0.176776692 : f32
    %165 = vector.broadcast %cst_52 : f32 to vector<2x8x8xf32>
    %166 = arith.mulf %164, %165 : vector<2x8x8xf32>
    %cst_53 = arith.constant dense<0xFF800000> : vector<2x8xf32>
    %167 = vector.multi_reduction <maximumf>, %166, %cst_53 [2] : vector<2x8x8xf32> to vector<2x8xf32>
    %168 = vector.shape_cast %167 : vector<2x8xf32> to vector<2x8x1xf32>
    %169 = vector.broadcast %168 : vector<2x8x1xf32> to vector<2x8x8xf32>
    %170 = arith.subf %166, %169 : vector<2x8x8xf32>
    %171 = math.exp %170 : vector<2x8x8xf32>
    %cst_54 = arith.constant dense<0.000000e+00> : vector<2x8xf32>
    %172 = vector.multi_reduction <add>, %171, %cst_54 [2] : vector<2x8x8xf32> to vector<2x8xf32>
    %173 = vector.shape_cast %172 : vector<2x8xf32> to vector<2x8x1xf32>
    %174 = vector.broadcast %173 : vector<2x8x1xf32> to vector<2x8x8xf32>
    %175 = arith.divf %171, %174 : vector<2x8x8xf32>
    "tpu.trace_start"() <{level = 10 : i32, message = "bqk,bkd->bqd"}> : () -> ()
    %cst_55 = arith.constant dense<0.000000e+00> : vector<2x8x8xf32>
    %176 = tpu.matmul %175, %163, %cst_55 {dimension_numbers = #tpu.dot_dimension_numbers<[2], [1], [1], [2], [0, 0, 0, 1, 1, 2], [0], [0]>} : vector<2x8x8xf32>, vector<2x8x8xf32>, vector<2x8x8xf32> -> vector<2x8x8xf32>
    "tpu.trace_stop"() : () -> ()
    %177 = arith.addf %161, %176 : vector<2x8x8xf32>
    %178 = tpu.concatenate %126, %143, %160, %177 in 2 : vector<2x8x8xf32>, vector<2x8x8xf32>, vector<2x8x8xf32>, vector<2x8x8xf32> -> vector<2x8x32xf32>
    %179 = vector.shape_cast %178 : vector<2x8x32xf32> to vector<16x32xf32>
    %c192 = arith.constant 192 : index
    %c0_56 = arith.constant 0 : index
    %180 = vector.load %arg1[%c192, %c0_56] : memref<1032x128xf32, #tpu.memory_space<vmem>>, vector<32x32xf32>
    %cst_57 = arith.constant dense<0.000000e+00> : vector<16x32xf32>
    %181 = tpu.matmul %179, %180, %cst_57 {dimension_numbers = #tpu.dot_dimension_numbers<[1], [0], [0], [1], [0, 0, 1, 1], [], []>} : vector<16x32xf32>, vector<32x32xf32>, vector<16x32xf32> -> vector<16x32xf32>
    %c224 = arith.constant 224 : index
    %c0_58 = arith.constant 0 : index
    %182 = vector.load %arg1[%c224, %c0_58] : memref<1032x128xf32, #tpu.memory_space<vmem>>, vector<1x32xf32>
    %183 = vector.broadcast %182 : vector<1x32xf32> to vector<16x32xf32>
    %184 = arith.addf %181, %183 : vector<16x32xf32>
    %cst_59 = arith.constant 0.000000e+00 : f32
    %185 = vector.broadcast %cst_59 : f32 to vector<16x32xf32>
    %186 = arith.maximumf %184, %185 : vector<16x32xf32>
    %187 = arith.addf %179, %186 : vector<16x32xf32>
    %188 = vector.shape_cast %187 : vector<16x32xf32> to vector<2x8x32xf32>
    %189 = vector.shape_cast %188 : vector<2x8x32xf32> to vector<16x32xf32>
    %c232 = arith.constant 232 : index
    %c0_60 = arith.constant 0 : index
    %190 = vector.load %arg1[%c232, %c0_60] : memref<1032x128xf32, #tpu.memory_space<vmem>>, vector<32x64xf32>
    %cst_61 = arith.constant dense<0.000000e+00> : vector<16x64xf32>
    %191 = tpu.matmul %189, %190, %cst_61 {dimension_numbers = #tpu.dot_dimension_numbers<[1], [0], [0], [1], [0, 0, 1, 1], [], []>} : vector<16x32xf32>, vector<32x64xf32>, vector<16x64xf32> -> vector<16x64xf32>
    %c264 = arith.constant 264 : index
    %c0_62 = arith.constant 0 : index
    %192 = vector.load %arg1[%c264, %c0_62] : memref<1032x128xf32, #tpu.memory_space<vmem>>, vector<1x64xf32>
    %193 = vector.broadcast %192 : vector<1x64xf32> to vector<16x64xf32>
    %194 = arith.addf %191, %193 : vector<16x64xf32>
    %195 = vector.extract_strided_slice %194 {offsets = [0, 0], sizes = [16, 32], strides = [1, 1]} : vector<16x64xf32> to vector<16x32xf32>
    %196 = vector.shape_cast %195 : vector<16x32xf32> to vector<2x8x32xf32>
    %197 = vector.extract_strided_slice %194 {offsets = [0, 32], sizes = [16, 32], strides = [1, 1]} : vector<16x64xf32> to vector<16x32xf32>
    %198 = vector.shape_cast %197 : vector<16x32xf32> to vector<2x8x32xf32>
    %c8 = arith.constant 8 : index
    %c0_63 = arith.constant 0 : index
    %199 = vector.load %arg1[%c8, %c0_63] : memref<1032x128xf32, #tpu.memory_space<vmem>>, vector<8x32xf32>
    %200 = vector.shape_cast %199 : vector<8x32xf32> to vector<1x8x32xf32>
    %201 = vector.shape_cast %200 : vector<1x8x32xf32> to vector<1x8x32xf32>
    %202 = vector.broadcast %201 : vector<1x8x32xf32> to vector<2x8x32xf32>
    %203 = vector.extract_strided_slice %202 {offsets = [0, 0, 0], sizes = [2, 8, 8], strides = [1, 1, 1]} : vector<2x8x32xf32> to vector<2x8x8xf32>
    %204 = vector.extract_strided_slice %196 {offsets = [0, 0, 0], sizes = [2, 8, 8], strides = [1, 1, 1]} : vector<2x8x32xf32> to vector<2x8x8xf32>
    %205 = vector.extract_strided_slice %198 {offsets = [0, 0, 0], sizes = [2, 8, 8], strides = [1, 1, 1]} : vector<2x8x32xf32> to vector<2x8x8xf32>
    "tpu.trace_start"() <{level = 10 : i32, message = "bqd,bkd->bqk"}> : () -> ()
    %cst_64 = arith.constant dense<0.000000e+00> : vector<2x8x8xf32>
    %206 = tpu.matmul %203, %204, %cst_64 {dimension_numbers = #tpu.dot_dimension_numbers<[2], [2], [1], [1], [0, 0, 0, 1, 1, 1], [0], [0]>} : vector<2x8x8xf32>, vector<2x8x8xf32>, vector<2x8x8xf32> -> vector<2x8x8xf32>
    "tpu.trace_stop"() : () -> ()
    %cst_65 = arith.constant 0.176776692 : f32
    %207 = vector.broadcast %cst_65 : f32 to vector<2x8x8xf32>
    %208 = arith.mulf %206, %207 : vector<2x8x8xf32>
    %cst_66 = arith.constant dense<0xFF800000> : vector<2x8xf32>
    %209 = vector.multi_reduction <maximumf>, %208, %cst_66 [2] : vector<2x8x8xf32> to vector<2x8xf32>
    %210 = vector.shape_cast %209 : vector<2x8xf32> to vector<2x8x1xf32>
    %211 = vector.broadcast %210 : vector<2x8x1xf32> to vector<2x8x8xf32>
    %212 = arith.subf %208, %211 : vector<2x8x8xf32>
    %213 = math.exp %212 : vector<2x8x8xf32>
    %cst_67 = arith.constant dense<0.000000e+00> : vector<2x8xf32>
    %214 = vector.multi_reduction <add>, %213, %cst_67 [2] : vector<2x8x8xf32> to vector<2x8xf32>
    %215 = vector.shape_cast %214 : vector<2x8xf32> to vector<2x8x1xf32>
    %216 = vector.broadcast %215 : vector<2x8x1xf32> to vector<2x8x8xf32>
    %217 = arith.divf %213, %216 : vector<2x8x8xf32>
    "tpu.trace_start"() <{level = 10 : i32, message = "bqk,bkd->bqd"}> : () -> ()
    %cst_68 = arith.constant dense<0.000000e+00> : vector<2x8x8xf32>
    %218 = tpu.matmul %217, %205, %cst_68 {dimension_numbers = #tpu.dot_dimension_numbers<[2], [1], [1], [2], [0, 0, 0, 1, 1, 2], [0], [0]>} : vector<2x8x8xf32>, vector<2x8x8xf32>, vector<2x8x8xf32> -> vector<2x8x8xf32>
    "tpu.trace_stop"() : () -> ()
    %219 = arith.addf %203, %218 : vector<2x8x8xf32>
    %220 = vector.extract_strided_slice %202 {offsets = [0, 0, 8], sizes = [2, 8, 8], strides = [1, 1, 1]} : vector<2x8x32xf32> to vector<2x8x8xf32>
    %221 = vector.extract_strided_slice %196 {offsets = [0, 0, 8], sizes = [2, 8, 8], strides = [1, 1, 1]} : vector<2x8x32xf32> to vector<2x8x8xf32>
    %222 = vector.extract_strided_slice %198 {offsets = [0, 0, 8], sizes = [2, 8, 8], strides = [1, 1, 1]} : vector<2x8x32xf32> to vector<2x8x8xf32>
    "tpu.trace_start"() <{level = 10 : i32, message = "bqd,bkd->bqk"}> : () -> ()
    %cst_69 = arith.constant dense<0.000000e+00> : vector<2x8x8xf32>
    %223 = tpu.matmul %220, %221, %cst_69 {dimension_numbers = #tpu.dot_dimension_numbers<[2], [2], [1], [1], [0, 0, 0, 1, 1, 1], [0], [0]>} : vector<2x8x8xf32>, vector<2x8x8xf32>, vector<2x8x8xf32> -> vector<2x8x8xf32>
    "tpu.trace_stop"() : () -> ()
    %cst_70 = arith.constant 0.176776692 : f32
    %224 = vector.broadcast %cst_70 : f32 to vector<2x8x8xf32>
    %225 = arith.mulf %223, %224 : vector<2x8x8xf32>
    %cst_71 = arith.constant dense<0xFF800000> : vector<2x8xf32>
    %226 = vector.multi_reduction <maximumf>, %225, %cst_71 [2] : vector<2x8x8xf32> to vector<2x8xf32>
    %227 = vector.shape_cast %226 : vector<2x8xf32> to vector<2x8x1xf32>
    %228 = vector.broadcast %227 : vector<2x8x1xf32> to vector<2x8x8xf32>
    %229 = arith.subf %225, %228 : vector<2x8x8xf32>
    %230 = math.exp %229 : vector<2x8x8xf32>
    %cst_72 = arith.constant dense<0.000000e+00> : vector<2x8xf32>
    %231 = vector.multi_reduction <add>, %230, %cst_72 [2] : vector<2x8x8xf32> to vector<2x8xf32>
    %232 = vector.shape_cast %231 : vector<2x8xf32> to vector<2x8x1xf32>
    %233 = vector.broadcast %232 : vector<2x8x1xf32> to vector<2x8x8xf32>
    %234 = arith.divf %230, %233 : vector<2x8x8xf32>
    "tpu.trace_start"() <{level = 10 : i32, message = "bqk,bkd->bqd"}> : () -> ()
    %cst_73 = arith.constant dense<0.000000e+00> : vector<2x8x8xf32>
    %235 = tpu.matmul %234, %222, %cst_73 {dimension_numbers = #tpu.dot_dimension_numbers<[2], [1], [1], [2], [0, 0, 0, 1, 1, 2], [0], [0]>} : vector<2x8x8xf32>, vector<2x8x8xf32>, vector<2x8x8xf32> -> vector<2x8x8xf32>
    "tpu.trace_stop"() : () -> ()
    %236 = arith.addf %220, %235 : vector<2x8x8xf32>
    %237 = vector.extract_strided_slice %202 {offsets = [0, 0, 16], sizes = [2, 8, 8], strides = [1, 1, 1]} : vector<2x8x32xf32> to vector<2x8x8xf32>
    %238 = vector.extract_strided_slice %196 {offsets = [0, 0, 16], sizes = [2, 8, 8], strides = [1, 1, 1]} : vector<2x8x32xf32> to vector<2x8x8xf32>
    %239 = vector.extract_strided_slice %198 {offsets = [0, 0, 16], sizes = [2, 8, 8], strides = [1, 1, 1]} : vector<2x8x32xf32> to vector<2x8x8xf32>
    "tpu.trace_start"() <{level = 10 : i32, message = "bqd,bkd->bqk"}> : () -> ()
    %cst_74 = arith.constant dense<0.000000e+00> : vector<2x8x8xf32>
    %240 = tpu.matmul %237, %238, %cst_74 {dimension_numbers = #tpu.dot_dimension_numbers<[2], [2], [1], [1], [0, 0, 0, 1, 1, 1], [0], [0]>} : vector<2x8x8xf32>, vector<2x8x8xf32>, vector<2x8x8xf32> -> vector<2x8x8xf32>
    "tpu.trace_stop"() : () -> ()
    %cst_75 = arith.constant 0.176776692 : f32
    %241 = vector.broadcast %cst_75 : f32 to vector<2x8x8xf32>
    %242 = arith.mulf %240, %241 : vector<2x8x8xf32>
    %cst_76 = arith.constant dense<0xFF800000> : vector<2x8xf32>
    %243 = vector.multi_reduction <maximumf>, %242, %cst_76 [2] : vector<2x8x8xf32> to vector<2x8xf32>
    %244 = vector.shape_cast %243 : vector<2x8xf32> to vector<2x8x1xf32>
    %245 = vector.broadcast %244 : vector<2x8x1xf32> to vector<2x8x8xf32>
    %246 = arith.subf %242, %245 : vector<2x8x8xf32>
    %247 = math.exp %246 : vector<2x8x8xf32>
    %cst_77 = arith.constant dense<0.000000e+00> : vector<2x8xf32>
    %248 = vector.multi_reduction <add>, %247, %cst_77 [2] : vector<2x8x8xf32> to vector<2x8xf32>
    %249 = vector.shape_cast %248 : vector<2x8xf32> to vector<2x8x1xf32>
    %250 = vector.broadcast %249 : vector<2x8x1xf32> to vector<2x8x8xf32>
    %251 = arith.divf %247, %250 : vector<2x8x8xf32>
    "tpu.trace_start"() <{level = 10 : i32, message = "bqk,bkd->bqd"}> : () -> ()
    %cst_78 = arith.constant dense<0.000000e+00> : vector<2x8x8xf32>
    %252 = tpu.matmul %251, %239, %cst_78 {dimension_numbers = #tpu.dot_dimension_numbers<[2], [1], [1], [2], [0, 0, 0, 1, 1, 2], [0], [0]>} : vector<2x8x8xf32>, vector<2x8x8xf32>, vector<2x8x8xf32> -> vector<2x8x8xf32>
    "tpu.trace_stop"() : () -> ()
    %253 = arith.addf %237, %252 : vector<2x8x8xf32>
    %254 = vector.extract_strided_slice %202 {offsets = [0, 0, 24], sizes = [2, 8, 8], strides = [1, 1, 1]} : vector<2x8x32xf32> to vector<2x8x8xf32>
    %255 = vector.extract_strided_slice %196 {offsets = [0, 0, 24], sizes = [2, 8, 8], strides = [1, 1, 1]} : vector<2x8x32xf32> to vector<2x8x8xf32>
    %256 = vector.extract_strided_slice %198 {offsets = [0, 0, 24], sizes = [2, 8, 8], strides = [1, 1, 1]} : vector<2x8x32xf32> to vector<2x8x8xf32>
    "tpu.trace_start"() <{level = 10 : i32, message = "bqd,bkd->bqk"}> : () -> ()
    %cst_79 = arith.constant dense<0.000000e+00> : vector<2x8x8xf32>
    %257 = tpu.matmul %254, %255, %cst_79 {dimension_numbers = #tpu.dot_dimension_numbers<[2], [2], [1], [1], [0, 0, 0, 1, 1, 1], [0], [0]>} : vector<2x8x8xf32>, vector<2x8x8xf32>, vector<2x8x8xf32> -> vector<2x8x8xf32>
    "tpu.trace_stop"() : () -> ()
    %cst_80 = arith.constant 0.176776692 : f32
    %258 = vector.broadcast %cst_80 : f32 to vector<2x8x8xf32>
    %259 = arith.mulf %257, %258 : vector<2x8x8xf32>
    %cst_81 = arith.constant dense<0xFF800000> : vector<2x8xf32>
    %260 = vector.multi_reduction <maximumf>, %259, %cst_81 [2] : vector<2x8x8xf32> to vector<2x8xf32>
    %261 = vector.shape_cast %260 : vector<2x8xf32> to vector<2x8x1xf32>
    %262 = vector.broadcast %261 : vector<2x8x1xf32> to vector<2x8x8xf32>
    %263 = arith.subf %259, %262 : vector<2x8x8xf32>
    %264 = math.exp %263 : vector<2x8x8xf32>
    %cst_82 = arith.constant dense<0.000000e+00> : vector<2x8xf32>
    %265 = vector.multi_reduction <add>, %264, %cst_82 [2] : vector<2x8x8xf32> to vector<2x8xf32>
    %266 = vector.shape_cast %265 : vector<2x8xf32> to vector<2x8x1xf32>
    %267 = vector.broadcast %266 : vector<2x8x1xf32> to vector<2x8x8xf32>
    %268 = arith.divf %264, %267 : vector<2x8x8xf32>
    "tpu.trace_start"() <{level = 10 : i32, message = "bqk,bkd->bqd"}> : () -> ()
    %cst_83 = arith.constant dense<0.000000e+00> : vector<2x8x8xf32>
    %269 = tpu.matmul %268, %256, %cst_83 {dimension_numbers = #tpu.dot_dimension_numbers<[2], [1], [1], [2], [0, 0, 0, 1, 1, 2], [0], [0]>} : vector<2x8x8xf32>, vector<2x8x8xf32>, vector<2x8x8xf32> -> vector<2x8x8xf32>
    "tpu.trace_stop"() : () -> ()
    %270 = arith.addf %254, %269 : vector<2x8x8xf32>
    %271 = tpu.concatenate %219, %236, %253, %270 in 2 : vector<2x8x8xf32>, vector<2x8x8xf32>, vector<2x8x8xf32>, vector<2x8x8xf32> -> vector<2x8x32xf32>
    %272 = vector.shape_cast %271 : vector<2x8x32xf32> to vector<16x32xf32>
    %c272 = arith.constant 272 : index
    %c0_84 = arith.constant 0 : index
    %273 = vector.load %arg1[%c272, %c0_84] : memref<1032x128xf32, #tpu.memory_space<vmem>>, vector<32x32xf32>
    %cst_85 = arith.constant dense<0.000000e+00> : vector<16x32xf32>
    %274 = tpu.matmul %272, %273, %cst_85 {dimension_numbers = #tpu.dot_dimension_numbers<[1], [0], [0], [1], [0, 0, 1, 1], [], []>} : vector<16x32xf32>, vector<32x32xf32>, vector<16x32xf32> -> vector<16x32xf32>
    %c304 = arith.constant 304 : index
    %c0_86 = arith.constant 0 : index
    %275 = vector.load %arg1[%c304, %c0_86] : memref<1032x128xf32, #tpu.memory_space<vmem>>, vector<1x32xf32>
    %276 = vector.broadcast %275 : vector<1x32xf32> to vector<16x32xf32>
    %277 = arith.addf %274, %276 : vector<16x32xf32>
    %cst_87 = arith.constant 0.000000e+00 : f32
    %278 = vector.broadcast %cst_87 : f32 to vector<16x32xf32>
    %279 = arith.maximumf %277, %278 : vector<16x32xf32>
    %280 = arith.addf %272, %279 : vector<16x32xf32>
    %281 = vector.shape_cast %280 : vector<16x32xf32> to vector<2x8x32xf32>
    %282 = vector.shape_cast %281 : vector<2x8x32xf32> to vector<16x32xf32>
    %c48 = arith.constant 48 : index
    %c0_88 = arith.constant 0 : index
    %283 = vector.load %arg1[%c48, %c0_88] : memref<1032x128xf32, #tpu.memory_space<vmem>>, vector<32x32xf32>
    %cst_89 = arith.constant dense<0.000000e+00> : vector<16x32xf32>
    %284 = tpu.matmul %189, %283, %cst_89 {dimension_numbers = #tpu.dot_dimension_numbers<[1], [0], [0], [1], [0, 0, 1, 1], [], []>} : vector<16x32xf32>, vector<32x32xf32>, vector<16x32xf32> -> vector<16x32xf32>
    %c80 = arith.constant 80 : index
    %c0_90 = arith.constant 0 : index
    %285 = vector.load %arg1[%c80, %c0_90] : memref<1032x128xf32, #tpu.memory_space<vmem>>, vector<1x32xf32>
    %286 = vector.broadcast %285 : vector<1x32xf32> to vector<16x32xf32>
    %287 = arith.addf %284, %286 : vector<16x32xf32>
    %c312 = arith.constant 312 : index
    %c0_91 = arith.constant 0 : index
    %288 = vector.load %arg1[%c312, %c0_91] : memref<1032x128xf32, #tpu.memory_space<vmem>>, vector<32x64xf32>
    %cst_92 = arith.constant dense<0.000000e+00> : vector<16x64xf32>
    %289 = tpu.matmul %282, %288, %cst_92 {dimension_numbers = #tpu.dot_dimension_numbers<[1], [0], [0], [1], [0, 0, 1, 1], [], []>} : vector<16x32xf32>, vector<32x64xf32>, vector<16x64xf32> -> vector<16x64xf32>
    %c344 = arith.constant 344 : index
    %c0_93 = arith.constant 0 : index
    %290 = vector.load %arg1[%c344, %c0_93] : memref<1032x128xf32, #tpu.memory_space<vmem>>, vector<1x64xf32>
    %291 = vector.broadcast %290 : vector<1x64xf32> to vector<16x64xf32>
    %292 = arith.addf %289, %291 : vector<16x64xf32>
    %293 = vector.extract_strided_slice %292 {offsets = [0, 0], sizes = [16, 32], strides = [1, 1]} : vector<16x64xf32> to vector<16x32xf32>
    %294 = vector.shape_cast %293 : vector<16x32xf32> to vector<2x8x32xf32>
    %295 = vector.extract_strided_slice %292 {offsets = [0, 32], sizes = [16, 32], strides = [1, 1]} : vector<16x64xf32> to vector<16x32xf32>
    %296 = vector.shape_cast %295 : vector<16x32xf32> to vector<2x8x32xf32>
    %297 = vector.shape_cast %287 : vector<16x32xf32> to vector<2x8x32xf32>
    %298 = vector.extract_strided_slice %297 {offsets = [0, 0, 0], sizes = [2, 8, 8], strides = [1, 1, 1]} : vector<2x8x32xf32> to vector<2x8x8xf32>
    %299 = vector.extract_strided_slice %294 {offsets = [0, 0, 0], sizes = [2, 8, 8], strides = [1, 1, 1]} : vector<2x8x32xf32> to vector<2x8x8xf32>
    %300 = vector.extract_strided_slice %296 {offsets = [0, 0, 0], sizes = [2, 8, 8], strides = [1, 1, 1]} : vector<2x8x32xf32> to vector<2x8x8xf32>
    "tpu.trace_start"() <{level = 10 : i32, message = "bqd,bkd->bqk"}> : () -> ()
    %cst_94 = arith.constant dense<0.000000e+00> : vector<2x8x8xf32>
    %301 = tpu.matmul %298, %299, %cst_94 {dimension_numbers = #tpu.dot_dimension_numbers<[2], [2], [1], [1], [0, 0, 0, 1, 1, 1], [0], [0]>} : vector<2x8x8xf32>, vector<2x8x8xf32>, vector<2x8x8xf32> -> vector<2x8x8xf32>
    "tpu.trace_stop"() : () -> ()
    %cst_95 = arith.constant 0.176776692 : f32
    %302 = vector.broadcast %cst_95 : f32 to vector<2x8x8xf32>
    %303 = arith.mulf %301, %302 : vector<2x8x8xf32>
    %cst_96 = arith.constant dense<0xFF800000> : vector<2x8xf32>
    %304 = vector.multi_reduction <maximumf>, %303, %cst_96 [2] : vector<2x8x8xf32> to vector<2x8xf32>
    %305 = vector.shape_cast %304 : vector<2x8xf32> to vector<2x8x1xf32>
    %306 = vector.broadcast %305 : vector<2x8x1xf32> to vector<2x8x8xf32>
    %307 = arith.subf %303, %306 : vector<2x8x8xf32>
    %308 = math.exp %307 : vector<2x8x8xf32>
    %cst_97 = arith.constant dense<0.000000e+00> : vector<2x8xf32>
    %309 = vector.multi_reduction <add>, %308, %cst_97 [2] : vector<2x8x8xf32> to vector<2x8xf32>
    %310 = vector.shape_cast %309 : vector<2x8xf32> to vector<2x8x1xf32>
    %311 = vector.broadcast %310 : vector<2x8x1xf32> to vector<2x8x8xf32>
    %312 = arith.divf %308, %311 : vector<2x8x8xf32>
    "tpu.trace_start"() <{level = 10 : i32, message = "bqk,bkd->bqd"}> : () -> ()
    %cst_98 = arith.constant dense<0.000000e+00> : vector<2x8x8xf32>
    %313 = tpu.matmul %312, %300, %cst_98 {dimension_numbers = #tpu.dot_dimension_numbers<[2], [1], [1], [2], [0, 0, 0, 1, 1, 2], [0], [0]>} : vector<2x8x8xf32>, vector<2x8x8xf32>, vector<2x8x8xf32> -> vector<2x8x8xf32>
    "tpu.trace_stop"() : () -> ()
    %314 = arith.addf %298, %313 : vector<2x8x8xf32>
    %315 = vector.extract_strided_slice %297 {offsets = [0, 0, 8], sizes = [2, 8, 8], strides = [1, 1, 1]} : vector<2x8x32xf32> to vector<2x8x8xf32>
    %316 = vector.extract_strided_slice %294 {offsets = [0, 0, 8], sizes = [2, 8, 8], strides = [1, 1, 1]} : vector<2x8x32xf32> to vector<2x8x8xf32>
    %317 = vector.extract_strided_slice %296 {offsets = [0, 0, 8], sizes = [2, 8, 8], strides = [1, 1, 1]} : vector<2x8x32xf32> to vector<2x8x8xf32>
    "tpu.trace_start"() <{level = 10 : i32, message = "bqd,bkd->bqk"}> : () -> ()
    %cst_99 = arith.constant dense<0.000000e+00> : vector<2x8x8xf32>
    %318 = tpu.matmul %315, %316, %cst_99 {dimension_numbers = #tpu.dot_dimension_numbers<[2], [2], [1], [1], [0, 0, 0, 1, 1, 1], [0], [0]>} : vector<2x8x8xf32>, vector<2x8x8xf32>, vector<2x8x8xf32> -> vector<2x8x8xf32>
    "tpu.trace_stop"() : () -> ()
    %cst_100 = arith.constant 0.176776692 : f32
    %319 = vector.broadcast %cst_100 : f32 to vector<2x8x8xf32>
    %320 = arith.mulf %318, %319 : vector<2x8x8xf32>
    %cst_101 = arith.constant dense<0xFF800000> : vector<2x8xf32>
    %321 = vector.multi_reduction <maximumf>, %320, %cst_101 [2] : vector<2x8x8xf32> to vector<2x8xf32>
    %322 = vector.shape_cast %321 : vector<2x8xf32> to vector<2x8x1xf32>
    %323 = vector.broadcast %322 : vector<2x8x1xf32> to vector<2x8x8xf32>
    %324 = arith.subf %320, %323 : vector<2x8x8xf32>
    %325 = math.exp %324 : vector<2x8x8xf32>
    %cst_102 = arith.constant dense<0.000000e+00> : vector<2x8xf32>
    %326 = vector.multi_reduction <add>, %325, %cst_102 [2] : vector<2x8x8xf32> to vector<2x8xf32>
    %327 = vector.shape_cast %326 : vector<2x8xf32> to vector<2x8x1xf32>
    %328 = vector.broadcast %327 : vector<2x8x1xf32> to vector<2x8x8xf32>
    %329 = arith.divf %325, %328 : vector<2x8x8xf32>
    "tpu.trace_start"() <{level = 10 : i32, message = "bqk,bkd->bqd"}> : () -> ()
    %cst_103 = arith.constant dense<0.000000e+00> : vector<2x8x8xf32>
    %330 = tpu.matmul %329, %317, %cst_103 {dimension_numbers = #tpu.dot_dimension_numbers<[2], [1], [1], [2], [0, 0, 0, 1, 1, 2], [0], [0]>} : vector<2x8x8xf32>, vector<2x8x8xf32>, vector<2x8x8xf32> -> vector<2x8x8xf32>
    "tpu.trace_stop"() : () -> ()
    %331 = arith.addf %315, %330 : vector<2x8x8xf32>
    %332 = vector.extract_strided_slice %297 {offsets = [0, 0, 16], sizes = [2, 8, 8], strides = [1, 1, 1]} : vector<2x8x32xf32> to vector<2x8x8xf32>
    %333 = vector.extract_strided_slice %294 {offsets = [0, 0, 16], sizes = [2, 8, 8], strides = [1, 1, 1]} : vector<2x8x32xf32> to vector<2x8x8xf32>
    %334 = vector.extract_strided_slice %296 {offsets = [0, 0, 16], sizes = [2, 8, 8], strides = [1, 1, 1]} : vector<2x8x32xf32> to vector<2x8x8xf32>
    "tpu.trace_start"() <{level = 10 : i32, message = "bqd,bkd->bqk"}> : () -> ()
    %cst_104 = arith.constant dense<0.000000e+00> : vector<2x8x8xf32>
    %335 = tpu.matmul %332, %333, %cst_104 {dimension_numbers = #tpu.dot_dimension_numbers<[2], [2], [1], [1], [0, 0, 0, 1, 1, 1], [0], [0]>} : vector<2x8x8xf32>, vector<2x8x8xf32>, vector<2x8x8xf32> -> vector<2x8x8xf32>
    "tpu.trace_stop"() : () -> ()
    %cst_105 = arith.constant 0.176776692 : f32
    %336 = vector.broadcast %cst_105 : f32 to vector<2x8x8xf32>
    %337 = arith.mulf %335, %336 : vector<2x8x8xf32>
    %cst_106 = arith.constant dense<0xFF800000> : vector<2x8xf32>
    %338 = vector.multi_reduction <maximumf>, %337, %cst_106 [2] : vector<2x8x8xf32> to vector<2x8xf32>
    %339 = vector.shape_cast %338 : vector<2x8xf32> to vector<2x8x1xf32>
    %340 = vector.broadcast %339 : vector<2x8x1xf32> to vector<2x8x8xf32>
    %341 = arith.subf %337, %340 : vector<2x8x8xf32>
    %342 = math.exp %341 : vector<2x8x8xf32>
    %cst_107 = arith.constant dense<0.000000e+00> : vector<2x8xf32>
    %343 = vector.multi_reduction <add>, %342, %cst_107 [2] : vector<2x8x8xf32> to vector<2x8xf32>
    %344 = vector.shape_cast %343 : vector<2x8xf32> to vector<2x8x1xf32>
    %345 = vector.broadcast %344 : vector<2x8x1xf32> to vector<2x8x8xf32>
    %346 = arith.divf %342, %345 : vector<2x8x8xf32>
    "tpu.trace_start"() <{level = 10 : i32, message = "bqk,bkd->bqd"}> : () -> ()
    %cst_108 = arith.constant dense<0.000000e+00> : vector<2x8x8xf32>
    %347 = tpu.matmul %346, %334, %cst_108 {dimension_numbers = #tpu.dot_dimension_numbers<[2], [1], [1], [2], [0, 0, 0, 1, 1, 2], [0], [0]>} : vector<2x8x8xf32>, vector<2x8x8xf32>, vector<2x8x8xf32> -> vector<2x8x8xf32>
    "tpu.trace_stop"() : () -> ()
    %348 = arith.addf %332, %347 : vector<2x8x8xf32>
    %349 = vector.extract_strided_slice %297 {offsets = [0, 0, 24], sizes = [2, 8, 8], strides = [1, 1, 1]} : vector<2x8x32xf32> to vector<2x8x8xf32>
    %350 = vector.extract_strided_slice %294 {offsets = [0, 0, 24], sizes = [2, 8, 8], strides = [1, 1, 1]} : vector<2x8x32xf32> to vector<2x8x8xf32>
    %351 = vector.extract_strided_slice %296 {offsets = [0, 0, 24], sizes = [2, 8, 8], strides = [1, 1, 1]} : vector<2x8x32xf32> to vector<2x8x8xf32>
    "tpu.trace_start"() <{level = 10 : i32, message = "bqd,bkd->bqk"}> : () -> ()
    %cst_109 = arith.constant dense<0.000000e+00> : vector<2x8x8xf32>
    %352 = tpu.matmul %349, %350, %cst_109 {dimension_numbers = #tpu.dot_dimension_numbers<[2], [2], [1], [1], [0, 0, 0, 1, 1, 1], [0], [0]>} : vector<2x8x8xf32>, vector<2x8x8xf32>, vector<2x8x8xf32> -> vector<2x8x8xf32>
    "tpu.trace_stop"() : () -> ()
    %cst_110 = arith.constant 0.176776692 : f32
    %353 = vector.broadcast %cst_110 : f32 to vector<2x8x8xf32>
    %354 = arith.mulf %352, %353 : vector<2x8x8xf32>
    %cst_111 = arith.constant dense<0xFF800000> : vector<2x8xf32>
    %355 = vector.multi_reduction <maximumf>, %354, %cst_111 [2] : vector<2x8x8xf32> to vector<2x8xf32>
    %356 = vector.shape_cast %355 : vector<2x8xf32> to vector<2x8x1xf32>
    %357 = vector.broadcast %356 : vector<2x8x1xf32> to vector<2x8x8xf32>
    %358 = arith.subf %354, %357 : vector<2x8x8xf32>
    %359 = math.exp %358 : vector<2x8x8xf32>
    %cst_112 = arith.constant dense<0.000000e+00> : vector<2x8xf32>
    %360 = vector.multi_reduction <add>, %359, %cst_112 [2] : vector<2x8x8xf32> to vector<2x8xf32>
    %361 = vector.shape_cast %360 : vector<2x8xf32> to vector<2x8x1xf32>
    %362 = vector.broadcast %361 : vector<2x8x1xf32> to vector<2x8x8xf32>
    %363 = arith.divf %359, %362 : vector<2x8x8xf32>
    "tpu.trace_start"() <{level = 10 : i32, message = "bqk,bkd->bqd"}> : () -> ()
    %cst_113 = arith.constant dense<0.000000e+00> : vector<2x8x8xf32>
    %364 = tpu.matmul %363, %351, %cst_113 {dimension_numbers = #tpu.dot_dimension_numbers<[2], [1], [1], [2], [0, 0, 0, 1, 1, 2], [0], [0]>} : vector<2x8x8xf32>, vector<2x8x8xf32>, vector<2x8x8xf32> -> vector<2x8x8xf32>
    "tpu.trace_stop"() : () -> ()
    %365 = arith.addf %349, %364 : vector<2x8x8xf32>
    %366 = tpu.concatenate %314, %331, %348, %365 in 2 : vector<2x8x8xf32>, vector<2x8x8xf32>, vector<2x8x8xf32>, vector<2x8x8xf32> -> vector<2x8x32xf32>
    %367 = vector.shape_cast %366 : vector<2x8x32xf32> to vector<16x32xf32>
    %c352 = arith.constant 352 : index
    %c0_114 = arith.constant 0 : index
    %368 = vector.load %arg1[%c352, %c0_114] : memref<1032x128xf32, #tpu.memory_space<vmem>>, vector<32x32xf32>
    %cst_115 = arith.constant dense<0.000000e+00> : vector<16x32xf32>
    %369 = tpu.matmul %367, %368, %cst_115 {dimension_numbers = #tpu.dot_dimension_numbers<[1], [0], [0], [1], [0, 0, 1, 1], [], []>} : vector<16x32xf32>, vector<32x32xf32>, vector<16x32xf32> -> vector<16x32xf32>
    %c384 = arith.constant 384 : index
    %c0_116 = arith.constant 0 : index
    %370 = vector.load %arg1[%c384, %c0_116] : memref<1032x128xf32, #tpu.memory_space<vmem>>, vector<1x32xf32>
    %371 = vector.broadcast %370 : vector<1x32xf32> to vector<16x32xf32>
    %372 = arith.addf %369, %371 : vector<16x32xf32>
    %cst_117 = arith.constant 0.000000e+00 : f32
    %373 = vector.broadcast %cst_117 : f32 to vector<16x32xf32>
    %374 = arith.maximumf %372, %373 : vector<16x32xf32>
    %375 = arith.addf %367, %374 : vector<16x32xf32>
    %376 = vector.shape_cast %375 : vector<16x32xf32> to vector<2x8x32xf32>
    %377 = vector.shape_cast %376 : vector<2x8x32xf32> to vector<16x32xf32>
    %c392 = arith.constant 392 : index
    %c0_118 = arith.constant 0 : index
    %378 = vector.load %arg1[%c392, %c0_118] : memref<1032x128xf32, #tpu.memory_space<vmem>>, vector<32x64xf32>
    %cst_119 = arith.constant dense<0.000000e+00> : vector<16x64xf32>
    %379 = tpu.matmul %377, %378, %cst_119 {dimension_numbers = #tpu.dot_dimension_numbers<[1], [0], [0], [1], [0, 0, 1, 1], [], []>} : vector<16x32xf32>, vector<32x64xf32>, vector<16x64xf32> -> vector<16x64xf32>
    %c424 = arith.constant 424 : index
    %c0_120 = arith.constant 0 : index
    %380 = vector.load %arg1[%c424, %c0_120] : memref<1032x128xf32, #tpu.memory_space<vmem>>, vector<1x64xf32>
    %381 = vector.broadcast %380 : vector<1x64xf32> to vector<16x64xf32>
    %382 = arith.addf %379, %381 : vector<16x64xf32>
    %383 = vector.extract_strided_slice %382 {offsets = [0, 0], sizes = [16, 32], strides = [1, 1]} : vector<16x64xf32> to vector<16x32xf32>
    %384 = vector.shape_cast %383 : vector<16x32xf32> to vector<2x8x32xf32>
    %385 = vector.extract_strided_slice %382 {offsets = [0, 32], sizes = [16, 32], strides = [1, 1]} : vector<16x64xf32> to vector<16x32xf32>
    %386 = vector.shape_cast %385 : vector<16x32xf32> to vector<2x8x32xf32>
    %c16 = arith.constant 16 : index
    %c0_121 = arith.constant 0 : index
    %387 = vector.load %arg1[%c16, %c0_121] : memref<1032x128xf32, #tpu.memory_space<vmem>>, vector<1x32xf32>
    %388 = vector.shape_cast %387 : vector<1x32xf32> to vector<1x1x32xf32>
    %389 = vector.shape_cast %388 : vector<1x1x32xf32> to vector<1x1x32xf32>
    %390 = vector.broadcast %389 : vector<1x1x32xf32> to vector<2x1x32xf32>
    %391 = vector.extract_strided_slice %390 {offsets = [0, 0, 0], sizes = [2, 1, 8], strides = [1, 1, 1]} : vector<2x1x32xf32> to vector<2x1x8xf32>
    %392 = vector.extract_strided_slice %384 {offsets = [0, 0, 0], sizes = [2, 8, 8], strides = [1, 1, 1]} : vector<2x8x32xf32> to vector<2x8x8xf32>
    %393 = vector.extract_strided_slice %386 {offsets = [0, 0, 0], sizes = [2, 8, 8], strides = [1, 1, 1]} : vector<2x8x32xf32> to vector<2x8x8xf32>
    "tpu.trace_start"() <{level = 10 : i32, message = "bqd,bkd->bqk"}> : () -> ()
    %cst_122 = arith.constant dense<0.000000e+00> : vector<2x1x8xf32>
    %394 = tpu.matmul %391, %392, %cst_122 {dimension_numbers = #tpu.dot_dimension_numbers<[2], [2], [1], [1], [0, 0, 0, 1, 1, 1], [0], [0]>} : vector<2x1x8xf32>, vector<2x8x8xf32>, vector<2x1x8xf32> -> vector<2x1x8xf32>
    "tpu.trace_stop"() : () -> ()
    %cst_123 = arith.constant 0.176776692 : f32
    %395 = vector.broadcast %cst_123 : f32 to vector<2x1x8xf32>
    %396 = arith.mulf %394, %395 : vector<2x1x8xf32>
    %cst_124 = arith.constant dense<0xFF800000> : vector<2x1xf32>
    %397 = vector.multi_reduction <maximumf>, %396, %cst_124 [2] : vector<2x1x8xf32> to vector<2x1xf32>
    %398 = vector.shape_cast %397 : vector<2x1xf32> to vector<2x1x1xf32>
    %399 = vector.broadcast %398 : vector<2x1x1xf32> to vector<2x1x8xf32>
    %400 = arith.subf %396, %399 : vector<2x1x8xf32>
    %401 = math.exp %400 : vector<2x1x8xf32>
    %cst_125 = arith.constant dense<0.000000e+00> : vector<2x1xf32>
    %402 = vector.multi_reduction <add>, %401, %cst_125 [2] : vector<2x1x8xf32> to vector<2x1xf32>
    %403 = vector.shape_cast %402 : vector<2x1xf32> to vector<2x1x1xf32>
    %404 = vector.broadcast %403 : vector<2x1x1xf32> to vector<2x1x8xf32>
    %405 = arith.divf %401, %404 : vector<2x1x8xf32>
    "tpu.trace_start"() <{level = 10 : i32, message = "bqk,bkd->bqd"}> : () -> ()
    %cst_126 = arith.constant dense<0.000000e+00> : vector<2x1x8xf32>
    %406 = tpu.matmul %405, %393, %cst_126 {dimension_numbers = #tpu.dot_dimension_numbers<[2], [1], [1], [2], [0, 0, 0, 1, 1, 2], [0], [0]>} : vector<2x1x8xf32>, vector<2x8x8xf32>, vector<2x1x8xf32> -> vector<2x1x8xf32>
    "tpu.trace_stop"() : () -> ()
    %407 = arith.addf %391, %406 : vector<2x1x8xf32>
    %408 = vector.extract_strided_slice %390 {offsets = [0, 0, 8], sizes = [2, 1, 8], strides = [1, 1, 1]} : vector<2x1x32xf32> to vector<2x1x8xf32>
    %409 = vector.extract_strided_slice %384 {offsets = [0, 0, 8], sizes = [2, 8, 8], strides = [1, 1, 1]} : vector<2x8x32xf32> to vector<2x8x8xf32>
    %410 = vector.extract_strided_slice %386 {offsets = [0, 0, 8], sizes = [2, 8, 8], strides = [1, 1, 1]} : vector<2x8x32xf32> to vector<2x8x8xf32>
    "tpu.trace_start"() <{level = 10 : i32, message = "bqd,bkd->bqk"}> : () -> ()
    %cst_127 = arith.constant dense<0.000000e+00> : vector<2x1x8xf32>
    %411 = tpu.matmul %408, %409, %cst_127 {dimension_numbers = #tpu.dot_dimension_numbers<[2], [2], [1], [1], [0, 0, 0, 1, 1, 1], [0], [0]>} : vector<2x1x8xf32>, vector<2x8x8xf32>, vector<2x1x8xf32> -> vector<2x1x8xf32>
    "tpu.trace_stop"() : () -> ()
    %cst_128 = arith.constant 0.176776692 : f32
    %412 = vector.broadcast %cst_128 : f32 to vector<2x1x8xf32>
    %413 = arith.mulf %411, %412 : vector<2x1x8xf32>
    %cst_129 = arith.constant dense<0xFF800000> : vector<2x1xf32>
    %414 = vector.multi_reduction <maximumf>, %413, %cst_129 [2] : vector<2x1x8xf32> to vector<2x1xf32>
    %415 = vector.shape_cast %414 : vector<2x1xf32> to vector<2x1x1xf32>
    %416 = vector.broadcast %415 : vector<2x1x1xf32> to vector<2x1x8xf32>
    %417 = arith.subf %413, %416 : vector<2x1x8xf32>
    %418 = math.exp %417 : vector<2x1x8xf32>
    %cst_130 = arith.constant dense<0.000000e+00> : vector<2x1xf32>
    %419 = vector.multi_reduction <add>, %418, %cst_130 [2] : vector<2x1x8xf32> to vector<2x1xf32>
    %420 = vector.shape_cast %419 : vector<2x1xf32> to vector<2x1x1xf32>
    %421 = vector.broadcast %420 : vector<2x1x1xf32> to vector<2x1x8xf32>
    %422 = arith.divf %418, %421 : vector<2x1x8xf32>
    "tpu.trace_start"() <{level = 10 : i32, message = "bqk,bkd->bqd"}> : () -> ()
    %cst_131 = arith.constant dense<0.000000e+00> : vector<2x1x8xf32>
    %423 = tpu.matmul %422, %410, %cst_131 {dimension_numbers = #tpu.dot_dimension_numbers<[2], [1], [1], [2], [0, 0, 0, 1, 1, 2], [0], [0]>} : vector<2x1x8xf32>, vector<2x8x8xf32>, vector<2x1x8xf32> -> vector<2x1x8xf32>
    "tpu.trace_stop"() : () -> ()
    %424 = arith.addf %408, %423 : vector<2x1x8xf32>
    %425 = vector.extract_strided_slice %390 {offsets = [0, 0, 16], sizes = [2, 1, 8], strides = [1, 1, 1]} : vector<2x1x32xf32> to vector<2x1x8xf32>
    %426 = vector.extract_strided_slice %384 {offsets = [0, 0, 16], sizes = [2, 8, 8], strides = [1, 1, 1]} : vector<2x8x32xf32> to vector<2x8x8xf32>
    %427 = vector.extract_strided_slice %386 {offsets = [0, 0, 16], sizes = [2, 8, 8], strides = [1, 1, 1]} : vector<2x8x32xf32> to vector<2x8x8xf32>
    "tpu.trace_start"() <{level = 10 : i32, message = "bqd,bkd->bqk"}> : () -> ()
    %cst_132 = arith.constant dense<0.000000e+00> : vector<2x1x8xf32>
    %428 = tpu.matmul %425, %426, %cst_132 {dimension_numbers = #tpu.dot_dimension_numbers<[2], [2], [1], [1], [0, 0, 0, 1, 1, 1], [0], [0]>} : vector<2x1x8xf32>, vector<2x8x8xf32>, vector<2x1x8xf32> -> vector<2x1x8xf32>
    "tpu.trace_stop"() : () -> ()
    %cst_133 = arith.constant 0.176776692 : f32
    %429 = vector.broadcast %cst_133 : f32 to vector<2x1x8xf32>
    %430 = arith.mulf %428, %429 : vector<2x1x8xf32>
    %cst_134 = arith.constant dense<0xFF800000> : vector<2x1xf32>
    %431 = vector.multi_reduction <maximumf>, %430, %cst_134 [2] : vector<2x1x8xf32> to vector<2x1xf32>
    %432 = vector.shape_cast %431 : vector<2x1xf32> to vector<2x1x1xf32>
    %433 = vector.broadcast %432 : vector<2x1x1xf32> to vector<2x1x8xf32>
    %434 = arith.subf %430, %433 : vector<2x1x8xf32>
    %435 = math.exp %434 : vector<2x1x8xf32>
    %cst_135 = arith.constant dense<0.000000e+00> : vector<2x1xf32>
    %436 = vector.multi_reduction <add>, %435, %cst_135 [2] : vector<2x1x8xf32> to vector<2x1xf32>
    %437 = vector.shape_cast %436 : vector<2x1xf32> to vector<2x1x1xf32>
    %438 = vector.broadcast %437 : vector<2x1x1xf32> to vector<2x1x8xf32>
    %439 = arith.divf %435, %438 : vector<2x1x8xf32>
    "tpu.trace_start"() <{level = 10 : i32, message = "bqk,bkd->bqd"}> : () -> ()
    %cst_136 = arith.constant dense<0.000000e+00> : vector<2x1x8xf32>
    %440 = tpu.matmul %439, %427, %cst_136 {dimension_numbers = #tpu.dot_dimension_numbers<[2], [1], [1], [2], [0, 0, 0, 1, 1, 2], [0], [0]>} : vector<2x1x8xf32>, vector<2x8x8xf32>, vector<2x1x8xf32> -> vector<2x1x8xf32>
    "tpu.trace_stop"() : () -> ()
    %441 = arith.addf %425, %440 : vector<2x1x8xf32>
    %442 = vector.extract_strided_slice %390 {offsets = [0, 0, 24], sizes = [2, 1, 8], strides = [1, 1, 1]} : vector<2x1x32xf32> to vector<2x1x8xf32>
    %443 = vector.extract_strided_slice %384 {offsets = [0, 0, 24], sizes = [2, 8, 8], strides = [1, 1, 1]} : vector<2x8x32xf32> to vector<2x8x8xf32>
    %444 = vector.extract_strided_slice %386 {offsets = [0, 0, 24], sizes = [2, 8, 8], strides = [1, 1, 1]} : vector<2x8x32xf32> to vector<2x8x8xf32>
    "tpu.trace_start"() <{level = 10 : i32, message = "bqd,bkd->bqk"}> : () -> ()
    %cst_137 = arith.constant dense<0.000000e+00> : vector<2x1x8xf32>
    %445 = tpu.matmul %442, %443, %cst_137 {dimension_numbers = #tpu.dot_dimension_numbers<[2], [2], [1], [1], [0, 0, 0, 1, 1, 1], [0], [0]>} : vector<2x1x8xf32>, vector<2x8x8xf32>, vector<2x1x8xf32> -> vector<2x1x8xf32>
    "tpu.trace_stop"() : () -> ()
    %cst_138 = arith.constant 0.176776692 : f32
    %446 = vector.broadcast %cst_138 : f32 to vector<2x1x8xf32>
    %447 = arith.mulf %445, %446 : vector<2x1x8xf32>
    %cst_139 = arith.constant dense<0xFF800000> : vector<2x1xf32>
    %448 = vector.multi_reduction <maximumf>, %447, %cst_139 [2] : vector<2x1x8xf32> to vector<2x1xf32>
    %449 = vector.shape_cast %448 : vector<2x1xf32> to vector<2x1x1xf32>
    %450 = vector.broadcast %449 : vector<2x1x1xf32> to vector<2x1x8xf32>
    %451 = arith.subf %447, %450 : vector<2x1x8xf32>
    %452 = math.exp %451 : vector<2x1x8xf32>
    %cst_140 = arith.constant dense<0.000000e+00> : vector<2x1xf32>
    %453 = vector.multi_reduction <add>, %452, %cst_140 [2] : vector<2x1x8xf32> to vector<2x1xf32>
    %454 = vector.shape_cast %453 : vector<2x1xf32> to vector<2x1x1xf32>
    %455 = vector.broadcast %454 : vector<2x1x1xf32> to vector<2x1x8xf32>
    %456 = arith.divf %452, %455 : vector<2x1x8xf32>
    "tpu.trace_start"() <{level = 10 : i32, message = "bqk,bkd->bqd"}> : () -> ()
    %cst_141 = arith.constant dense<0.000000e+00> : vector<2x1x8xf32>
    %457 = tpu.matmul %456, %444, %cst_141 {dimension_numbers = #tpu.dot_dimension_numbers<[2], [1], [1], [2], [0, 0, 0, 1, 1, 2], [0], [0]>} : vector<2x1x8xf32>, vector<2x8x8xf32>, vector<2x1x8xf32> -> vector<2x1x8xf32>
    "tpu.trace_stop"() : () -> ()
    %458 = arith.addf %442, %457 : vector<2x1x8xf32>
    %459 = tpu.concatenate %407, %424, %441, %458 in 2 : vector<2x1x8xf32>, vector<2x1x8xf32>, vector<2x1x8xf32>, vector<2x1x8xf32> -> vector<2x1x32xf32>
    %460 = vector.shape_cast %459 : vector<2x1x32xf32> to vector<2x32xf32>
    %c432 = arith.constant 432 : index
    %c0_142 = arith.constant 0 : index
    %461 = vector.load %arg1[%c432, %c0_142] : memref<1032x128xf32, #tpu.memory_space<vmem>>, vector<32x32xf32>
    %cst_143 = arith.constant dense<0.000000e+00> : vector<2x32xf32>
    %462 = tpu.matmul %460, %461, %cst_143 {dimension_numbers = #tpu.dot_dimension_numbers<[1], [0], [0], [1], [0, 0, 1, 1], [], []>} : vector<2x32xf32>, vector<32x32xf32>, vector<2x32xf32> -> vector<2x32xf32>
    %c464 = arith.constant 464 : index
    %c0_144 = arith.constant 0 : index
    %463 = vector.load %arg1[%c464, %c0_144] : memref<1032x128xf32, #tpu.memory_space<vmem>>, vector<1x32xf32>
    %464 = vector.broadcast %463 : vector<1x32xf32> to vector<2x32xf32>
    %465 = arith.addf %462, %464 : vector<2x32xf32>
    %cst_145 = arith.constant 0.000000e+00 : f32
    %466 = vector.broadcast %cst_145 : f32 to vector<2x32xf32>
    %467 = arith.maximumf %465, %466 : vector<2x32xf32>
    %468 = arith.addf %460, %467 : vector<2x32xf32>
    %469 = vector.shape_cast %468 : vector<2x32xf32> to vector<2x1x32xf32>
    %470 = vector.shape_cast %469 : vector<2x1x32xf32> to vector<2x32xf32>
    %c472 = arith.constant 472 : index
    %c0_146 = arith.constant 0 : index
    %471 = vector.load %arg1[%c472, %c0_146] : memref<1032x128xf32, #tpu.memory_space<vmem>>, vector<32x96xf32>
    %cst_147 = arith.constant dense<0.000000e+00> : vector<2x96xf32>
    %472 = tpu.matmul %470, %471, %cst_147 {dimension_numbers = #tpu.dot_dimension_numbers<[1], [0], [0], [1], [0, 0, 1, 1], [], []>} : vector<2x32xf32>, vector<32x96xf32>, vector<2x96xf32> -> vector<2x96xf32>
    %c504 = arith.constant 504 : index
    %c0_148 = arith.constant 0 : index
    %473 = vector.load %arg1[%c504, %c0_148] : memref<1032x128xf32, #tpu.memory_space<vmem>>, vector<1x96xf32>
    %474 = vector.broadcast %473 : vector<1x96xf32> to vector<2x96xf32>
    %475 = arith.addf %472, %474 : vector<2x96xf32>
    %476 = vector.extract_strided_slice %475 {offsets = [0, 0], sizes = [2, 32], strides = [1, 1]} : vector<2x96xf32> to vector<2x32xf32>
    %477 = vector.shape_cast %476 : vector<2x32xf32> to vector<2x1x32xf32>
    %478 = vector.extract_strided_slice %475 {offsets = [0, 32], sizes = [2, 32], strides = [1, 1]} : vector<2x96xf32> to vector<2x32xf32>
    %479 = vector.shape_cast %478 : vector<2x32xf32> to vector<2x1x32xf32>
    %480 = vector.extract_strided_slice %475 {offsets = [0, 64], sizes = [2, 32], strides = [1, 1]} : vector<2x96xf32> to vector<2x32xf32>
    %481 = vector.shape_cast %480 : vector<2x32xf32> to vector<2x1x32xf32>
    %482 = vector.extract_strided_slice %477 {offsets = [0, 0, 0], sizes = [2, 1, 8], strides = [1, 1, 1]} : vector<2x1x32xf32> to vector<2x1x8xf32>
    %483 = vector.extract_strided_slice %479 {offsets = [0, 0, 0], sizes = [2, 1, 8], strides = [1, 1, 1]} : vector<2x1x32xf32> to vector<2x1x8xf32>
    %484 = vector.extract_strided_slice %481 {offsets = [0, 0, 0], sizes = [2, 1, 8], strides = [1, 1, 1]} : vector<2x1x32xf32> to vector<2x1x8xf32>
    "tpu.trace_start"() <{level = 10 : i32, message = "bqd,bkd->bqk"}> : () -> ()
    %cst_149 = arith.constant dense<0.000000e+00> : vector<2x1x1xf32>
    %485 = tpu.matmul %482, %483, %cst_149 {dimension_numbers = #tpu.dot_dimension_numbers<[2], [2], [1], [1], [0, 0, 0, 1, 1, 1], [0], [0]>} : vector<2x1x8xf32>, vector<2x1x8xf32>, vector<2x1x1xf32> -> vector<2x1x1xf32>
    "tpu.trace_stop"() : () -> ()
    %cst_150 = arith.constant 0.176776692 : f32
    %486 = vector.broadcast %cst_150 : f32 to vector<2x1x1xf32>
    %487 = arith.mulf %485, %486 : vector<2x1x1xf32>
    %cst_151 = arith.constant dense<0xFF800000> : vector<2x1xf32>
    %488 = vector.multi_reduction <maximumf>, %487, %cst_151 [2] : vector<2x1x1xf32> to vector<2x1xf32>
    %489 = vector.shape_cast %488 : vector<2x1xf32> to vector<2x1x1xf32>
    %490 = arith.subf %487, %489 : vector<2x1x1xf32>
    %491 = math.exp %490 : vector<2x1x1xf32>
    %cst_152 = arith.constant dense<0.000000e+00> : vector<2x1xf32>
    %492 = vector.multi_reduction <add>, %491, %cst_152 [2] : vector<2x1x1xf32> to vector<2x1xf32>
    %493 = vector.shape_cast %492 : vector<2x1xf32> to vector<2x1x1xf32>
    %494 = arith.divf %491, %493 : vector<2x1x1xf32>
    "tpu.trace_start"() <{level = 10 : i32, message = "bqk,bkd->bqd"}> : () -> ()
    %cst_153 = arith.constant dense<0.000000e+00> : vector<2x1x8xf32>
    %495 = tpu.matmul %494, %484, %cst_153 {dimension_numbers = #tpu.dot_dimension_numbers<[2], [1], [1], [2], [0, 0, 0, 1, 1, 2], [0], [0]>} : vector<2x1x1xf32>, vector<2x1x8xf32>, vector<2x1x8xf32> -> vector<2x1x8xf32>
    "tpu.trace_stop"() : () -> ()
    %496 = arith.addf %482, %495 : vector<2x1x8xf32>
    %497 = vector.extract_strided_slice %477 {offsets = [0, 0, 8], sizes = [2, 1, 8], strides = [1, 1, 1]} : vector<2x1x32xf32> to vector<2x1x8xf32>
    %498 = vector.extract_strided_slice %479 {offsets = [0, 0, 8], sizes = [2, 1, 8], strides = [1, 1, 1]} : vector<2x1x32xf32> to vector<2x1x8xf32>
    %499 = vector.extract_strided_slice %481 {offsets = [0, 0, 8], sizes = [2, 1, 8], strides = [1, 1, 1]} : vector<2x1x32xf32> to vector<2x1x8xf32>
    "tpu.trace_start"() <{level = 10 : i32, message = "bqd,bkd->bqk"}> : () -> ()
    %cst_154 = arith.constant dense<0.000000e+00> : vector<2x1x1xf32>
    %500 = tpu.matmul %497, %498, %cst_154 {dimension_numbers = #tpu.dot_dimension_numbers<[2], [2], [1], [1], [0, 0, 0, 1, 1, 1], [0], [0]>} : vector<2x1x8xf32>, vector<2x1x8xf32>, vector<2x1x1xf32> -> vector<2x1x1xf32>
    "tpu.trace_stop"() : () -> ()
    %cst_155 = arith.constant 0.176776692 : f32
    %501 = vector.broadcast %cst_155 : f32 to vector<2x1x1xf32>
    %502 = arith.mulf %500, %501 : vector<2x1x1xf32>
    %cst_156 = arith.constant dense<0xFF800000> : vector<2x1xf32>
    %503 = vector.multi_reduction <maximumf>, %502, %cst_156 [2] : vector<2x1x1xf32> to vector<2x1xf32>
    %504 = vector.shape_cast %503 : vector<2x1xf32> to vector<2x1x1xf32>
    %505 = arith.subf %502, %504 : vector<2x1x1xf32>
    %506 = math.exp %505 : vector<2x1x1xf32>
    %cst_157 = arith.constant dense<0.000000e+00> : vector<2x1xf32>
    %507 = vector.multi_reduction <add>, %506, %cst_157 [2] : vector<2x1x1xf32> to vector<2x1xf32>
    %508 = vector.shape_cast %507 : vector<2x1xf32> to vector<2x1x1xf32>
    %509 = arith.divf %506, %508 : vector<2x1x1xf32>
    "tpu.trace_start"() <{level = 10 : i32, message = "bqk,bkd->bqd"}> : () -> ()
    %cst_158 = arith.constant dense<0.000000e+00> : vector<2x1x8xf32>
    %510 = tpu.matmul %509, %499, %cst_158 {dimension_numbers = #tpu.dot_dimension_numbers<[2], [1], [1], [2], [0, 0, 0, 1, 1, 2], [0], [0]>} : vector<2x1x1xf32>, vector<2x1x8xf32>, vector<2x1x8xf32> -> vector<2x1x8xf32>
    "tpu.trace_stop"() : () -> ()
    %511 = arith.addf %497, %510 : vector<2x1x8xf32>
    %512 = vector.extract_strided_slice %477 {offsets = [0, 0, 16], sizes = [2, 1, 8], strides = [1, 1, 1]} : vector<2x1x32xf32> to vector<2x1x8xf32>
    %513 = vector.extract_strided_slice %479 {offsets = [0, 0, 16], sizes = [2, 1, 8], strides = [1, 1, 1]} : vector<2x1x32xf32> to vector<2x1x8xf32>
    %514 = vector.extract_strided_slice %481 {offsets = [0, 0, 16], sizes = [2, 1, 8], strides = [1, 1, 1]} : vector<2x1x32xf32> to vector<2x1x8xf32>
    "tpu.trace_start"() <{level = 10 : i32, message = "bqd,bkd->bqk"}> : () -> ()
    %cst_159 = arith.constant dense<0.000000e+00> : vector<2x1x1xf32>
    %515 = tpu.matmul %512, %513, %cst_159 {dimension_numbers = #tpu.dot_dimension_numbers<[2], [2], [1], [1], [0, 0, 0, 1, 1, 1], [0], [0]>} : vector<2x1x8xf32>, vector<2x1x8xf32>, vector<2x1x1xf32> -> vector<2x1x1xf32>
    "tpu.trace_stop"() : () -> ()
    %cst_160 = arith.constant 0.176776692 : f32
    %516 = vector.broadcast %cst_160 : f32 to vector<2x1x1xf32>
    %517 = arith.mulf %515, %516 : vector<2x1x1xf32>
    %cst_161 = arith.constant dense<0xFF800000> : vector<2x1xf32>
    %518 = vector.multi_reduction <maximumf>, %517, %cst_161 [2] : vector<2x1x1xf32> to vector<2x1xf32>
    %519 = vector.shape_cast %518 : vector<2x1xf32> to vector<2x1x1xf32>
    %520 = arith.subf %517, %519 : vector<2x1x1xf32>
    %521 = math.exp %520 : vector<2x1x1xf32>
    %cst_162 = arith.constant dense<0.000000e+00> : vector<2x1xf32>
    %522 = vector.multi_reduction <add>, %521, %cst_162 [2] : vector<2x1x1xf32> to vector<2x1xf32>
    %523 = vector.shape_cast %522 : vector<2x1xf32> to vector<2x1x1xf32>
    %524 = arith.divf %521, %523 : vector<2x1x1xf32>
    "tpu.trace_start"() <{level = 10 : i32, message = "bqk,bkd->bqd"}> : () -> ()
    %cst_163 = arith.constant dense<0.000000e+00> : vector<2x1x8xf32>
    %525 = tpu.matmul %524, %514, %cst_163 {dimension_numbers = #tpu.dot_dimension_numbers<[2], [1], [1], [2], [0, 0, 0, 1, 1, 2], [0], [0]>} : vector<2x1x1xf32>, vector<2x1x8xf32>, vector<2x1x8xf32> -> vector<2x1x8xf32>
    "tpu.trace_stop"() : () -> ()
    %526 = arith.addf %512, %525 : vector<2x1x8xf32>
    %527 = vector.extract_strided_slice %477 {offsets = [0, 0, 24], sizes = [2, 1, 8], strides = [1, 1, 1]} : vector<2x1x32xf32> to vector<2x1x8xf32>
    %528 = vector.extract_strided_slice %479 {offsets = [0, 0, 24], sizes = [2, 1, 8], strides = [1, 1, 1]} : vector<2x1x32xf32> to vector<2x1x8xf32>
    %529 = vector.extract_strided_slice %481 {offsets = [0, 0, 24], sizes = [2, 1, 8], strides = [1, 1, 1]} : vector<2x1x32xf32> to vector<2x1x8xf32>
    "tpu.trace_start"() <{level = 10 : i32, message = "bqd,bkd->bqk"}> : () -> ()
    %cst_164 = arith.constant dense<0.000000e+00> : vector<2x1x1xf32>
    %530 = tpu.matmul %527, %528, %cst_164 {dimension_numbers = #tpu.dot_dimension_numbers<[2], [2], [1], [1], [0, 0, 0, 1, 1, 1], [0], [0]>} : vector<2x1x8xf32>, vector<2x1x8xf32>, vector<2x1x1xf32> -> vector<2x1x1xf32>
    "tpu.trace_stop"() : () -> ()
    %cst_165 = arith.constant 0.176776692 : f32
    %531 = vector.broadcast %cst_165 : f32 to vector<2x1x1xf32>
    %532 = arith.mulf %530, %531 : vector<2x1x1xf32>
    %cst_166 = arith.constant dense<0xFF800000> : vector<2x1xf32>
    %533 = vector.multi_reduction <maximumf>, %532, %cst_166 [2] : vector<2x1x1xf32> to vector<2x1xf32>
    %534 = vector.shape_cast %533 : vector<2x1xf32> to vector<2x1x1xf32>
    %535 = arith.subf %532, %534 : vector<2x1x1xf32>
    %536 = math.exp %535 : vector<2x1x1xf32>
    %cst_167 = arith.constant dense<0.000000e+00> : vector<2x1xf32>
    %537 = vector.multi_reduction <add>, %536, %cst_167 [2] : vector<2x1x1xf32> to vector<2x1xf32>
    %538 = vector.shape_cast %537 : vector<2x1xf32> to vector<2x1x1xf32>
    %539 = arith.divf %536, %538 : vector<2x1x1xf32>
    "tpu.trace_start"() <{level = 10 : i32, message = "bqk,bkd->bqd"}> : () -> ()
    %cst_168 = arith.constant dense<0.000000e+00> : vector<2x1x8xf32>
    %540 = tpu.matmul %539, %529, %cst_168 {dimension_numbers = #tpu.dot_dimension_numbers<[2], [1], [1], [2], [0, 0, 0, 1, 1, 2], [0], [0]>} : vector<2x1x1xf32>, vector<2x1x8xf32>, vector<2x1x8xf32> -> vector<2x1x8xf32>
    "tpu.trace_stop"() : () -> ()
    %541 = arith.addf %527, %540 : vector<2x1x8xf32>
    %542 = tpu.concatenate %496, %511, %526, %541 in 2 : vector<2x1x8xf32>, vector<2x1x8xf32>, vector<2x1x8xf32>, vector<2x1x8xf32> -> vector<2x1x32xf32>
    %543 = vector.shape_cast %542 : vector<2x1x32xf32> to vector<2x32xf32>
    %c512 = arith.constant 512 : index
    %c0_169 = arith.constant 0 : index
    %544 = vector.load %arg1[%c512, %c0_169] : memref<1032x128xf32, #tpu.memory_space<vmem>>, vector<32x32xf32>
    %cst_170 = arith.constant dense<0.000000e+00> : vector<2x32xf32>
    %545 = tpu.matmul %543, %544, %cst_170 {dimension_numbers = #tpu.dot_dimension_numbers<[1], [0], [0], [1], [0, 0, 1, 1], [], []>} : vector<2x32xf32>, vector<32x32xf32>, vector<2x32xf32> -> vector<2x32xf32>
    %c544 = arith.constant 544 : index
    %c0_171 = arith.constant 0 : index
    %546 = vector.load %arg1[%c544, %c0_171] : memref<1032x128xf32, #tpu.memory_space<vmem>>, vector<1x32xf32>
    %547 = vector.broadcast %546 : vector<1x32xf32> to vector<2x32xf32>
    %548 = arith.addf %545, %547 : vector<2x32xf32>
    %cst_172 = arith.constant 0.000000e+00 : f32
    %549 = vector.broadcast %cst_172 : f32 to vector<2x32xf32>
    %550 = arith.maximumf %548, %549 : vector<2x32xf32>
    %551 = arith.addf %543, %550 : vector<2x32xf32>
    %552 = vector.shape_cast %551 : vector<2x32xf32> to vector<2x1x32xf32>
    %553 = vector.shape_cast %552 : vector<2x1x32xf32> to vector<2x32xf32>
    %c552 = arith.constant 552 : index
    %c0_173 = arith.constant 0 : index
    %554 = vector.load %arg1[%c552, %c0_173] : memref<1032x128xf32, #tpu.memory_space<vmem>>, vector<32x96xf32>
    %cst_174 = arith.constant dense<0.000000e+00> : vector<2x96xf32>
    %555 = tpu.matmul %553, %554, %cst_174 {dimension_numbers = #tpu.dot_dimension_numbers<[1], [0], [0], [1], [0, 0, 1, 1], [], []>} : vector<2x32xf32>, vector<32x96xf32>, vector<2x96xf32> -> vector<2x96xf32>
    %c584 = arith.constant 584 : index
    %c0_175 = arith.constant 0 : index
    %556 = vector.load %arg1[%c584, %c0_175] : memref<1032x128xf32, #tpu.memory_space<vmem>>, vector<1x96xf32>
    %557 = vector.broadcast %556 : vector<1x96xf32> to vector<2x96xf32>
    %558 = arith.addf %555, %557 : vector<2x96xf32>
    %559 = vector.extract_strided_slice %558 {offsets = [0, 0], sizes = [2, 32], strides = [1, 1]} : vector<2x96xf32> to vector<2x32xf32>
    %560 = vector.shape_cast %559 : vector<2x32xf32> to vector<2x1x32xf32>
    %561 = vector.extract_strided_slice %558 {offsets = [0, 32], sizes = [2, 32], strides = [1, 1]} : vector<2x96xf32> to vector<2x32xf32>
    %562 = vector.shape_cast %561 : vector<2x32xf32> to vector<2x1x32xf32>
    %563 = vector.extract_strided_slice %558 {offsets = [0, 64], sizes = [2, 32], strides = [1, 1]} : vector<2x96xf32> to vector<2x32xf32>
    %564 = vector.shape_cast %563 : vector<2x32xf32> to vector<2x1x32xf32>
    %565 = vector.extract_strided_slice %560 {offsets = [0, 0, 0], sizes = [2, 1, 8], strides = [1, 1, 1]} : vector<2x1x32xf32> to vector<2x1x8xf32>
    %566 = vector.extract_strided_slice %562 {offsets = [0, 0, 0], sizes = [2, 1, 8], strides = [1, 1, 1]} : vector<2x1x32xf32> to vector<2x1x8xf32>
    %567 = vector.extract_strided_slice %564 {offsets = [0, 0, 0], sizes = [2, 1, 8], strides = [1, 1, 1]} : vector<2x1x32xf32> to vector<2x1x8xf32>
    "tpu.trace_start"() <{level = 10 : i32, message = "bqd,bkd->bqk"}> : () -> ()
    %cst_176 = arith.constant dense<0.000000e+00> : vector<2x1x1xf32>
    %568 = tpu.matmul %565, %566, %cst_176 {dimension_numbers = #tpu.dot_dimension_numbers<[2], [2], [1], [1], [0, 0, 0, 1, 1, 1], [0], [0]>} : vector<2x1x8xf32>, vector<2x1x8xf32>, vector<2x1x1xf32> -> vector<2x1x1xf32>
    "tpu.trace_stop"() : () -> ()
    %cst_177 = arith.constant 0.176776692 : f32
    %569 = vector.broadcast %cst_177 : f32 to vector<2x1x1xf32>
    %570 = arith.mulf %568, %569 : vector<2x1x1xf32>
    %cst_178 = arith.constant dense<0xFF800000> : vector<2x1xf32>
    %571 = vector.multi_reduction <maximumf>, %570, %cst_178 [2] : vector<2x1x1xf32> to vector<2x1xf32>
    %572 = vector.shape_cast %571 : vector<2x1xf32> to vector<2x1x1xf32>
    %573 = arith.subf %570, %572 : vector<2x1x1xf32>
    %574 = math.exp %573 : vector<2x1x1xf32>
    %cst_179 = arith.constant dense<0.000000e+00> : vector<2x1xf32>
    %575 = vector.multi_reduction <add>, %574, %cst_179 [2] : vector<2x1x1xf32> to vector<2x1xf32>
    %576 = vector.shape_cast %575 : vector<2x1xf32> to vector<2x1x1xf32>
    %577 = arith.divf %574, %576 : vector<2x1x1xf32>
    "tpu.trace_start"() <{level = 10 : i32, message = "bqk,bkd->bqd"}> : () -> ()
    %cst_180 = arith.constant dense<0.000000e+00> : vector<2x1x8xf32>
    %578 = tpu.matmul %577, %567, %cst_180 {dimension_numbers = #tpu.dot_dimension_numbers<[2], [1], [1], [2], [0, 0, 0, 1, 1, 2], [0], [0]>} : vector<2x1x1xf32>, vector<2x1x8xf32>, vector<2x1x8xf32> -> vector<2x1x8xf32>
    "tpu.trace_stop"() : () -> ()
    %579 = arith.addf %565, %578 : vector<2x1x8xf32>
    %580 = vector.extract_strided_slice %560 {offsets = [0, 0, 8], sizes = [2, 1, 8], strides = [1, 1, 1]} : vector<2x1x32xf32> to vector<2x1x8xf32>
    %581 = vector.extract_strided_slice %562 {offsets = [0, 0, 8], sizes = [2, 1, 8], strides = [1, 1, 1]} : vector<2x1x32xf32> to vector<2x1x8xf32>
    %582 = vector.extract_strided_slice %564 {offsets = [0, 0, 8], sizes = [2, 1, 8], strides = [1, 1, 1]} : vector<2x1x32xf32> to vector<2x1x8xf32>
    "tpu.trace_start"() <{level = 10 : i32, message = "bqd,bkd->bqk"}> : () -> ()
    %cst_181 = arith.constant dense<0.000000e+00> : vector<2x1x1xf32>
    %583 = tpu.matmul %580, %581, %cst_181 {dimension_numbers = #tpu.dot_dimension_numbers<[2], [2], [1], [1], [0, 0, 0, 1, 1, 1], [0], [0]>} : vector<2x1x8xf32>, vector<2x1x8xf32>, vector<2x1x1xf32> -> vector<2x1x1xf32>
    "tpu.trace_stop"() : () -> ()
    %cst_182 = arith.constant 0.176776692 : f32
    %584 = vector.broadcast %cst_182 : f32 to vector<2x1x1xf32>
    %585 = arith.mulf %583, %584 : vector<2x1x1xf32>
    %cst_183 = arith.constant dense<0xFF800000> : vector<2x1xf32>
    %586 = vector.multi_reduction <maximumf>, %585, %cst_183 [2] : vector<2x1x1xf32> to vector<2x1xf32>
    %587 = vector.shape_cast %586 : vector<2x1xf32> to vector<2x1x1xf32>
    %588 = arith.subf %585, %587 : vector<2x1x1xf32>
    %589 = math.exp %588 : vector<2x1x1xf32>
    %cst_184 = arith.constant dense<0.000000e+00> : vector<2x1xf32>
    %590 = vector.multi_reduction <add>, %589, %cst_184 [2] : vector<2x1x1xf32> to vector<2x1xf32>
    %591 = vector.shape_cast %590 : vector<2x1xf32> to vector<2x1x1xf32>
    %592 = arith.divf %589, %591 : vector<2x1x1xf32>
    "tpu.trace_start"() <{level = 10 : i32, message = "bqk,bkd->bqd"}> : () -> ()
    %cst_185 = arith.constant dense<0.000000e+00> : vector<2x1x8xf32>
    %593 = tpu.matmul %592, %582, %cst_185 {dimension_numbers = #tpu.dot_dimension_numbers<[2], [1], [1], [2], [0, 0, 0, 1, 1, 2], [0], [0]>} : vector<2x1x1xf32>, vector<2x1x8xf32>, vector<2x1x8xf32> -> vector<2x1x8xf32>
    "tpu.trace_stop"() : () -> ()
    %594 = arith.addf %580, %593 : vector<2x1x8xf32>
    %595 = vector.extract_strided_slice %560 {offsets = [0, 0, 16], sizes = [2, 1, 8], strides = [1, 1, 1]} : vector<2x1x32xf32> to vector<2x1x8xf32>
    %596 = vector.extract_strided_slice %562 {offsets = [0, 0, 16], sizes = [2, 1, 8], strides = [1, 1, 1]} : vector<2x1x32xf32> to vector<2x1x8xf32>
    %597 = vector.extract_strided_slice %564 {offsets = [0, 0, 16], sizes = [2, 1, 8], strides = [1, 1, 1]} : vector<2x1x32xf32> to vector<2x1x8xf32>
    "tpu.trace_start"() <{level = 10 : i32, message = "bqd,bkd->bqk"}> : () -> ()
    %cst_186 = arith.constant dense<0.000000e+00> : vector<2x1x1xf32>
    %598 = tpu.matmul %595, %596, %cst_186 {dimension_numbers = #tpu.dot_dimension_numbers<[2], [2], [1], [1], [0, 0, 0, 1, 1, 1], [0], [0]>} : vector<2x1x8xf32>, vector<2x1x8xf32>, vector<2x1x1xf32> -> vector<2x1x1xf32>
    "tpu.trace_stop"() : () -> ()
    %cst_187 = arith.constant 0.176776692 : f32
    %599 = vector.broadcast %cst_187 : f32 to vector<2x1x1xf32>
    %600 = arith.mulf %598, %599 : vector<2x1x1xf32>
    %cst_188 = arith.constant dense<0xFF800000> : vector<2x1xf32>
    %601 = vector.multi_reduction <maximumf>, %600, %cst_188 [2] : vector<2x1x1xf32> to vector<2x1xf32>
    %602 = vector.shape_cast %601 : vector<2x1xf32> to vector<2x1x1xf32>
    %603 = arith.subf %600, %602 : vector<2x1x1xf32>
    %604 = math.exp %603 : vector<2x1x1xf32>
    %cst_189 = arith.constant dense<0.000000e+00> : vector<2x1xf32>
    %605 = vector.multi_reduction <add>, %604, %cst_189 [2] : vector<2x1x1xf32> to vector<2x1xf32>
    %606 = vector.shape_cast %605 : vector<2x1xf32> to vector<2x1x1xf32>
    %607 = arith.divf %604, %606 : vector<2x1x1xf32>
    "tpu.trace_start"() <{level = 10 : i32, message = "bqk,bkd->bqd"}> : () -> ()
    %cst_190 = arith.constant dense<0.000000e+00> : vector<2x1x8xf32>
    %608 = tpu.matmul %607, %597, %cst_190 {dimension_numbers = #tpu.dot_dimension_numbers<[2], [1], [1], [2], [0, 0, 0, 1, 1, 2], [0], [0]>} : vector<2x1x1xf32>, vector<2x1x8xf32>, vector<2x1x8xf32> -> vector<2x1x8xf32>
    "tpu.trace_stop"() : () -> ()
    %609 = arith.addf %595, %608 : vector<2x1x8xf32>
    %610 = vector.extract_strided_slice %560 {offsets = [0, 0, 24], sizes = [2, 1, 8], strides = [1, 1, 1]} : vector<2x1x32xf32> to vector<2x1x8xf32>
    %611 = vector.extract_strided_slice %562 {offsets = [0, 0, 24], sizes = [2, 1, 8], strides = [1, 1, 1]} : vector<2x1x32xf32> to vector<2x1x8xf32>
    %612 = vector.extract_strided_slice %564 {offsets = [0, 0, 24], sizes = [2, 1, 8], strides = [1, 1, 1]} : vector<2x1x32xf32> to vector<2x1x8xf32>
    "tpu.trace_start"() <{level = 10 : i32, message = "bqd,bkd->bqk"}> : () -> ()
    %cst_191 = arith.constant dense<0.000000e+00> : vector<2x1x1xf32>
    %613 = tpu.matmul %610, %611, %cst_191 {dimension_numbers = #tpu.dot_dimension_numbers<[2], [2], [1], [1], [0, 0, 0, 1, 1, 1], [0], [0]>} : vector<2x1x8xf32>, vector<2x1x8xf32>, vector<2x1x1xf32> -> vector<2x1x1xf32>
    "tpu.trace_stop"() : () -> ()
    %cst_192 = arith.constant 0.176776692 : f32
    %614 = vector.broadcast %cst_192 : f32 to vector<2x1x1xf32>
    %615 = arith.mulf %613, %614 : vector<2x1x1xf32>
    %cst_193 = arith.constant dense<0xFF800000> : vector<2x1xf32>
    %616 = vector.multi_reduction <maximumf>, %615, %cst_193 [2] : vector<2x1x1xf32> to vector<2x1xf32>
    %617 = vector.shape_cast %616 : vector<2x1xf32> to vector<2x1x1xf32>
    %618 = arith.subf %615, %617 : vector<2x1x1xf32>
    %619 = math.exp %618 : vector<2x1x1xf32>
    %cst_194 = arith.constant dense<0.000000e+00> : vector<2x1xf32>
    %620 = vector.multi_reduction <add>, %619, %cst_194 [2] : vector<2x1x1xf32> to vector<2x1xf32>
    %621 = vector.shape_cast %620 : vector<2x1xf32> to vector<2x1x1xf32>
    %622 = arith.divf %619, %621 : vector<2x1x1xf32>
    "tpu.trace_start"() <{level = 10 : i32, message = "bqk,bkd->bqd"}> : () -> ()
    %cst_195 = arith.constant dense<0.000000e+00> : vector<2x1x8xf32>
    %623 = tpu.matmul %622, %612, %cst_195 {dimension_numbers = #tpu.dot_dimension_numbers<[2], [1], [1], [2], [0, 0, 0, 1, 1, 2], [0], [0]>} : vector<2x1x1xf32>, vector<2x1x8xf32>, vector<2x1x8xf32> -> vector<2x1x8xf32>
    "tpu.trace_stop"() : () -> ()
    %624 = arith.addf %610, %623 : vector<2x1x8xf32>
    %625 = tpu.concatenate %579, %594, %609, %624 in 2 : vector<2x1x8xf32>, vector<2x1x8xf32>, vector<2x1x8xf32>, vector<2x1x8xf32> -> vector<2x1x32xf32>
    %626 = vector.shape_cast %625 : vector<2x1x32xf32> to vector<2x32xf32>
    %c592 = arith.constant 592 : index
    %c0_196 = arith.constant 0 : index
    %627 = vector.load %arg1[%c592, %c0_196] : memref<1032x128xf32, #tpu.memory_space<vmem>>, vector<32x32xf32>
    %cst_197 = arith.constant dense<0.000000e+00> : vector<2x32xf32>
    %628 = tpu.matmul %626, %627, %cst_197 {dimension_numbers = #tpu.dot_dimension_numbers<[1], [0], [0], [1], [0, 0, 1, 1], [], []>} : vector<2x32xf32>, vector<32x32xf32>, vector<2x32xf32> -> vector<2x32xf32>
    %c624 = arith.constant 624 : index
    %c0_198 = arith.constant 0 : index
    %629 = vector.load %arg1[%c624, %c0_198] : memref<1032x128xf32, #tpu.memory_space<vmem>>, vector<1x32xf32>
    %630 = vector.broadcast %629 : vector<1x32xf32> to vector<2x32xf32>
    %631 = arith.addf %628, %630 : vector<2x32xf32>
    %cst_199 = arith.constant 0.000000e+00 : f32
    %632 = vector.broadcast %cst_199 : f32 to vector<2x32xf32>
    %633 = arith.maximumf %631, %632 : vector<2x32xf32>
    %634 = arith.addf %626, %633 : vector<2x32xf32>
    %635 = vector.shape_cast %634 : vector<2x32xf32> to vector<2x1x32xf32>
    %636 = vector.shape_cast %635 : vector<2x1x32xf32> to vector<2x32xf32>
    %c632 = arith.constant 632 : index
    %c0_200 = arith.constant 0 : index
    %637 = vector.load %arg1[%c632, %c0_200] : memref<1032x128xf32, #tpu.memory_space<vmem>>, vector<32x32xf32>
    %cst_201 = arith.constant dense<0.000000e+00> : vector<2x32xf32>
    %638 = tpu.matmul %636, %637, %cst_201 {dimension_numbers = #tpu.dot_dimension_numbers<[1], [0], [0], [1], [0, 0, 1, 1], [], []>} : vector<2x32xf32>, vector<32x32xf32>, vector<2x32xf32> -> vector<2x32xf32>
    %c664 = arith.constant 664 : index
    %c0_202 = arith.constant 0 : index
    %639 = vector.load %arg1[%c664, %c0_202] : memref<1032x128xf32, #tpu.memory_space<vmem>>, vector<1x32xf32>
    %640 = vector.broadcast %639 : vector<1x32xf32> to vector<2x32xf32>
    %641 = arith.addf %638, %640 : vector<2x32xf32>
    %c672 = arith.constant 672 : index
    %c0_203 = arith.constant 0 : index
    %642 = vector.load %arg1[%c672, %c0_203] : memref<1032x128xf32, #tpu.memory_space<vmem>>, vector<32x32xf32>
    %cst_204 = arith.constant dense<0.000000e+00> : vector<2x32xf32>
    %643 = tpu.matmul %641, %642, %cst_204 {dimension_numbers = #tpu.dot_dimension_numbers<[1], [0], [0], [1], [0, 0, 1, 1], [], []>} : vector<2x32xf32>, vector<32x32xf32>, vector<2x32xf32> -> vector<2x32xf32>
    %c704 = arith.constant 704 : index
    %c0_205 = arith.constant 0 : index
    %644 = vector.load %arg1[%c704, %c0_205] : memref<1032x128xf32, #tpu.memory_space<vmem>>, vector<1x32xf32>
    %645 = vector.broadcast %644 : vector<1x32xf32> to vector<2x32xf32>
    %646 = arith.addf %643, %645 : vector<2x32xf32>
    %cst_206 = arith.constant 0.000000e+00 : f32
    %647 = vector.broadcast %cst_206 : f32 to vector<2x32xf32>
    %648 = arith.maximumf %646, %647 : vector<2x32xf32>
    %c712 = arith.constant 712 : index
    %c0_207 = arith.constant 0 : index
    %649 = vector.load %arg1[%c712, %c0_207] : memref<1032x128xf32, #tpu.memory_space<vmem>>, vector<32x32xf32>
    %cst_208 = arith.constant dense<0.000000e+00> : vector<2x32xf32>
    %650 = tpu.matmul %648, %649, %cst_208 {dimension_numbers = #tpu.dot_dimension_numbers<[1], [0], [0], [1], [0, 0, 1, 1], [], []>} : vector<2x32xf32>, vector<32x32xf32>, vector<2x32xf32> -> vector<2x32xf32>
    %c744 = arith.constant 744 : index
    %c0_209 = arith.constant 0 : index
    %651 = vector.load %arg1[%c744, %c0_209] : memref<1032x128xf32, #tpu.memory_space<vmem>>, vector<1x32xf32>
    %652 = vector.broadcast %651 : vector<1x32xf32> to vector<2x32xf32>
    %653 = arith.addf %650, %652 : vector<2x32xf32>
    %cst_210 = arith.constant 0.000000e+00 : f32
    %654 = vector.broadcast %cst_210 : f32 to vector<2x32xf32>
    %655 = arith.maximumf %653, %654 : vector<2x32xf32>
    %c752 = arith.constant 752 : index
    %c0_211 = arith.constant 0 : index
    %656 = vector.load %arg1[%c752, %c0_211] : memref<1032x128xf32, #tpu.memory_space<vmem>>, vector<32x32xf32>
    %cst_212 = arith.constant dense<0.000000e+00> : vector<2x32xf32>
    %657 = tpu.matmul %655, %656, %cst_212 {dimension_numbers = #tpu.dot_dimension_numbers<[1], [0], [0], [1], [0, 0, 1, 1], [], []>} : vector<2x32xf32>, vector<32x32xf32>, vector<2x32xf32> -> vector<2x32xf32>
    %c784 = arith.constant 784 : index
    %c0_213 = arith.constant 0 : index
    %658 = vector.load %arg1[%c784, %c0_213] : memref<1032x128xf32, #tpu.memory_space<vmem>>, vector<1x32xf32>
    %659 = vector.broadcast %658 : vector<1x32xf32> to vector<2x32xf32>
    %660 = arith.addf %657, %659 : vector<2x32xf32>
    %cst_214 = arith.constant 0.000000e+00 : f32
    %661 = vector.broadcast %cst_214 : f32 to vector<2x32xf32>
    %662 = arith.maximumf %660, %661 : vector<2x32xf32>
    %c792 = arith.constant 792 : index
    %c0_215 = arith.constant 0 : index
    %663 = vector.load %arg1[%c792, %c0_215] : memref<1032x128xf32, #tpu.memory_space<vmem>>, vector<32x32xf32>
    %cst_216 = arith.constant dense<0.000000e+00> : vector<2x32xf32>
    %664 = tpu.matmul %662, %663, %cst_216 {dimension_numbers = #tpu.dot_dimension_numbers<[1], [0], [0], [1], [0, 0, 1, 1], [], []>} : vector<2x32xf32>, vector<32x32xf32>, vector<2x32xf32> -> vector<2x32xf32>
    %c824 = arith.constant 824 : index
    %c0_217 = arith.constant 0 : index
    %665 = vector.load %arg1[%c824, %c0_217] : memref<1032x128xf32, #tpu.memory_space<vmem>>, vector<1x32xf32>
    %666 = vector.broadcast %665 : vector<1x32xf32> to vector<2x32xf32>
    %667 = arith.addf %664, %666 : vector<2x32xf32>
    %cst_218 = arith.constant 0.000000e+00 : f32
    %668 = vector.broadcast %cst_218 : f32 to vector<2x32xf32>
    %669 = arith.maximumf %667, %668 : vector<2x32xf32>
    %c832 = arith.constant 832 : index
    %c0_219 = arith.constant 0 : index
    %670 = vector.load %arg1[%c832, %c0_219] : memref<1032x128xf32, #tpu.memory_space<vmem>>, vector<32x32xf32>
    %cst_220 = arith.constant dense<0.000000e+00> : vector<2x32xf32>
    %671 = tpu.matmul %669, %670, %cst_220 {dimension_numbers = #tpu.dot_dimension_numbers<[1], [0], [0], [1], [0, 0, 1, 1], [], []>} : vector<2x32xf32>, vector<32x32xf32>, vector<2x32xf32> -> vector<2x32xf32>
    %c864 = arith.constant 864 : index
    %c0_221 = arith.constant 0 : index
    %672 = vector.load %arg1[%c864, %c0_221] : memref<1032x128xf32, #tpu.memory_space<vmem>>, vector<1x32xf32>
    %673 = vector.broadcast %672 : vector<1x32xf32> to vector<2x32xf32>
    %674 = arith.addf %671, %673 : vector<2x32xf32>
    %cst_222 = arith.constant 0.000000e+00 : f32
    %675 = vector.broadcast %cst_222 : f32 to vector<2x32xf32>
    %676 = arith.maximumf %674, %675 : vector<2x32xf32>
    %c872 = arith.constant 872 : index
    %c0_223 = arith.constant 0 : index
    %677 = vector.load %arg1[%c872, %c0_223] : memref<1032x128xf32, #tpu.memory_space<vmem>>, vector<32x32xf32>
    %cst_224 = arith.constant dense<0.000000e+00> : vector<2x32xf32>
    %678 = tpu.matmul %676, %677, %cst_224 {dimension_numbers = #tpu.dot_dimension_numbers<[1], [0], [0], [1], [0, 0, 1, 1], [], []>} : vector<2x32xf32>, vector<32x32xf32>, vector<2x32xf32> -> vector<2x32xf32>
    %c904 = arith.constant 904 : index
    %c0_225 = arith.constant 0 : index
    %679 = vector.load %arg1[%c904, %c0_225] : memref<1032x128xf32, #tpu.memory_space<vmem>>, vector<1x32xf32>
    %680 = vector.broadcast %679 : vector<1x32xf32> to vector<2x32xf32>
    %681 = arith.addf %678, %680 : vector<2x32xf32>
    %cst_226 = arith.constant 0.000000e+00 : f32
    %682 = vector.broadcast %cst_226 : f32 to vector<2x32xf32>
    %683 = arith.maximumf %681, %682 : vector<2x32xf32>
    %c912 = arith.constant 912 : index
    %c0_227 = arith.constant 0 : index
    %684 = vector.load %arg1[%c912, %c0_227] : memref<1032x128xf32, #tpu.memory_space<vmem>>, vector<32x32xf32>
    %cst_228 = arith.constant dense<0.000000e+00> : vector<2x32xf32>
    %685 = tpu.matmul %683, %684, %cst_228 {dimension_numbers = #tpu.dot_dimension_numbers<[1], [0], [0], [1], [0, 0, 1, 1], [], []>} : vector<2x32xf32>, vector<32x32xf32>, vector<2x32xf32> -> vector<2x32xf32>
    %c944 = arith.constant 944 : index
    %c0_229 = arith.constant 0 : index
    %686 = vector.load %arg1[%c944, %c0_229] : memref<1032x128xf32, #tpu.memory_space<vmem>>, vector<1x32xf32>
    %687 = vector.broadcast %686 : vector<1x32xf32> to vector<2x32xf32>
    %688 = arith.addf %685, %687 : vector<2x32xf32>
    %cst_230 = arith.constant 0.000000e+00 : f32
    %689 = vector.broadcast %cst_230 : f32 to vector<2x32xf32>
    %690 = arith.maximumf %688, %689 : vector<2x32xf32>
    %c952 = arith.constant 952 : index
    %c0_231 = arith.constant 0 : index
    %691 = vector.load %arg1[%c952, %c0_231] : memref<1032x128xf32, #tpu.memory_space<vmem>>, vector<32x32xf32>
    %cst_232 = arith.constant dense<0.000000e+00> : vector<2x32xf32>
    %692 = tpu.matmul %690, %691, %cst_232 {dimension_numbers = #tpu.dot_dimension_numbers<[1], [0], [0], [1], [0, 0, 1, 1], [], []>} : vector<2x32xf32>, vector<32x32xf32>, vector<2x32xf32> -> vector<2x32xf32>
    %c984 = arith.constant 984 : index
    %c0_233 = arith.constant 0 : index
    %693 = vector.load %arg1[%c984, %c0_233] : memref<1032x128xf32, #tpu.memory_space<vmem>>, vector<1x32xf32>
    %694 = vector.broadcast %693 : vector<1x32xf32> to vector<2x32xf32>
    %695 = arith.addf %692, %694 : vector<2x32xf32>
    %cst_234 = arith.constant 0.000000e+00 : f32
    %696 = vector.broadcast %cst_234 : f32 to vector<2x32xf32>
    %697 = arith.maximumf %695, %696 : vector<2x32xf32>
    %c992 = arith.constant 992 : index
    %c0_235 = arith.constant 0 : index
    %698 = vector.load %arg1[%c992, %c0_235] : memref<1032x128xf32, #tpu.memory_space<vmem>>, vector<32x1xf32>
    %cst_236 = arith.constant dense<0.000000e+00> : vector<2x1xf32>
    %699 = tpu.matmul %697, %698, %cst_236 {dimension_numbers = #tpu.dot_dimension_numbers<[1], [0], [0], [1], [0, 0, 1, 1], [], []>} : vector<2x32xf32>, vector<32x1xf32>, vector<2x1xf32> -> vector<2x1xf32>
    %c1024 = arith.constant 1024 : index
    %c0_237 = arith.constant 0 : index
    %700 = vector.load %arg1[%c1024, %c0_237] : memref<1032x128xf32, #tpu.memory_space<vmem>>, vector<1x1xf32>
    %701 = vector.broadcast %700 : vector<1x1xf32> to vector<2x1xf32>
    %702 = arith.addf %699, %701 : vector<2x1xf32>
    %cst_238 = arith.constant 0.000000e+00 : f32
    %703 = vector.broadcast %cst_238 : f32 to vector<2x1xf32>
    %704 = arith.subf %703, %702 : vector<2x1xf32>
    %705 = math.exp %704 : vector<2x1xf32>
    %cst_239 = arith.constant 1.000000e+00 : f32
    %706 = vector.broadcast %cst_239 : f32 to vector<2x1xf32>
    %707 = arith.addf %706, %705 : vector<2x1xf32>
    %cst_240 = arith.constant 1.000000e+00 : f32
    %708 = vector.broadcast %cst_240 : f32 to vector<2x1xf32>
    %709 = arith.divf %708, %707 : vector<2x1xf32>
    %c0_241 = arith.constant 0 : index
    %c0_242 = arith.constant 0 : index
    %710 = vector.load %arg2[%c0_241, %c0_242] : memref<2x1xf32, #tpu.memory_space<vmem>>, vector<2x1xf32>
    tpu.vector_store %arg2[%c0_241, %c0_242], %709 {strides = array<i32>} : memref<2x1xf32, #tpu.memory_space<vmem>>, vector<2x1xf32>,
    return
  }
}

</mosaic_0001>

<llo_original>
// kernel: approximanet_forward.1
$region0: #{approximanet_forward.1}
  #allocation0 [shape = 'u32[]', space=smem, size = 0x4, offset = 0x4, fixed_abs, tag = 'smem constant byte address 0x4 - core index']
  #allocation1 [shape = 'u32[144,128]{1,0:T(1,128)}', space=vmem, size = 0x12000, scoped, tag = 'internal scratch']
  %s0 = inlined_call_operand.hbm [shape: f32[2,8,16], index: 0, kind: input, shape index: {}]
  %s1 = inlined_call_operand.hbm [shape: f32[1032,128], index: 1, kind: input, shape index: {}]
  %s2 = inlined_call_operand.vmem [shape: f32[2,1], index: 2, kind: output, shape index: {}]
  %s3 = sld [smem:[#allocation0]]
  $region26: #{approximanet_forward.1} parent=0
    _
  %s5 = ssub.s32 1, %s3
  %s6 = scalar_select 0, %s5, %s3
  $region1: #{approximanet_forward.1} parent=0
    #allocation2 [shape = 'u8[8192]{0}', space=vmem, size = 0x2000, scoped, tag = 'input window, operand 0, single buffered']
    #allocation3 [shape = 's32[1]{0}', space=sflag, size = 0x4, scoped, tag = 'scoped memory for approximanet_forward.1']
    #allocation4 [shape = 'u8[528384]{0}', space=vmem, size = 0x81000, scoped, tag = 'input window, operand 1, single buffered']
    #allocation5 [shape = 's32[1]{0}', space=sflag, size = 0x4, scoped, tag = 'scoped memory for approximanet_forward.1']
    %7 = vsyncpa [#allocation3], 0
    %8 = vsyncpa [#allocation5], 0
    // Predicated region
    $region2: #{approximanet_forward.1} parent=1 // pred_check
      _
    $region3: #{approximanet_forward.1} parent=1 // pred_check_branch
      %10 = sbr.rel (0) target = $region5
    $region4: #{approximanet_forward.1} parent=1 // pred_region
      %s12 = ssub.s32 256, 256
      %13 = vsyncadd [#allocation3], %s12
      %s14 = sshll.u32 [#allocation2], 4
      %s15 = int_to_ptr.vmem [resolvable:$true] %s14
      %20 = dma.hbm_to_vmem [thread:$0]  %s0, 256, %s15, [#allocation3], 128, 128, 8
    $region5: #{approximanet_forward.1} parent=1 // pred_fallthru
      _
    // Predicated region
    $region6: #{approximanet_forward.1} parent=1 // pred_check
      _
    $region7: #{approximanet_forward.1} parent=1 // pred_check_branch
      %22 = sbr.rel (0) target = $region9
    $region8: #{approximanet_forward.1} parent=1 // pred_region
      %s24 = ssub.s32 16512, 16512
      %25 = vsyncadd [#allocation5], %s24
      %s26 = sshll.u32 [#allocation4], 4
      %s27 = int_to_ptr.vmem [resolvable:$true] %s26
      %32 = dma.hbm_to_vmem [thread:$0]  %s1, 16512, %s27, [#allocation5], 128, 128, 8
    $region9: #{approximanet_forward.1} parent=1 // pred_fallthru
      _
    // Predicated region
    $region10: #{approximanet_forward.1} parent=1 // pred_check
      _
    $region11: #{approximanet_forward.1} parent=1 // pred_check_branch
      %34 = sbr.rel (0) target = $region13
    $region12: #{approximanet_forward.1} parent=1 // pred_region
      %35 = dma.done [#allocation3], 256
    $region13: #{approximanet_forward.1} parent=1 // pred_fallthru
      _
    // Predicated region
    $region14: #{approximanet_forward.1} parent=1 // pred_check
      _
    $region15: #{approximanet_forward.1} parent=1 // pred_check_branch
      %37 = sbr.rel (0) target = $region17
    $region16: #{approximanet_forward.1} parent=1 // pred_region
      %38 = dma.done [#allocation5], 16512
    $region17: #{approximanet_forward.1} parent=1 // pred_fallthru
      _
    %v39 = vld [vmem:[#allocation2] sm:$0xff]
    %v40 = vld [vmem:[#allocation2 + $0x8] sm:$0xff]
    %v41 = vld [vmem:[#allocation4 + $0x58] sm:$0xff]
    %v42 = vld [vmem:[#allocation4 + $0x60] sm:$0xff]
    %v43 = vld [vmem:[#allocation4 + $0x68] sm:$0x1]
    %v44 = vlaneseq
    %v45 = vshrl.u32 %v44, 7
    %v46 = vsub.s32 0, %v45
    %v47 = vrot.slane %v43, %v46
    %vm48 = vcmask 130048
    %v50 = vsel %vm48, %v39, 0
    %v53 = vsel %vm48, %v40, 0
    %55 = vmatprep.subr.mxu0 0.0
    %56 = vmatpush1.msra.mxu0 0.0
    %57 = vmatprep.subr.mxu0 0.0
    %58 = vmatpush1.msra.mxu0 0.0
    %59 = vmatprep.subr.mxu0 0.0
    %60 = vmatpush1.msra.mxu0 0.0
    %61 = vmatprep.subr.mxu0 0.0
    %62 = vmatpush1.msra.mxu0 0.0
    %63 = vmatprep.subr.mxu0 0.0
    %64 = vmatpush1.msra.mxu0 0.0
    %65 = vmatprep.subr.mxu0 0.0
    %66 = vmatpush1.msra.mxu0 0.0
    %67 = vmatprep.subr.mxu0 0.0
    %68 = vmatpush1.msra.mxu0 0.0
    %69 = vmatprep.subr.mxu0 0.0
    %70 = vmatpush1.msra.mxu0 0.0
    %71 = vmatprep.subr.mxu0 0.0
    %72 = vmatpush1.msra.mxu0 0.0
    %73 = vmatprep.subr.mxu0 0.0
    %74 = vmatpush1.msra.mxu0 0.0
    %75 = vmatprep.subr.mxu0 0.0
    %76 = vmatpush1.msra.mxu0 0.0
    %77 = vmatprep.subr.mxu0 0.0
    %78 = vmatpush1.msra.mxu0 0.0
    %79 = vmatprep.subr.mxu0 0.0
    %80 = vmatpush1.msra.mxu0 0.0
    %81 = vmatprep.subr.mxu0 0.0
    %82 = vmatpush1.msra.mxu0 0.0
    %83 = vmatprep.subr.mxu0 0.0
    %84 = vmatpush1.msra.mxu0 %v42
    %85 = vmatprep.subr.mxu0 0.0
    %86 = vmatpush1.msra.mxu0 %v41
    %87 = vmatprep.subr.mxu0 0.0
    %88 = vmatpush2.msra.mxu0 0.0
    %89 = vmatprep.subr.mxu0 0.0
    %90 = vmatpush2.msra.mxu0 0.0
    %91 = vmatprep.subr.mxu0 0.0
    %92 = vmatpush2.msra.mxu0 0.0
    %93 = vmatprep.subr.mxu0 0.0
    %94 = vmatpush2.msra.mxu0 0.0
    %95 = vmatprep.subr.mxu0 0.0
    %96 = vmatpush2.msra.mxu0 0.0
    %97 = vmatprep.subr.mxu0 0.0
    %98 = vmatpush2.msra.mxu0 0.0
    %99 = vmatprep.subr.mxu0 0.0
    %100 = vmatpush2.msra.mxu0 0.0
    %101 = vmatprep.subr.mxu0 0.0
    %102 = vmatpush2.msra.mxu0 0.0
    %103 = vmatprep.subr.mxu0 0.0
    %104 = vmatpush2.msra.mxu0 0.0
    %105 = vmatprep.subr.mxu0 0.0
    %106 = vmatpush2.msra.mxu0 0.0
    %107 = vmatprep.subr.mxu0 0.0
    %108 = vmatpush2.msra.mxu0 0.0
    %109 = vmatprep.subr.mxu0 0.0
    %110 = vmatpush2.msra.mxu0 0.0
    %111 = vmatprep.subr.mxu0 0.0
    %112 = vmatpush2.msra.mxu0 0.0
    %113 = vmatprep.subr.mxu0 0.0
    %114 = vmatpush2.msra.mxu0 0.0
    %115 = vmatprep.subr.mxu0 0.0
    %116 = vmatpush2.msra.mxu0 0.0
    %117 = vmatprep.subr.mxu0 0.0
    %118 = vmatpush2.msra.mxu0 0.0
    %119 = vmatprep.mubr.f32.mxu0 0.0
    %120 = vmatmul.mubr.f32.gmra.mxu0 %v50
    %v121 = vpop.f32.mrf.mxu0
    %v122 = vadd.f32 %v47, %v121
    %v123 = vpop.f32.mrf.mxu0
    %124 = vmatprep.mubr.f32.mxu0 0.0
    %125 = vmatmul.mubr.f32.gmra.mxu0 %v53
    %v126 = vpop.f32.mrf.mxu0
    %v127 = vadd.f32 %v47, %v126
    %v128 = vpop.f32.mrf.mxu0
    %129 = vdwg.mxu0
    %v130 = vld [vmem:[#allocation4] sm:$0xff]
    %vm131 = vcmask 64512
    %v133 = vsel %vm131, %v130, 0
    %v136 = vsel %vm131, %v122, 0
    %138 = vmatprep.subr.mxu0 0.0
    %139 = vmatpush1.xpose.msra.mxu0 0.0
    %140 = vmatprep.subr.mxu0 0.0
    %141 = vmatpush1.xpose.msra.mxu0 0.0
    %142 = vmatprep.subr.mxu0 0.0
    %143 = vmatpush1.xpose.msra.mxu0 0.0
    %144 = vmatprep.subr.mxu0 0.0
    %145 = vmatpush1.xpose.msra.mxu0 0.0
    %146 = vmatprep.subr.mxu0 0.0
    %147 = vmatpush1.xpose.msra.mxu0 0.0
    %148 = vmatprep.subr.mxu0 0.0
    %149 = vmatpush1.xpose.msra.mxu0 0.0
    %150 = vmatprep.subr.mxu0 0.0
    %151 = vmatpush1.xpose.msra.mxu0 0.0
    %152 = vmatprep.subr.mxu0 0.0
    %153 = vmatpush1.xpose.msra.mxu0 0.0
    %154 = vmatprep.subr.mxu0 0.0
    %155 = vmatpush1.xpose.msra.mxu0 0.0
    %156 = vmatprep.subr.mxu0 0.0
    %157 = vmatpush1.xpose.msra.mxu0 0.0
    %158 = vmatprep.subr.mxu0 0.0
    %159 = vmatpush1.xpose.msra.mxu0 0.0
    %160 = vmatprep.subr.mxu0 0.0
    %161 = vmatpush1.xpose.msra.mxu0 0.0
    %162 = vmatprep.subr.mxu0 0.0
    %163 = vmatpush1.xpose.msra.mxu0 0.0
    %164 = vmatprep.subr.mxu0 0.0
    %165 = vmatpush1.xpose.msra.mxu0 0.0
    %166 = vmatprep.subr.mxu0 0.0
    %167 = vmatpush1.xpose.msra.mxu0 0.0
    %168 = vmatprep.subr.mxu0 0.0
    %169 = vmatpush1.xpose.msra.mxu0 %v136
    %170 = vmatprep.subr.mxu0 0.0
    %171 = vmatpush2.xpose.msra.mxu0 0.0
    %172 = vmatprep.subr.mxu0 0.0
    %173 = vmatpush2.xpose.msra.mxu0 0.0
    %174 = vmatprep.subr.mxu0 0.0
    %175 = vmatpush2.xpose.msra.mxu0 0.0
    %176 = vmatprep.subr.mxu0 0.0
    %177 = vmatpush2.xpose.msra.mxu0 0.0
    %178 = vmatprep.subr.mxu0 0.0
    %179 = vmatpush2.xpose.msra.mxu0 0.0
    %180 = vmatprep.subr.mxu0 0.0
    %181 = vmatpush2.xpose.msra.mxu0 0.0
    %182 = vmatprep.subr.mxu0 0.0
    %183 = vmatpush2.xpose.msra.mxu0 0.0
    %184 = vmatprep.subr.mxu0 0.0
    %185 = vmatpush2.xpose.msra.mxu0 0.0
    %186 = vmatprep.subr.mxu0 0.0
    %187 = vmatpush2.xpose.msra.mxu0 0.0
    %188 = vmatprep.subr.mxu0 0.0
    %189 = vmatpush2.xpose.msra.mxu0 0.0
    %190 = vmatprep.subr.mxu0 0.0
    %191 = vmatpush2.xpose.msra.mxu0 0.0
    %192 = vmatprep.subr.mxu0 0.0
    %193 = vmatpush2.xpose.msra.mxu0 0.0
    %194 = vmatprep.subr.mxu0 0.0
    %195 = vmatpush2.xpose.msra.mxu0 0.0
    %196 = vmatprep.subr.mxu0 0.0
    %197 = vmatpush2.xpose.msra.mxu0 0.0
    %198 = vmatprep.subr.mxu0 0.0
    %199 = vmatpush2.xpose.msra.mxu0 0.0
    %200 = vmatprep.subr.mxu0 0.0
    %201 = vmatpush2.xpose.msra.mxu0 0.0
    %202 = vmatprep.mubr.f32.mxu0 0.0
    %203 = vmatmul.mubr.f32.gmra.mxu0 %v133
    %v204 = vpop.f32.mrf.mxu0
    %v205 = vadd.f32 0.0, %v204
    %v206 = vpop.f32.mrf.mxu0
    %207 = vdwg.mxu0
    %v209 = vsel %vm131, %v127, 0
    %211 = vmatprep.subr.mxu0 0.0
    %212 = vmatpush1.xpose.msra.mxu0 0.0
    %213 = vmatprep.subr.mxu0 0.0
    %214 = vmatpush1.xpose.msra.mxu0 0.0
    %215 = vmatprep.subr.mxu0 0.0
    %216 = vmatpush1.xpose.msra.mxu0 0.0
    %217 = vmatprep.subr.mxu0 0.0
    %218 = vmatpush1.xpose.msra.mxu0 0.0
    %219 = vmatprep.subr.mxu0 0.0
    %220 = vmatpush1.xpose.msra.mxu0 0.0
    %221 = vmatprep.subr.mxu0 0.0
    %222 = vmatpush1.xpose.msra.mxu0 0.0
    %223 = vmatprep.subr.mxu0 0.0
    %224 = vmatpush1.xpose.msra.mxu0 0.0
    %225 = vmatprep.subr.mxu0 0.0
    %226 = vmatpush1.xpose.msra.mxu0 0.0
    %227 = vmatprep.subr.mxu0 0.0
    %228 = vmatpush1.xpose.msra.mxu0 0.0
    %229 = vmatprep.subr.mxu0 0.0
    %230 = vmatpush1.xpose.msra.mxu0 0.0
    %231 = vmatprep.subr.mxu0 0.0
    %232 = vmatpush1.xpose.msra.mxu0 0.0
    %233 = vmatprep.subr.mxu0 0.0
    %234 = vmatpush1.xpose.msra.mxu0 0.0
    %235 = vmatprep.subr.mxu0 0.0
    %236 = vmatpush1.xpose.msra.mxu0 0.0
    %237 = vmatprep.subr.mxu0 0.0
    %238 = vmatpush1.xpose.msra.mxu0 0.0
    %239 = vmatprep.subr.mxu0 0.0
    %240 = vmatpush1.xpose.msra.mxu0 0.0
    %241 = vmatprep.subr.mxu0 0.0
    %242 = vmatpush1.xpose.msra.mxu0 %v209
    %243 = vmatprep.subr.mxu0 0.0
    %244 = vmatpush2.xpose.msra.mxu0 0.0
    %245 = vmatprep.subr.mxu0 0.0
    %246 = vmatpush2.xpose.msra.mxu0 0.0
    %247 = vmatprep.subr.mxu0 0.0
    %248 = vmatpush2.xpose.msra.mxu0 0.0
    %249 = vmatprep.subr.mxu0 0.0
    %250 = vmatpush2.xpose.msra.mxu0 0.0
    %251 = vmatprep.subr.mxu0 0.0
    %252 = vmatpush2.xpose.msra.mxu0 0.0
    %253 = vmatprep.subr.mxu0 0.0
    %254 = vmatpush2.xpose.msra.mxu0 0.0
    %255 = vmatprep.subr.mxu0 0.0
    %256 = vmatpush2.xpose.msra.mxu0 0.0
    %257 = vmatprep.subr.mxu0 0.0
    %258 = vmatpush2.xpose.msra.mxu0 0.0
    %259 = vmatprep.subr.mxu0 0.0
    %260 = vmatpush2.xpose.msra.mxu0 0.0
    %261 = vmatprep.subr.mxu0 0.0
    %262 = vmatpush2.xpose.msra.mxu0 0.0
    %263 = vmatprep.subr.mxu0 0.0
    %264 = vmatpush2.xpose.msra.mxu0 0.0
    %265 = vmatprep.subr.mxu0 0.0
    %266 = vmatpush2.xpose.msra.mxu0 0.0
    %267 = vmatprep.subr.mxu0 0.0
    %268 = vmatpush2.xpose.msra.mxu0 0.0
    %269 = vmatprep.subr.mxu0 0.0
    %270 = vmatpush2.xpose.msra.mxu0 0.0
    %271 = vmatprep.subr.mxu0 0.0
    %272 = vmatpush2.xpose.msra.mxu0 0.0
    %273 = vmatprep.subr.mxu0 0.0
    %274 = vmatpush2.xpose.msra.mxu0 0.0
    %275 = vmatprep.mubr.f32.mxu0 0.0
    %276 = vmatmul.mubr.f32.gmra.mxu0 %v133
    %v277 = vpop.f32.mrf.mxu0
    %v278 = vadd.f32 0.0, %v277
    %v279 = vpop.f32.mrf.mxu0
    %280 = vdwg.mxu0
    %v281 = vmul.f32 %v205, 0.17677669
    %v282 = vmul.f32 %v278, 0.17677669
    %v283 = vsel %vm131, %v281, -inf
    %284 = vmax.xlane.f32.xlu0 %v283
    %v285 = vpop.xlane.xlu0 %284
    %v286 = vsel %vm131, %v282, -inf
    %287 = vmax.xlane.f32.xlu0 %v286
    %v288 = vpop.xlane.xlu0 %287
    %v289 = vsub.f32 %v281, %v285
    %v290 = vsub.f32 %v282, %v288
    %v291 = vmul.f32 %v289, 1.442695
    %v292 = vpow.pop %v291
    %v293 = vmul.f32 %v290, 1.442695
    %v294 = vpow.pop %v293
    %v295 = vsel %vm131, %v292, 0.0
    %296 = vadd.xlane.f32.xlu0 %v295
    %v297 = vpop.xlane.xlu0 %296
    %v298 = vsel %vm131, %v294, 0.0
    %299 = vadd.xlane.f32.xlu0 %v298
    %v300 = vpop.xlane.xlu0 %299
    %v301 = vrcp.pop %v297
    %v302 = vmul.f32 %v292, %v301
    %v303 = vrcp.pop %v300
    %v304 = vmul.f32 %v294, %v303
    %305 = vrot.lane.b32.xlu0 %v122, 96
    %v306 = vpop.permute.xlu0 %305
    %v309 = vsel %vm131, %v302, 0
    %311 = vmatprep.subr.mxu0 0.0
    %312 = vmatpush1.msra.mxu0 0.0
    %313 = vmatprep.subr.mxu0 0.0
    %314 = vmatpush1.msra.mxu0 0.0
    %315 = vmatprep.subr.mxu0 0.0
    %316 = vmatpush1.msra.mxu0 0.0
    %317 = vmatprep.subr.mxu0 0.0
    %318 = vmatpush1.msra.mxu0 0.0
    %319 = vmatprep.subr.mxu0 0.0
    %320 = vmatpush1.msra.mxu0 0.0
    %321 = vmatprep.subr.mxu0 0.0
    %322 = vmatpush1.msra.mxu0 0.0
    %323 = vmatprep.subr.mxu0 0.0
    %324 = vmatpush1.msra.mxu0 0.0
    %325 = vmatprep.subr.mxu0 0.0
    %326 = vmatpush1.msra.mxu0 0.0
    %327 = vmatprep.subr.mxu0 0.0
    %328 = vmatpush1.msra.mxu0 0.0
    %329 = vmatprep.subr.mxu0 0.0
    %330 = vmatpush1.msra.mxu0 0.0
    %331 = vmatprep.subr.mxu0 0.0
    %332 = vmatpush1.msra.mxu0 0.0
    %333 = vmatprep.subr.mxu0 0.0
    %334 = vmatpush1.msra.mxu0 0.0
    %335 = vmatprep.subr.mxu0 0.0
    %336 = vmatpush1.msra.mxu0 0.0
    %337 = vmatprep.subr.mxu0 0.0
    %338 = vmatpush1.msra.mxu0 0.0
    %339 = vmatprep.subr.mxu0 0.0
    %340 = vmatpush1.msra.mxu0 0.0
    %341 = vmatprep.subr.mxu0 0.0
    %342 = vmatpush1.msra.mxu0 %v306
    %343 = vmatprep.subr.mxu0 0.0
    %344 = vmatpush2.msra.mxu0 0.0
    %345 = vmatprep.subr.mxu0 0.0
    %346 = vmatpush2.msra.mxu0 0.0
    %347 = vmatprep.subr.mxu0 0.0
    %348 = vmatpush2.msra.mxu0 0.0
    %349 = vmatprep.subr.mxu0 0.0
    %350 = vmatpush2.msra.mxu0 0.0
    %351 = vmatprep.subr.mxu0 0.0
    %352 = vmatpush2.msra.mxu0 0.0
    %353 = vmatprep.subr.mxu0 0.0
    %354 = vmatpush2.msra.mxu0 0.0
    %355 = vmatprep.subr.mxu0 0.0
    %356 = vmatpush2.msra.mxu0 0.0
    %357 = vmatprep.subr.mxu0 0.0
    %358 = vmatpush2.msra.mxu0 0.0
    %359 = vmatprep.subr.mxu0 0.0
    %360 = vmatpush2.msra.mxu0 0.0
    %361 = vmatprep.subr.mxu0 0.0
    %362 = vmatpush2.msra.mxu0 0.0
    %363 = vmatprep.subr.mxu0 0.0
    %364 = vmatpush2.msra.mxu0 0.0
    %365 = vmatprep.subr.mxu0 0.0
    %366 = vmatpush2.msra.mxu0 0.0
    %367 = vmatprep.subr.mxu0 0.0
    %368 = vmatpush2.msra.mxu0 0.0
    %369 = vmatprep.subr.mxu0 0.0
    %370 = vmatpush2.msra.mxu0 0.0
    %371 = vmatprep.subr.mxu0 0.0
    %372 = vmatpush2.msra.mxu0 0.0
    %373 = vmatprep.subr.mxu0 0.0
    %374 = vmatpush2.msra.mxu0 0.0
    %375 = vmatprep.mubr.f32.mxu0 0.0
    %376 = vmatmul.mubr.f32.gmra.mxu0 %v309
    %v377 = vpop.f32.mrf.mxu0
    %v378 = vadd.f32 0.0, %v377
    %v379 = vpop.f32.mrf.mxu0
    %380 = vdwg.mxu0
    %381 = vrot.lane.b32.xlu0 %v127, 96
    %v382 = vpop.permute.xlu0 %381
    %v385 = vsel %vm131, %v304, 0
    %387 = vmatprep.subr.mxu0 0.0
    %388 = vmatpush1.msra.mxu0 0.0
    %389 = vmatprep.subr.mxu0 0.0
    %390 = vmatpush1.msra.mxu0 0.0
    %391 = vmatprep.subr.mxu0 0.0
    %392 = vmatpush1.msra.mxu0 0.0
    %393 = vmatprep.subr.mxu0 0.0
    %394 = vmatpush1.msra.mxu0 0.0
    %395 = vmatprep.subr.mxu0 0.0
    %396 = vmatpush1.msra.mxu0 0.0
    %397 = vmatprep.subr.mxu0 0.0
    %398 = vmatpush1.msra.mxu0 0.0
    %399 = vmatprep.subr.mxu0 0.0
    %400 = vmatpush1.msra.mxu0 0.0
    %401 = vmatprep.subr.mxu0 0.0
    %402 = vmatpush1.msra.mxu0 0.0
    %403 = vmatprep.subr.mxu0 0.0
    %404 = vmatpush1.msra.mxu0 0.0
    %405 = vmatprep.subr.mxu0 0.0
    %406 = vmatpush1.msra.mxu0 0.0
    %407 = vmatprep.subr.mxu0 0.0
    %408 = vmatpush1.msra.mxu0 0.0
    %409 = vmatprep.subr.mxu0 0.0
    %410 = vmatpush1.msra.mxu0 0.0
    %411 = vmatprep.subr.mxu0 0.0
    %412 = vmatpush1.msra.mxu0 0.0
    %413 = vmatprep.subr.mxu0 0.0
    %414 = vmatpush1.msra.mxu0 0.0
    %415 = vmatprep.subr.mxu0 0.0
    %416 = vmatpush1.msra.mxu0 0.0
    %417 = vmatprep.subr.mxu0 0.0
    %418 = vmatpush1.msra.mxu0 %v382
    %419 = vmatprep.subr.mxu0 0.0
    %420 = vmatpush2.msra.mxu0 0.0
    %421 = vmatprep.subr.mxu0 0.0
    %422 = vmatpush2.msra.mxu0 0.0
    %423 = vmatprep.subr.mxu0 0.0
    %424 = vmatpush2.msra.mxu0 0.0
    %425 = vmatprep.subr.mxu0 0.0
    %426 = vmatpush2.msra.mxu0 0.0
    %427 = vmatprep.subr.mxu0 0.0
    %428 = vmatpush2.msra.mxu0 0.0
    %429 = vmatprep.subr.mxu0 0.0
    %430 = vmatpush2.msra.mxu0 0.0
    %431 = vmatprep.subr.mxu0 0.0
    %432 = vmatpush2.msra.mxu0 0.0
    %433 = vmatprep.subr.mxu0 0.0
    %434 = vmatpush2.msra.mxu0 0.0
    %435 = vmatprep.subr.mxu0 0.0
    %436 = vmatpush2.msra.mxu0 0.0
    %437 = vmatprep.subr.mxu0 0.0
    %438 = vmatpush2.msra.mxu0 0.0
    %439 = vmatprep.subr.mxu0 0.0
    %440 = vmatpush2.msra.mxu0 0.0
    %441 = vmatprep.subr.mxu0 0.0
    %442 = vmatpush2.msra.mxu0 0.0
    %443 = vmatprep.subr.mxu0 0.0
    %444 = vmatpush2.msra.mxu0 0.0
    %445 = vmatprep.subr.mxu0 0.0
    %446 = vmatpush2.msra.mxu0 0.0
    %447 = vmatprep.subr.mxu0 0.0
    %448 = vmatpush2.msra.mxu0 0.0
    %449 = vmatprep.subr.mxu0 0.0
    %450 = vmatpush2.msra.mxu0 0.0
    %451 = vmatprep.mubr.f32.mxu0 0.0
    %452 = vmatmul.mubr.f32.gmra.mxu0 %v385
    %v453 = vpop.f32.mrf.mxu0
    %v454 = vadd.f32 0.0, %v453
    %v455 = vpop.f32.mrf.mxu0
    %456 = vdwg.mxu0
    %v457 = vadd.f32 %v130, %v378
    %v458 = vadd.f32 %v130, %v454
    %459 = vrot.lane.b32.xlu0 %v130, 120
    %v460 = vpop.permute.xlu0 %459
    %461 = vrot.lane.b32.xlu0 %v122, 120
    %v462 = vpop.permute.xlu0 %461
    %v463 = vsel %vm131, %v460, 0
    %v465 = vsel %vm131, %v462, 0
    %467 = vmatprep.subr.mxu0 0.0
    %468 = vmatpush1.xpose.msra.mxu0 0.0
    %469 = vmatprep.subr.mxu0 0.0
    %470 = vmatpush1.xpose.msra.mxu0 0.0
    %471 = vmatprep.subr.mxu0 0.0
    %472 = vmatpush1.xpose.msra.mxu0 0.0
    %473 = vmatprep.subr.mxu0 0.0
    %474 = vmatpush1.xpose.msra.mxu0 0.0
    %475 = vmatprep.subr.mxu0 0.0
    %476 = vmatpush1.xpose.msra.mxu0 0.0
    %477 = vmatprep.subr.mxu0 0.0
    %478 = vmatpush1.xpose.msra.mxu0 0.0
    %479 = vmatprep.subr.mxu0 0.0
    %480 = vmatpush1.xpose.msra.mxu0 0.0
    %481 = vmatprep.subr.mxu0 0.0
    %482 = vmatpush1.xpose.msra.mxu0 0.0
    %483 = vmatprep.subr.mxu0 0.0
    %484 = vmatpush1.xpose.msra.mxu0 0.0
    %485 = vmatprep.subr.mxu0 0.0
    %486 = vmatpush1.xpose.msra.mxu0 0.0
    %487 = vmatprep.subr.mxu0 0.0
    %488 = vmatpush1.xpose.msra.mxu0 0.0
    %489 = vmatprep.subr.mxu0 0.0
    %490 = vmatpush1.xpose.msra.mxu0 0.0
    %491 = vmatprep.subr.mxu0 0.0
    %492 = vmatpush1.xpose.msra.mxu0 0.0
    %493 = vmatprep.subr.mxu0 0.0
    %494 = vmatpush1.xpose.msra.mxu0 0.0
    %495 = vmatprep.subr.mxu0 0.0
    %496 = vmatpush1.xpose.msra.mxu0 0.0
    %497 = vmatprep.subr.mxu0 0.0
    %498 = vmatpush1.xpose.msra.mxu0 %v465
    %499 = vmatprep.subr.mxu0 0.0
    %500 = vmatpush2.xpose.msra.mxu0 0.0
    %501 = vmatprep.subr.mxu0 0.0
    %502 = vmatpush2.xpose.msra.mxu0 0.0
    %503 = vmatprep.subr.mxu0 0.0
    %504 = vmatpush2.xpose.msra.mxu0 0.0
    %505 = vmatprep.subr.mxu0 0.0
    %506 = vmatpush2.xpose.msra.mxu0 0.0
    %507 = vmatprep.subr.mxu0 0.0
    %508 = vmatpush2.xpose.msra.mxu0 0.0
    %509 = vmatprep.subr.mxu0 0.0
    %510 = vmatpush2.xpose.msra.mxu0 0.0
    %511 = vmatprep.subr.mxu0 0.0
    %512 = vmatpush2.xpose.msra.mxu0 0.0
    %513 = vmatprep.subr.mxu0 0.0
    %514 = vmatpush2.xpose.msra.mxu0 0.0
    %515 = vmatprep.subr.mxu0 0.0
    %516 = vmatpush2.xpose.msra.mxu0 0.0
    %517 = vmatprep.subr.mxu0 0.0
    %518 = vmatpush2.xpose.msra.mxu0 0.0
    %519 = vmatprep.subr.mxu0 0.0
    %520 = vmatpush2.xpose.msra.mxu0 0.0
    %521 = vmatprep.subr.mxu0 0.0
    %522 = vmatpush2.xpose.msra.mxu0 0.0
    %523 = vmatprep.subr.mxu0 0.0
    %524 = vmatpush2.xpose.msra.mxu0 0.0
    %525 = vmatprep.subr.mxu0 0.0
    %526 = vmatpush2.xpose.msra.mxu0 0.0
    %527 = vmatprep.subr.mxu0 0.0
    %528 = vmatpush2.xpose.msra.mxu0 0.0
    %529 = vmatprep.subr.mxu0 0.0
    %530 = vmatpush2.xpose.msra.mxu0 0.0
    %531 = vmatprep.mubr.f32.mxu0 0.0
    %532 = vmatmul.mubr.f32.gmra.mxu0 %v463
    %v533 = vpop.f32.mrf.mxu0
    %v534 = vadd.f32 0.0, %v533
    %v535 = vpop.f32.mrf.mxu0
    %536 = vdwg.mxu0
    %537 = vrot.lane.b32.xlu0 %v127, 120
    %v538 = vpop.permute.xlu0 %537
    %v539 = vsel %vm131, %v538, 0
    %541 = vmatprep.subr.mxu0 0.0
    %542 = vmatpush1.xpose.msra.mxu0 0.0
    %543 = vmatprep.subr.mxu0 0.0
    %544 = vmatpush1.xpose.msra.mxu0 0.0
    %545 = vmatprep.subr.mxu0 0.0
    %546 = vmatpush1.xpose.msra.mxu0 0.0
    %547 = vmatprep.subr.mxu0 0.0
    %548 = vmatpush1.xpose.msra.mxu0 0.0
    %549 = vmatprep.subr.mxu0 0.0
    %550 = vmatpush1.xpose.msra.mxu0 0.0
    %551 = vmatprep.subr.mxu0 0.0
    %552 = vmatpush1.xpose.msra.mxu0 0.0
    %553 = vmatprep.subr.mxu0 0.0
    %554 = vmatpush1.xpose.msra.mxu0 0.0
    %555 = vmatprep.subr.mxu0 0.0
    %556 = vmatpush1.xpose.msra.mxu0 0.0
    %557 = vmatprep.subr.mxu0 0.0
    %558 = vmatpush1.xpose.msra.mxu0 0.0
    %559 = vmatprep.subr.mxu0 0.0
    %560 = vmatpush1.xpose.msra.mxu0 0.0
    %561 = vmatprep.subr.mxu0 0.0
    %562 = vmatpush1.xpose.msra.mxu0 0.0
    %563 = vmatprep.subr.mxu0 0.0
    %564 = vmatpush1.xpose.msra.mxu0 0.0
    %565 = vmatprep.subr.mxu0 0.0
    %566 = vmatpush1.xpose.msra.mxu0 0.0
    %567 = vmatprep.subr.mxu0 0.0
    %568 = vmatpush1.xpose.msra.mxu0 0.0
    %569 = vmatprep.subr.mxu0 0.0
    %570 = vmatpush1.xpose.msra.mxu0 0.0
    %571 = vmatprep.subr.mxu0 0.0
    %572 = vmatpush1.xpose.msra.mxu0 %v539
    %573 = vmatprep.subr.mxu0 0.0
    %574 = vmatpush2.xpose.msra.mxu0 0.0
    %575 = vmatprep.subr.mxu0 0.0
    %576 = vmatpush2.xpose.msra.mxu0 0.0
    %577 = vmatprep.subr.mxu0 0.0
    %578 = vmatpush2.xpose.msra.mxu0 0.0
    %579 = vmatprep.subr.mxu0 0.0
    %580 = vmatpush2.xpose.msra.mxu0 0.0
    %581 = vmatprep.subr.mxu0 0.0
    %582 = vmatpush2.xpose.msra.mxu0 0.0
    %583 = vmatprep.subr.mxu0 0.0
    %584 = vmatpush2.xpose.msra.mxu0 0.0
    %585 = vmatprep.subr.mxu0 0.0
    %586 = vmatpush2.xpose.msra.mxu0 0.0
    %587 = vmatprep.subr.mxu0 0.0
    %588 = vmatpush2.xpose.msra.mxu0 0.0
    %589 = vmatprep.subr.mxu0 0.0
    %590 = vmatpush2.xpose.msra.mxu0 0.0
    %591 = vmatprep.subr.mxu0 0.0
    %592 = vmatpush2.xpose.msra.mxu0 0.0
    %593 = vmatprep.subr.mxu0 0.0
    %594 = vmatpush2.xpose.msra.mxu0 0.0
    %595 = vmatprep.subr.mxu0 0.0
    %596 = vmatpush2.xpose.msra.mxu0 0.0
    %597 = vmatprep.subr.mxu0 0.0
    %598 = vmatpush2.xpose.msra.mxu0 0.0
    %599 = vmatprep.subr.mxu0 0.0
    %600 = vmatpush2.xpose.msra.mxu0 0.0
    %601 = vmatprep.subr.mxu0 0.0
    %602 = vmatpush2.xpose.msra.mxu0 0.0
    %603 = vmatprep.subr.mxu0 0.0
    %604 = vmatpush2.xpose.msra.mxu0 0.0
    %605 = vmatprep.mubr.f32.mxu0 0.0
    %606 = vmatmul.mubr.f32.gmra.mxu0 %v463
    %v607 = vpop.f32.mrf.mxu0
    %v608 = vadd.f32 0.0, %v607
    %v609 = vpop.f32.mrf.mxu0
    %610 = vdwg.mxu0
    %v611 = vmul.f32 %v534, 0.17677669
    %v612 = vmul.f32 %v608, 0.17677669
    %v613 = vsel %vm131, %v611, -inf
    %614 = vmax.xlane.f32.xlu0 %v613
    %v615 = vpop.xlane.xlu0 %614
    %v616 = vsel %vm131, %v612, -inf
    %617 = vmax.xlane.f32.xlu0 %v616
    %v618 = vpop.xlane.xlu0 %617
    %v619 = vsub.f32 %v611, %v615
    %v620 = vsub.f32 %v612, %v618
    %v621 = vmul.f32 %v619, 1.442695
    %v622 = vpow.pop %v621
    %v623 = vmul.f32 %v620, 1.442695
    %v624 = vpow.pop %v623
    %v625 = vsel %vm131, %v622, 0.0
    %626 = vadd.xlane.f32.xlu0 %v625
    %v627 = vpop.xlane.xlu0 %626
    %v628 = vsel %vm131, %v624, 0.0
    %629 = vadd.xlane.f32.xlu0 %v628
    %v630 = vpop.xlane.xlu0 %629
    %v631 = vrcp.pop %v627
    %v632 = vmul.f32 %v622, %v631
    %v633 = vrcp.pop %v630
    %v634 = vmul.f32 %v624, %v633
    %635 = vrot.lane.b32.xlu0 %v122, 88
    %v636 = vpop.permute.xlu0 %635
    %v639 = vsel %vm131, %v632, 0
    %641 = vmatprep.subr.mxu0 0.0
    %642 = vmatpush1.msra.mxu0 0.0
    %643 = vmatprep.subr.mxu0 0.0
    %644 = vmatpush1.msra.mxu0 0.0
    %645 = vmatprep.subr.mxu0 0.0
    %646 = vmatpush1.msra.mxu0 0.0
    %647 = vmatprep.subr.mxu0 0.0
    %648 = vmatpush1.msra.mxu0 0.0
    %649 = vmatprep.subr.mxu0 0.0
    %650 = vmatpush1.msra.mxu0 0.0
    %651 = vmatprep.subr.mxu0 0.0
    %652 = vmatpush1.msra.mxu0 0.0
    %653 = vmatprep.subr.mxu0 0.0
    %654 = vmatpush1.msra.mxu0 0.0
    %655 = vmatprep.subr.mxu0 0.0
    %656 = vmatpush1.msra.mxu0 0.0
    %657 = vmatprep.subr.mxu0 0.0
    %658 = vmatpush1.msra.mxu0 0.0
    %659 = vmatprep.subr.mxu0 0.0
    %660 = vmatpush1.msra.mxu0 0.0
    %661 = vmatprep.subr.mxu0 0.0
    %662 = vmatpush1.msra.mxu0 0.0
    %663 = vmatprep.subr.mxu0 0.0
    %664 = vmatpush1.msra.mxu0 0.0
    %665 = vmatprep.subr.mxu0 0.0
    %666 = vmatpush1.msra.mxu0 0.0
    %667 = vmatprep.subr.mxu0 0.0
    %668 = vmatpush1.msra.mxu0 0.0
    %669 = vmatprep.subr.mxu0 0.0
    %670 = vmatpush1.msra.mxu0 0.0
    %671 = vmatprep.subr.mxu0 0.0
    %672 = vmatpush1.msra.mxu0 %v636
    %673 = vmatprep.subr.mxu0 0.0
    %674 = vmatpush2.msra.mxu0 0.0
    %675 = vmatprep.subr.mxu0 0.0
    %676 = vmatpush2.msra.mxu0 0.0
    %677 = vmatprep.subr.mxu0 0.0
    %678 = vmatpush2.msra.mxu0 0.0
    %679 = vmatprep.subr.mxu0 0.0
    %680 = vmatpush2.msra.mxu0 0.0
    %681 = vmatprep.subr.mxu0 0.0
    %682 = vmatpush2.msra.mxu0 0.0
    %683 = vmatprep.subr.mxu0 0.0
    %684 = vmatpush2.msra.mxu0 0.0
    %685 = vmatprep.subr.mxu0 0.0
    %686 = vmatpush2.msra.mxu0 0.0
    %687 = vmatprep.subr.mxu0 0.0
    %688 = vmatpush2.msra.mxu0 0.0
    %689 = vmatprep.subr.mxu0 0.0
    %690 = vmatpush2.msra.mxu0 0.0
    %691 = vmatprep.subr.mxu0 0.0
    %692 = vmatpush2.msra.mxu0 0.0
    %693 = vmatprep.subr.mxu0 0.0
    %694 = vmatpush2.msra.mxu0 0.0
    %695 = vmatprep.subr.mxu0 0.0
    %696 = vmatpush2.msra.mxu0 0.0
    %697 = vmatprep.subr.mxu0 0.0
    %698 = vmatpush2.msra.mxu0 0.0
    %699 = vmatprep.subr.mxu0 0.0
    %700 = vmatpush2.msra.mxu0 0.0
    %701 = vmatprep.subr.mxu0 0.0
    %702 = vmatpush2.msra.mxu0 0.0
    %703 = vmatprep.subr.mxu0 0.0
    %704 = vmatpush2.msra.mxu0 0.0
    %705 = vmatprep.mubr.f32.mxu0 0.0
    %706 = vmatmul.mubr.f32.gmra.mxu0 %v639
    %v707 = vpop.f32.mrf.mxu0
    %v708 = vadd.f32 0.0, %v707
    %v709 = vpop.f32.mrf.mxu0
    %710 = vdwg.mxu0
    %711 = vrot.lane.b32.xlu0 %v127, 88
    %v712 = vpop.permute.xlu0 %711
    %v715 = vsel %vm131, %v634, 0
    %717 = vmatprep.subr.mxu0 0.0
    %718 = vmatpush1.msra.mxu0 0.0
    %719 = vmatprep.subr.mxu0 0.0
    %720 = vmatpush1.msra.mxu0 0.0
    %721 = vmatprep.subr.mxu0 0.0
    %722 = vmatpush1.msra.mxu0 0.0
    %723 = vmatprep.subr.mxu0 0.0
    %724 = vmatpush1.msra.mxu0 0.0
    %725 = vmatprep.subr.mxu0 0.0
    %726 = vmatpush1.msra.mxu0 0.0
    %727 = vmatprep.subr.mxu0 0.0
    %728 = vmatpush1.msra.mxu0 0.0
    %729 = vmatprep.subr.mxu0 0.0
    %730 = vmatpush1.msra.mxu0 0.0
    %731 = vmatprep.subr.mxu0 0.0
    %732 = vmatpush1.msra.mxu0 0.0
    %733 = vmatprep.subr.mxu0 0.0
    %734 = vmatpush1.msra.mxu0 0.0
    %735 = vmatprep.subr.mxu0 0.0
    %736 = vmatpush1.msra.mxu0 0.0
    %737 = vmatprep.subr.mxu0 0.0
    %738 = vmatpush1.msra.mxu0 0.0
    %739 = vmatprep.subr.mxu0 0.0
    %740 = vmatpush1.msra.mxu0 0.0
    %741 = vmatprep.subr.mxu0 0.0
    %742 = vmatpush1.msra.mxu0 0.0
    %743 = vmatprep.subr.mxu0 0.0
    %744 = vmatpush1.msra.mxu0 0.0
    %745 = vmatprep.subr.mxu0 0.0
    %746 = vmatpush1.msra.mxu0 0.0
    %747 = vmatprep.subr.mxu0 0.0
    %748 = vmatpush1.msra.mxu0 %v712
    %749 = vmatprep.subr.mxu0 0.0
    %750 = vmatpush2.msra.mxu0 0.0
    %751 = vmatprep.subr.mxu0 0.0
    %752 = vmatpush2.msra.mxu0 0.0
    %753 = vmatprep.subr.mxu0 0.0
    %754 = vmatpush2.msra.mxu0 0.0
    %755 = vmatprep.subr.mxu0 0.0
    %756 = vmatpush2.msra.mxu0 0.0
    %757 = vmatprep.subr.mxu0 0.0
    %758 = vmatpush2.msra.mxu0 0.0
    %759 = vmatprep.subr.mxu0 0.0
    %760 = vmatpush2.msra.mxu0 0.0
    %761 = vmatprep.subr.mxu0 0.0
    %762 = vmatpush2.msra.mxu0 0.0
    %763 = vmatprep.subr.mxu0 0.0
    %764 = vmatpush2.msra.mxu0 0.0
    %765 = vmatprep.subr.mxu0 0.0
    %766 = vmatpush2.msra.mxu0 0.0
    %767 = vmatprep.subr.mxu0 0.0
    %768 = vmatpush2.msra.mxu0 0.0
    %769 = vmatprep.subr.mxu0 0.0
    %770 = vmatpush2.msra.mxu0 0.0
    %771 = vmatprep.subr.mxu0 0.0
    %772 = vmatpush2.msra.mxu0 0.0
    %773 = vmatprep.subr.mxu0 0.0
    %774 = vmatpush2.msra.mxu0 0.0
    %775 = vmatprep.subr.mxu0 0.0
    %776 = vmatpush2.msra.mxu0 0.0
    %777 = vmatprep.subr.mxu0 0.0
    %778 = vmatpush2.msra.mxu0 0.0
    %779 = vmatprep.subr.mxu0 0.0
    %780 = vmatpush2.msra.mxu0 0.0
    %781 = vmatprep.mubr.f32.mxu0 0.0
    %782 = vmatmul.mubr.f32.gmra.mxu0 %v715
    %v783 = vpop.f32.mrf.mxu0
    %v784 = vadd.f32 0.0, %v783
    %v785 = vpop.f32.mrf.mxu0
    %786 = vdwg.mxu0
    %789 = vrot.lane.b32.xlu0 %v708, 8
    %v790 = vpop.permute.xlu0 %789
    %791 = vrot.lane.b32.xlu0 %v784, 8
    %v792 = vpop.permute.xlu0 %791
    %v795 = vadd.f32 %v130, %v790
    %v796 = vadd.f32 %v130, %v792
    %797 = vrot.lane.b32.xlu0 %v130, 112
    %v798 = vpop.permute.xlu0 %797
    %799 = vrot.lane.b32.xlu0 %v122, 112
    %v800 = vpop.permute.xlu0 %799
    %v801 = vsel %vm131, %v798, 0
    %v803 = vsel %vm131, %v800, 0
    %805 = vmatprep.subr.mxu0 0.0
    %806 = vmatpush1.xpose.msra.mxu0 0.0
    %807 = vmatprep.subr.mxu0 0.0
    %808 = vmatpush1.xpose.msra.mxu0 0.0
    %809 = vmatprep.subr.mxu0 0.0
    %810 = vmatpush1.xpose.msra.mxu0 0.0
    %811 = vmatprep.subr.mxu0 0.0
    %812 = vmatpush1.xpose.msra.mxu0 0.0
    %813 = vmatprep.subr.mxu0 0.0
    %814 = vmatpush1.xpose.msra.mxu0 0.0
    %815 = vmatprep.subr.mxu0 0.0
    %816 = vmatpush1.xpose.msra.mxu0 0.0
    %817 = vmatprep.subr.mxu0 0.0
    %818 = vmatpush1.xpose.msra.mxu0 0.0
    %819 = vmatprep.subr.mxu0 0.0
    %820 = vmatpush1.xpose.msra.mxu0 0.0
    %821 = vmatprep.subr.mxu0 0.0
    %822 = vmatpush1.xpose.msra.mxu0 0.0
    %823 = vmatprep.subr.mxu0 0.0
    %824 = vmatpush1.xpose.msra.mxu0 0.0
    %825 = vmatprep.subr.mxu0 0.0
    %826 = vmatpush1.xpose.msra.mxu0 0.0
    %827 = vmatprep.subr.mxu0 0.0
    %828 = vmatpush1.xpose.msra.mxu0 0.0
    %829 = vmatprep.subr.mxu0 0.0
    %830 = vmatpush1.xpose.msra.mxu0 0.0
    %831 = vmatprep.subr.mxu0 0.0
    %832 = vmatpush1.xpose.msra.mxu0 0.0
    %833 = vmatprep.subr.mxu0 0.0
    %834 = vmatpush1.xpose.msra.mxu0 0.0
    %835 = vmatprep.subr.mxu0 0.0
    %836 = vmatpush1.xpose.msra.mxu0 %v803
    %837 = vmatprep.subr.mxu0 0.0
    %838 = vmatpush2.xpose.msra.mxu0 0.0
    %839 = vmatprep.subr.mxu0 0.0
    %840 = vmatpush2.xpose.msra.mxu0 0.0
    %841 = vmatprep.subr.mxu0 0.0
    %842 = vmatpush2.xpose.msra.mxu0 0.0
    %843 = vmatprep.subr.mxu0 0.0
    %844 = vmatpush2.xpose.msra.mxu0 0.0
    %845 = vmatprep.subr.mxu0 0.0
    %846 = vmatpush2.xpose.msra.mxu0 0.0
    %847 = vmatprep.subr.mxu0 0.0
    %848 = vmatpush2.xpose.msra.mxu0 0.0
    %849 = vmatprep.subr.mxu0 0.0
    %850 = vmatpush2.xpose.msra.mxu0 0.0
    %851 = vmatprep.subr.mxu0 0.0
    %852 = vmatpush2.xpose.msra.mxu0 0.0
    %853 = vmatprep.subr.mxu0 0.0
    %854 = vmatpush2.xpose.msra.mxu0 0.0
    %855 = vmatprep.subr.mxu0 0.0
    %856 = vmatpush2.xpose.msra.mxu0 0.0
    %857 = vmatprep.subr.mxu0 0.0
    %858 = vmatpush2.xpose.msra.mxu0 0.0
    %859 = vmatprep.subr.mxu0 0.0
    %860 = vmatpush2.xpose.msra.mxu0 0.0
    %861 = vmatprep.subr.mxu0 0.0
    %862 = vmatpush2.xpose.msra.mxu0 0.0
    %863 = vmatprep.subr.mxu0 0.0
    %864 = vmatpush2.xpose.msra.mxu0 0.0
    %865 = vmatprep.subr.mxu0 0.0
    %866 = vmatpush2.xpose.msra.mxu0 0.0
    %867 = vmatprep.subr.mxu0 0.0
    %868 = vmatpush2.xpose.msra.mxu0 0.0
    %869 = vmatprep.mubr.f32.mxu0 0.0
    %870 = vmatmul.mubr.f32.gmra.mxu0 %v801
    %v871 = vpop.f32.mrf.mxu0
    %v872 = vadd.f32 0.0, %v871
    %v873 = vpop.f32.mrf.mxu0
    %874 = vdwg.mxu0
    %875 = vrot.lane.b32.xlu0 %v127, 112
    %v876 = vpop.permute.xlu0 %875
    %v877 = vsel %vm131, %v876, 0
    %879 = vmatprep.subr.mxu0 0.0
    %880 = vmatpush1.xpose.msra.mxu0 0.0
    %881 = vmatprep.subr.mxu0 0.0
    %882 = vmatpush1.xpose.msra.mxu0 0.0
    %883 = vmatprep.subr.mxu0 0.0
    %884 = vmatpush1.xpose.msra.mxu0 0.0
    %885 = vmatprep.subr.mxu0 0.0
    %886 = vmatpush1.xpose.msra.mxu0 0.0
    %887 = vmatprep.subr.mxu0 0.0
    %888 = vmatpush1.xpose.msra.mxu0 0.0
    %889 = vmatprep.subr.mxu0 0.0
    %890 = vmatpush1.xpose.msra.mxu0 0.0
    %891 = vmatprep.subr.mxu0 0.0
    %892 = vmatpush1.xpose.msra.mxu0 0.0
    %893 = vmatprep.subr.mxu0 0.0
    %894 = vmatpush1.xpose.msra.mxu0 0.0
    %895 = vmatprep.subr.mxu0 0.0
    %896 = vmatpush1.xpose.msra.mxu0 0.0
    %897 = vmatprep.subr.mxu0 0.0
    %898 = vmatpush1.xpose.msra.mxu0 0.0
    %899 = vmatprep.subr.mxu0 0.0
    %900 = vmatpush1.xpose.msra.mxu0 0.0
    %901 = vmatprep.subr.mxu0 0.0
    %902 = vmatpush1.xpose.msra.mxu0 0.0
    %903 = vmatprep.subr.mxu0 0.0
    %904 = vmatpush1.xpose.msra.mxu0 0.0
    %905 = vmatprep.subr.mxu0 0.0
    %906 = vmatpush1.xpose.msra.mxu0 0.0
    %907 = vmatprep.subr.mxu0 0.0
    %908 = vmatpush1.xpose.msra.mxu0 0.0
    %909 = vmatprep.subr.mxu0 0.0
    %910 = vmatpush1.xpose.msra.mxu0 %v877
    %911 = vmatprep.subr.mxu0 0.0
    %912 = vmatpush2.xpose.msra.mxu0 0.0
    %913 = vmatprep.subr.mxu0 0.0
    %914 = vmatpush2.xpose.msra.mxu0 0.0
    %915 = vmatprep.subr.mxu0 0.0
    %916 = vmatpush2.xpose.msra.mxu0 0.0
    %917 = vmatprep.subr.mxu0 0.0
    %918 = vmatpush2.xpose.msra.mxu0 0.0
    %919 = vmatprep.subr.mxu0 0.0
    %920 = vmatpush2.xpose.msra.mxu0 0.0
    %921 = vmatprep.subr.mxu0 0.0
    %922 = vmatpush2.xpose.msra.mxu0 0.0
    %923 = vmatprep.subr.mxu0 0.0
    %924 = vmatpush2.xpose.msra.mxu0 0.0
    %925 = vmatprep.subr.mxu0 0.0
    %926 = vmatpush2.xpose.msra.mxu0 0.0
    %927 = vmatprep.subr.mxu0 0.0
    %928 = vmatpush2.xpose.msra.mxu0 0.0
    %929 = vmatprep.subr.mxu0 0.0
    %930 = vmatpush2.xpose.msra.mxu0 0.0
    %931 = vmatprep.subr.mxu0 0.0
    %932 = vmatpush2.xpose.msra.mxu0 0.0
    %933 = vmatprep.subr.mxu0 0.0
    %934 = vmatpush2.xpose.msra.mxu0 0.0
    %935 = vmatprep.subr.mxu0 0.0
    %936 = vmatpush2.xpose.msra.mxu0 0.0
    %937 = vmatprep.subr.mxu0 0.0
    %938 = vmatpush2.xpose.msra.mxu0 0.0
    %939 = vmatprep.subr.mxu0 0.0
    %940 = vmatpush2.xpose.msra.mxu0 0.0
    %941 = vmatprep.subr.mxu0 0.0
    %942 = vmatpush2.xpose.msra.mxu0 0.0
    %943 = vmatprep.mubr.f32.mxu0 0.0
    %944 = vmatmul.mubr.f32.gmra.mxu0 %v801
    %v945 = vpop.f32.mrf.mxu0
    %v946 = vadd.f32 0.0, %v945
    %v947 = vpop.f32.mrf.mxu0
    %948 = vdwg.mxu0
    %v949 = vmul.f32 %v872, 0.17677669
    %v950 = vmul.f32 %v946, 0.17677669
    %v951 = vsel %vm131, %v949, -inf
    %952 = vmax.xlane.f32.xlu0 %v951
    %v953 = vpop.xlane.xlu0 %952
    %v954 = vsel %vm131, %v950, -inf
    %955 = vmax.xlane.f32.xlu0 %v954
    %v956 = vpop.xlane.xlu0 %955
    %v957 = vsub.f32 %v949, %v953
    %v958 = vsub.f32 %v950, %v956
    %v959 = vmul.f32 %v957, 1.442695
    %v960 = vpow.pop %v959
    %v961 = vmul.f32 %v958, 1.442695
    %v962 = vpow.pop %v961
    %v963 = vsel %vm131, %v960, 0.0
    %964 = vadd.xlane.f32.xlu0 %v963
    %v965 = vpop.xlane.xlu0 %964
    %v966 = vsel %vm131, %v962, 0.0
    %967 = vadd.xlane.f32.xlu0 %v966
    %v968 = vpop.xlane.xlu0 %967
    %v969 = vrcp.pop %v965
    %v970 = vmul.f32 %v960, %v969
    %v971 = vrcp.pop %v968
    %v972 = vmul.f32 %v962, %v971
    %973 = vrot.lane.b32.xlu0 %v122, 80
    %v974 = vpop.permute.xlu0 %973
    %v977 = vsel %vm131, %v970, 0
    %979 = vmatprep.subr.mxu0 0.0
    %980 = vmatpush1.msra.mxu0 0.0
    %981 = vmatprep.subr.mxu0 0.0
    %982 = vmatpush1.msra.mxu0 0.0
    %983 = vmatprep.subr.mxu0 0.0
    %984 = vmatpush1.msra.mxu0 0.0
    %985 = vmatprep.subr.mxu0 0.0
    %986 = vmatpush1.msra.mxu0 0.0
    %987 = vmatprep.subr.mxu0 0.0
    %988 = vmatpush1.msra.mxu0 0.0
    %989 = vmatprep.subr.mxu0 0.0
    %990 = vmatpush1.msra.mxu0 0.0
    %991 = vmatprep.subr.mxu0 0.0
    %992 = vmatpush1.msra.mxu0 0.0
    %993 = vmatprep.subr.mxu0 0.0
    %994 = vmatpush1.msra.mxu0 0.0
    %995 = vmatprep.subr.mxu0 0.0
    %996 = vmatpush1.msra.mxu0 0.0
    %997 = vmatprep.subr.mxu0 0.0
    %998 = vmatpush1.msra.mxu0 0.0
    %999 = vmatprep.subr.mxu0 0.0
    %1000 = vmatpush1.msra.mxu0 0.0
    %1001 = vmatprep.subr.mxu0 0.0
    %1002 = vmatpush1.msra.mxu0 0.0
    %1003 = vmatprep.subr.mxu0 0.0
    %1004 = vmatpush1.msra.mxu0 0.0
    %1005 = vmatprep.subr.mxu0 0.0
    %1006 = vmatpush1.msra.mxu0 0.0
    %1007 = vmatprep.subr.mxu0 0.0
    %1008 = vmatpush1.msra.mxu0 0.0
    %1009 = vmatprep.subr.mxu0 0.0
    %1010 = vmatpush1.msra.mxu0 %v974
    %1011 = vmatprep.subr.mxu0 0.0
    %1012 = vmatpush2.msra.mxu0 0.0
    %1013 = vmatprep.subr.mxu0 0.0
    %1014 = vmatpush2.msra.mxu0 0.0
    %1015 = vmatprep.subr.mxu0 0.0
    %1016 = vmatpush2.msra.mxu0 0.0
    %1017 = vmatprep.subr.mxu0 0.0
    %1018 = vmatpush2.msra.mxu0 0.0
    %1019 = vmatprep.subr.mxu0 0.0
    %1020 = vmatpush2.msra.mxu0 0.0
    %1021 = vmatprep.subr.mxu0 0.0
    %1022 = vmatpush2.msra.mxu0 0.0
    %1023 = vmatprep.subr.mxu0 0.0
    %1024 = vmatpush2.msra.mxu0 0.0
    %1025 = vmatprep.subr.mxu0 0.0
    %1026 = vmatpush2.msra.mxu0 0.0
    %1027 = vmatprep.subr.mxu0 0.0
    %1028 = vmatpush2.msra.mxu0 0.0
    %1029 = vmatprep.subr.mxu0 0.0
    %1030 = vmatpush2.msra.mxu0 0.0
    %1031 = vmatprep.subr.mxu0 0.0
    %1032 = vmatpush2.msra.mxu0 0.0
    %1033 = vmatprep.subr.mxu0 0.0
    %1034 = vmatpush2.msra.mxu0 0.0
    %1035 = vmatprep.subr.mxu0 0.0
    %1036 = vmatpush2.msra.mxu0 0.0
    %1037 = vmatprep.subr.mxu0 0.0
    %1038 = vmatpush2.msra.mxu0 0.0
    %1039 = vmatprep.subr.mxu0 0.0
    %1040 = vmatpush2.msra.mxu0 0.0
    %1041 = vmatprep.subr.mxu0 0.0
    %1042 = vmatpush2.msra.mxu0 0.0
    %1043 = vmatprep.mubr.f32.mxu0 0.0
    %1044 = vmatmul.mubr.f32.gmra.mxu0 %v977
    %v1045 = vpop.f32.mrf.mxu0
    %v1046 = vadd.f32 0.0, %v1045
    %v1047 = vpop.f32.mrf.mxu0
    %1048 = vdwg.mxu0
    %1049 = vrot.lane.b32.xlu0 %v127, 80
    %v1050 = vpop.permute.xlu0 %1049
    %v1053 = vsel %vm131, %v972, 0
    %1055 = vmatprep.subr.mxu0 0.0
    %1056 = vmatpush1.msra.mxu0 0.0
    %1057 = vmatprep.subr.mxu0 0.0
    %1058 = vmatpush1.msra.mxu0 0.0
    %1059 = vmatprep.subr.mxu0 0.0
    %1060 = vmatpush1.msra.mxu0 0.0
    %1061 = vmatprep.subr.mxu0 0.0
    %1062 = vmatpush1.msra.mxu0 0.0
    %1063 = vmatprep.subr.mxu0 0.0
    %1064 = vmatpush1.msra.mxu0 0.0
    %1065 = vmatprep.subr.mxu0 0.0
    %1066 = vmatpush1.msra.mxu0 0.0
    %1067 = vmatprep.subr.mxu0 0.0
    %1068 = vmatpush1.msra.mxu0 0.0
    %1069 = vmatprep.subr.mxu0 0.0
    %1070 = vmatpush1.msra.mxu0 0.0
    %1071 = vmatprep.subr.mxu0 0.0
    %1072 = vmatpush1.msra.mxu0 0.0
    %1073 = vmatprep.subr.mxu0 0.0
    %1074 = vmatpush1.msra.mxu0 0.0
    %1075 = vmatprep.subr.mxu0 0.0
    %1076 = vmatpush1.msra.mxu0 0.0
    %1077 = vmatprep.subr.mxu0 0.0
    %1078 = vmatpush1.msra.mxu0 0.0
    %1079 = vmatprep.subr.mxu0 0.0
    %1080 = vmatpush1.msra.mxu0 0.0
    %1081 = vmatprep.subr.mxu0 0.0
    %1082 = vmatpush1.msra.mxu0 0.0
    %1083 = vmatprep.subr.mxu0 0.0
    %1084 = vmatpush1.msra.mxu0 0.0
    %1085 = vmatprep.subr.mxu0 0.0
    %1086 = vmatpush1.msra.mxu0 %v1050
    %1087 = vmatprep.subr.mxu0 0.0
    %1088 = vmatpush2.msra.mxu0 0.0
    %1089 = vmatprep.subr.mxu0 0.0
    %1090 = vmatpush2.msra.mxu0 0.0
    %1091 = vmatprep.subr.mxu0 0.0
    %1092 = vmatpush2.msra.mxu0 0.0
    %1093 = vmatprep.subr.mxu0 0.0
    %1094 = vmatpush2.msra.mxu0 0.0
    %1095 = vmatprep.subr.mxu0 0.0
    %1096 = vmatpush2.msra.mxu0 0.0
    %1097 = vmatprep.subr.mxu0 0.0
    %1098 = vmatpush2.msra.mxu0 0.0
    %1099 = vmatprep.subr.mxu0 0.0
    %1100 = vmatpush2.msra.mxu0 0.0
    %1101 = vmatprep.subr.mxu0 0.0
    %1102 = vmatpush2.msra.mxu0 0.0
    %1103 = vmatprep.subr.mxu0 0.0
    %1104 = vmatpush2.msra.mxu0 0.0
    %1105 = vmatprep.subr.mxu0 0.0
    %1106 = vmatpush2.msra.mxu0 0.0
    %1107 = vmatprep.subr.mxu0 0.0
    %1108 = vmatpush2.msra.mxu0 0.0
    %1109 = vmatprep.subr.mxu0 0.0
    %1110 = vmatpush2.msra.mxu0 0.0
    %1111 = vmatprep.subr.mxu0 0.0
    %1112 = vmatpush2.msra.mxu0 0.0
    %1113 = vmatprep.subr.mxu0 0.0
    %1114 = vmatpush2.msra.mxu0 0.0
    %1115 = vmatprep.subr.mxu0 0.0
    %1116 = vmatpush2.msra.mxu0 0.0
    %1117 = vmatprep.subr.mxu0 0.0
    %1118 = vmatpush2.msra.mxu0 0.0
    %1119 = vmatprep.mubr.f32.mxu0 0.0
    %1120 = vmatmul.mubr.f32.gmra.mxu0 %v1053
    %v1121 = vpop.f32.mrf.mxu0
    %v1122 = vadd.f32 0.0, %v1121
    %v1123 = vpop.f32.mrf.mxu0
    %1124 = vdwg.mxu0
    %1127 = vrot.lane.b32.xlu0 %v1046, 16
    %v1128 = vpop.permute.xlu0 %1127
    %1129 = vrot.lane.b32.xlu0 %v1122, 16
    %v1130 = vpop.permute.xlu0 %1129
    %v1133 = vadd.f32 %v130, %v1128
    %v1134 = vadd.f32 %v130, %v1130
    %1135 = vrot.lane.b32.xlu0 %v130, 104
    %v1136 = vpop.permute.xlu0 %1135
    %1137 = vrot.lane.b32.xlu0 %v122, 104
    %v1138 = vpop.permute.xlu0 %1137
    %v1139 = vsel %vm131, %v1136, 0
    %v1141 = vsel %vm131, %v1138, 0
    %1143 = vmatprep.subr.mxu0 0.0
    %1144 = vmatpush1.xpose.msra.mxu0 0.0
    %1145 = vmatprep.subr.mxu0 0.0
    %1146 = vmatpush1.xpose.msra.mxu0 0.0
    %1147 = vmatprep.subr.mxu0 0.0
    %1148 = vmatpush1.xpose.msra.mxu0 0.0
    %1149 = vmatprep.subr.mxu0 0.0
    %1150 = vmatpush1.xpose.msra.mxu0 0.0
    %1151 = vmatprep.subr.mxu0 0.0
    %1152 = vmatpush1.xpose.msra.mxu0 0.0
    %1153 = vmatprep.subr.mxu0 0.0
    %1154 = vmatpush1.xpose.msra.mxu0 0.0
    %1155 = vmatprep.subr.mxu0 0.0
    %1156 = vmatpush1.xpose.msra.mxu0 0.0
    %1157 = vmatprep.subr.mxu0 0.0
    %1158 = vmatpush1.xpose.msra.mxu0 0.0
    %1159 = vmatprep.subr.mxu0 0.0
    %1160 = vmatpush1.xpose.msra.mxu0 0.0
    %1161 = vmatprep.subr.mxu0 0.0
    %1162 = vmatpush1.xpose.msra.mxu0 0.0
    %1163 = vmatprep.subr.mxu0 0.0
    %1164 = vmatpush1.xpose.msra.mxu0 0.0
    %1165 = vmatprep.subr.mxu0 0.0
    %1166 = vmatpush1.xpose.msra.mxu0 0.0
    %1167 = vmatprep.subr.mxu0 0.0
    %1168 = vmatpush1.xpose.msra.mxu0 0.0
    %1169 = vmatprep.subr.mxu0 0.0
    %1170 = vmatpush1.xpose.msra.mxu0 0.0
    %1171 = vmatprep.subr.mxu0 0.0
    %1172 = vmatpush1.xpose.msra.mxu0 0.0
    %1173 = vmatprep.subr.mxu0 0.0
    %1174 = vmatpush1.xpose.msra.mxu0 %v1141
    %1175 = vmatprep.subr.mxu0 0.0
    %1176 = vmatpush2.xpose.msra.mxu0 0.0
    %1177 = vmatprep.subr.mxu0 0.0
    %1178 = vmatpush2.xpose.msra.mxu0 0.0
    %1179 = vmatprep.subr.mxu0 0.0
    %1180 = vmatpush2.xpose.msra.mxu0 0.0
    %1181 = vmatprep.subr.mxu0 0.0
    %1182 = vmatpush2.xpose.msra.mxu0 0.0
    %1183 = vmatprep.subr.mxu0 0.0
    %1184 = vmatpush2.xpose.msra.mxu0 0.0
    %1185 = vmatprep.subr.mxu0 0.0
    %1186 = vmatpush2.xpose.msra.mxu0 0.0
    %1187 = vmatprep.subr.mxu0 0.0
    %1188 = vmatpush2.xpose.msra.mxu0 0.0
    %1189 = vmatprep.subr.mxu0 0.0
    %1190 = vmatpush2.xpose.msra.mxu0 0.0
    %1191 = vmatprep.subr.mxu0 0.0
    %1192 = vmatpush2.xpose.msra.mxu0 0.0
    %1193 = vmatprep.subr.mxu0 0.0
    %1194 = vmatpush2.xpose.msra.mxu0 0.0
    %1195 = vmatprep.subr.mxu0 0.0
    %1196 = vmatpush2.xpose.msra.mxu0 0.0
    %1197 = vmatprep.subr.mxu0 0.0
    %1198 = vmatpush2.xpose.msra.mxu0 0.0
    %1199 = vmatprep.subr.mxu0 0.0
    %1200 = vmatpush2.xpose.msra.mxu0 0.0
    %1201 = vmatprep.subr.mxu0 0.0
    %1202 = vmatpush2.xpose.msra.mxu0 0.0
    %1203 = vmatprep.subr.mxu0 0.0
    %1204 = vmatpush2.xpose.msra.mxu0 0.0
    %1205 = vmatprep.subr.mxu0 0.0
    %1206 = vmatpush2.xpose.msra.mxu0 0.0
    %1207 = vmatprep.mubr.f32.mxu0 0.0
    %1208 = vmatmul.mubr.f32.gmra.mxu0 %v1139
    %v1209 = vpop.f32.mrf.mxu0
    %v1210 = vadd.f32 0.0, %v1209
    %v1211 = vpop.f32.mrf.mxu0
    %1212 = vdwg.mxu0
    %1213 = vrot.lane.b32.xlu0 %v127, 104
    %v1214 = vpop.permute.xlu0 %1213
    %v1215 = vsel %vm131, %v1214, 0
    %1217 = vmatprep.subr.mxu0 0.0
    %1218 = vmatpush1.xpose.msra.mxu0 0.0
    %1219 = vmatprep.subr.mxu0 0.0
    %1220 = vmatpush1.xpose.msra.mxu0 0.0
    %1221 = vmatprep.subr.mxu0 0.0
    %1222 = vmatpush1.xpose.msra.mxu0 0.0
    %1223 = vmatprep.subr.mxu0 0.0
    %1224 = vmatpush1.xpose.msra.mxu0 0.0
    %1225 = vmatprep.subr.mxu0 0.0
    %1226 = vmatpush1.xpose.msra.mxu0 0.0
    %1227 = vmatprep.subr.mxu0 0.0
    %1228 = vmatpush1.xpose.msra.mxu0 0.0
    %1229 = vmatprep.subr.mxu0 0.0
    %1230 = vmatpush1.xpose.msra.mxu0 0.0
    %1231 = vmatprep.subr.mxu0 0.0
    %1232 = vmatpush1.xpose.msra.mxu0 0.0
    %1233 = vmatprep.subr.mxu0 0.0
    %1234 = vmatpush1.xpose.msra.mxu0 0.0
    %1235 = vmatprep.subr.mxu0 0.0
    %1236 = vmatpush1.xpose.msra.mxu0 0.0
    %1237 = vmatprep.subr.mxu0 0.0
    %1238 = vmatpush1.xpose.msra.mxu0 0.0
    %1239 = vmatprep.subr.mxu0 0.0
    %1240 = vmatpush1.xpose.msra.mxu0 0.0
    %1241 = vmatprep.subr.mxu0 0.0
    %1242 = vmatpush1.xpose.msra.mxu0 0.0
    %1243 = vmatprep.subr.mxu0 0.0
    %1244 = vmatpush1.xpose.msra.mxu0 0.0
    %1245 = vmatprep.subr.mxu0 0.0
    %1246 = vmatpush1.xpose.msra.mxu0 0.0
    %1247 = vmatprep.subr.mxu0 0.0
    %1248 = vmatpush1.xpose.msra.mxu0 %v1215
    %1249 = vmatprep.subr.mxu0 0.0
    %1250 = vmatpush2.xpose.msra.mxu0 0.0
    %1251 = vmatprep.subr.mxu0 0.0
    %1252 = vmatpush2.xpose.msra.mxu0 0.0
    %1253 = vmatprep.subr.mxu0 0.0
    %1254 = vmatpush2.xpose.msra.mxu0 0.0
    %1255 = vmatprep.subr.mxu0 0.0
    %1256 = vmatpush2.xpose.msra.mxu0 0.0
    %1257 = vmatprep.subr.mxu0 0.0
    %1258 = vmatpush2.xpose.msra.mxu0 0.0
    %1259 = vmatprep.subr.mxu0 0.0
    %1260 = vmatpush2.xpose.msra.mxu0 0.0
    %1261 = vmatprep.subr.mxu0 0.0
    %1262 = vmatpush2.xpose.msra.mxu0 0.0
    %1263 = vmatprep.subr.mxu0 0.0
    %1264 = vmatpush2.xpose.msra.mxu0 0.0
    %1265 = vmatprep.subr.mxu0 0.0
    %1266 = vmatpush2.xpose.msra.mxu0 0.0
    %1267 = vmatprep.subr.mxu0 0.0
    %1268 = vmatpush2.xpose.msra.mxu0 0.0
    %1269 = vmatprep.subr.mxu0 0.0
    %1270 = vmatpush2.xpose.msra.mxu0 0.0
    %1271 = vmatprep.subr.mxu0 0.0
    %1272 = vmatpush2.xpose.msra.mxu0 0.0
    %1273 = vmatprep.subr.mxu0 0.0
    %1274 = vmatpush2.xpose.msra.mxu0 0.0
    %1275 = vmatprep.subr.mxu0 0.0
    %1276 = vmatpush2.xpose.msra.mxu0 0.0
    %1277 = vmatprep.subr.mxu0 0.0
    %1278 = vmatpush2.xpose.msra.mxu0 0.0
    %1279 = vmatprep.subr.mxu0 0.0
    %1280 = vmatpush2.xpose.msra.mxu0 0.0
    %1281 = vmatprep.mubr.f32.mxu0 0.0
    %1282 = vmatmul.mubr.f32.gmra.mxu0 %v1139
    %v1283 = vpop.f32.mrf.mxu0
    %v1284 = vadd.f32 0.0, %v1283
    %v1285 = vpop.f32.mrf.mxu0
    %1286 = vdwg.mxu0
    %v1287 = vmul.f32 %v1210, 0.17677669
    %v1288 = vmul.f32 %v1284, 0.17677669
    %v1289 = vsel %vm131, %v1287, -inf
    %1290 = vmax.xlane.f32.xlu0 %v1289
    %v1291 = vpop.xlane.xlu0 %1290
    %v1292 = vsel %vm131, %v1288, -inf
    %1293 = vmax.xlane.f32.xlu0 %v1292
    %v1294 = vpop.xlane.xlu0 %1293
    %v1295 = vsub.f32 %v1287, %v1291
    %v1296 = vsub.f32 %v1288, %v1294
    %v1297 = vmul.f32 %v1295, 1.442695
    %v1298 = vpow.pop %v1297
    %v1299 = vmul.f32 %v1296, 1.442695
    %v1300 = vpow.pop %v1299
    %v1301 = vsel %vm131, %v1298, 0.0
    %1302 = vadd.xlane.f32.xlu0 %v1301
    %v1303 = vpop.xlane.xlu0 %1302
    %v1304 = vsel %vm131, %v1300, 0.0
    %1305 = vadd.xlane.f32.xlu0 %v1304
    %v1306 = vpop.xlane.xlu0 %1305
    %v1307 = vrcp.pop %v1303
    %v1308 = vmul.f32 %v1298, %v1307
    %v1309 = vrcp.pop %v1306
    %v1310 = vmul.f32 %v1300, %v1309
    %1311 = vrot.lane.b32.xlu0 %v122, 72
    %v1312 = vpop.permute.xlu0 %1311
    %v1315 = vsel %vm131, %v1308, 0
    %1317 = vmatprep.subr.mxu0 0.0
    %1318 = vmatpush1.msra.mxu0 0.0
    %1319 = vmatprep.subr.mxu0 0.0
    %1320 = vmatpush1.msra.mxu0 0.0
    %1321 = vmatprep.subr.mxu0 0.0
    %1322 = vmatpush1.msra.mxu0 0.0
    %1323 = vmatprep.subr.mxu0 0.0
    %1324 = vmatpush1.msra.mxu0 0.0
    %1325 = vmatprep.subr.mxu0 0.0
    %1326 = vmatpush1.msra.mxu0 0.0
    %1327 = vmatprep.subr.mxu0 0.0
    %1328 = vmatpush1.msra.mxu0 0.0
    %1329 = vmatprep.subr.mxu0 0.0
    %1330 = vmatpush1.msra.mxu0 0.0
    %1331 = vmatprep.subr.mxu0 0.0
    %1332 = vmatpush1.msra.mxu0 0.0
    %1333 = vmatprep.subr.mxu0 0.0
    %1334 = vmatpush1.msra.mxu0 0.0
    %1335 = vmatprep.subr.mxu0 0.0
    %1336 = vmatpush1.msra.mxu0 0.0
    %1337 = vmatprep.subr.mxu0 0.0
    %1338 = vmatpush1.msra.mxu0 0.0
    %1339 = vmatprep.subr.mxu0 0.0
    %1340 = vmatpush1.msra.mxu0 0.0
    %1341 = vmatprep.subr.mxu0 0.0
    %1342 = vmatpush1.msra.mxu0 0.0
    %1343 = vmatprep.subr.mxu0 0.0
    %1344 = vmatpush1.msra.mxu0 0.0
    %1345 = vmatprep.subr.mxu0 0.0
    %1346 = vmatpush1.msra.mxu0 0.0
    %1347 = vmatprep.subr.mxu0 0.0
    %1348 = vmatpush1.msra.mxu0 %v1312
    %1349 = vmatprep.subr.mxu0 0.0
    %1350 = vmatpush2.msra.mxu0 0.0
    %1351 = vmatprep.subr.mxu0 0.0
    %1352 = vmatpush2.msra.mxu0 0.0
    %1353 = vmatprep.subr.mxu0 0.0
    %1354 = vmatpush2.msra.mxu0 0.0
    %1355 = vmatprep.subr.mxu0 0.0
    %1356 = vmatpush2.msra.mxu0 0.0
    %1357 = vmatprep.subr.mxu0 0.0
    %1358 = vmatpush2.msra.mxu0 0.0
    %1359 = vmatprep.subr.mxu0 0.0
    %1360 = vmatpush2.msra.mxu0 0.0
    %1361 = vmatprep.subr.mxu0 0.0
    %1362 = vmatpush2.msra.mxu0 0.0
    %1363 = vmatprep.subr.mxu0 0.0
    %1364 = vmatpush2.msra.mxu0 0.0
    %1365 = vmatprep.subr.mxu0 0.0
    %1366 = vmatpush2.msra.mxu0 0.0
    %1367 = vmatprep.subr.mxu0 0.0
    %1368 = vmatpush2.msra.mxu0 0.0
    %1369 = vmatprep.subr.mxu0 0.0
    %1370 = vmatpush2.msra.mxu0 0.0
    %1371 = vmatprep.subr.mxu0 0.0
    %1372 = vmatpush2.msra.mxu0 0.0
    %1373 = vmatprep.subr.mxu0 0.0
    %1374 = vmatpush2.msra.mxu0 0.0
    %1375 = vmatprep.subr.mxu0 0.0
    %1376 = vmatpush2.msra.mxu0 0.0
    %1377 = vmatprep.subr.mxu0 0.0
    %1378 = vmatpush2.msra.mxu0 0.0
    %1379 = vmatprep.subr.mxu0 0.0
    %1380 = vmatpush2.msra.mxu0 0.0
    %1381 = vmatprep.mubr.f32.mxu0 0.0
    %1382 = vmatmul.mubr.f32.gmra.mxu0 %v1315
    %v1383 = vpop.f32.mrf.mxu0
    %v1384 = vadd.f32 0.0, %v1383
    %v1385 = vpop.f32.mrf.mxu0
    %1386 = vdwg.mxu0
    %1387 = vrot.lane.b32.xlu0 %v127, 72
    %v1388 = vpop.permute.xlu0 %1387
    %v1391 = vsel %vm131, %v1310, 0
    %1393 = vmatprep.subr.mxu0 0.0
    %1394 = vmatpush1.msra.mxu0 0.0
    %1395 = vmatprep.subr.mxu0 0.0
    %1396 = vmatpush1.msra.mxu0 0.0
    %1397 = vmatprep.subr.mxu0 0.0
    %1398 = vmatpush1.msra.mxu0 0.0
    %1399 = vmatprep.subr.mxu0 0.0
    %1400 = vmatpush1.msra.mxu0 0.0
    %1401 = vmatprep.subr.mxu0 0.0
    %1402 = vmatpush1.msra.mxu0 0.0
    %1403 = vmatprep.subr.mxu0 0.0
    %1404 = vmatpush1.msra.mxu0 0.0
    %1405 = vmatprep.subr.mxu0 0.0
    %1406 = vmatpush1.msra.mxu0 0.0
    %1407 = vmatprep.subr.mxu0 0.0
    %1408 = vmatpush1.msra.mxu0 0.0
    %1409 = vmatprep.subr.mxu0 0.0
    %1410 = vmatpush1.msra.mxu0 0.0
    %1411 = vmatprep.subr.mxu0 0.0
    %1412 = vmatpush1.msra.mxu0 0.0
    %1413 = vmatprep.subr.mxu0 0.0
    %1414 = vmatpush1.msra.mxu0 0.0
    %1415 = vmatprep.subr.mxu0 0.0
    %1416 = vmatpush1.msra.mxu0 0.0
    %1417 = vmatprep.subr.mxu0 0.0
    %1418 = vmatpush1.msra.mxu0 0.0
    %1419 = vmatprep.subr.mxu0 0.0
    %1420 = vmatpush1.msra.mxu0 0.0
    %1421 = vmatprep.subr.mxu0 0.0
    %1422 = vmatpush1.msra.mxu0 0.0
    %1423 = vmatprep.subr.mxu0 0.0
    %1424 = vmatpush1.msra.mxu0 %v1388
    %1425 = vmatprep.subr.mxu0 0.0
    %1426 = vmatpush2.msra.mxu0 0.0
    %1427 = vmatprep.subr.mxu0 0.0
    %1428 = vmatpush2.msra.mxu0 0.0
    %1429 = vmatprep.subr.mxu0 0.0
    %1430 = vmatpush2.msra.mxu0 0.0
    %1431 = vmatprep.subr.mxu0 0.0
    %1432 = vmatpush2.msra.mxu0 0.0
    %1433 = vmatprep.subr.mxu0 0.0
    %1434 = vmatpush2.msra.mxu0 0.0
    %1435 = vmatprep.subr.mxu0 0.0
    %1436 = vmatpush2.msra.mxu0 0.0
    %1437 = vmatprep.subr.mxu0 0.0
    %1438 = vmatpush2.msra.mxu0 0.0
    %1439 = vmatprep.subr.mxu0 0.0
    %1440 = vmatpush2.msra.mxu0 0.0
    %1441 = vmatprep.subr.mxu0 0.0
    %1442 = vmatpush2.msra.mxu0 0.0
    %1443 = vmatprep.subr.mxu0 0.0
    %1444 = vmatpush2.msra.mxu0 0.0
    %1445 = vmatprep.subr.mxu0 0.0
    %1446 = vmatpush2.msra.mxu0 0.0
    %1447 = vmatprep.subr.mxu0 0.0
    %1448 = vmatpush2.msra.mxu0 0.0
    %1449 = vmatprep.subr.mxu0 0.0
    %1450 = vmatpush2.msra.mxu0 0.0
    %1451 = vmatprep.subr.mxu0 0.0
    %1452 = vmatpush2.msra.mxu0 0.0
    %1453 = vmatprep.subr.mxu0 0.0
    %1454 = vmatpush2.msra.mxu0 0.0
    %1455 = vmatprep.subr.mxu0 0.0
    %1456 = vmatpush2.msra.mxu0 0.0
    %1457 = vmatprep.mubr.f32.mxu0 0.0
    %1458 = vmatmul.mubr.f32.gmra.mxu0 %v1391
    %v1459 = vpop.f32.mrf.mxu0
    %v1460 = vadd.f32 0.0, %v1459
    %v1461 = vpop.f32.mrf.mxu0
    %1462 = vdwg.mxu0
    %1465 = vrot.lane.b32.xlu0 %v1384, 24
    %v1466 = vpop.permute.xlu0 %1465
    %1467 = vrot.lane.b32.xlu0 %v1460, 24
    %v1468 = vpop.permute.xlu0 %1467
    %v1471 = vadd.f32 %v130, %v1466
    %v1472 = vadd.f32 %v130, %v1468
    %v1473 = vsel %vm131, %v457, %v795
    %v1474 = vsel %vm131, %v458, %v796
    %v1475 = vsel %vm48, %v1473, %v1133
    %v1476 = vsel %vm48, %v1474, %v1134
    %vm1477 = vcmask 195584
    %v1478 = vsel %vm1477, %v1475, %v1471
    %v1479 = vsel %vm1477, %v1476, %v1472
    %v1480 = vld [vmem:[#allocation4 + $0x70] sm:$0xff]
    %v1481 = vld [vmem:[#allocation4 + $0x78] sm:$0xff]
    %v1482 = vld [vmem:[#allocation4 + $0x80] sm:$0xff]
    %v1483 = vld [vmem:[#allocation4 + $0x88] sm:$0xff]
    %v1484 = vld [vmem:[#allocation4 + $0x90] sm:$0x1]
    %v1485 = vlaneseq
    %v1486 = vshrl.u32 %v1485, 7
    %v1487 = vsub.s32 0, %v1486
    %v1488 = vrot.slane %v1484, %v1487
    %vm1489 = vcmask 261120
    %v1491 = vsel %vm1489, %v1478, 0
    %v1494 = vsel %vm1489, %v1479, 0
    %1496 = vmatprep.subr.mxu0 0.0
    %1497 = vmatpush1.msra.mxu0 0.0
    %1498 = vmatprep.subr.mxu0 0.0
    %1499 = vmatpush1.msra.mxu0 0.0
    %1500 = vmatprep.subr.mxu0 0.0
    %1501 = vmatpush1.msra.mxu0 0.0
    %1502 = vmatprep.subr.mxu0 0.0
    %1503 = vmatpush1.msra.mxu0 0.0
    %1504 = vmatprep.subr.mxu0 0.0
    %1505 = vmatpush1.msra.mxu0 0.0
    %1506 = vmatprep.subr.mxu0 0.0
    %1507 = vmatpush1.msra.mxu0 0.0
    %1508 = vmatprep.subr.mxu0 0.0
    %1509 = vmatpush1.msra.mxu0 0.0
    %1510 = vmatprep.subr.mxu0 0.0
    %1511 = vmatpush1.msra.mxu0 0.0
    %1512 = vmatprep.subr.mxu0 0.0
    %1513 = vmatpush1.msra.mxu0 0.0
    %1514 = vmatprep.subr.mxu0 0.0
    %1515 = vmatpush1.msra.mxu0 0.0
    %1516 = vmatprep.subr.mxu0 0.0
    %1517 = vmatpush1.msra.mxu0 0.0
    %1518 = vmatprep.subr.mxu0 0.0
    %1519 = vmatpush1.msra.mxu0 0.0
    %1520 = vmatprep.subr.mxu0 0.0
    %1521 = vmatpush1.msra.mxu0 %v1483
    %1522 = vmatprep.subr.mxu0 0.0
    %1523 = vmatpush1.msra.mxu0 %v1482
    %1524 = vmatprep.subr.mxu0 0.0
    %1525 = vmatpush1.msra.mxu0 %v1481
    %1526 = vmatprep.subr.mxu0 0.0
    %1527 = vmatpush1.msra.mxu0 %v1480
    %1528 = vmatprep.subr.mxu0 0.0
    %1529 = vmatpush2.msra.mxu0 0.0
    %1530 = vmatprep.subr.mxu0 0.0
    %1531 = vmatpush2.msra.mxu0 0.0
    %1532 = vmatprep.subr.mxu0 0.0
    %1533 = vmatpush2.msra.mxu0 0.0
    %1534 = vmatprep.subr.mxu0 0.0
    %1535 = vmatpush2.msra.mxu0 0.0
    %1536 = vmatprep.subr.mxu0 0.0
    %1537 = vmatpush2.msra.mxu0 0.0
    %1538 = vmatprep.subr.mxu0 0.0
    %1539 = vmatpush2.msra.mxu0 0.0
    %1540 = vmatprep.subr.mxu0 0.0
    %1541 = vmatpush2.msra.mxu0 0.0
    %1542 = vmatprep.subr.mxu0 0.0
    %1543 = vmatpush2.msra.mxu0 0.0
    %1544 = vmatprep.subr.mxu0 0.0
    %1545 = vmatpush2.msra.mxu0 0.0
    %1546 = vmatprep.subr.mxu0 0.0
    %1547 = vmatpush2.msra.mxu0 0.0
    %1548 = vmatprep.subr.mxu0 0.0
    %1549 = vmatpush2.msra.mxu0 0.0
    %1550 = vmatprep.subr.mxu0 0.0
    %1551 = vmatpush2.msra.mxu0 0.0
    %1552 = vmatprep.subr.mxu0 0.0
    %1553 = vmatpush2.msra.mxu0 0.0
    %1554 = vmatprep.subr.mxu0 0.0
    %1555 = vmatpush2.msra.mxu0 0.0
    %1556 = vmatprep.subr.mxu0 0.0
    %1557 = vmatpush2.msra.mxu0 0.0
    %1558 = vmatprep.subr.mxu0 0.0
    %1559 = vmatpush2.msra.mxu0 0.0
    %1560 = vmatprep.mubr.f32.mxu0 0.0
    %1561 = vmatmul.mubr.f32.gmra.mxu0 %v1491
    %v1562 = vpop.f32.mrf.mxu0
    %v1563 = vadd.f32 %v1488, %v1562
    %v1564 = vpop.f32.mrf.mxu0
    %1565 = vmatprep.mubr.f32.mxu0 0.0
    %1566 = vmatmul.mubr.f32.gmra.mxu0 %v1494
    %v1567 = vpop.f32.mrf.mxu0
    %v1568 = vadd.f32 %v1488, %v1567
    %v1569 = vpop.f32.mrf.mxu0
    %1570 = vdwg.mxu0
    %v1571 = vmax.f32 %v1563, 0.0
    %v1572 = vmax.f32 %v1568, 0.0
    %v1573 = vadd.f32 %v1478, %v1571
    %v1574 = vadd.f32 %v1479, %v1572
    %v1575 = vld [vmem:[#allocation4 + $0x18] sm:$0xff]
    %v1576 = vld [vmem:[#allocation4 + $0x20] sm:$0xff]
    %v1577 = vld [vmem:[#allocation4 + $0x28] sm:$0x1]
    %v1578 = vlaneseq
    %v1579 = vshrl.u32 %v1578, 7
    %v1580 = vsub.s32 0, %v1579
    %v1581 = vrot.slane %v1577, %v1580
    %1582 = vmatprep.subr.mxu0 0.0
    %1583 = vmatpush1.msra.mxu0 0.0
    %1584 = vmatprep.subr.mxu0 0.0
    %1585 = vmatpush1.msra.mxu0 0.0
    %1586 = vmatprep.subr.mxu0 0.0
    %1587 = vmatpush1.msra.mxu0 0.0
    %1588 = vmatprep.subr.mxu0 0.0
    %1589 = vmatpush1.msra.mxu0 0.0
    %1590 = vmatprep.subr.mxu0 0.0
    %1591 = vmatpush1.msra.mxu0 0.0
    %1592 = vmatprep.subr.mxu0 0.0
    %1593 = vmatpush1.msra.mxu0 0.0
    %1594 = vmatprep.subr.mxu0 0.0
    %1595 = vmatpush1.msra.mxu0 0.0
    %1596 = vmatprep.subr.mxu0 0.0
    %1597 = vmatpush1.msra.mxu0 0.0
    %1598 = vmatprep.subr.mxu0 0.0
    %1599 = vmatpush1.msra.mxu0 0.0
    %1600 = vmatprep.subr.mxu0 0.0
    %1601 = vmatpush1.msra.mxu0 0.0
    %1602 = vmatprep.subr.mxu0 0.0
    %1603 = vmatpush1.msra.mxu0 0.0
    %1604 = vmatprep.subr.mxu0 0.0
    %1605 = vmatpush1.msra.mxu0 0.0
    %1606 = vmatprep.subr.mxu0 0.0
    %1607 = vmatpush1.msra.mxu0 0.0
    %1608 = vmatprep.subr.mxu0 0.0
    %1609 = vmatpush1.msra.mxu0 0.0
    %1610 = vmatprep.subr.mxu0 0.0
    %1611 = vmatpush1.msra.mxu0 %v1576
    %1612 = vmatprep.subr.mxu0 0.0
    %1613 = vmatpush1.msra.mxu0 %v1575
    %1614 = vmatprep.subr.mxu0 0.0
    %1615 = vmatpush2.msra.mxu0 0.0
    %1616 = vmatprep.subr.mxu0 0.0
    %1617 = vmatpush2.msra.mxu0 0.0
    %1618 = vmatprep.subr.mxu0 0.0
    %1619 = vmatpush2.msra.mxu0 0.0
    %1620 = vmatprep.subr.mxu0 0.0
    %1621 = vmatpush2.msra.mxu0 0.0
    %1622 = vmatprep.subr.mxu0 0.0
    %1623 = vmatpush2.msra.mxu0 0.0
    %1624 = vmatprep.subr.mxu0 0.0
    %1625 = vmatpush2.msra.mxu0 0.0
    %1626 = vmatprep.subr.mxu0 0.0
    %1627 = vmatpush2.msra.mxu0 0.0
    %1628 = vmatprep.subr.mxu0 0.0
    %1629 = vmatpush2.msra.mxu0 0.0
    %1630 = vmatprep.subr.mxu0 0.0
    %1631 = vmatpush2.msra.mxu0 0.0
    %1632 = vmatprep.subr.mxu0 0.0
    %1633 = vmatpush2.msra.mxu0 0.0
    %1634 = vmatprep.subr.mxu0 0.0
    %1635 = vmatpush2.msra.mxu0 0.0
    %1636 = vmatprep.subr.mxu0 0.0
    %1637 = vmatpush2.msra.mxu0 0.0
    %1638 = vmatprep.subr.mxu0 0.0
    %1639 = vmatpush2.msra.mxu0 0.0
    %1640 = vmatprep.subr.mxu0 0.0
    %1641 = vmatpush2.msra.mxu0 0.0
    %1642 = vmatprep.subr.mxu0 0.0
    %1643 = vmatpush2.msra.mxu0 0.0
    %1644 = vmatprep.subr.mxu0 0.0
    %1645 = vmatpush2.msra.mxu0 0.0
    %1646 = vmatprep.mubr.f32.mxu0 0.0
    %1647 = vmatmul.mubr.f32.gmra.mxu0 %v50
    %v1648 = vpop.f32.mrf.mxu0
    %v1649 = vadd.f32 %v1581, %v1648
    %v1650 = vpop.f32.mrf.mxu0
    %1651 = vmatprep.mubr.f32.mxu0 0.0
    %1652 = vmatmul.mubr.f32.gmra.mxu0 %v53
    %v1653 = vpop.f32.mrf.mxu0
    %v1654 = vadd.f32 %v1581, %v1653
    %v1655 = vpop.f32.mrf.mxu0
    %1656 = vdwg.mxu0
    %v1657 = vld [vmem:[#allocation4 + $0x98] sm:$0xff]
    %v1658 = vld [vmem:[#allocation4 + $0xa0] sm:$0xff]
    %v1659 = vld [vmem:[#allocation4 + $0xa8] sm:$0xff]
    %v1660 = vld [vmem:[#allocation4 + $0xb0] sm:$0xff]
    %v1661 = vld [vmem:[#allocation4 + $0xb8] sm:$0x1]
    %v1662 = vlaneseq
    %v1663 = vshrl.u32 %v1662, 7
    %v1664 = vsub.s32 0, %v1663
    %v1665 = vrot.slane %v1661, %v1664
    %v1667 = vsel %vm1489, %v1573, 0
    %v1670 = vsel %vm1489, %v1574, 0
    %1672 = vmatprep.subr.mxu0 0.0
    %1673 = vmatpush1.msra.mxu0 0.0
    %1674 = vmatprep.subr.mxu0 0.0
    %1675 = vmatpush1.msra.mxu0 0.0
    %1676 = vmatprep.subr.mxu0 0.0
    %1677 = vmatpush1.msra.mxu0 0.0
    %1678 = vmatprep.subr.mxu0 0.0
    %1679 = vmatpush1.msra.mxu0 0.0
    %1680 = vmatprep.subr.mxu0 0.0
    %1681 = vmatpush1.msra.mxu0 0.0
    %1682 = vmatprep.subr.mxu0 0.0
    %1683 = vmatpush1.msra.mxu0 0.0
    %1684 = vmatprep.subr.mxu0 0.0
    %1685 = vmatpush1.msra.mxu0 0.0
    %1686 = vmatprep.subr.mxu0 0.0
    %1687 = vmatpush1.msra.mxu0 0.0
    %1688 = vmatprep.subr.mxu0 0.0
    %1689 = vmatpush1.msra.mxu0 0.0
    %1690 = vmatprep.subr.mxu0 0.0
    %1691 = vmatpush1.msra.mxu0 0.0
    %1692 = vmatprep.subr.mxu0 0.0
    %1693 = vmatpush1.msra.mxu0 0.0
    %1694 = vmatprep.subr.mxu0 0.0
    %1695 = vmatpush1.msra.mxu0 0.0
    %1696 = vmatprep.subr.mxu0 0.0
    %1697 = vmatpush1.msra.mxu0 %v1660
    %1698 = vmatprep.subr.mxu0 0.0
    %1699 = vmatpush1.msra.mxu0 %v1659
    %1700 = vmatprep.subr.mxu0 0.0
    %1701 = vmatpush1.msra.mxu0 %v1658
    %1702 = vmatprep.subr.mxu0 0.0
    %1703 = vmatpush1.msra.mxu0 %v1657
    %1704 = vmatprep.subr.mxu0 0.0
    %1705 = vmatpush2.msra.mxu0 0.0
    %1706 = vmatprep.subr.mxu0 0.0
    %1707 = vmatpush2.msra.mxu0 0.0
    %1708 = vmatprep.subr.mxu0 0.0
    %1709 = vmatpush2.msra.mxu0 0.0
    %1710 = vmatprep.subr.mxu0 0.0
    %1711 = vmatpush2.msra.mxu0 0.0
    %1712 = vmatprep.subr.mxu0 0.0
    %1713 = vmatpush2.msra.mxu0 0.0
    %1714 = vmatprep.subr.mxu0 0.0
    %1715 = vmatpush2.msra.mxu0 0.0
    %1716 = vmatprep.subr.mxu0 0.0
    %1717 = vmatpush2.msra.mxu0 0.0
    %1718 = vmatprep.subr.mxu0 0.0
    %1719 = vmatpush2.msra.mxu0 0.0
    %1720 = vmatprep.subr.mxu0 0.0
    %1721 = vmatpush2.msra.mxu0 0.0
    %1722 = vmatprep.subr.mxu0 0.0
    %1723 = vmatpush2.msra.mxu0 0.0
    %1724 = vmatprep.subr.mxu0 0.0
    %1725 = vmatpush2.msra.mxu0 0.0
    %1726 = vmatprep.subr.mxu0 0.0
    %1727 = vmatpush2.msra.mxu0 0.0
    %1728 = vmatprep.subr.mxu0 0.0
    %1729 = vmatpush2.msra.mxu0 0.0
    %1730 = vmatprep.subr.mxu0 0.0
    %1731 = vmatpush2.msra.mxu0 0.0
    %1732 = vmatprep.subr.mxu0 0.0
    %1733 = vmatpush2.msra.mxu0 0.0
    %1734 = vmatprep.subr.mxu0 0.0
    %1735 = vmatpush2.msra.mxu0 0.0
    %1736 = vmatprep.mubr.f32.mxu0 0.0
    %1737 = vmatmul.mubr.f32.gmra.mxu0 %v1667
    %v1738 = vpop.f32.mrf.mxu0
    %v1739 = vadd.f32 %v1665, %v1738
    %v1740 = vpop.f32.mrf.mxu0
    %1741 = vmatprep.mubr.f32.mxu0 0.0
    %1742 = vmatmul.mubr.f32.gmra.mxu0 %v1670
    %v1743 = vpop.f32.mrf.mxu0
    %v1744 = vadd.f32 %v1665, %v1743
    %v1745 = vpop.f32.mrf.mxu0
    %1746 = vdwg.mxu0
    %v1748 = vsel %vm131, %v1649, 0
    %v1751 = vsel %vm131, %v1739, 0
    %1753 = vmatprep.subr.mxu0 0.0
    %1754 = vmatpush1.xpose.msra.mxu0 0.0
    %1755 = vmatprep.subr.mxu0 0.0
    %1756 = vmatpush1.xpose.msra.mxu0 0.0
    %1757 = vmatprep.subr.mxu0 0.0
    %1758 = vmatpush1.xpose.msra.mxu0 0.0
    %1759 = vmatprep.subr.mxu0 0.0
    %1760 = vmatpush1.xpose.msra.mxu0 0.0
    %1761 = vmatprep.subr.mxu0 0.0
    %1762 = vmatpush1.xpose.msra.mxu0 0.0
    %1763 = vmatprep.subr.mxu0 0.0
    %1764 = vmatpush1.xpose.msra.mxu0 0.0
    %1765 = vmatprep.subr.mxu0 0.0
    %1766 = vmatpush1.xpose.msra.mxu0 0.0
    %1767 = vmatprep.subr.mxu0 0.0
    %1768 = vmatpush1.xpose.msra.mxu0 0.0
    %1769 = vmatprep.subr.mxu0 0.0
    %1770 = vmatpush1.xpose.msra.mxu0 0.0
    %1771 = vmatprep.subr.mxu0 0.0
    %1772 = vmatpush1.xpose.msra.mxu0 0.0
    %1773 = vmatprep.subr.mxu0 0.0
    %1774 = vmatpush1.xpose.msra.mxu0 0.0
    %1775 = vmatprep.subr.mxu0 0.0
    %1776 = vmatpush1.xpose.msra.mxu0 0.0
    %1777 = vmatprep.subr.mxu0 0.0
    %1778 = vmatpush1.xpose.msra.mxu0 0.0
    %1779 = vmatprep.subr.mxu0 0.0
    %1780 = vmatpush1.xpose.msra.mxu0 0.0
    %1781 = vmatprep.subr.mxu0 0.0
    %1782 = vmatpush1.xpose.msra.mxu0 0.0
    %1783 = vmatprep.subr.mxu0 0.0
    %1784 = vmatpush1.xpose.msra.mxu0 %v1751
    %1785 = vmatprep.subr.mxu0 0.0
    %1786 = vmatpush2.xpose.msra.mxu0 0.0
    %1787 = vmatprep.subr.mxu0 0.0
    %1788 = vmatpush2.xpose.msra.mxu0 0.0
    %1789 = vmatprep.subr.mxu0 0.0
    %1790 = vmatpush2.xpose.msra.mxu0 0.0
    %1791 = vmatprep.subr.mxu0 0.0
    %1792 = vmatpush2.xpose.msra.mxu0 0.0
    %1793 = vmatprep.subr.mxu0 0.0
    %1794 = vmatpush2.xpose.msra.mxu0 0.0
    %1795 = vmatprep.subr.mxu0 0.0
    %1796 = vmatpush2.xpose.msra.mxu0 0.0
    %1797 = vmatprep.subr.mxu0 0.0
    %1798 = vmatpush2.xpose.msra.mxu0 0.0
    %1799 = vmatprep.subr.mxu0 0.0
    %1800 = vmatpush2.xpose.msra.mxu0 0.0
    %1801 = vmatprep.subr.mxu0 0.0
    %1802 = vmatpush2.xpose.msra.mxu0 0.0
    %1803 = vmatprep.subr.mxu0 0.0
    %1804 = vmatpush2.xpose.msra.mxu0 0.0
    %1805 = vmatprep.subr.mxu0 0.0
    %1806 = vmatpush2.xpose.msra.mxu0 0.0
    %1807 = vmatprep.subr.mxu0 0.0
    %1808 = vmatpush2.xpose.msra.mxu0 0.0
    %1809 = vmatprep.subr.mxu0 0.0
    %1810 = vmatpush2.xpose.msra.mxu0 0.0
    %1811 = vmatprep.subr.mxu0 0.0
    %1812 = vmatpush2.xpose.msra.mxu0 0.0
    %1813 = vmatprep.subr.mxu0 0.0
    %1814 = vmatpush2.xpose.msra.mxu0 0.0
    %1815 = vmatprep.subr.mxu0 0.0
    %1816 = vmatpush2.xpose.msra.mxu0 0.0
    %1817 = vmatprep.mubr.f32.mxu0 0.0
    %1818 = vmatmul.mubr.f32.gmra.mxu0 %v1748
    %v1819 = vpop.f32.mrf.mxu0
    %v1820 = vadd.f32 0.0, %v1819
    %v1821 = vpop.f32.mrf.mxu0
    %1822 = vdwg.mxu0
    %v1824 = vsel %vm131, %v1654, 0
    %v1827 = vsel %vm131, %v1744, 0
    %1829 = vmatprep.subr.mxu0 0.0
    %1830 = vmatpush1.xpose.msra.mxu0 0.0
    %1831 = vmatprep.subr.mxu0 0.0
    %1832 = vmatpush1.xpose.msra.mxu0 0.0
    %1833 = vmatprep.subr.mxu0 0.0
    %1834 = vmatpush1.xpose.msra.mxu0 0.0
    %1835 = vmatprep.subr.mxu0 0.0
    %1836 = vmatpush1.xpose.msra.mxu0 0.0
    %1837 = vmatprep.subr.mxu0 0.0
    %1838 = vmatpush1.xpose.msra.mxu0 0.0
    %1839 = vmatprep.subr.mxu0 0.0
    %1840 = vmatpush1.xpose.msra.mxu0 0.0
    %1841 = vmatprep.subr.mxu0 0.0
    %1842 = vmatpush1.xpose.msra.mxu0 0.0
    %1843 = vmatprep.subr.mxu0 0.0
    %1844 = vmatpush1.xpose.msra.mxu0 0.0
    %1845 = vmatprep.subr.mxu0 0.0
    %1846 = vmatpush1.xpose.msra.mxu0 0.0
    %1847 = vmatprep.subr.mxu0 0.0
    %1848 = vmatpush1.xpose.msra.mxu0 0.0
    %1849 = vmatprep.subr.mxu0 0.0
    %1850 = vmatpush1.xpose.msra.mxu0 0.0
    %1851 = vmatprep.subr.mxu0 0.0
    %1852 = vmatpush1.xpose.msra.mxu0 0.0
    %1853 = vmatprep.subr.mxu0 0.0
    %1854 = vmatpush1.xpose.msra.mxu0 0.0
    %1855 = vmatprep.subr.mxu0 0.0
    %1856 = vmatpush1.xpose.msra.mxu0 0.0
    %1857 = vmatprep.subr.mxu0 0.0
    %1858 = vmatpush1.xpose.msra.mxu0 0.0
    %1859 = vmatprep.subr.mxu0 0.0
    %1860 = vmatpush1.xpose.msra.mxu0 %v1827
    %1861 = vmatprep.subr.mxu0 0.0
    %1862 = vmatpush2.xpose.msra.mxu0 0.0
    %1863 = vmatprep.subr.mxu0 0.0
    %1864 = vmatpush2.xpose.msra.mxu0 0.0
    %1865 = vmatprep.subr.mxu0 0.0
    %1866 = vmatpush2.xpose.msra.mxu0 0.0
    %1867 = vmatprep.subr.mxu0 0.0
    %1868 = vmatpush2.xpose.msra.mxu0 0.0
    %1869 = vmatprep.subr.mxu0 0.0
    %1870 = vmatpush2.xpose.msra.mxu0 0.0
    %1871 = vmatprep.subr.mxu0 0.0
    %1872 = vmatpush2.xpose.msra.mxu0 0.0
    %1873 = vmatprep.subr.mxu0 0.0
    %1874 = vmatpush2.xpose.msra.mxu0 0.0
    %1875 = vmatprep.subr.mxu0 0.0
    %1876 = vmatpush2.xpose.msra.mxu0 0.0
    %1877 = vmatprep.subr.mxu0 0.0
    %1878 = vmatpush2.xpose.msra.mxu0 0.0
    %1879 = vmatprep.subr.mxu0 0.0
    %1880 = vmatpush2.xpose.msra.mxu0 0.0
    %1881 = vmatprep.subr.mxu0 0.0
    %1882 = vmatpush2.xpose.msra.mxu0 0.0
    %1883 = vmatprep.subr.mxu0 0.0
    %1884 = vmatpush2.xpose.msra.mxu0 0.0
    %1885 = vmatprep.subr.mxu0 0.0
    %1886 = vmatpush2.xpose.msra.mxu0 0.0
    %1887 = vmatprep.subr.mxu0 0.0
    %1888 = vmatpush2.xpose.msra.mxu0 0.0
    %1889 = vmatprep.subr.mxu0 0.0
    %1890 = vmatpush2.xpose.msra.mxu0 0.0
    %1891 = vmatprep.subr.mxu0 0.0
    %1892 = vmatpush2.xpose.msra.mxu0 0.0
    %1893 = vmatprep.mubr.f32.mxu0 0.0
    %1894 = vmatmul.mubr.f32.gmra.mxu0 %v1824
    %v1895 = vpop.f32.mrf.mxu0
    %v1896 = vadd.f32 0.0, %v1895
    %v1897 = vpop.f32.mrf.mxu0
    %1898 = vdwg.mxu0
    %v1899 = vmul.f32 %v1820, 0.17677669
    %v1900 = vmul.f32 %v1896, 0.17677669
    %v1901 = vsel %vm131, %v1899, -inf
    %1902 = vmax.xlane.f32.xlu0 %v1901
    %v1903 = vpop.xlane.xlu0 %1902
    %v1904 = vsel %vm131, %v1900, -inf
    %1905 = vmax.xlane.f32.xlu0 %v1904
    %v1906 = vpop.xlane.xlu0 %1905
    %v1907 = vsub.f32 %v1899, %v1903
    %v1908 = vsub.f32 %v1900, %v1906
    %v1909 = vmul.f32 %v1907, 1.442695
    %v1910 = vpow.pop %v1909
    %v1911 = vmul.f32 %v1908, 1.442695
    %v1912 = vpow.pop %v1911
    %v1913 = vsel %vm131, %v1910, 0.0
    %1914 = vadd.xlane.f32.xlu0 %v1913
    %v1915 = vpop.xlane.xlu0 %1914
    %v1916 = vsel %vm131, %v1912, 0.0
    %1917 = vadd.xlane.f32.xlu0 %v1916
    %v1918 = vpop.xlane.xlu0 %1917
    %v1919 = vrcp.pop %v1915
    %v1920 = vmul.f32 %v1910, %v1919
    %v1921 = vrcp.pop %v1918
    %v1922 = vmul.f32 %v1912, %v1921
    %1923 = vrot.lane.b32.xlu0 %v1739, 96
    %v1924 = vpop.permute.xlu0 %1923
    %v1927 = vsel %vm131, %v1920, 0
    %1929 = vmatprep.subr.mxu0 0.0
    %1930 = vmatpush1.msra.mxu0 0.0
    %1931 = vmatprep.subr.mxu0 0.0
    %1932 = vmatpush1.msra.mxu0 0.0
    %1933 = vmatprep.subr.mxu0 0.0
    %1934 = vmatpush1.msra.mxu0 0.0
    %1935 = vmatprep.subr.mxu0 0.0
    %1936 = vmatpush1.msra.mxu0 0.0
    %1937 = vmatprep.subr.mxu0 0.0
    %1938 = vmatpush1.msra.mxu0 0.0
    %1939 = vmatprep.subr.mxu0 0.0
    %1940 = vmatpush1.msra.mxu0 0.0
    %1941 = vmatprep.subr.mxu0 0.0
    %1942 = vmatpush1.msra.mxu0 0.0
    %1943 = vmatprep.subr.mxu0 0.0
    %1944 = vmatpush1.msra.mxu0 0.0
    %1945 = vmatprep.subr.mxu0 0.0
    %1946 = vmatpush1.msra.mxu0 0.0
    %1947 = vmatprep.subr.mxu0 0.0
    %1948 = vmatpush1.msra.mxu0 0.0
    %1949 = vmatprep.subr.mxu0 0.0
    %1950 = vmatpush1.msra.mxu0 0.0
    %1951 = vmatprep.subr.mxu0 0.0
    %1952 = vmatpush1.msra.mxu0 0.0
    %1953 = vmatprep.subr.mxu0 0.0
    %1954 = vmatpush1.msra.mxu0 0.0
    %1955 = vmatprep.subr.mxu0 0.0
    %1956 = vmatpush1.msra.mxu0 0.0
    %1957 = vmatprep.subr.mxu0 0.0
    %1958 = vmatpush1.msra.mxu0 0.0
    %1959 = vmatprep.subr.mxu0 0.0
    %1960 = vmatpush1.msra.mxu0 %v1924
    %1961 = vmatprep.subr.mxu0 0.0
    %1962 = vmatpush2.msra.mxu0 0.0
    %1963 = vmatprep.subr.mxu0 0.0
    %1964 = vmatpush2.msra.mxu0 0.0
    %1965 = vmatprep.subr.mxu0 0.0
    %1966 = vmatpush2.msra.mxu0 0.0
    %1967 = vmatprep.subr.mxu0 0.0
    %1968 = vmatpush2.msra.mxu0 0.0
    %1969 = vmatprep.subr.mxu0 0.0
    %1970 = vmatpush2.msra.mxu0 0.0
    %1971 = vmatprep.subr.mxu0 0.0
    %1972 = vmatpush2.msra.mxu0 0.0
    %1973 = vmatprep.subr.mxu0 0.0
    %1974 = vmatpush2.msra.mxu0 0.0
    %1975 = vmatprep.subr.mxu0 0.0
    %1976 = vmatpush2.msra.mxu0 0.0
    %1977 = vmatprep.subr.mxu0 0.0
    %1978 = vmatpush2.msra.mxu0 0.0
    %1979 = vmatprep.subr.mxu0 0.0
    %1980 = vmatpush2.msra.mxu0 0.0
    %1981 = vmatprep.subr.mxu0 0.0
    %1982 = vmatpush2.msra.mxu0 0.0
    %1983 = vmatprep.subr.mxu0 0.0
    %1984 = vmatpush2.msra.mxu0 0.0
    %1985 = vmatprep.subr.mxu0 0.0
    %1986 = vmatpush2.msra.mxu0 0.0
    %1987 = vmatprep.subr.mxu0 0.0
    %1988 = vmatpush2.msra.mxu0 0.0
    %1989 = vmatprep.subr.mxu0 0.0
    %1990 = vmatpush2.msra.mxu0 0.0
    %1991 = vmatprep.subr.mxu0 0.0
    %1992 = vmatpush2.msra.mxu0 0.0
    %1993 = vmatprep.mubr.f32.mxu0 0.0
    %1994 = vmatmul.mubr.f32.gmra.mxu0 %v1927
    %v1995 = vpop.f32.mrf.mxu0
    %v1996 = vadd.f32 0.0, %v1995
    %v1997 = vpop.f32.mrf.mxu0
    %1998 = vdwg.mxu0
    %1999 = vrot.lane.b32.xlu0 %v1744, 96
    %v2000 = vpop.permute.xlu0 %1999
    %v2003 = vsel %vm131, %v1922, 0
    %2005 = vmatprep.subr.mxu0 0.0
    %2006 = vmatpush1.msra.mxu0 0.0
    %2007 = vmatprep.subr.mxu0 0.0
    %2008 = vmatpush1.msra.mxu0 0.0
    %2009 = vmatprep.subr.mxu0 0.0
    %2010 = vmatpush1.msra.mxu0 0.0
    %2011 = vmatprep.subr.mxu0 0.0
    %2012 = vmatpush1.msra.mxu0 0.0
    %2013 = vmatprep.subr.mxu0 0.0
    %2014 = vmatpush1.msra.mxu0 0.0
    %2015 = vmatprep.subr.mxu0 0.0
    %2016 = vmatpush1.msra.mxu0 0.0
    %2017 = vmatprep.subr.mxu0 0.0
    %2018 = vmatpush1.msra.mxu0 0.0
    %2019 = vmatprep.subr.mxu0 0.0
    %2020 = vmatpush1.msra.mxu0 0.0
    %2021 = vmatprep.subr.mxu0 0.0
    %2022 = vmatpush1.msra.mxu0 0.0
    %2023 = vmatprep.subr.mxu0 0.0
    %2024 = vmatpush1.msra.mxu0 0.0
    %2025 = vmatprep.subr.mxu0 0.0
    %2026 = vmatpush1.msra.mxu0 0.0
    %2027 = vmatprep.subr.mxu0 0.0
    %2028 = vmatpush1.msra.mxu0 0.0
    %2029 = vmatprep.subr.mxu0 0.0
    %2030 = vmatpush1.msra.mxu0 0.0
    %2031 = vmatprep.subr.mxu0 0.0
    %2032 = vmatpush1.msra.mxu0 0.0
    %2033 = vmatprep.subr.mxu0 0.0
    %2034 = vmatpush1.msra.mxu0 0.0
    %2035 = vmatprep.subr.mxu0 0.0
    %2036 = vmatpush1.msra.mxu0 %v2000
    %2037 = vmatprep.subr.mxu0 0.0
    %2038 = vmatpush2.msra.mxu0 0.0
    %2039 = vmatprep.subr.mxu0 0.0
    %2040 = vmatpush2.msra.mxu0 0.0
    %2041 = vmatprep.subr.mxu0 0.0
    %2042 = vmatpush2.msra.mxu0 0.0
    %2043 = vmatprep.subr.mxu0 0.0
    %2044 = vmatpush2.msra.mxu0 0.0
    %2045 = vmatprep.subr.mxu0 0.0
    %2046 = vmatpush2.msra.mxu0 0.0
    %2047 = vmatprep.subr.mxu0 0.0
    %2048 = vmatpush2.msra.mxu0 0.0
    %2049 = vmatprep.subr.mxu0 0.0
    %2050 = vmatpush2.msra.mxu0 0.0
    %2051 = vmatprep.subr.mxu0 0.0
    %2052 = vmatpush2.msra.mxu0 0.0
    %2053 = vmatprep.subr.mxu0 0.0
    %2054 = vmatpush2.msra.mxu0 0.0
    %2055 = vmatprep.subr.mxu0 0.0
    %2056 = vmatpush2.msra.mxu0 0.0
    %2057 = vmatprep.subr.mxu0 0.0
    %2058 = vmatpush2.msra.mxu0 0.0
    %2059 = vmatprep.subr.mxu0 0.0
    %2060 = vmatpush2.msra.mxu0 0.0
    %2061 = vmatprep.subr.mxu0 0.0
    %2062 = vmatpush2.msra.mxu0 0.0
    %2063 = vmatprep.subr.mxu0 0.0
    %2064 = vmatpush2.msra.mxu0 0.0
    %2065 = vmatprep.subr.mxu0 0.0
    %2066 = vmatpush2.msra.mxu0 0.0
    %2067 = vmatprep.subr.mxu0 0.0
    %2068 = vmatpush2.msra.mxu0 0.0
    %2069 = vmatprep.mubr.f32.mxu0 0.0
    %2070 = vmatmul.mubr.f32.gmra.mxu0 %v2003
    %v2071 = vpop.f32.mrf.mxu0
    %v2072 = vadd.f32 0.0, %v2071
    %v2073 = vpop.f32.mrf.mxu0
    %2074 = vdwg.mxu0
    %v2075 = vadd.f32 %v1649, %v1996
    %v2076 = vadd.f32 %v1654, %v2072
    %2077 = vrot.lane.b32.xlu0 %v1649, 120
    %v2078 = vpop.permute.xlu0 %2077
    %2079 = vrot.lane.b32.xlu0 %v1739, 120
    %v2080 = vpop.permute.xlu0 %2079
    %v2081 = vsel %vm131, %v2078, 0
    %v2083 = vsel %vm131, %v2080, 0
    %2085 = vmatprep.subr.mxu0 0.0
    %2086 = vmatpush1.xpose.msra.mxu0 0.0
    %2087 = vmatprep.subr.mxu0 0.0
    %2088 = vmatpush1.xpose.msra.mxu0 0.0
    %2089 = vmatprep.subr.mxu0 0.0
    %2090 = vmatpush1.xpose.msra.mxu0 0.0
    %2091 = vmatprep.subr.mxu0 0.0
    %2092 = vmatpush1.xpose.msra.mxu0 0.0
    %2093 = vmatprep.subr.mxu0 0.0
    %2094 = vmatpush1.xpose.msra.mxu0 0.0
    %2095 = vmatprep.subr.mxu0 0.0
    %2096 = vmatpush1.xpose.msra.mxu0 0.0
    %2097 = vmatprep.subr.mxu0 0.0
    %2098 = vmatpush1.xpose.msra.mxu0 0.0
    %2099 = vmatprep.subr.mxu0 0.0
    %2100 = vmatpush1.xpose.msra.mxu0 0.0
    %2101 = vmatprep.subr.mxu0 0.0
    %2102 = vmatpush1.xpose.msra.mxu0 0.0
    %2103 = vmatprep.subr.mxu0 0.0
    %2104 = vmatpush1.xpose.msra.mxu0 0.0
    %2105 = vmatprep.subr.mxu0 0.0
    %2106 = vmatpush1.xpose.msra.mxu0 0.0
    %2107 = vmatprep.subr.mxu0 0.0
    %2108 = vmatpush1.xpose.msra.mxu0 0.0
    %2109 = vmatprep.subr.mxu0 0.0
    %2110 = vmatpush1.xpose.msra.mxu0 0.0
    %2111 = vmatprep.subr.mxu0 0.0
    %2112 = vmatpush1.xpose.msra.mxu0 0.0
    %2113 = vmatprep.subr.mxu0 0.0
    %2114 = vmatpush1.xpose.msra.mxu0 0.0
    %2115 = vmatprep.subr.mxu0 0.0
    %2116 = vmatpush1.xpose.msra.mxu0 %v2083
    %2117 = vmatprep.subr.mxu0 0.0
    %2118 = vmatpush2.xpose.msra.mxu0 0.0
    %2119 = vmatprep.subr.mxu0 0.0
    %2120 = vmatpush2.xpose.msra.mxu0 0.0
    %2121 = vmatprep.subr.mxu0 0.0
    %2122 = vmatpush2.xpose.msra.mxu0 0.0
    %2123 = vmatprep.subr.mxu0 0.0
    %2124 = vmatpush2.xpose.msra.mxu0 0.0
    %2125 = vmatprep.subr.mxu0 0.0
    %2126 = vmatpush2.xpose.msra.mxu0 0.0
    %2127 = vmatprep.subr.mxu0 0.0
    %2128 = vmatpush2.xpose.msra.mxu0 0.0
    %2129 = vmatprep.subr.mxu0 0.0
    %2130 = vmatpush2.xpose.msra.mxu0 0.0
    %2131 = vmatprep.subr.mxu0 0.0
    %2132 = vmatpush2.xpose.msra.mxu0 0.0
    %2133 = vmatprep.subr.mxu0 0.0
    %2134 = vmatpush2.xpose.msra.mxu0 0.0
    %2135 = vmatprep.subr.mxu0 0.0
    %2136 = vmatpush2.xpose.msra.mxu0 0.0
    %2137 = vmatprep.subr.mxu0 0.0
    %2138 = vmatpush2.xpose.msra.mxu0 0.0
    %2139 = vmatprep.subr.mxu0 0.0
    %2140 = vmatpush2.xpose.msra.mxu0 0.0
    %2141 = vmatprep.subr.mxu0 0.0
    %2142 = vmatpush2.xpose.msra.mxu0 0.0
    %2143 = vmatprep.subr.mxu0 0.0
    %2144 = vmatpush2.xpose.msra.mxu0 0.0
    %2145 = vmatprep.subr.mxu0 0.0
    %2146 = vmatpush2.xpose.msra.mxu0 0.0
    %2147 = vmatprep.subr.mxu0 0.0
    %2148 = vmatpush2.xpose.msra.mxu0 0.0
    %2149 = vmatprep.mubr.f32.mxu0 0.0
    %2150 = vmatmul.mubr.f32.gmra.mxu0 %v2081
    %v2151 = vpop.f32.mrf.mxu0
    %v2152 = vadd.f32 0.0, %v2151
    %v2153 = vpop.f32.mrf.mxu0
    %2154 = vdwg.mxu0
    %2155 = vrot.lane.b32.xlu0 %v1654, 120
    %v2156 = vpop.permute.xlu0 %2155
    %2157 = vrot.lane.b32.xlu0 %v1744, 120
    %v2158 = vpop.permute.xlu0 %2157
    %v2159 = vsel %vm131, %v2156, 0
    %v2161 = vsel %vm131, %v2158, 0
    %2163 = vmatprep.subr.mxu0 0.0
    %2164 = vmatpush1.xpose.msra.mxu0 0.0
    %2165 = vmatprep.subr.mxu0 0.0
    %2166 = vmatpush1.xpose.msra.mxu0 0.0
    %2167 = vmatprep.subr.mxu0 0.0
    %2168 = vmatpush1.xpose.msra.mxu0 0.0
    %2169 = vmatprep.subr.mxu0 0.0
    %2170 = vmatpush1.xpose.msra.mxu0 0.0
    %2171 = vmatprep.subr.mxu0 0.0
    %2172 = vmatpush1.xpose.msra.mxu0 0.0
    %2173 = vmatprep.subr.mxu0 0.0
    %2174 = vmatpush1.xpose.msra.mxu0 0.0
    %2175 = vmatprep.subr.mxu0 0.0
    %2176 = vmatpush1.xpose.msra.mxu0 0.0
    %2177 = vmatprep.subr.mxu0 0.0
    %2178 = vmatpush1.xpose.msra.mxu0 0.0
    %2179 = vmatprep.subr.mxu0 0.0
    %2180 = vmatpush1.xpose.msra.mxu0 0.0
    %2181 = vmatprep.subr.mxu0 0.0
    %2182 = vmatpush1.xpose.msra.mxu0 0.0
    %2183 = vmatprep.subr.mxu0 0.0
    %2184 = vmatpush1.xpose.msra.mxu0 0.0
    %2185 = vmatprep.subr.mxu0 0.0
    %2186 = vmatpush1.xpose.msra.mxu0 0.0
    %2187 = vmatprep.subr.mxu0 0.0
    %2188 = vmatpush1.xpose.msra.mxu0 0.0
    %2189 = vmatprep.subr.mxu0 0.0
    %2190 = vmatpush1.xpose.msra.mxu0 0.0
    %2191 = vmatprep.subr.mxu0 0.0
    %2192 = vmatpush1.xpose.msra.mxu0 0.0
    %2193 = vmatprep.subr.mxu0 0.0
    %2194 = vmatpush1.xpose.msra.mxu0 %v2161
    %2195 = vmatprep.subr.mxu0 0.0
    %2196 = vmatpush2.xpose.msra.mxu0 0.0
    %2197 = vmatprep.subr.mxu0 0.0
    %2198 = vmatpush2.xpose.msra.mxu0 0.0
    %2199 = vmatprep.subr.mxu0 0.0
    %2200 = vmatpush2.xpose.msra.mxu0 0.0
    %2201 = vmatprep.subr.mxu0 0.0
    %2202 = vmatpush2.xpose.msra.mxu0 0.0
    %2203 = vmatprep.subr.mxu0 0.0
    %2204 = vmatpush2.xpose.msra.mxu0 0.0
    %2205 = vmatprep.subr.mxu0 0.0
    %2206 = vmatpush2.xpose.msra.mxu0 0.0
    %2207 = vmatprep.subr.mxu0 0.0
    %2208 = vmatpush2.xpose.msra.mxu0 0.0
    %2209 = vmatprep.subr.mxu0 0.0
    %2210 = vmatpush2.xpose.msra.mxu0 0.0
    %2211 = vmatprep.subr.mxu0 0.0
    %2212 = vmatpush2.xpose.msra.mxu0 0.0
    %2213 = vmatprep.subr.mxu0 0.0
    %2214 = vmatpush2.xpose.msra.mxu0 0.0
    %2215 = vmatprep.subr.mxu0 0.0
    %2216 = vmatpush2.xpose.msra.mxu0 0.0
    %2217 = vmatprep.subr.mxu0 0.0
    %2218 = vmatpush2.xpose.msra.mxu0 0.0
    %2219 = vmatprep.subr.mxu0 0.0
    %2220 = vmatpush2.xpose.msra.mxu0 0.0
    %2221 = vmatprep.subr.mxu0 0.0
    %2222 = vmatpush2.xpose.msra.mxu0 0.0
    %2223 = vmatprep.subr.mxu0 0.0
    %2224 = vmatpush2.xpose.msra.mxu0 0.0
    %2225 = vmatprep.subr.mxu0 0.0
    %2226 = vmatpush2.xpose.msra.mxu0 0.0
    %2227 = vmatprep.mubr.f32.mxu0 0.0
    %2228 = vmatmul.mubr.f32.gmra.mxu0 %v2159
    %v2229 = vpop.f32.mrf.mxu0
    %v2230 = vadd.f32 0.0, %v2229
    %v2231 = vpop.f32.mrf.mxu0
    %2232 = vdwg.mxu0
    %v2233 = vmul.f32 %v2152, 0.17677669
    %v2234 = vmul.f32 %v2230, 0.17677669
    %v2235 = vsel %vm131, %v2233, -inf
    %2236 = vmax.xlane.f32.xlu0 %v2235
    %v2237 = vpop.xlane.xlu0 %2236
    %v2238 = vsel %vm131, %v2234, -inf
    %2239 = vmax.xlane.f32.xlu0 %v2238
    %v2240 = vpop.xlane.xlu0 %2239
    %v2241 = vsub.f32 %v2233, %v2237
    %v2242 = vsub.f32 %v2234, %v2240
    %v2243 = vmul.f32 %v2241, 1.442695
    %v2244 = vpow.pop %v2243
    %v2245 = vmul.f32 %v2242, 1.442695
    %v2246 = vpow.pop %v2245
    %v2247 = vsel %vm131, %v2244, 0.0
    %2248 = vadd.xlane.f32.xlu0 %v2247
    %v2249 = vpop.xlane.xlu0 %2248
    %v2250 = vsel %vm131, %v2246, 0.0
    %2251 = vadd.xlane.f32.xlu0 %v2250
    %v2252 = vpop.xlane.xlu0 %2251
    %v2253 = vrcp.pop %v2249
    %v2254 = vmul.f32 %v2244, %v2253
    %v2255 = vrcp.pop %v2252
    %v2256 = vmul.f32 %v2246, %v2255
    %2257 = vrot.lane.b32.xlu0 %v1739, 88
    %v2258 = vpop.permute.xlu0 %2257
    %v2261 = vsel %vm131, %v2254, 0
    %2263 = vmatprep.subr.mxu0 0.0
    %2264 = vmatpush1.msra.mxu0 0.0
    %2265 = vmatprep.subr.mxu0 0.0
    %2266 = vmatpush1.msra.mxu0 0.0
    %2267 = vmatprep.subr.mxu0 0.0
    %2268 = vmatpush1.msra.mxu0 0.0
    %2269 = vmatprep.subr.mxu0 0.0
    %2270 = vmatpush1.msra.mxu0 0.0
    %2271 = vmatprep.subr.mxu0 0.0
    %2272 = vmatpush1.msra.mxu0 0.0
    %2273 = vmatprep.subr.mxu0 0.0
    %2274 = vmatpush1.msra.mxu0 0.0
    %2275 = vmatprep.subr.mxu0 0.0
    %2276 = vmatpush1.msra.mxu0 0.0
    %2277 = vmatprep.subr.mxu0 0.0
    %2278 = vmatpush1.msra.mxu0 0.0
    %2279 = vmatprep.subr.mxu0 0.0
    %2280 = vmatpush1.msra.mxu0 0.0
    %2281 = vmatprep.subr.mxu0 0.0
    %2282 = vmatpush1.msra.mxu0 0.0
    %2283 = vmatprep.subr.mxu0 0.0
    %2284 = vmatpush1.msra.mxu0 0.0
    %2285 = vmatprep.subr.mxu0 0.0
    %2286 = vmatpush1.msra.mxu0 0.0
    %2287 = vmatprep.subr.mxu0 0.0
    %2288 = vmatpush1.msra.mxu0 0.0
    %2289 = vmatprep.subr.mxu0 0.0
    %2290 = vmatpush1.msra.mxu0 0.0
    %2291 = vmatprep.subr.mxu0 0.0
    %2292 = vmatpush1.msra.mxu0 0.0
    %2293 = vmatprep.subr.mxu0 0.0
    %2294 = vmatpush1.msra.mxu0 %v2258
    %2295 = vmatprep.subr.mxu0 0.0
    %2296 = vmatpush2.msra.mxu0 0.0
    %2297 = vmatprep.subr.mxu0 0.0
    %2298 = vmatpush2.msra.mxu0 0.0
    %2299 = vmatprep.subr.mxu0 0.0
    %2300 = vmatpush2.msra.mxu0 0.0
    %2301 = vmatprep.subr.mxu0 0.0
    %2302 = vmatpush2.msra.mxu0 0.0
    %2303 = vmatprep.subr.mxu0 0.0
    %2304 = vmatpush2.msra.mxu0 0.0
    %2305 = vmatprep.subr.mxu0 0.0
    %2306 = vmatpush2.msra.mxu0 0.0
    %2307 = vmatprep.subr.mxu0 0.0
    %2308 = vmatpush2.msra.mxu0 0.0
    %2309 = vmatprep.subr.mxu0 0.0
    %2310 = vmatpush2.msra.mxu0 0.0
    %2311 = vmatprep.subr.mxu0 0.0
    %2312 = vmatpush2.msra.mxu0 0.0
    %2313 = vmatprep.subr.mxu0 0.0
    %2314 = vmatpush2.msra.mxu0 0.0
    %2315 = vmatprep.subr.mxu0 0.0
    %2316 = vmatpush2.msra.mxu0 0.0
    %2317 = vmatprep.subr.mxu0 0.0
    %2318 = vmatpush2.msra.mxu0 0.0
    %2319 = vmatprep.subr.mxu0 0.0
    %2320 = vmatpush2.msra.mxu0 0.0
    %2321 = vmatprep.subr.mxu0 0.0
    %2322 = vmatpush2.msra.mxu0 0.0
    %2323 = vmatprep.subr.mxu0 0.0
    %2324 = vmatpush2.msra.mxu0 0.0
    %2325 = vmatprep.subr.mxu0 0.0
    %2326 = vmatpush2.msra.mxu0 0.0
    %2327 = vmatprep.mubr.f32.mxu0 0.0
    %2328 = vmatmul.mubr.f32.gmra.mxu0 %v2261
    %v2329 = vpop.f32.mrf.mxu0
    %v2330 = vadd.f32 0.0, %v2329
    %v2331 = vpop.f32.mrf.mxu0
    %2332 = vdwg.mxu0
    %2333 = vrot.lane.b32.xlu0 %v1744, 88
    %v2334 = vpop.permute.xlu0 %2333
    %v2337 = vsel %vm131, %v2256, 0
    %2339 = vmatprep.subr.mxu0 0.0
    %2340 = vmatpush1.msra.mxu0 0.0
    %2341 = vmatprep.subr.mxu0 0.0
    %2342 = vmatpush1.msra.mxu0 0.0
    %2343 = vmatprep.subr.mxu0 0.0
    %2344 = vmatpush1.msra.mxu0 0.0
    %2345 = vmatprep.subr.mxu0 0.0
    %2346 = vmatpush1.msra.mxu0 0.0
    %2347 = vmatprep.subr.mxu0 0.0
    %2348 = vmatpush1.msra.mxu0 0.0
    %2349 = vmatprep.subr.mxu0 0.0
    %2350 = vmatpush1.msra.mxu0 0.0
    %2351 = vmatprep.subr.mxu0 0.0
    %2352 = vmatpush1.msra.mxu0 0.0
    %2353 = vmatprep.subr.mxu0 0.0
    %2354 = vmatpush1.msra.mxu0 0.0
    %2355 = vmatprep.subr.mxu0 0.0
    %2356 = vmatpush1.msra.mxu0 0.0
    %2357 = vmatprep.subr.mxu0 0.0
    %2358 = vmatpush1.msra.mxu0 0.0
    %2359 = vmatprep.subr.mxu0 0.0
    %2360 = vmatpush1.msra.mxu0 0.0
    %2361 = vmatprep.subr.mxu0 0.0
    %2362 = vmatpush1.msra.mxu0 0.0
    %2363 = vmatprep.subr.mxu0 0.0
    %2364 = vmatpush1.msra.mxu0 0.0
    %2365 = vmatprep.subr.mxu0 0.0
    %2366 = vmatpush1.msra.mxu0 0.0
    %2367 = vmatprep.subr.mxu0 0.0
    %2368 = vmatpush1.msra.mxu0 0.0
    %2369 = vmatprep.subr.mxu0 0.0
    %2370 = vmatpush1.msra.mxu0 %v2334
    %2371 = vmatprep.subr.mxu0 0.0
    %2372 = vmatpush2.msra.mxu0 0.0
    %2373 = vmatprep.subr.mxu0 0.0
    %2374 = vmatpush2.msra.mxu0 0.0
    %2375 = vmatprep.subr.mxu0 0.0
    %2376 = vmatpush2.msra.mxu0 0.0
    %2377 = vmatprep.subr.mxu0 0.0
    %2378 = vmatpush2.msra.mxu0 0.0
    %2379 = vmatprep.subr.mxu0 0.0
    %2380 = vmatpush2.msra.mxu0 0.0
    %2381 = vmatprep.subr.mxu0 0.0
    %2382 = vmatpush2.msra.mxu0 0.0
    %2383 = vmatprep.subr.mxu0 0.0
    %2384 = vmatpush2.msra.mxu0 0.0
    %2385 = vmatprep.subr.mxu0 0.0
    %2386 = vmatpush2.msra.mxu0 0.0
    %2387 = vmatprep.subr.mxu0 0.0
    %2388 = vmatpush2.msra.mxu0 0.0
    %2389 = vmatprep.subr.mxu0 0.0
    %2390 = vmatpush2.msra.mxu0 0.0
    %2391 = vmatprep.subr.mxu0 0.0
    %2392 = vmatpush2.msra.mxu0 0.0
    %2393 = vmatprep.subr.mxu0 0.0
    %2394 = vmatpush2.msra.mxu0 0.0
    %2395 = vmatprep.subr.mxu0 0.0
    %2396 = vmatpush2.msra.mxu0 0.0
    %2397 = vmatprep.subr.mxu0 0.0
    %2398 = vmatpush2.msra.mxu0 0.0
    %2399 = vmatprep.subr.mxu0 0.0
    %2400 = vmatpush2.msra.mxu0 0.0
    %2401 = vmatprep.subr.mxu0 0.0
    %2402 = vmatpush2.msra.mxu0 0.0
    %2403 = vmatprep.mubr.f32.mxu0 0.0
    %2404 = vmatmul.mubr.f32.gmra.mxu0 %v2337
    %v2405 = vpop.f32.mrf.mxu0
    %v2406 = vadd.f32 0.0, %v2405
    %v2407 = vpop.f32.mrf.mxu0
    %2408 = vdwg.mxu0
    %2411 = vrot.lane.b32.xlu0 %v2330, 8
    %v2412 = vpop.permute.xlu0 %2411
    %2413 = vrot.lane.b32.xlu0 %v2406, 8
    %v2414 = vpop.permute.xlu0 %2413
    %v2417 = vadd.f32 %v1649, %v2412
    %v2418 = vadd.f32 %v1654, %v2414
    %2419 = vrot.lane.b32.xlu0 %v1649, 112
    %v2420 = vpop.permute.xlu0 %2419
    %2421 = vrot.lane.b32.xlu0 %v1739, 112
    %v2422 = vpop.permute.xlu0 %2421
    %v2423 = vsel %vm131, %v2420, 0
    %v2425 = vsel %vm131, %v2422, 0
    %2427 = vmatprep.subr.mxu0 0.0
    %2428 = vmatpush1.xpose.msra.mxu0 0.0
    %2429 = vmatprep.subr.mxu0 0.0
    %2430 = vmatpush1.xpose.msra.mxu0 0.0
    %2431 = vmatprep.subr.mxu0 0.0
    %2432 = vmatpush1.xpose.msra.mxu0 0.0
    %2433 = vmatprep.subr.mxu0 0.0
    %2434 = vmatpush1.xpose.msra.mxu0 0.0
    %2435 = vmatprep.subr.mxu0 0.0
    %2436 = vmatpush1.xpose.msra.mxu0 0.0
    %2437 = vmatprep.subr.mxu0 0.0
    %2438 = vmatpush1.xpose.msra.mxu0 0.0
    %2439 = vmatprep.subr.mxu0 0.0
    %2440 = vmatpush1.xpose.msra.mxu0 0.0
    %2441 = vmatprep.subr.mxu0 0.0
    %2442 = vmatpush1.xpose.msra.mxu0 0.0
    %2443 = vmatprep.subr.mxu0 0.0
    %2444 = vmatpush1.xpose.msra.mxu0 0.0
    %2445 = vmatprep.subr.mxu0 0.0
    %2446 = vmatpush1.xpose.msra.mxu0 0.0
    %2447 = vmatprep.subr.mxu0 0.0
    %2448 = vmatpush1.xpose.msra.mxu0 0.0
    %2449 = vmatprep.subr.mxu0 0.0
    %2450 = vmatpush1.xpose.msra.mxu0 0.0
    %2451 = vmatprep.subr.mxu0 0.0
    %2452 = vmatpush1.xpose.msra.mxu0 0.0
    %2453 = vmatprep.subr.mxu0 0.0
    %2454 = vmatpush1.xpose.msra.mxu0 0.0
    %2455 = vmatprep.subr.mxu0 0.0
    %2456 = vmatpush1.xpose.msra.mxu0 0.0
    %2457 = vmatprep.subr.mxu0 0.0
    %2458 = vmatpush1.xpose.msra.mxu0 %v2425
    %2459 = vmatprep.subr.mxu0 0.0
    %2460 = vmatpush2.xpose.msra.mxu0 0.0
    %2461 = vmatprep.subr.mxu0 0.0
    %2462 = vmatpush2.xpose.msra.mxu0 0.0
    %2463 = vmatprep.subr.mxu0 0.0
    %2464 = vmatpush2.xpose.msra.mxu0 0.0
    %2465 = vmatprep.subr.mxu0 0.0
    %2466 = vmatpush2.xpose.msra.mxu0 0.0
    %2467 = vmatprep.subr.mxu0 0.0
    %2468 = vmatpush2.xpose.msra.mxu0 0.0
    %2469 = vmatprep.subr.mxu0 0.0
    %2470 = vmatpush2.xpose.msra.mxu0 0.0
    %2471 = vmatprep.subr.mxu0 0.0
    %2472 = vmatpush2.xpose.msra.mxu0 0.0
    %2473 = vmatprep.subr.mxu0 0.0
    %2474 = vmatpush2.xpose.msra.mxu0 0.0
    %2475 = vmatprep.subr.mxu0 0.0
    %2476 = vmatpush2.xpose.msra.mxu0 0.0
    %2477 = vmatprep.subr.mxu0 0.0
    %2478 = vmatpush2.xpose.msra.mxu0 0.0
    %2479 = vmatprep.subr.mxu0 0.0
    %2480 = vmatpush2.xpose.msra.mxu0 0.0
    %2481 = vmatprep.subr.mxu0 0.0
    %2482 = vmatpush2.xpose.msra.mxu0 0.0
    %2483 = vmatprep.subr.mxu0 0.0
    %2484 = vmatpush2.xpose.msra.mxu0 0.0
    %2485 = vmatprep.subr.mxu0 0.0
    %2486 = vmatpush2.xpose.msra.mxu0 0.0
    %2487 = vmatprep.subr.mxu0 0.0
    %2488 = vmatpush2.xpose.msra.mxu0 0.0
    %2489 = vmatprep.subr.mxu0 0.0
    %2490 = vmatpush2.xpose.msra.mxu0 0.0
    %2491 = vmatprep.mubr.f32.mxu0 0.0
    %2492 = vmatmul.mubr.f32.gmra.mxu0 %v2423
    %v2493 = vpop.f32.mrf.mxu0
    %v2494 = vadd.f32 0.0, %v2493
    %v2495 = vpop.f32.mrf.mxu0
    %2496 = vdwg.mxu0
    %2497 = vrot.lane.b32.xlu0 %v1654, 112
    %v2498 = vpop.permute.xlu0 %2497
    %2499 = vrot.lane.b32.xlu0 %v1744, 112
    %v2500 = vpop.permute.xlu0 %2499
    %v2501 = vsel %vm131, %v2498, 0
    %v2503 = vsel %vm131, %v2500, 0
    %2505 = vmatprep.subr.mxu0 0.0
    %2506 = vmatpush1.xpose.msra.mxu0 0.0
    %2507 = vmatprep.subr.mxu0 0.0
    %2508 = vmatpush1.xpose.msra.mxu0 0.0
    %2509 = vmatprep.subr.mxu0 0.0
    %2510 = vmatpush1.xpose.msra.mxu0 0.0
    %2511 = vmatprep.subr.mxu0 0.0
    %2512 = vmatpush1.xpose.msra.mxu0 0.0
    %2513 = vmatprep.subr.mxu0 0.0
    %2514 = vmatpush1.xpose.msra.mxu0 0.0
    %2515 = vmatprep.subr.mxu0 0.0
    %2516 = vmatpush1.xpose.msra.mxu0 0.0
    %2517 = vmatprep.subr.mxu0 0.0
    %2518 = vmatpush1.xpose.msra.mxu0 0.0
    %2519 = vmatprep.subr.mxu0 0.0
    %2520 = vmatpush1.xpose.msra.mxu0 0.0
    %2521 = vmatprep.subr.mxu0 0.0
    %2522 = vmatpush1.xpose.msra.mxu0 0.0
    %2523 = vmatprep.subr.mxu0 0.0
    %2524 = vmatpush1.xpose.msra.mxu0 0.0
    %2525 = vmatprep.subr.mxu0 0.0
    %2526 = vmatpush1.xpose.msra.mxu0 0.0
    %2527 = vmatprep.subr.mxu0 0.0
    %2528 = vmatpush1.xpose.msra.mxu0 0.0
    %2529 = vmatprep.subr.mxu0 0.0
    %2530 = vmatpush1.xpose.msra.mxu0 0.0
    %2531 = vmatprep.subr.mxu0 0.0
    %2532 = vmatpush1.xpose.msra.mxu0 0.0
    %2533 = vmatprep.subr.mxu0 0.0
    %2534 = vmatpush1.xpose.msra.mxu0 0.0
    %2535 = vmatprep.subr.mxu0 0.0
    %2536 = vmatpush1.xpose.msra.mxu0 %v2503
    %2537 = vmatprep.subr.mxu0 0.0
    %2538 = vmatpush2.xpose.msra.mxu0 0.0
    %2539 = vmatprep.subr.mxu0 0.0
    %2540 = vmatpush2.xpose.msra.mxu0 0.0
    %2541 = vmatprep.subr.mxu0 0.0
    %2542 = vmatpush2.xpose.msra.mxu0 0.0
    %2543 = vmatprep.subr.mxu0 0.0
    %2544 = vmatpush2.xpose.msra.mxu0 0.0
    %2545 = vmatprep.subr.mxu0 0.0
    %2546 = vmatpush2.xpose.msra.mxu0 0.0
    %2547 = vmatprep.subr.mxu0 0.0
    %2548 = vmatpush2.xpose.msra.mxu0 0.0
    %2549 = vmatprep.subr.mxu0 0.0
    %2550 = vmatpush2.xpose.msra.mxu0 0.0
    %2551 = vmatprep.subr.mxu0 0.0
    %2552 = vmatpush2.xpose.msra.mxu0 0.0
    %2553 = vmatprep.subr.mxu0 0.0
    %2554 = vmatpush2.xpose.msra.mxu0 0.0
    %2555 = vmatprep.subr.mxu0 0.0
    %2556 = vmatpush2.xpose.msra.mxu0 0.0
    %2557 = vmatprep.subr.mxu0 0.0
    %2558 = vmatpush2.xpose.msra.mxu0 0.0
    %2559 = vmatprep.subr.mxu0 0.0
    %2560 = vmatpush2.xpose.msra.mxu0 0.0
    %2561 = vmatprep.subr.mxu0 0.0
    %2562 = vmatpush2.xpose.msra.mxu0 0.0
    %2563 = vmatprep.subr.mxu0 0.0
    %2564 = vmatpush2.xpose.msra.mxu0 0.0
    %2565 = vmatprep.subr.mxu0 0.0
    %2566 = vmatpush2.xpose.msra.mxu0 0.0
    %2567 = vmatprep.subr.mxu0 0.0
    %2568 = vmatpush2.xpose.msra.mxu0 0.0
    %2569 = vmatprep.mubr.f32.mxu0 0.0
    %2570 = vmatmul.mubr.f32.gmra.mxu0 %v2501
    %v2571 = vpop.f32.mrf.mxu0
    %v2572 = vadd.f32 0.0, %v2571
    %v2573 = vpop.f32.mrf.mxu0
    %2574 = vdwg.mxu0
    %v2575 = vmul.f32 %v2494, 0.17677669
    %v2576 = vmul.f32 %v2572, 0.17677669
    %v2577 = vsel %vm131, %v2575, -inf
    %2578 = vmax.xlane.f32.xlu0 %v2577
    %v2579 = vpop.xlane.xlu0 %2578
    %v2580 = vsel %vm131, %v2576, -inf
    %2581 = vmax.xlane.f32.xlu0 %v2580
    %v2582 = vpop.xlane.xlu0 %2581
    %v2583 = vsub.f32 %v2575, %v2579
    %v2584 = vsub.f32 %v2576, %v2582
    %v2585 = vmul.f32 %v2583, 1.442695
    %v2586 = vpow.pop %v2585
    %v2587 = vmul.f32 %v2584, 1.442695
    %v2588 = vpow.pop %v2587
    %v2589 = vsel %vm131, %v2586, 0.0
    %2590 = vadd.xlane.f32.xlu0 %v2589
    %v2591 = vpop.xlane.xlu0 %2590
    %v2592 = vsel %vm131, %v2588, 0.0
    %2593 = vadd.xlane.f32.xlu0 %v2592
    %v2594 = vpop.xlane.xlu0 %2593
    %v2595 = vrcp.pop %v2591
    %v2596 = vmul.f32 %v2586, %v2595
    %v2597 = vrcp.pop %v2594
    %v2598 = vmul.f32 %v2588, %v2597
    %2599 = vrot.lane.b32.xlu0 %v1739, 80
    %v2600 = vpop.permute.xlu0 %2599
    %v2603 = vsel %vm131, %v2596, 0
    %2605 = vmatprep.subr.mxu0 0.0
    %2606 = vmatpush1.msra.mxu0 0.0
    %2607 = vmatprep.subr.mxu0 0.0
    %2608 = vmatpush1.msra.mxu0 0.0
    %2609 = vmatprep.subr.mxu0 0.0
    %2610 = vmatpush1.msra.mxu0 0.0
    %2611 = vmatprep.subr.mxu0 0.0
    %2612 = vmatpush1.msra.mxu0 0.0
    %2613 = vmatprep.subr.mxu0 0.0
    %2614 = vmatpush1.msra.mxu0 0.0
    %2615 = vmatprep.subr.mxu0 0.0
    %2616 = vmatpush1.msra.mxu0 0.0
    %2617 = vmatprep.subr.mxu0 0.0
    %2618 = vmatpush1.msra.mxu0 0.0
    %2619 = vmatprep.subr.mxu0 0.0
    %2620 = vmatpush1.msra.mxu0 0.0
    %2621 = vmatprep.subr.mxu0 0.0
    %2622 = vmatpush1.msra.mxu0 0.0
    %2623 = vmatprep.subr.mxu0 0.0
    %2624 = vmatpush1.msra.mxu0 0.0
    %2625 = vmatprep.subr.mxu0 0.0
    %2626 = vmatpush1.msra.mxu0 0.0
    %2627 = vmatprep.subr.mxu0 0.0
    %2628 = vmatpush1.msra.mxu0 0.0
    %2629 = vmatprep.subr.mxu0 0.0
    %2630 = vmatpush1.msra.mxu0 0.0
    %2631 = vmatprep.subr.mxu0 0.0
    %2632 = vmatpush1.msra.mxu0 0.0
    %2633 = vmatprep.subr.mxu0 0.0
    %2634 = vmatpush1.msra.mxu0 0.0
    %2635 = vmatprep.subr.mxu0 0.0
    %2636 = vmatpush1.msra.mxu0 %v2600
    %2637 = vmatprep.subr.mxu0 0.0
    %2638 = vmatpush2.msra.mxu0 0.0
    %2639 = vmatprep.subr.mxu0 0.0
    %2640 = vmatpush2.msra.mxu0 0.0
    %2641 = vmatprep.subr.mxu0 0.0
    %2642 = vmatpush2.msra.mxu0 0.0
    %2643 = vmatprep.subr.mxu0 0.0
    %2644 = vmatpush2.msra.mxu0 0.0
    %2645 = vmatprep.subr.mxu0 0.0
    %2646 = vmatpush2.msra.mxu0 0.0
    %2647 = vmatprep.subr.mxu0 0.0
    %2648 = vmatpush2.msra.mxu0 0.0
    %2649 = vmatprep.subr.mxu0 0.0
    %2650 = vmatpush2.msra.mxu0 0.0
    %2651 = vmatprep.subr.mxu0 0.0
    %2652 = vmatpush2.msra.mxu0 0.0
    %2653 = vmatprep.subr.mxu0 0.0
    %2654 = vmatpush2.msra.mxu0 0.0
    %2655 = vmatprep.subr.mxu0 0.0
    %2656 = vmatpush2.msra.mxu0 0.0
    %2657 = vmatprep.subr.mxu0 0.0
    %2658 = vmatpush2.msra.mxu0 0.0
    %2659 = vmatprep.subr.mxu0 0.0
    %2660 = vmatpush2.msra.mxu0 0.0
    %2661 = vmatprep.subr.mxu0 0.0
    %2662 = vmatpush2.msra.mxu0 0.0
    %2663 = vmatprep.subr.mxu0 0.0
    %2664 = vmatpush2.msra.mxu0 0.0
    %2665 = vmatprep.subr.mxu0 0.0
    %2666 = vmatpush2.msra.mxu0 0.0
    %2667 = vmatprep.subr.mxu0 0.0
    %2668 = vmatpush2.msra.mxu0 0.0
    %2669 = vmatprep.mubr.f32.mxu0 0.0
    %2670 = vmatmul.mubr.f32.gmra.mxu0 %v2603
    %v2671 = vpop.f32.mrf.mxu0
    %v2672 = vadd.f32 0.0, %v2671
    %v2673 = vpop.f32.mrf.mxu0
    %2674 = vdwg.mxu0
    %2675 = vrot.lane.b32.xlu0 %v1744, 80
    %v2676 = vpop.permute.xlu0 %2675
    %v2679 = vsel %vm131, %v2598, 0
    %2681 = vmatprep.subr.mxu0 0.0
    %2682 = vmatpush1.msra.mxu0 0.0
    %2683 = vmatprep.subr.mxu0 0.0
    %2684 = vmatpush1.msra.mxu0 0.0
    %2685 = vmatprep.subr.mxu0 0.0
    %2686 = vmatpush1.msra.mxu0 0.0
    %2687 = vmatprep.subr.mxu0 0.0
    %2688 = vmatpush1.msra.mxu0 0.0
    %2689 = vmatprep.subr.mxu0 0.0
    %2690 = vmatpush1.msra.mxu0 0.0
    %2691 = vmatprep.subr.mxu0 0.0
    %2692 = vmatpush1.msra.mxu0 0.0
    %2693 = vmatprep.subr.mxu0 0.0
    %2694 = vmatpush1.msra.mxu0 0.0
    %2695 = vmatprep.subr.mxu0 0.0
    %2696 = vmatpush1.msra.mxu0 0.0
    %2697 = vmatprep.subr.mxu0 0.0
    %2698 = vmatpush1.msra.mxu0 0.0
    %2699 = vmatprep.subr.mxu0 0.0
    %2700 = vmatpush1.msra.mxu0 0.0
    %2701 = vmatprep.subr.mxu0 0.0
    %2702 = vmatpush1.msra.mxu0 0.0
    %2703 = vmatprep.subr.mxu0 0.0
    %2704 = vmatpush1.msra.mxu0 0.0
    %2705 = vmatprep.subr.mxu0 0.0
    %2706 = vmatpush1.msra.mxu0 0.0
    %2707 = vmatprep.subr.mxu0 0.0
    %2708 = vmatpush1.msra.mxu0 0.0
    %2709 = vmatprep.subr.mxu0 0.0
    %2710 = vmatpush1.msra.mxu0 0.0
    %2711 = vmatprep.subr.mxu0 0.0
    %2712 = vmatpush1.msra.mxu0 %v2676
    %2713 = vmatprep.subr.mxu0 0.0
    %2714 = vmatpush2.msra.mxu0 0.0
    %2715 = vmatprep.subr.mxu0 0.0
    %2716 = vmatpush2.msra.mxu0 0.0
    %2717 = vmatprep.subr.mxu0 0.0
    %2718 = vmatpush2.msra.mxu0 0.0
    %2719 = vmatprep.subr.mxu0 0.0
    %2720 = vmatpush2.msra.mxu0 0.0
    %2721 = vmatprep.subr.mxu0 0.0
    %2722 = vmatpush2.msra.mxu0 0.0
    %2723 = vmatprep.subr.mxu0 0.0
    %2724 = vmatpush2.msra.mxu0 0.0
    %2725 = vmatprep.subr.mxu0 0.0
    %2726 = vmatpush2.msra.mxu0 0.0
    %2727 = vmatprep.subr.mxu0 0.0
    %2728 = vmatpush2.msra.mxu0 0.0
    %2729 = vmatprep.subr.mxu0 0.0
    %2730 = vmatpush2.msra.mxu0 0.0
    %2731 = vmatprep.subr.mxu0 0.0
    %2732 = vmatpush2.msra.mxu0 0.0
    %2733 = vmatprep.subr.mxu0 0.0
    %2734 = vmatpush2.msra.mxu0 0.0
    %2735 = vmatprep.subr.mxu0 0.0
    %2736 = vmatpush2.msra.mxu0 0.0
    %2737 = vmatprep.subr.mxu0 0.0
    %2738 = vmatpush2.msra.mxu0 0.0
    %2739 = vmatprep.subr.mxu0 0.0
    %2740 = vmatpush2.msra.mxu0 0.0
    %2741 = vmatprep.subr.mxu0 0.0
    %2742 = vmatpush2.msra.mxu0 0.0
    %2743 = vmatprep.subr.mxu0 0.0
    %2744 = vmatpush2.msra.mxu0 0.0
    %2745 = vmatprep.mubr.f32.mxu0 0.0
    %2746 = vmatmul.mubr.f32.gmra.mxu0 %v2679
    %v2747 = vpop.f32.mrf.mxu0
    %v2748 = vadd.f32 0.0, %v2747
    %v2749 = vpop.f32.mrf.mxu0
    %2750 = vdwg.mxu0
    %2753 = vrot.lane.b32.xlu0 %v2672, 16
    %v2754 = vpop.permute.xlu0 %2753
    %2755 = vrot.lane.b32.xlu0 %v2748, 16
    %v2756 = vpop.permute.xlu0 %2755
    %v2759 = vadd.f32 %v1649, %v2754
    %v2760 = vadd.f32 %v1654, %v2756
    %2761 = vrot.lane.b32.xlu0 %v1649, 104
    %v2762 = vpop.permute.xlu0 %2761
    %2763 = vrot.lane.b32.xlu0 %v1739, 104
    %v2764 = vpop.permute.xlu0 %2763
    %v2765 = vsel %vm131, %v2762, 0
    %v2767 = vsel %vm131, %v2764, 0
    %2769 = vmatprep.subr.mxu0 0.0
    %2770 = vmatpush1.xpose.msra.mxu0 0.0
    %2771 = vmatprep.subr.mxu0 0.0
    %2772 = vmatpush1.xpose.msra.mxu0 0.0
    %2773 = vmatprep.subr.mxu0 0.0
    %2774 = vmatpush1.xpose.msra.mxu0 0.0
    %2775 = vmatprep.subr.mxu0 0.0
    %2776 = vmatpush1.xpose.msra.mxu0 0.0
    %2777 = vmatprep.subr.mxu0 0.0
    %2778 = vmatpush1.xpose.msra.mxu0 0.0
    %2779 = vmatprep.subr.mxu0 0.0
    %2780 = vmatpush1.xpose.msra.mxu0 0.0
    %2781 = vmatprep.subr.mxu0 0.0
    %2782 = vmatpush1.xpose.msra.mxu0 0.0
    %2783 = vmatprep.subr.mxu0 0.0
    %2784 = vmatpush1.xpose.msra.mxu0 0.0
    %2785 = vmatprep.subr.mxu0 0.0
    %2786 = vmatpush1.xpose.msra.mxu0 0.0
    %2787 = vmatprep.subr.mxu0 0.0
    %2788 = vmatpush1.xpose.msra.mxu0 0.0
    %2789 = vmatprep.subr.mxu0 0.0
    %2790 = vmatpush1.xpose.msra.mxu0 0.0
    %2791 = vmatprep.subr.mxu0 0.0
    %2792 = vmatpush1.xpose.msra.mxu0 0.0
    %2793 = vmatprep.subr.mxu0 0.0
    %2794 = vmatpush1.xpose.msra.mxu0 0.0
    %2795 = vmatprep.subr.mxu0 0.0
    %2796 = vmatpush1.xpose.msra.mxu0 0.0
    %2797 = vmatprep.subr.mxu0 0.0
    %2798 = vmatpush1.xpose.msra.mxu0 0.0
    %2799 = vmatprep.subr.mxu0 0.0
    %2800 = vmatpush1.xpose.msra.mxu0 %v2767
    %2801 = vmatprep.subr.mxu0 0.0
    %2802 = vmatpush2.xpose.msra.mxu0 0.0
    %2803 = vmatprep.subr.mxu0 0.0
    %2804 = vmatpush2.xpose.msra.mxu0 0.0
    %2805 = vmatprep.subr.mxu0 0.0
    %2806 = vmatpush2.xpose.msra.mxu0 0.0
    %2807 = vmatprep.subr.mxu0 0.0
    %2808 = vmatpush2.xpose.msra.mxu0 0.0
    %2809 = vmatprep.subr.mxu0 0.0
    %2810 = vmatpush2.xpose.msra.mxu0 0.0
    %2811 = vmatprep.subr.mxu0 0.0
    %2812 = vmatpush2.xpose.msra.mxu0 0.0
    %2813 = vmatprep.subr.mxu0 0.0
    %2814 = vmatpush2.xpose.msra.mxu0 0.0
    %2815 = vmatprep.subr.mxu0 0.0
    %2816 = vmatpush2.xpose.msra.mxu0 0.0
    %2817 = vmatprep.subr.mxu0 0.0
    %2818 = vmatpush2.xpose.msra.mxu0 0.0
    %2819 = vmatprep.subr.mxu0 0.0
    %2820 = vmatpush2.xpose.msra.mxu0 0.0
    %2821 = vmatprep.subr.mxu0 0.0
    %2822 = vmatpush2.xpose.msra.mxu0 0.0
    %2823 = vmatprep.subr.mxu0 0.0
    %2824 = vmatpush2.xpose.msra.mxu0 0.0
    %2825 = vmatprep.subr.mxu0 0.0
    %2826 = vmatpush2.xpose.msra.mxu0 0.0
    %2827 = vmatprep.subr.mxu0 0.0
    %2828 = vmatpush2.xpose.msra.mxu0 0.0
    %2829 = vmatprep.subr.mxu0 0.0
    %2830 = vmatpush2.xpose.msra.mxu0 0.0
    %2831 = vmatprep.subr.mxu0 0.0
    %2832 = vmatpush2.xpose.msra.mxu0 0.0
    %2833 = vmatprep.mubr.f32.mxu0 0.0
    %2834 = vmatmul.mubr.f32.gmra.mxu0 %v2765
    %v2835 = vpop.f32.mrf.mxu0
    %v2836 = vadd.f32 0.0, %v2835
    %v2837 = vpop.f32.mrf.mxu0
    %2838 = vdwg.mxu0
    %2839 = vrot.lane.b32.xlu0 %v1654, 104
    %v2840 = vpop.permute.xlu0 %2839
    %2841 = vrot.lane.b32.xlu0 %v1744, 104
    %v2842 = vpop.permute.xlu0 %2841
    %v2843 = vsel %vm131, %v2840, 0
    %v2845 = vsel %vm131, %v2842, 0
    %2847 = vmatprep.subr.mxu0 0.0
    %2848 = vmatpush1.xpose.msra.mxu0 0.0
    %2849 = vmatprep.subr.mxu0 0.0
    %2850 = vmatpush1.xpose.msra.mxu0 0.0
    %2851 = vmatprep.subr.mxu0 0.0
    %2852 = vmatpush1.xpose.msra.mxu0 0.0
    %2853 = vmatprep.subr.mxu0 0.0
    %2854 = vmatpush1.xpose.msra.mxu0 0.0
    %2855 = vmatprep.subr.mxu0 0.0
    %2856 = vmatpush1.xpose.msra.mxu0 0.0
    %2857 = vmatprep.subr.mxu0 0.0
    %2858 = vmatpush1.xpose.msra.mxu0 0.0
    %2859 = vmatprep.subr.mxu0 0.0
    %2860 = vmatpush1.xpose.msra.mxu0 0.0
    %2861 = vmatprep.subr.mxu0 0.0
    %2862 = vmatpush1.xpose.msra.mxu0 0.0
    %2863 = vmatprep.subr.mxu0 0.0
    %2864 = vmatpush1.xpose.msra.mxu0 0.0
    %2865 = vmatprep.subr.mxu0 0.0
    %2866 = vmatpush1.xpose.msra.mxu0 0.0
    %2867 = vmatprep.subr.mxu0 0.0
    %2868 = vmatpush1.xpose.msra.mxu0 0.0
    %2869 = vmatprep.subr.mxu0 0.0
    %2870 = vmatpush1.xpose.msra.mxu0 0.0
    %2871 = vmatprep.subr.mxu0 0.0
    %2872 = vmatpush1.xpose.msra.mxu0 0.0
    %2873 = vmatprep.subr.mxu0 0.0
    %2874 = vmatpush1.xpose.msra.mxu0 0.0
    %2875 = vmatprep.subr.mxu0 0.0
    %2876 = vmatpush1.xpose.msra.mxu0 0.0
    %2877 = vmatprep.subr.mxu0 0.0
    %2878 = vmatpush1.xpose.msra.mxu0 %v2845
    %2879 = vmatprep.subr.mxu0 0.0
    %2880 = vmatpush2.xpose.msra.mxu0 0.0
    %2881 = vmatprep.subr.mxu0 0.0
    %2882 = vmatpush2.xpose.msra.mxu0 0.0
    %2883 = vmatprep.subr.mxu0 0.0
    %2884 = vmatpush2.xpose.msra.mxu0 0.0
    %2885 = vmatprep.subr.mxu0 0.0
    %2886 = vmatpush2.xpose.msra.mxu0 0.0
    %2887 = vmatprep.subr.mxu0 0.0
    %2888 = vmatpush2.xpose.msra.mxu0 0.0
    %2889 = vmatprep.subr.mxu0 0.0
    %2890 = vmatpush2.xpose.msra.mxu0 0.0
    %2891 = vmatprep.subr.mxu0 0.0
    %2892 = vmatpush2.xpose.msra.mxu0 0.0
    %2893 = vmatprep.subr.mxu0 0.0
    %2894 = vmatpush2.xpose.msra.mxu0 0.0
    %2895 = vmatprep.subr.mxu0 0.0
    %2896 = vmatpush2.xpose.msra.mxu0 0.0
    %2897 = vmatprep.subr.mxu0 0.0
    %2898 = vmatpush2.xpose.msra.mxu0 0.0
    %2899 = vmatprep.subr.mxu0 0.0
    %2900 = vmatpush2.xpose.msra.mxu0 0.0
    %2901 = vmatprep.subr.mxu0 0.0
    %2902 = vmatpush2.xpose.msra.mxu0 0.0
    %2903 = vmatprep.subr.mxu0 0.0
    %2904 = vmatpush2.xpose.msra.mxu0 0.0
    %2905 = vmatprep.subr.mxu0 0.0
    %2906 = vmatpush2.xpose.msra.mxu0 0.0
    %2907 = vmatprep.subr.mxu0 0.0
    %2908 = vmatpush2.xpose.msra.mxu0 0.0
    %2909 = vmatprep.subr.mxu0 0.0
    %2910 = vmatpush2.xpose.msra.mxu0 0.0
    %2911 = vmatprep.mubr.f32.mxu0 0.0
    %2912 = vmatmul.mubr.f32.gmra.mxu0 %v2843
    %v2913 = vpop.f32.mrf.mxu0
    %v2914 = vadd.f32 0.0, %v2913
    %v2915 = vpop.f32.mrf.mxu0
    %2916 = vdwg.mxu0
    %v2917 = vmul.f32 %v2836, 0.17677669
    %v2918 = vmul.f32 %v2914, 0.17677669
    %v2919 = vsel %vm131, %v2917, -inf
    %2920 = vmax.xlane.f32.xlu0 %v2919
    %v2921 = vpop.xlane.xlu0 %2920
    %v2922 = vsel %vm131, %v2918, -inf
    %2923 = vmax.xlane.f32.xlu0 %v2922
    %v2924 = vpop.xlane.xlu0 %2923
    %v2925 = vsub.f32 %v2917, %v2921
    %v2926 = vsub.f32 %v2918, %v2924
    %v2927 = vmul.f32 %v2925, 1.442695
    %v2928 = vpow.pop %v2927
    %v2929 = vmul.f32 %v2926, 1.442695
    %v2930 = vpow.pop %v2929
    %v2931 = vsel %vm131, %v2928, 0.0
    %2932 = vadd.xlane.f32.xlu0 %v2931
    %v2933 = vpop.xlane.xlu0 %2932
    %v2934 = vsel %vm131, %v2930, 0.0
    %2935 = vadd.xlane.f32.xlu0 %v2934
    %v2936 = vpop.xlane.xlu0 %2935
    %v2937 = vrcp.pop %v2933
    %v2938 = vmul.f32 %v2928, %v2937
    %v2939 = vrcp.pop %v2936
    %v2940 = vmul.f32 %v2930, %v2939
    %2941 = vrot.lane.b32.xlu0 %v1739, 72
    %v2942 = vpop.permute.xlu0 %2941
    %v2945 = vsel %vm131, %v2938, 0
    %2947 = vmatprep.subr.mxu0 0.0
    %2948 = vmatpush1.msra.mxu0 0.0
    %2949 = vmatprep.subr.mxu0 0.0
    %2950 = vmatpush1.msra.mxu0 0.0
    %2951 = vmatprep.subr.mxu0 0.0
    %2952 = vmatpush1.msra.mxu0 0.0
    %2953 = vmatprep.subr.mxu0 0.0
    %2954 = vmatpush1.msra.mxu0 0.0
    %2955 = vmatprep.subr.mxu0 0.0
    %2956 = vmatpush1.msra.mxu0 0.0
    %2957 = vmatprep.subr.mxu0 0.0
    %2958 = vmatpush1.msra.mxu0 0.0
    %2959 = vmatprep.subr.mxu0 0.0
    %2960 = vmatpush1.msra.mxu0 0.0
    %2961 = vmatprep.subr.mxu0 0.0
    %2962 = vmatpush1.msra.mxu0 0.0
    %2963 = vmatprep.subr.mxu0 0.0
    %2964 = vmatpush1.msra.mxu0 0.0
    %2965 = vmatprep.subr.mxu0 0.0
    %2966 = vmatpush1.msra.mxu0 0.0
    %2967 = vmatprep.subr.mxu0 0.0
    %2968 = vmatpush1.msra.mxu0 0.0
    %2969 = vmatprep.subr.mxu0 0.0
    %2970 = vmatpush1.msra.mxu0 0.0
    %2971 = vmatprep.subr.mxu0 0.0
    %2972 = vmatpush1.msra.mxu0 0.0
    %2973 = vmatprep.subr.mxu0 0.0
    %2974 = vmatpush1.msra.mxu0 0.0
    %2975 = vmatprep.subr.mxu0 0.0
    %2976 = vmatpush1.msra.mxu0 0.0
    %2977 = vmatprep.subr.mxu0 0.0
    %2978 = vmatpush1.msra.mxu0 %v2942
    %2979 = vmatprep.subr.mxu0 0.0
    %2980 = vmatpush2.msra.mxu0 0.0
    %2981 = vmatprep.subr.mxu0 0.0
    %2982 = vmatpush2.msra.mxu0 0.0
    %2983 = vmatprep.subr.mxu0 0.0
    %2984 = vmatpush2.msra.mxu0 0.0
    %2985 = vmatprep.subr.mxu0 0.0
    %2986 = vmatpush2.msra.mxu0 0.0
    %2987 = vmatprep.subr.mxu0 0.0
    %2988 = vmatpush2.msra.mxu0 0.0
    %2989 = vmatprep.subr.mxu0 0.0
    %2990 = vmatpush2.msra.mxu0 0.0
    %2991 = vmatprep.subr.mxu0 0.0
    %2992 = vmatpush2.msra.mxu0 0.0
    %2993 = vmatprep.subr.mxu0 0.0
    %2994 = vmatpush2.msra.mxu0 0.0
    %2995 = vmatprep.subr.mxu0 0.0
    %2996 = vmatpush2.msra.mxu0 0.0
    %2997 = vmatprep.subr.mxu0 0.0
    %2998 = vmatpush2.msra.mxu0 0.0
    %2999 = vmatprep.subr.mxu0 0.0
    %3000 = vmatpush2.msra.mxu0 0.0
    %3001 = vmatprep.subr.mxu0 0.0
    %3002 = vmatpush2.msra.mxu0 0.0
    %3003 = vmatprep.subr.mxu0 0.0
    %3004 = vmatpush2.msra.mxu0 0.0
    %3005 = vmatprep.subr.mxu0 0.0
    %3006 = vmatpush2.msra.mxu0 0.0
    %3007 = vmatprep.subr.mxu0 0.0
    %3008 = vmatpush2.msra.mxu0 0.0
    %3009 = vmatprep.subr.mxu0 0.0
    %3010 = vmatpush2.msra.mxu0 0.0
    %3011 = vmatprep.mubr.f32.mxu0 0.0
    %3012 = vmatmul.mubr.f32.gmra.mxu0 %v2945
    %v3013 = vpop.f32.mrf.mxu0
    %v3014 = vadd.f32 0.0, %v3013
    %v3015 = vpop.f32.mrf.mxu0
    %3016 = vdwg.mxu0
    %3017 = vrot.lane.b32.xlu0 %v1744, 72
    %v3018 = vpop.permute.xlu0 %3017
    %v3021 = vsel %vm131, %v2940, 0
    %3023 = vmatprep.subr.mxu0 0.0
    %3024 = vmatpush1.msra.mxu0 0.0
    %3025 = vmatprep.subr.mxu0 0.0
    %3026 = vmatpush1.msra.mxu0 0.0
    %3027 = vmatprep.subr.mxu0 0.0
    %3028 = vmatpush1.msra.mxu0 0.0
    %3029 = vmatprep.subr.mxu0 0.0
    %3030 = vmatpush1.msra.mxu0 0.0
    %3031 = vmatprep.subr.mxu0 0.0
    %3032 = vmatpush1.msra.mxu0 0.0
    %3033 = vmatprep.subr.mxu0 0.0
    %3034 = vmatpush1.msra.mxu0 0.0
    %3035 = vmatprep.subr.mxu0 0.0
    %3036 = vmatpush1.msra.mxu0 0.0
    %3037 = vmatprep.subr.mxu0 0.0
    %3038 = vmatpush1.msra.mxu0 0.0
    %3039 = vmatprep.subr.mxu0 0.0
    %3040 = vmatpush1.msra.mxu0 0.0
    %3041 = vmatprep.subr.mxu0 0.0
    %3042 = vmatpush1.msra.mxu0 0.0
    %3043 = vmatprep.subr.mxu0 0.0
    %3044 = vmatpush1.msra.mxu0 0.0
    %3045 = vmatprep.subr.mxu0 0.0
    %3046 = vmatpush1.msra.mxu0 0.0
    %3047 = vmatprep.subr.mxu0 0.0
    %3048 = vmatpush1.msra.mxu0 0.0
    %3049 = vmatprep.subr.mxu0 0.0
    %3050 = vmatpush1.msra.mxu0 0.0
    %3051 = vmatprep.subr.mxu0 0.0
    %3052 = vmatpush1.msra.mxu0 0.0
    %3053 = vmatprep.subr.mxu0 0.0
    %3054 = vmatpush1.msra.mxu0 %v3018
    %3055 = vmatprep.subr.mxu0 0.0
    %3056 = vmatpush2.msra.mxu0 0.0
    %3057 = vmatprep.subr.mxu0 0.0
    %3058 = vmatpush2.msra.mxu0 0.0
    %3059 = vmatprep.subr.mxu0 0.0
    %3060 = vmatpush2.msra.mxu0 0.0
    %3061 = vmatprep.subr.mxu0 0.0
    %3062 = vmatpush2.msra.mxu0 0.0
    %3063 = vmatprep.subr.mxu0 0.0
    %3064 = vmatpush2.msra.mxu0 0.0
    %3065 = vmatprep.subr.mxu0 0.0
    %3066 = vmatpush2.msra.mxu0 0.0
    %3067 = vmatprep.subr.mxu0 0.0
    %3068 = vmatpush2.msra.mxu0 0.0
    %3069 = vmatprep.subr.mxu0 0.0
    %3070 = vmatpush2.msra.mxu0 0.0
    %3071 = vmatprep.subr.mxu0 0.0
    %3072 = vmatpush2.msra.mxu0 0.0
    %3073 = vmatprep.subr.mxu0 0.0
    %3074 = vmatpush2.msra.mxu0 0.0
    %3075 = vmatprep.subr.mxu0 0.0
    %3076 = vmatpush2.msra.mxu0 0.0
    %3077 = vmatprep.subr.mxu0 0.0
    %3078 = vmatpush2.msra.mxu0 0.0
    %3079 = vmatprep.subr.mxu0 0.0
    %3080 = vmatpush2.msra.mxu0 0.0
    %3081 = vmatprep.subr.mxu0 0.0
    %3082 = vmatpush2.msra.mxu0 0.0
    %3083 = vmatprep.subr.mxu0 0.0
    %3084 = vmatpush2.msra.mxu0 0.0
    %3085 = vmatprep.subr.mxu0 0.0
    %3086 = vmatpush2.msra.mxu0 0.0
    %3087 = vmatprep.mubr.f32.mxu0 0.0
    %3088 = vmatmul.mubr.f32.gmra.mxu0 %v3021
    %v3089 = vpop.f32.mrf.mxu0
    %v3090 = vadd.f32 0.0, %v3089
    %v3091 = vpop.f32.mrf.mxu0
    %3092 = vdwg.mxu0
    %3095 = vrot.lane.b32.xlu0 %v3014, 24
    %v3096 = vpop.permute.xlu0 %3095
    %3097 = vrot.lane.b32.xlu0 %v3090, 24
    %v3098 = vpop.permute.xlu0 %3097
    %v3101 = vadd.f32 %v1649, %v3096
    %v3102 = vadd.f32 %v1654, %v3098
    %v3103 = vsel %vm131, %v2075, %v2417
    %v3104 = vsel %vm131, %v2076, %v2418
    %v3105 = vsel %vm48, %v3103, %v2759
    %v3106 = vsel %vm48, %v3104, %v2760
    %v3107 = vsel %vm1477, %v3105, %v3101
    %v3108 = vsel %vm1477, %v3106, %v3102
    %v3109 = vld [vmem:[#allocation4 + $0xc0] sm:$0xff]
    %v3110 = vld [vmem:[#allocation4 + $0xc8] sm:$0xff]
    %v3111 = vld [vmem:[#allocation4 + $0xd0] sm:$0xff]
    %v3112 = vld [vmem:[#allocation4 + $0xd8] sm:$0xff]
    %v3113 = vld [vmem:[#allocation4 + $0xe0] sm:$0x1]
    %v3114 = vlaneseq
    %v3115 = vshrl.u32 %v3114, 7
    %v3116 = vsub.s32 0, %v3115
    %v3117 = vrot.slane %v3113, %v3116
    %v3119 = vsel %vm1489, %v3107, 0
    %v3122 = vsel %vm1489, %v3108, 0
    %3124 = vmatprep.subr.mxu0 0.0
    %3125 = vmatpush1.msra.mxu0 0.0
    %3126 = vmatprep.subr.mxu0 0.0
    %3127 = vmatpush1.msra.mxu0 0.0
    %3128 = vmatprep.subr.mxu0 0.0
    %3129 = vmatpush1.msra.mxu0 0.0
    %3130 = vmatprep.subr.mxu0 0.0
    %3131 = vmatpush1.msra.mxu0 0.0
    %3132 = vmatprep.subr.mxu0 0.0
    %3133 = vmatpush1.msra.mxu0 0.0
    %3134 = vmatprep.subr.mxu0 0.0
    %3135 = vmatpush1.msra.mxu0 0.0
    %3136 = vmatprep.subr.mxu0 0.0
    %3137 = vmatpush1.msra.mxu0 0.0
    %3138 = vmatprep.subr.mxu0 0.0
    %3139 = vmatpush1.msra.mxu0 0.0
    %3140 = vmatprep.subr.mxu0 0.0
    %3141 = vmatpush1.msra.mxu0 0.0
    %3142 = vmatprep.subr.mxu0 0.0
    %3143 = vmatpush1.msra.mxu0 0.0
    %3144 = vmatprep.subr.mxu0 0.0
    %3145 = vmatpush1.msra.mxu0 0.0
    %3146 = vmatprep.subr.mxu0 0.0
    %3147 = vmatpush1.msra.mxu0 0.0
    %3148 = vmatprep.subr.mxu0 0.0
    %3149 = vmatpush1.msra.mxu0 %v3112
    %3150 = vmatprep.subr.mxu0 0.0
    %3151 = vmatpush1.msra.mxu0 %v3111
    %3152 = vmatprep.subr.mxu0 0.0
    %3153 = vmatpush1.msra.mxu0 %v3110
    %3154 = vmatprep.subr.mxu0 0.0
    %3155 = vmatpush1.msra.mxu0 %v3109
    %3156 = vmatprep.subr.mxu0 0.0
    %3157 = vmatpush2.msra.mxu0 0.0
    %3158 = vmatprep.subr.mxu0 0.0
    %3159 = vmatpush2.msra.mxu0 0.0
    %3160 = vmatprep.subr.mxu0 0.0
    %3161 = vmatpush2.msra.mxu0 0.0
    %3162 = vmatprep.subr.mxu0 0.0
    %3163 = vmatpush2.msra.mxu0 0.0
    %3164 = vmatprep.subr.mxu0 0.0
    %3165 = vmatpush2.msra.mxu0 0.0
    %3166 = vmatprep.subr.mxu0 0.0
    %3167 = vmatpush2.msra.mxu0 0.0
    %3168 = vmatprep.subr.mxu0 0.0
    %3169 = vmatpush2.msra.mxu0 0.0
    %3170 = vmatprep.subr.mxu0 0.0
    %3171 = vmatpush2.msra.mxu0 0.0
    %3172 = vmatprep.subr.mxu0 0.0
    %3173 = vmatpush2.msra.mxu0 0.0
    %3174 = vmatprep.subr.mxu0 0.0
    %3175 = vmatpush2.msra.mxu0 0.0
    %3176 = vmatprep.subr.mxu0 0.0
    %3177 = vmatpush2.msra.mxu0 0.0
    %3178 = vmatprep.subr.mxu0 0.0
    %3179 = vmatpush2.msra.mxu0 0.0
    %3180 = vmatprep.subr.mxu0 0.0
    %3181 = vmatpush2.msra.mxu0 0.0
    %3182 = vmatprep.subr.mxu0 0.0
    %3183 = vmatpush2.msra.mxu0 0.0
    %3184 = vmatprep.subr.mxu0 0.0
    %3185 = vmatpush2.msra.mxu0 0.0
    %3186 = vmatprep.subr.mxu0 0.0
    %3187 = vmatpush2.msra.mxu0 0.0
    %3188 = vmatprep.mubr.f32.mxu0 0.0
    %3189 = vmatmul.mubr.f32.gmra.mxu0 %v3119
    %v3190 = vpop.f32.mrf.mxu0
    %v3191 = vadd.f32 %v3117, %v3190
    %v3192 = vpop.f32.mrf.mxu0
    %3193 = vmatprep.mubr.f32.mxu0 0.0
    %3194 = vmatmul.mubr.f32.gmra.mxu0 %v3122
    %v3195 = vpop.f32.mrf.mxu0
    %v3196 = vadd.f32 %v3117, %v3195
    %v3197 = vpop.f32.mrf.mxu0
    %3198 = vdwg.mxu0
    %v3199 = vmax.f32 %v3191, 0.0
    %v3200 = vmax.f32 %v3196, 0.0
    %v3201 = vadd.f32 %v3107, %v3199
    %v3202 = vadd.f32 %v3108, %v3200
    %v3203 = vld [vmem:[#allocation4 + $0xe8] sm:$0xff]
    %v3204 = vld [vmem:[#allocation4 + $0xf0] sm:$0xff]
    %v3205 = vld [vmem:[#allocation4 + $0xf8] sm:$0xff]
    %v3206 = vld [vmem:[#allocation4 + $0x100] sm:$0xff]
    %v3207 = vld [vmem:[#allocation4 + $0x108] sm:$0x1]
    %v3208 = vlaneseq
    %v3209 = vshrl.u32 %v3208, 7
    %v3210 = vsub.s32 0, %v3209
    %v3211 = vrot.slane %v3207, %v3210
    %v3213 = vsel %vm1489, %v3201, 0
    %v3216 = vsel %vm1489, %v3202, 0
    %3218 = vmatprep.subr.mxu0 0.0
    %3219 = vmatpush1.msra.mxu0 0.0
    %3220 = vmatprep.subr.mxu0 0.0
    %3221 = vmatpush1.msra.mxu0 0.0
    %3222 = vmatprep.subr.mxu0 0.0
    %3223 = vmatpush1.msra.mxu0 0.0
    %3224 = vmatprep.subr.mxu0 0.0
    %3225 = vmatpush1.msra.mxu0 0.0
    %3226 = vmatprep.subr.mxu0 0.0
    %3227 = vmatpush1.msra.mxu0 0.0
    %3228 = vmatprep.subr.mxu0 0.0
    %3229 = vmatpush1.msra.mxu0 0.0
    %3230 = vmatprep.subr.mxu0 0.0
    %3231 = vmatpush1.msra.mxu0 0.0
    %3232 = vmatprep.subr.mxu0 0.0
    %3233 = vmatpush1.msra.mxu0 0.0
    %3234 = vmatprep.subr.mxu0 0.0
    %3235 = vmatpush1.msra.mxu0 0.0
    %3236 = vmatprep.subr.mxu0 0.0
    %3237 = vmatpush1.msra.mxu0 0.0
    %3238 = vmatprep.subr.mxu0 0.0
    %3239 = vmatpush1.msra.mxu0 0.0
    %3240 = vmatprep.subr.mxu0 0.0
    %3241 = vmatpush1.msra.mxu0 0.0
    %3242 = vmatprep.subr.mxu0 0.0
    %3243 = vmatpush1.msra.mxu0 %v3206
    %3244 = vmatprep.subr.mxu0 0.0
    %3245 = vmatpush1.msra.mxu0 %v3205
    %3246 = vmatprep.subr.mxu0 0.0
    %3247 = vmatpush1.msra.mxu0 %v3204
    %3248 = vmatprep.subr.mxu0 0.0
    %3249 = vmatpush1.msra.mxu0 %v3203
    %3250 = vmatprep.subr.mxu0 0.0
    %3251 = vmatpush2.msra.mxu0 0.0
    %3252 = vmatprep.subr.mxu0 0.0
    %3253 = vmatpush2.msra.mxu0 0.0
    %3254 = vmatprep.subr.mxu0 0.0
    %3255 = vmatpush2.msra.mxu0 0.0
    %3256 = vmatprep.subr.mxu0 0.0
    %3257 = vmatpush2.msra.mxu0 0.0
    %3258 = vmatprep.subr.mxu0 0.0
    %3259 = vmatpush2.msra.mxu0 0.0
    %3260 = vmatprep.subr.mxu0 0.0
    %3261 = vmatpush2.msra.mxu0 0.0
    %3262 = vmatprep.subr.mxu0 0.0
    %3263 = vmatpush2.msra.mxu0 0.0
    %3264 = vmatprep.subr.mxu0 0.0
    %3265 = vmatpush2.msra.mxu0 0.0
    %3266 = vmatprep.subr.mxu0 0.0
    %3267 = vmatpush2.msra.mxu0 0.0
    %3268 = vmatprep.subr.mxu0 0.0
    %3269 = vmatpush2.msra.mxu0 0.0
    %3270 = vmatprep.subr.mxu0 0.0
    %3271 = vmatpush2.msra.mxu0 0.0
    %3272 = vmatprep.subr.mxu0 0.0
    %3273 = vmatpush2.msra.mxu0 0.0
    %3274 = vmatprep.subr.mxu0 0.0
    %3275 = vmatpush2.msra.mxu0 0.0
    %3276 = vmatprep.subr.mxu0 0.0
    %3277 = vmatpush2.msra.mxu0 0.0
    %3278 = vmatprep.subr.mxu0 0.0
    %3279 = vmatpush2.msra.mxu0 0.0
    %3280 = vmatprep.subr.mxu0 0.0
    %3281 = vmatpush2.msra.mxu0 0.0
    %3282 = vmatprep.mubr.f32.mxu0 0.0
    %3283 = vmatmul.mubr.f32.gmra.mxu0 %v3213
    %v3284 = vpop.f32.mrf.mxu0
    %v3285 = vadd.f32 %v3211, %v3284
    %v3286 = vpop.f32.mrf.mxu0
    %3287 = vmatprep.mubr.f32.mxu0 0.0
    %3288 = vmatmul.mubr.f32.gmra.mxu0 %v3216
    %v3289 = vpop.f32.mrf.mxu0
    %v3290 = vadd.f32 %v3211, %v3289
    %v3291 = vpop.f32.mrf.mxu0
    %3292 = vdwg.mxu0
    %v3293 = vld [vmem:[#allocation4 + $0x8] sm:$0xff]
    %v3295 = vsel %vm131, %v3293, 0
    %v3298 = vsel %vm131, %v3285, 0
    %3300 = vmatprep.subr.mxu0 0.0
    %3301 = vmatpush1.xpose.msra.mxu0 0.0
    %3302 = vmatprep.subr.mxu0 0.0
    %3303 = vmatpush1.xpose.msra.mxu0 0.0
    %3304 = vmatprep.subr.mxu0 0.0
    %3305 = vmatpush1.xpose.msra.mxu0 0.0
    %3306 = vmatprep.subr.mxu0 0.0
    %3307 = vmatpush1.xpose.msra.mxu0 0.0
    %3308 = vmatprep.subr.mxu0 0.0
    %3309 = vmatpush1.xpose.msra.mxu0 0.0
    %3310 = vmatprep.subr.mxu0 0.0
    %3311 = vmatpush1.xpose.msra.mxu0 0.0
    %3312 = vmatprep.subr.mxu0 0.0
    %3313 = vmatpush1.xpose.msra.mxu0 0.0
    %3314 = vmatprep.subr.mxu0 0.0
    %3315 = vmatpush1.xpose.msra.mxu0 0.0
    %3316 = vmatprep.subr.mxu0 0.0
    %3317 = vmatpush1.xpose.msra.mxu0 0.0
    %3318 = vmatprep.subr.mxu0 0.0
    %3319 = vmatpush1.xpose.msra.mxu0 0.0
    %3320 = vmatprep.subr.mxu0 0.0
    %3321 = vmatpush1.xpose.msra.mxu0 0.0
    %3322 = vmatprep.subr.mxu0 0.0
    %3323 = vmatpush1.xpose.msra.mxu0 0.0
    %3324 = vmatprep.subr.mxu0 0.0
    %3325 = vmatpush1.xpose.msra.mxu0 0.0
    %3326 = vmatprep.subr.mxu0 0.0
    %3327 = vmatpush1.xpose.msra.mxu0 0.0
    %3328 = vmatprep.subr.mxu0 0.0
    %3329 = vmatpush1.xpose.msra.mxu0 0.0
    %3330 = vmatprep.subr.mxu0 0.0
    %3331 = vmatpush1.xpose.msra.mxu0 %v3298
    %3332 = vmatprep.subr.mxu0 0.0
    %3333 = vmatpush2.xpose.msra.mxu0 0.0
    %3334 = vmatprep.subr.mxu0 0.0
    %3335 = vmatpush2.xpose.msra.mxu0 0.0
    %3336 = vmatprep.subr.mxu0 0.0
    %3337 = vmatpush2.xpose.msra.mxu0 0.0
    %3338 = vmatprep.subr.mxu0 0.0
    %3339 = vmatpush2.xpose.msra.mxu0 0.0
    %3340 = vmatprep.subr.mxu0 0.0
    %3341 = vmatpush2.xpose.msra.mxu0 0.0
    %3342 = vmatprep.subr.mxu0 0.0
    %3343 = vmatpush2.xpose.msra.mxu0 0.0
    %3344 = vmatprep.subr.mxu0 0.0
    %3345 = vmatpush2.xpose.msra.mxu0 0.0
    %3346 = vmatprep.subr.mxu0 0.0
    %3347 = vmatpush2.xpose.msra.mxu0 0.0
    %3348 = vmatprep.subr.mxu0 0.0
    %3349 = vmatpush2.xpose.msra.mxu0 0.0
    %3350 = vmatprep.subr.mxu0 0.0
    %3351 = vmatpush2.xpose.msra.mxu0 0.0
    %3352 = vmatprep.subr.mxu0 0.0
    %3353 = vmatpush2.xpose.msra.mxu0 0.0
    %3354 = vmatprep.subr.mxu0 0.0
    %3355 = vmatpush2.xpose.msra.mxu0 0.0
    %3356 = vmatprep.subr.mxu0 0.0
    %3357 = vmatpush2.xpose.msra.mxu0 0.0
    %3358 = vmatprep.subr.mxu0 0.0
    %3359 = vmatpush2.xpose.msra.mxu0 0.0
    %3360 = vmatprep.subr.mxu0 0.0
    %3361 = vmatpush2.xpose.msra.mxu0 0.0
    %3362 = vmatprep.subr.mxu0 0.0
    %3363 = vmatpush2.xpose.msra.mxu0 0.0
    %3364 = vmatprep.mubr.f32.mxu0 0.0
    %3365 = vmatmul.mubr.f32.gmra.mxu0 %v3295
    %v3366 = vpop.f32.mrf.mxu0
    %v3367 = vadd.f32 0.0, %v3366
    %v3368 = vpop.f32.mrf.mxu0
    %3369 = vdwg.mxu0
    %v3371 = vsel %vm131, %v3290, 0
    %3373 = vmatprep.subr.mxu0 0.0
    %3374 = vmatpush1.xpose.msra.mxu0 0.0
    %3375 = vmatprep.subr.mxu0 0.0
    %3376 = vmatpush1.xpose.msra.mxu0 0.0
    %3377 = vmatprep.subr.mxu0 0.0
    %3378 = vmatpush1.xpose.msra.mxu0 0.0
    %3379 = vmatprep.subr.mxu0 0.0
    %3380 = vmatpush1.xpose.msra.mxu0 0.0
    %3381 = vmatprep.subr.mxu0 0.0
    %3382 = vmatpush1.xpose.msra.mxu0 0.0
    %3383 = vmatprep.subr.mxu0 0.0
    %3384 = vmatpush1.xpose.msra.mxu0 0.0
    %3385 = vmatprep.subr.mxu0 0.0
    %3386 = vmatpush1.xpose.msra.mxu0 0.0
    %3387 = vmatprep.subr.mxu0 0.0
    %3388 = vmatpush1.xpose.msra.mxu0 0.0
    %3389 = vmatprep.subr.mxu0 0.0
    %3390 = vmatpush1.xpose.msra.mxu0 0.0
    %3391 = vmatprep.subr.mxu0 0.0
    %3392 = vmatpush1.xpose.msra.mxu0 0.0
    %3393 = vmatprep.subr.mxu0 0.0
    %3394 = vmatpush1.xpose.msra.mxu0 0.0
    %3395 = vmatprep.subr.mxu0 0.0
    %3396 = vmatpush1.xpose.msra.mxu0 0.0
    %3397 = vmatprep.subr.mxu0 0.0
    %3398 = vmatpush1.xpose.msra.mxu0 0.0
    %3399 = vmatprep.subr.mxu0 0.0
    %3400 = vmatpush1.xpose.msra.mxu0 0.0
    %3401 = vmatprep.subr.mxu0 0.0
    %3402 = vmatpush1.xpose.msra.mxu0 0.0
    %3403 = vmatprep.subr.mxu0 0.0
    %3404 = vmatpush1.xpose.msra.mxu0 %v3371
    %3405 = vmatprep.subr.mxu0 0.0
    %3406 = vmatpush2.xpose.msra.mxu0 0.0
    %3407 = vmatprep.subr.mxu0 0.0
    %3408 = vmatpush2.xpose.msra.mxu0 0.0
    %3409 = vmatprep.subr.mxu0 0.0
    %3410 = vmatpush2.xpose.msra.mxu0 0.0
    %3411 = vmatprep.subr.mxu0 0.0
    %3412 = vmatpush2.xpose.msra.mxu0 0.0
    %3413 = vmatprep.subr.mxu0 0.0
    %3414 = vmatpush2.xpose.msra.mxu0 0.0
    %3415 = vmatprep.subr.mxu0 0.0
    %3416 = vmatpush2.xpose.msra.mxu0 0.0
    %3417 = vmatprep.subr.mxu0 0.0
    %3418 = vmatpush2.xpose.msra.mxu0 0.0
    %3419 = vmatprep.subr.mxu0 0.0
    %3420 = vmatpush2.xpose.msra.mxu0 0.0
    %3421 = vmatprep.subr.mxu0 0.0
    %3422 = vmatpush2.xpose.msra.mxu0 0.0
    %3423 = vmatprep.subr.mxu0 0.0
    %3424 = vmatpush2.xpose.msra.mxu0 0.0
    %3425 = vmatprep.subr.mxu0 0.0
    %3426 = vmatpush2.xpose.msra.mxu0 0.0
    %3427 = vmatprep.subr.mxu0 0.0
    %3428 = vmatpush2.xpose.msra.mxu0 0.0
    %3429 = vmatprep.subr.mxu0 0.0
    %3430 = vmatpush2.xpose.msra.mxu0 0.0
    %3431 = vmatprep.subr.mxu0 0.0
    %3432 = vmatpush2.xpose.msra.mxu0 0.0
    %3433 = vmatprep.subr.mxu0 0.0
    %3434 = vmatpush2.xpose.msra.mxu0 0.0
    %3435 = vmatprep.subr.mxu0 0.0
    %3436 = vmatpush2.xpose.msra.mxu0 0.0
    %3437 = vmatprep.mubr.f32.mxu0 0.0
    %3438 = vmatmul.mubr.f32.gmra.mxu0 %v3295
    %v3439 = vpop.f32.mrf.mxu0
    %v3440 = vadd.f32 0.0, %v3439
    %v3441 = vpop.f32.mrf.mxu0
    %3442 = vdwg.mxu0
    %v3443 = vmul.f32 %v3367, 0.17677669
    %v3444 = vmul.f32 %v3440, 0.17677669
    %v3445 = vsel %vm131, %v3443, -inf
    %3446 = vmax.xlane.f32.xlu0 %v3445
    %v3447 = vpop.xlane.xlu0 %3446
    %v3448 = vsel %vm131, %v3444, -inf
    %3449 = vmax.xlane.f32.xlu0 %v3448
    %v3450 = vpop.xlane.xlu0 %3449
    %v3451 = vsub.f32 %v3443, %v3447
    %v3452 = vsub.f32 %v3444, %v3450
    %v3453 = vmul.f32 %v3451, 1.442695
    %v3454 = vpow.pop %v3453
    %v3455 = vmul.f32 %v3452, 1.442695
    %v3456 = vpow.pop %v3455
    %v3457 = vsel %vm131, %v3454, 0.0
    %3458 = vadd.xlane.f32.xlu0 %v3457
    %v3459 = vpop.xlane.xlu0 %3458
    %v3460 = vsel %vm131, %v3456, 0.0
    %3461 = vadd.xlane.f32.xlu0 %v3460
    %v3462 = vpop.xlane.xlu0 %3461
    %v3463 = vrcp.pop %v3459
    %v3464 = vmul.f32 %v3454, %v3463
    %v3465 = vrcp.pop %v3462
    %v3466 = vmul.f32 %v3456, %v3465
    %3467 = vrot.lane.b32.xlu0 %v3285, 96
    %v3468 = vpop.permute.xlu0 %3467
    %v3471 = vsel %vm131, %v3464, 0
    %3473 = vmatprep.subr.mxu0 0.0
    %3474 = vmatpush1.msra.mxu0 0.0
    %3475 = vmatprep.subr.mxu0 0.0
    %3476 = vmatpush1.msra.mxu0 0.0
    %3477 = vmatprep.subr.mxu0 0.0
    %3478 = vmatpush1.msra.mxu0 0.0
    %3479 = vmatprep.subr.mxu0 0.0
    %3480 = vmatpush1.msra.mxu0 0.0
    %3481 = vmatprep.subr.mxu0 0.0
    %3482 = vmatpush1.msra.mxu0 0.0
    %3483 = vmatprep.subr.mxu0 0.0
    %3484 = vmatpush1.msra.mxu0 0.0
    %3485 = vmatprep.subr.mxu0 0.0
    %3486 = vmatpush1.msra.mxu0 0.0
    %3487 = vmatprep.subr.mxu0 0.0
    %3488 = vmatpush1.msra.mxu0 0.0
    %3489 = vmatprep.subr.mxu0 0.0
    %3490 = vmatpush1.msra.mxu0 0.0
    %3491 = vmatprep.subr.mxu0 0.0
    %3492 = vmatpush1.msra.mxu0 0.0
    %3493 = vmatprep.subr.mxu0 0.0
    %3494 = vmatpush1.msra.mxu0 0.0
    %3495 = vmatprep.subr.mxu0 0.0
    %3496 = vmatpush1.msra.mxu0 0.0
    %3497 = vmatprep.subr.mxu0 0.0
    %3498 = vmatpush1.msra.mxu0 0.0
    %3499 = vmatprep.subr.mxu0 0.0
    %3500 = vmatpush1.msra.mxu0 0.0
    %3501 = vmatprep.subr.mxu0 0.0
    %3502 = vmatpush1.msra.mxu0 0.0
    %3503 = vmatprep.subr.mxu0 0.0
    %3504 = vmatpush1.msra.mxu0 %v3468
    %3505 = vmatprep.subr.mxu0 0.0
    %3506 = vmatpush2.msra.mxu0 0.0
    %3507 = vmatprep.subr.mxu0 0.0
    %3508 = vmatpush2.msra.mxu0 0.0
    %3509 = vmatprep.subr.mxu0 0.0
    %3510 = vmatpush2.msra.mxu0 0.0
    %3511 = vmatprep.subr.mxu0 0.0
    %3512 = vmatpush2.msra.mxu0 0.0
    %3513 = vmatprep.subr.mxu0 0.0
    %3514 = vmatpush2.msra.mxu0 0.0
    %3515 = vmatprep.subr.mxu0 0.0
    %3516 = vmatpush2.msra.mxu0 0.0
    %3517 = vmatprep.subr.mxu0 0.0
    %3518 = vmatpush2.msra.mxu0 0.0
    %3519 = vmatprep.subr.mxu0 0.0
    %3520 = vmatpush2.msra.mxu0 0.0
    %3521 = vmatprep.subr.mxu0 0.0
    %3522 = vmatpush2.msra.mxu0 0.0
    %3523 = vmatprep.subr.mxu0 0.0
    %3524 = vmatpush2.msra.mxu0 0.0
    %3525 = vmatprep.subr.mxu0 0.0
    %3526 = vmatpush2.msra.mxu0 0.0
    %3527 = vmatprep.subr.mxu0 0.0
    %3528 = vmatpush2.msra.mxu0 0.0
    %3529 = vmatprep.subr.mxu0 0.0
    %3530 = vmatpush2.msra.mxu0 0.0
    %3531 = vmatprep.subr.mxu0 0.0
    %3532 = vmatpush2.msra.mxu0 0.0
    %3533 = vmatprep.subr.mxu0 0.0
    %3534 = vmatpush2.msra.mxu0 0.0
    %3535 = vmatprep.subr.mxu0 0.0
    %3536 = vmatpush2.msra.mxu0 0.0
    %3537 = vmatprep.mubr.f32.mxu0 0.0
    %3538 = vmatmul.mubr.f32.gmra.mxu0 %v3471
    %v3539 = vpop.f32.mrf.mxu0
    %v3540 = vadd.f32 0.0, %v3539
    %v3541 = vpop.f32.mrf.mxu0
    %3542 = vdwg.mxu0
    %3543 = vrot.lane.b32.xlu0 %v3290, 96
    %v3544 = vpop.permute.xlu0 %3543
    %v3547 = vsel %vm131, %v3466, 0
    %3549 = vmatprep.subr.mxu0 0.0
    %3550 = vmatpush1.msra.mxu0 0.0
    %3551 = vmatprep.subr.mxu0 0.0
    %3552 = vmatpush1.msra.mxu0 0.0
    %3553 = vmatprep.subr.mxu0 0.0
    %3554 = vmatpush1.msra.mxu0 0.0
    %3555 = vmatprep.subr.mxu0 0.0
    %3556 = vmatpush1.msra.mxu0 0.0
    %3557 = vmatprep.subr.mxu0 0.0
    %3558 = vmatpush1.msra.mxu0 0.0
    %3559 = vmatprep.subr.mxu0 0.0
    %3560 = vmatpush1.msra.mxu0 0.0
    %3561 = vmatprep.subr.mxu0 0.0
    %3562 = vmatpush1.msra.mxu0 0.0
    %3563 = vmatprep.subr.mxu0 0.0
    %3564 = vmatpush1.msra.mxu0 0.0
    %3565 = vmatprep.subr.mxu0 0.0
    %3566 = vmatpush1.msra.mxu0 0.0
    %3567 = vmatprep.subr.mxu0 0.0
    %3568 = vmatpush1.msra.mxu0 0.0
    %3569 = vmatprep.subr.mxu0 0.0
    %3570 = vmatpush1.msra.mxu0 0.0
    %3571 = vmatprep.subr.mxu0 0.0
    %3572 = vmatpush1.msra.mxu0 0.0
    %3573 = vmatprep.subr.mxu0 0.0
    %3574 = vmatpush1.msra.mxu0 0.0
    %3575 = vmatprep.subr.mxu0 0.0
    %3576 = vmatpush1.msra.mxu0 0.0
    %3577 = vmatprep.subr.mxu0 0.0
    %3578 = vmatpush1.msra.mxu0 0.0
    %3579 = vmatprep.subr.mxu0 0.0
    %3580 = vmatpush1.msra.mxu0 %v3544
    %3581 = vmatprep.subr.mxu0 0.0
    %3582 = vmatpush2.msra.mxu0 0.0
    %3583 = vmatprep.subr.mxu0 0.0
    %3584 = vmatpush2.msra.mxu0 0.0
    %3585 = vmatprep.subr.mxu0 0.0
    %3586 = vmatpush2.msra.mxu0 0.0
    %3587 = vmatprep.subr.mxu0 0.0
    %3588 = vmatpush2.msra.mxu0 0.0
    %3589 = vmatprep.subr.mxu0 0.0
    %3590 = vmatpush2.msra.mxu0 0.0
    %3591 = vmatprep.subr.mxu0 0.0
    %3592 = vmatpush2.msra.mxu0 0.0
    %3593 = vmatprep.subr.mxu0 0.0
    %3594 = vmatpush2.msra.mxu0 0.0
    %3595 = vmatprep.subr.mxu0 0.0
    %3596 = vmatpush2.msra.mxu0 0.0
    %3597 = vmatprep.subr.mxu0 0.0
    %3598 = vmatpush2.msra.mxu0 0.0
    %3599 = vmatprep.subr.mxu0 0.0
    %3600 = vmatpush2.msra.mxu0 0.0
    %3601 = vmatprep.subr.mxu0 0.0
    %3602 = vmatpush2.msra.mxu0 0.0
    %3603 = vmatprep.subr.mxu0 0.0
    %3604 = vmatpush2.msra.mxu0 0.0
    %3605 = vmatprep.subr.mxu0 0.0
    %3606 = vmatpush2.msra.mxu0 0.0
    %3607 = vmatprep.subr.mxu0 0.0
    %3608 = vmatpush2.msra.mxu0 0.0
    %3609 = vmatprep.subr.mxu0 0.0
    %3610 = vmatpush2.msra.mxu0 0.0
    %3611 = vmatprep.subr.mxu0 0.0
    %3612 = vmatpush2.msra.mxu0 0.0
    %3613 = vmatprep.mubr.f32.mxu0 0.0
    %3614 = vmatmul.mubr.f32.gmra.mxu0 %v3547
    %v3615 = vpop.f32.mrf.mxu0
    %v3616 = vadd.f32 0.0, %v3615
    %v3617 = vpop.f32.mrf.mxu0
    %3618 = vdwg.mxu0
    %v3619 = vadd.f32 %v3293, %v3540
    %v3620 = vadd.f32 %v3293, %v3616
    %3621 = vrot.lane.b32.xlu0 %v3293, 120
    %v3622 = vpop.permute.xlu0 %3621
    %3623 = vrot.lane.b32.xlu0 %v3285, 120
    %v3624 = vpop.permute.xlu0 %3623
    %v3625 = vsel %vm131, %v3622, 0
    %v3627 = vsel %vm131, %v3624, 0
    %3629 = vmatprep.subr.mxu0 0.0
    %3630 = vmatpush1.xpose.msra.mxu0 0.0
    %3631 = vmatprep.subr.mxu0 0.0
    %3632 = vmatpush1.xpose.msra.mxu0 0.0
    %3633 = vmatprep.subr.mxu0 0.0
    %3634 = vmatpush1.xpose.msra.mxu0 0.0
    %3635 = vmatprep.subr.mxu0 0.0
    %3636 = vmatpush1.xpose.msra.mxu0 0.0
    %3637 = vmatprep.subr.mxu0 0.0
    %3638 = vmatpush1.xpose.msra.mxu0 0.0
    %3639 = vmatprep.subr.mxu0 0.0
    %3640 = vmatpush1.xpose.msra.mxu0 0.0
    %3641 = vmatprep.subr.mxu0 0.0
    %3642 = vmatpush1.xpose.msra.mxu0 0.0
    %3643 = vmatprep.subr.mxu0 0.0
    %3644 = vmatpush1.xpose.msra.mxu0 0.0
    %3645 = vmatprep.subr.mxu0 0.0
    %3646 = vmatpush1.xpose.msra.mxu0 0.0
    %3647 = vmatprep.subr.mxu0 0.0
    %3648 = vmatpush1.xpose.msra.mxu0 0.0
    %3649 = vmatprep.subr.mxu0 0.0
    %3650 = vmatpush1.xpose.msra.mxu0 0.0
    %3651 = vmatprep.subr.mxu0 0.0
    %3652 = vmatpush1.xpose.msra.mxu0 0.0
    %3653 = vmatprep.subr.mxu0 0.0
    %3654 = vmatpush1.xpose.msra.mxu0 0.0
    %3655 = vmatprep.subr.mxu0 0.0
    %3656 = vmatpush1.xpose.msra.mxu0 0.0
    %3657 = vmatprep.subr.mxu0 0.0
    %3658 = vmatpush1.xpose.msra.mxu0 0.0
    %3659 = vmatprep.subr.mxu0 0.0
    %3660 = vmatpush1.xpose.msra.mxu0 %v3627
    %3661 = vmatprep.subr.mxu0 0.0
    %3662 = vmatpush2.xpose.msra.mxu0 0.0
    %3663 = vmatprep.subr.mxu0 0.0
    %3664 = vmatpush2.xpose.msra.mxu0 0.0
    %3665 = vmatprep.subr.mxu0 0.0
    %3666 = vmatpush2.xpose.msra.mxu0 0.0
    %3667 = vmatprep.subr.mxu0 0.0
    %3668 = vmatpush2.xpose.msra.mxu0 0.0
    %3669 = vmatprep.subr.mxu0 0.0
    %3670 = vmatpush2.xpose.msra.mxu0 0.0
    %3671 = vmatprep.subr.mxu0 0.0
    %3672 = vmatpush2.xpose.msra.mxu0 0.0
    %3673 = vmatprep.subr.mxu0 0.0
    %3674 = vmatpush2.xpose.msra.mxu0 0.0
    %3675 = vmatprep.subr.mxu0 0.0
    %3676 = vmatpush2.xpose.msra.mxu0 0.0
    %3677 = vmatprep.subr.mxu0 0.0
    %3678 = vmatpush2.xpose.msra.mxu0 0.0
    %3679 = vmatprep.subr.mxu0 0.0
    %3680 = vmatpush2.xpose.msra.mxu0 0.0
    %3681 = vmatprep.subr.mxu0 0.0
    %3682 = vmatpush2.xpose.msra.mxu0 0.0
    %3683 = vmatprep.subr.mxu0 0.0
    %3684 = vmatpush2.xpose.msra.mxu0 0.0
    %3685 = vmatprep.subr.mxu0 0.0
    %3686 = vmatpush2.xpose.msra.mxu0 0.0
    %3687 = vmatprep.subr.mxu0 0.0
    %3688 = vmatpush2.xpose.msra.mxu0 0.0
    %3689 = vmatprep.subr.mxu0 0.0
    %3690 = vmatpush2.xpose.msra.mxu0 0.0
    %3691 = vmatprep.subr.mxu0 0.0
    %3692 = vmatpush2.xpose.msra.mxu0 0.0
    %3693 = vmatprep.mubr.f32.mxu0 0.0
    %3694 = vmatmul.mubr.f32.gmra.mxu0 %v3625
    %v3695 = vpop.f32.mrf.mxu0
    %v3696 = vadd.f32 0.0, %v3695
    %v3697 = vpop.f32.mrf.mxu0
    %3698 = vdwg.mxu0
    %3699 = vrot.lane.b32.xlu0 %v3290, 120
    %v3700 = vpop.permute.xlu0 %3699
    %v3701 = vsel %vm131, %v3700, 0
    %3703 = vmatprep.subr.mxu0 0.0
    %3704 = vmatpush1.xpose.msra.mxu0 0.0
    %3705 = vmatprep.subr.mxu0 0.0
    %3706 = vmatpush1.xpose.msra.mxu0 0.0
    %3707 = vmatprep.subr.mxu0 0.0
    %3708 = vmatpush1.xpose.msra.mxu0 0.0
    %3709 = vmatprep.subr.mxu0 0.0
    %3710 = vmatpush1.xpose.msra.mxu0 0.0
    %3711 = vmatprep.subr.mxu0 0.0
    %3712 = vmatpush1.xpose.msra.mxu0 0.0
    %3713 = vmatprep.subr.mxu0 0.0
    %3714 = vmatpush1.xpose.msra.mxu0 0.0
    %3715 = vmatprep.subr.mxu0 0.0
    %3716 = vmatpush1.xpose.msra.mxu0 0.0
    %3717 = vmatprep.subr.mxu0 0.0
    %3718 = vmatpush1.xpose.msra.mxu0 0.0
    %3719 = vmatprep.subr.mxu0 0.0
    %3720 = vmatpush1.xpose.msra.mxu0 0.0
    %3721 = vmatprep.subr.mxu0 0.0
    %3722 = vmatpush1.xpose.msra.mxu0 0.0
    %3723 = vmatprep.subr.mxu0 0.0
    %3724 = vmatpush1.xpose.msra.mxu0 0.0
    %3725 = vmatprep.subr.mxu0 0.0
    %3726 = vmatpush1.xpose.msra.mxu0 0.0
    %3727 = vmatprep.subr.mxu0 0.0
    %3728 = vmatpush1.xpose.msra.mxu0 0.0
    %3729 = vmatprep.subr.mxu0 0.0
    %3730 = vmatpush1.xpose.msra.mxu0 0.0
    %3731 = vmatprep.subr.mxu0 0.0
    %3732 = vmatpush1.xpose.msra.mxu0 0.0
    %3733 = vmatprep.subr.mxu0 0.0
    %3734 = vmatpush1.xpose.msra.mxu0 %v3701
    %3735 = vmatprep.subr.mxu0 0.0
    %3736 = vmatpush2.xpose.msra.mxu0 0.0
    %3737 = vmatprep.subr.mxu0 0.0
    %3738 = vmatpush2.xpose.msra.mxu0 0.0
    %3739 = vmatprep.subr.mxu0 0.0
    %3740 = vmatpush2.xpose.msra.mxu0 0.0
    %3741 = vmatprep.subr.mxu0 0.0
    %3742 = vmatpush2.xpose.msra.mxu0 0.0
    %3743 = vmatprep.subr.mxu0 0.0
    %3744 = vmatpush2.xpose.msra.mxu0 0.0
    %3745 = vmatprep.subr.mxu0 0.0
    %3746 = vmatpush2.xpose.msra.mxu0 0.0
    %3747 = vmatprep.subr.mxu0 0.0
    %3748 = vmatpush2.xpose.msra.mxu0 0.0
    %3749 = vmatprep.subr.mxu0 0.0
    %3750 = vmatpush2.xpose.msra.mxu0 0.0
    %3751 = vmatprep.subr.mxu0 0.0
    %3752 = vmatpush2.xpose.msra.mxu0 0.0
    %3753 = vmatprep.subr.mxu0 0.0
    %3754 = vmatpush2.xpose.msra.mxu0 0.0
    %3755 = vmatprep.subr.mxu0 0.0
    %3756 = vmatpush2.xpose.msra.mxu0 0.0
    %3757 = vmatprep.subr.mxu0 0.0
    %3758 = vmatpush2.xpose.msra.mxu0 0.0
    %3759 = vmatprep.subr.mxu0 0.0
    %3760 = vmatpush2.xpose.msra.mxu0 0.0
    %3761 = vmatprep.subr.mxu0 0.0
    %3762 = vmatpush2.xpose.msra.mxu0 0.0
    %3763 = vmatprep.subr.mxu0 0.0
    %3764 = vmatpush2.xpose.msra.mxu0 0.0
    %3765 = vmatprep.subr.mxu0 0.0
    %3766 = vmatpush2.xpose.msra.mxu0 0.0
    %3767 = vmatprep.mubr.f32.mxu0 0.0
    %3768 = vmatmul.mubr.f32.gmra.mxu0 %v3625
    %v3769 = vpop.f32.mrf.mxu0
    %v3770 = vadd.f32 0.0, %v3769
    %v3771 = vpop.f32.mrf.mxu0
    %3772 = vdwg.mxu0
    %v3773 = vmul.f32 %v3696, 0.17677669
    %v3774 = vmul.f32 %v3770, 0.17677669
    %v3775 = vsel %vm131, %v3773, -inf
    %3776 = vmax.xlane.f32.xlu0 %v3775
    %v3777 = vpop.xlane.xlu0 %3776
    %v3778 = vsel %vm131, %v3774, -inf
    %3779 = vmax.xlane.f32.xlu0 %v3778
    %v3780 = vpop.xlane.xlu0 %3779
    %v3781 = vsub.f32 %v3773, %v3777
    %v3782 = vsub.f32 %v3774, %v3780
    %v3783 = vmul.f32 %v3781, 1.442695
    %v3784 = vpow.pop %v3783
    %v3785 = vmul.f32 %v3782, 1.442695
    %v3786 = vpow.pop %v3785
    %v3787 = vsel %vm131, %v3784, 0.0
    %3788 = vadd.xlane.f32.xlu0 %v3787
    %v3789 = vpop.xlane.xlu0 %3788
    %v3790 = vsel %vm131, %v3786, 0.0
    %3791 = vadd.xlane.f32.xlu0 %v3790
    %v3792 = vpop.xlane.xlu0 %3791
    %v3793 = vrcp.pop %v3789
    %v3794 = vmul.f32 %v3784, %v3793
    %v3795 = vrcp.pop %v3792
    %v3796 = vmul.f32 %v3786, %v3795
    %3797 = vrot.lane.b32.xlu0 %v3285, 88
    %v3798 = vpop.permute.xlu0 %3797
    %v3801 = vsel %vm131, %v3794, 0
    %3803 = vmatprep.subr.mxu0 0.0
    %3804 = vmatpush1.msra.mxu0 0.0
    %3805 = vmatprep.subr.mxu0 0.0
    %3806 = vmatpush1.msra.mxu0 0.0
    %3807 = vmatprep.subr.mxu0 0.0
    %3808 = vmatpush1.msra.mxu0 0.0
    %3809 = vmatprep.subr.mxu0 0.0
    %3810 = vmatpush1.msra.mxu0 0.0
    %3811 = vmatprep.subr.mxu0 0.0
    %3812 = vmatpush1.msra.mxu0 0.0
    %3813 = vmatprep.subr.mxu0 0.0
    %3814 = vmatpush1.msra.mxu0 0.0
    %3815 = vmatprep.subr.mxu0 0.0
    %3816 = vmatpush1.msra.mxu0 0.0
    %3817 = vmatprep.subr.mxu0 0.0
    %3818 = vmatpush1.msra.mxu0 0.0
    %3819 = vmatprep.subr.mxu0 0.0
    %3820 = vmatpush1.msra.mxu0 0.0
    %3821 = vmatprep.subr.mxu0 0.0
    %3822 = vmatpush1.msra.mxu0 0.0
    %3823 = vmatprep.subr.mxu0 0.0
    %3824 = vmatpush1.msra.mxu0 0.0
    %3825 = vmatprep.subr.mxu0 0.0
    %3826 = vmatpush1.msra.mxu0 0.0
    %3827 = vmatprep.subr.mxu0 0.0
    %3828 = vmatpush1.msra.mxu0 0.0
    %3829 = vmatprep.subr.mxu0 0.0
    %3830 = vmatpush1.msra.mxu0 0.0
    %3831 = vmatprep.subr.mxu0 0.0
    %3832 = vmatpush1.msra.mxu0 0.0
    %3833 = vmatprep.subr.mxu0 0.0
    %3834 = vmatpush1.msra.mxu0 %v3798
    %3835 = vmatprep.subr.mxu0 0.0
    %3836 = vmatpush2.msra.mxu0 0.0
    %3837 = vmatprep.subr.mxu0 0.0
    %3838 = vmatpush2.msra.mxu0 0.0
    %3839 = vmatprep.subr.mxu0 0.0
    %3840 = vmatpush2.msra.mxu0 0.0
    %3841 = vmatprep.subr.mxu0 0.0
    %3842 = vmatpush2.msra.mxu0 0.0
    %3843 = vmatprep.subr.mxu0 0.0
    %3844 = vmatpush2.msra.mxu0 0.0
    %3845 = vmatprep.subr.mxu0 0.0
    %3846 = vmatpush2.msra.mxu0 0.0
    %3847 = vmatprep.subr.mxu0 0.0
    %3848 = vmatpush2.msra.mxu0 0.0
    %3849 = vmatprep.subr.mxu0 0.0
    %3850 = vmatpush2.msra.mxu0 0.0
    %3851 = vmatprep.subr.mxu0 0.0
    %3852 = vmatpush2.msra.mxu0 0.0
    %3853 = vmatprep.subr.mxu0 0.0
    %3854 = vmatpush2.msra.mxu0 0.0
    %3855 = vmatprep.subr.mxu0 0.0
    %3856 = vmatpush2.msra.mxu0 0.0
    %3857 = vmatprep.subr.mxu0 0.0
    %3858 = vmatpush2.msra.mxu0 0.0
    %3859 = vmatprep.subr.mxu0 0.0
    %3860 = vmatpush2.msra.mxu0 0.0
    %3861 = vmatprep.subr.mxu0 0.0
    %3862 = vmatpush2.msra.mxu0 0.0
    %3863 = vmatprep.subr.mxu0 0.0
    %3864 = vmatpush2.msra.mxu0 0.0
    %3865 = vmatprep.subr.mxu0 0.0
    %3866 = vmatpush2.msra.mxu0 0.0
    %3867 = vmatprep.mubr.f32.mxu0 0.0
    %3868 = vmatmul.mubr.f32.gmra.mxu0 %v3801
    %v3869 = vpop.f32.mrf.mxu0
    %v3870 = vadd.f32 0.0, %v3869
    %v3871 = vpop.f32.mrf.mxu0
    %3872 = vdwg.mxu0
    %3873 = vrot.lane.b32.xlu0 %v3290, 88
    %v3874 = vpop.permute.xlu0 %3873
    %v3877 = vsel %vm131, %v3796, 0
    %3879 = vmatprep.subr.mxu0 0.0
    %3880 = vmatpush1.msra.mxu0 0.0
    %3881 = vmatprep.subr.mxu0 0.0
    %3882 = vmatpush1.msra.mxu0 0.0
    %3883 = vmatprep.subr.mxu0 0.0
    %3884 = vmatpush1.msra.mxu0 0.0
    %3885 = vmatprep.subr.mxu0 0.0
    %3886 = vmatpush1.msra.mxu0 0.0
    %3887 = vmatprep.subr.mxu0 0.0
    %3888 = vmatpush1.msra.mxu0 0.0
    %3889 = vmatprep.subr.mxu0 0.0
    %3890 = vmatpush1.msra.mxu0 0.0
    %3891 = vmatprep.subr.mxu0 0.0
    %3892 = vmatpush1.msra.mxu0 0.0
    %3893 = vmatprep.subr.mxu0 0.0
    %3894 = vmatpush1.msra.mxu0 0.0
    %3895 = vmatprep.subr.mxu0 0.0
    %3896 = vmatpush1.msra.mxu0 0.0
    %3897 = vmatprep.subr.mxu0 0.0
    %3898 = vmatpush1.msra.mxu0 0.0
    %3899 = vmatprep.subr.mxu0 0.0
    %3900 = vmatpush1.msra.mxu0 0.0
    %3901 = vmatprep.subr.mxu0 0.0
    %3902 = vmatpush1.msra.mxu0 0.0
    %3903 = vmatprep.subr.mxu0 0.0
    %3904 = vmatpush1.msra.mxu0 0.0
    %3905 = vmatprep.subr.mxu0 0.0
    %3906 = vmatpush1.msra.mxu0 0.0
    %3907 = vmatprep.subr.mxu0 0.0
    %3908 = vmatpush1.msra.mxu0 0.0
    %3909 = vmatprep.subr.mxu0 0.0
    %3910 = vmatpush1.msra.mxu0 %v3874
    %3911 = vmatprep.subr.mxu0 0.0
    %3912 = vmatpush2.msra.mxu0 0.0
    %3913 = vmatprep.subr.mxu0 0.0
    %3914 = vmatpush2.msra.mxu0 0.0
    %3915 = vmatprep.subr.mxu0 0.0
    %3916 = vmatpush2.msra.mxu0 0.0
    %3917 = vmatprep.subr.mxu0 0.0
    %3918 = vmatpush2.msra.mxu0 0.0
    %3919 = vmatprep.subr.mxu0 0.0
    %3920 = vmatpush2.msra.mxu0 0.0
    %3921 = vmatprep.subr.mxu0 0.0
    %3922 = vmatpush2.msra.mxu0 0.0
    %3923 = vmatprep.subr.mxu0 0.0
    %3924 = vmatpush2.msra.mxu0 0.0
    %3925 = vmatprep.subr.mxu0 0.0
    %3926 = vmatpush2.msra.mxu0 0.0
    %3927 = vmatprep.subr.mxu0 0.0
    %3928 = vmatpush2.msra.mxu0 0.0
    %3929 = vmatprep.subr.mxu0 0.0
    %3930 = vmatpush2.msra.mxu0 0.0
    %3931 = vmatprep.subr.mxu0 0.0
    %3932 = vmatpush2.msra.mxu0 0.0
    %3933 = vmatprep.subr.mxu0 0.0
    %3934 = vmatpush2.msra.mxu0 0.0
    %3935 = vmatprep.subr.mxu0 0.0
    %3936 = vmatpush2.msra.mxu0 0.0
    %3937 = vmatprep.subr.mxu0 0.0
    %3938 = vmatpush2.msra.mxu0 0.0
    %3939 = vmatprep.subr.mxu0 0.0
    %3940 = vmatpush2.msra.mxu0 0.0
    %3941 = vmatprep.subr.mxu0 0.0
    %3942 = vmatpush2.msra.mxu0 0.0
    %3943 = vmatprep.mubr.f32.mxu0 0.0
    %3944 = vmatmul.mubr.f32.gmra.mxu0 %v3877
    %v3945 = vpop.f32.mrf.mxu0
    %v3946 = vadd.f32 0.0, %v3945
    %v3947 = vpop.f32.mrf.mxu0
    %3948 = vdwg.mxu0
    %3951 = vrot.lane.b32.xlu0 %v3870, 8
    %v3952 = vpop.permute.xlu0 %3951
    %3953 = vrot.lane.b32.xlu0 %v3946, 8
    %v3954 = vpop.permute.xlu0 %3953
    %v3957 = vadd.f32 %v3293, %v3952
    %v3958 = vadd.f32 %v3293, %v3954
    %3959 = vrot.lane.b32.xlu0 %v3293, 112
    %v3960 = vpop.permute.xlu0 %3959
    %3961 = vrot.lane.b32.xlu0 %v3285, 112
    %v3962 = vpop.permute.xlu0 %3961
    %v3963 = vsel %vm131, %v3960, 0
    %v3965 = vsel %vm131, %v3962, 0
    %3967 = vmatprep.subr.mxu0 0.0
    %3968 = vmatpush1.xpose.msra.mxu0 0.0
    %3969 = vmatprep.subr.mxu0 0.0
    %3970 = vmatpush1.xpose.msra.mxu0 0.0
    %3971 = vmatprep.subr.mxu0 0.0
    %3972 = vmatpush1.xpose.msra.mxu0 0.0
    %3973 = vmatprep.subr.mxu0 0.0
    %3974 = vmatpush1.xpose.msra.mxu0 0.0
    %3975 = vmatprep.subr.mxu0 0.0
    %3976 = vmatpush1.xpose.msra.mxu0 0.0
    %3977 = vmatprep.subr.mxu0 0.0
    %3978 = vmatpush1.xpose.msra.mxu0 0.0
    %3979 = vmatprep.subr.mxu0 0.0
    %3980 = vmatpush1.xpose.msra.mxu0 0.0
    %3981 = vmatprep.subr.mxu0 0.0
    %3982 = vmatpush1.xpose.msra.mxu0 0.0
    %3983 = vmatprep.subr.mxu0 0.0
    %3984 = vmatpush1.xpose.msra.mxu0 0.0
    %3985 = vmatprep.subr.mxu0 0.0
    %3986 = vmatpush1.xpose.msra.mxu0 0.0
    %3987 = vmatprep.subr.mxu0 0.0
    %3988 = vmatpush1.xpose.msra.mxu0 0.0
    %3989 = vmatprep.subr.mxu0 0.0
    %3990 = vmatpush1.xpose.msra.mxu0 0.0
    %3991 = vmatprep.subr.mxu0 0.0
    %3992 = vmatpush1.xpose.msra.mxu0 0.0
    %3993 = vmatprep.subr.mxu0 0.0
    %3994 = vmatpush1.xpose.msra.mxu0 0.0
    %3995 = vmatprep.subr.mxu0 0.0
    %3996 = vmatpush1.xpose.msra.mxu0 0.0
    %3997 = vmatprep.subr.mxu0 0.0
    %3998 = vmatpush1.xpose.msra.mxu0 %v3965
    %3999 = vmatprep.subr.mxu0 0.0
    %4000 = vmatpush2.xpose.msra.mxu0 0.0
    %4001 = vmatprep.subr.mxu0 0.0
    %4002 = vmatpush2.xpose.msra.mxu0 0.0
    %4003 = vmatprep.subr.mxu0 0.0
    %4004 = vmatpush2.xpose.msra.mxu0 0.0
    %4005 = vmatprep.subr.mxu0 0.0
    %4006 = vmatpush2.xpose.msra.mxu0 0.0
    %4007 = vmatprep.subr.mxu0 0.0
    %4008 = vmatpush2.xpose.msra.mxu0 0.0
    %4009 = vmatprep.subr.mxu0 0.0
    %4010 = vmatpush2.xpose.msra.mxu0 0.0
    %4011 = vmatprep.subr.mxu0 0.0
    %4012 = vmatpush2.xpose.msra.mxu0 0.0
    %4013 = vmatprep.subr.mxu0 0.0
    %4014 = vmatpush2.xpose.msra.mxu0 0.0
    %4015 = vmatprep.subr.mxu0 0.0
    %4016 = vmatpush2.xpose.msra.mxu0 0.0
    %4017 = vmatprep.subr.mxu0 0.0
    %4018 = vmatpush2.xpose.msra.mxu0 0.0
    %4019 = vmatprep.subr.mxu0 0.0
    %4020 = vmatpush2.xpose.msra.mxu0 0.0
    %4021 = vmatprep.subr.mxu0 0.0
    %4022 = vmatpush2.xpose.msra.mxu0 0.0
    %4023 = vmatprep.subr.mxu0 0.0
    %4024 = vmatpush2.xpose.msra.mxu0 0.0
    %4025 = vmatprep.subr.mxu0 0.0
    %4026 = vmatpush2.xpose.msra.mxu0 0.0
    %4027 = vmatprep.subr.mxu0 0.0
    %4028 = vmatpush2.xpose.msra.mxu0 0.0
    %4029 = vmatprep.subr.mxu0 0.0
    %4030 = vmatpush2.xpose.msra.mxu0 0.0
    %4031 = vmatprep.mubr.f32.mxu0 0.0
    %4032 = vmatmul.mubr.f32.gmra.mxu0 %v3963
    %v4033 = vpop.f32.mrf.mxu0
    %v4034 = vadd.f32 0.0, %v4033
    %v4035 = vpop.f32.mrf.mxu0
    %4036 = vdwg.mxu0
    %4037 = vrot.lane.b32.xlu0 %v3290, 112
    %v4038 = vpop.permute.xlu0 %4037
    %v4039 = vsel %vm131, %v4038, 0
    %4041 = vmatprep.subr.mxu0 0.0
    %4042 = vmatpush1.xpose.msra.mxu0 0.0
    %4043 = vmatprep.subr.mxu0 0.0
    %4044 = vmatpush1.xpose.msra.mxu0 0.0
    %4045 = vmatprep.subr.mxu0 0.0
    %4046 = vmatpush1.xpose.msra.mxu0 0.0
    %4047 = vmatprep.subr.mxu0 0.0
    %4048 = vmatpush1.xpose.msra.mxu0 0.0
    %4049 = vmatprep.subr.mxu0 0.0
    %4050 = vmatpush1.xpose.msra.mxu0 0.0
    %4051 = vmatprep.subr.mxu0 0.0
    %4052 = vmatpush1.xpose.msra.mxu0 0.0
    %4053 = vmatprep.subr.mxu0 0.0
    %4054 = vmatpush1.xpose.msra.mxu0 0.0
    %4055 = vmatprep.subr.mxu0 0.0
    %4056 = vmatpush1.xpose.msra.mxu0 0.0
    %4057 = vmatprep.subr.mxu0 0.0
    %4058 = vmatpush1.xpose.msra.mxu0 0.0
    %4059 = vmatprep.subr.mxu0 0.0
    %4060 = vmatpush1.xpose.msra.mxu0 0.0
    %4061 = vmatprep.subr.mxu0 0.0
    %4062 = vmatpush1.xpose.msra.mxu0 0.0
    %4063 = vmatprep.subr.mxu0 0.0
    %4064 = vmatpush1.xpose.msra.mxu0 0.0
    %4065 = vmatprep.subr.mxu0 0.0
    %4066 = vmatpush1.xpose.msra.mxu0 0.0
    %4067 = vmatprep.subr.mxu0 0.0
    %4068 = vmatpush1.xpose.msra.mxu0 0.0
    %4069 = vmatprep.subr.mxu0 0.0
    %4070 = vmatpush1.xpose.msra.mxu0 0.0
    %4071 = vmatprep.subr.mxu0 0.0
    %4072 = vmatpush1.xpose.msra.mxu0 %v4039
    %4073 = vmatprep.subr.mxu0 0.0
    %4074 = vmatpush2.xpose.msra.mxu0 0.0
    %4075 = vmatprep.subr.mxu0 0.0
    %4076 = vmatpush2.xpose.msra.mxu0 0.0
    %4077 = vmatprep.subr.mxu0 0.0
    %4078 = vmatpush2.xpose.msra.mxu0 0.0
    %4079 = vmatprep.subr.mxu0 0.0
    %4080 = vmatpush2.xpose.msra.mxu0 0.0
    %4081 = vmatprep.subr.mxu0 0.0
    %4082 = vmatpush2.xpose.msra.mxu0 0.0
    %4083 = vmatprep.subr.mxu0 0.0
    %4084 = vmatpush2.xpose.msra.mxu0 0.0
    %4085 = vmatprep.subr.mxu0 0.0
    %4086 = vmatpush2.xpose.msra.mxu0 0.0
    %4087 = vmatprep.subr.mxu0 0.0
    %4088 = vmatpush2.xpose.msra.mxu0 0.0
    %4089 = vmatprep.subr.mxu0 0.0
    %4090 = vmatpush2.xpose.msra.mxu0 0.0
    %4091 = vmatprep.subr.mxu0 0.0
    %4092 = vmatpush2.xpose.msra.mxu0 0.0
    %4093 = vmatprep.subr.mxu0 0.0
    %4094 = vmatpush2.xpose.msra.mxu0 0.0
    %4095 = vmatprep.subr.mxu0 0.0
    %4096 = vmatpush2.xpose.msra.mxu0 0.0
    %4097 = vmatprep.subr.mxu0 0.0
    %4098 = vmatpush2.xpose.msra.mxu0 0.0
    %4099 = vmatprep.subr.mxu0 0.0
    %4100 = vmatpush2.xpose.msra.mxu0 0.0
    %4101 = vmatprep.subr.mxu0 0.0
    %4102 = vmatpush2.xpose.msra.mxu0 0.0
    %4103 = vmatprep.subr.mxu0 0.0
    %4104 = vmatpush2.xpose.msra.mxu0 0.0
    %4105 = vmatprep.mubr.f32.mxu0 0.0
    %4106 = vmatmul.mubr.f32.gmra.mxu0 %v3963
    %v4107 = vpop.f32.mrf.mxu0
    %v4108 = vadd.f32 0.0, %v4107
    %v4109 = vpop.f32.mrf.mxu0
    %4110 = vdwg.mxu0
    %v4111 = vmul.f32 %v4034, 0.17677669
    %v4112 = vmul.f32 %v4108, 0.17677669
    %v4113 = vsel %vm131, %v4111, -inf
    %4114 = vmax.xlane.f32.xlu0 %v4113
    %v4115 = vpop.xlane.xlu0 %4114
    %v4116 = vsel %vm131, %v4112, -inf
    %4117 = vmax.xlane.f32.xlu0 %v4116
    %v4118 = vpop.xlane.xlu0 %4117
    %v4119 = vsub.f32 %v4111, %v4115
    %v4120 = vsub.f32 %v4112, %v4118
    %v4121 = vmul.f32 %v4119, 1.442695
    %v4122 = vpow.pop %v4121
    %v4123 = vmul.f32 %v4120, 1.442695
    %v4124 = vpow.pop %v4123
    %v4125 = vsel %vm131, %v4122, 0.0
    %4126 = vadd.xlane.f32.xlu0 %v4125
    %v4127 = vpop.xlane.xlu0 %4126
    %v4128 = vsel %vm131, %v4124, 0.0
    %4129 = vadd.xlane.f32.xlu0 %v4128
    %v4130 = vpop.xlane.xlu0 %4129
    %v4131 = vrcp.pop %v4127
    %v4132 = vmul.f32 %v4122, %v4131
    %v4133 = vrcp.pop %v4130
    %v4134 = vmul.f32 %v4124, %v4133
    %4135 = vrot.lane.b32.xlu0 %v3285, 80
    %v4136 = vpop.permute.xlu0 %4135
    %v4139 = vsel %vm131, %v4132, 0
    %4141 = vmatprep.subr.mxu0 0.0
    %4142 = vmatpush1.msra.mxu0 0.0
    %4143 = vmatprep.subr.mxu0 0.0
    %4144 = vmatpush1.msra.mxu0 0.0
    %4145 = vmatprep.subr.mxu0 0.0
    %4146 = vmatpush1.msra.mxu0 0.0
    %4147 = vmatprep.subr.mxu0 0.0
    %4148 = vmatpush1.msra.mxu0 0.0
    %4149 = vmatprep.subr.mxu0 0.0
    %4150 = vmatpush1.msra.mxu0 0.0
    %4151 = vmatprep.subr.mxu0 0.0
    %4152 = vmatpush1.msra.mxu0 0.0
    %4153 = vmatprep.subr.mxu0 0.0
    %4154 = vmatpush1.msra.mxu0 0.0
    %4155 = vmatprep.subr.mxu0 0.0
    %4156 = vmatpush1.msra.mxu0 0.0
    %4157 = vmatprep.subr.mxu0 0.0
    %4158 = vmatpush1.msra.mxu0 0.0
    %4159 = vmatprep.subr.mxu0 0.0
    %4160 = vmatpush1.msra.mxu0 0.0
    %4161 = vmatprep.subr.mxu0 0.0
    %4162 = vmatpush1.msra.mxu0 0.0
    %4163 = vmatprep.subr.mxu0 0.0
    %4164 = vmatpush1.msra.mxu0 0.0
    %4165 = vmatprep.subr.mxu0 0.0
    %4166 = vmatpush1.msra.mxu0 0.0
    %4167 = vmatprep.subr.mxu0 0.0
    %4168 = vmatpush1.msra.mxu0 0.0
    %4169 = vmatprep.subr.mxu0 0.0
    %4170 = vmatpush1.msra.mxu0 0.0
    %4171 = vmatprep.subr.mxu0 0.0
    %4172 = vmatpush1.msra.mxu0 %v4136
    %4173 = vmatprep.subr.mxu0 0.0
    %4174 = vmatpush2.msra.mxu0 0.0
    %4175 = vmatprep.subr.mxu0 0.0
    %4176 = vmatpush2.msra.mxu0 0.0
    %4177 = vmatprep.subr.mxu0 0.0
    %4178 = vmatpush2.msra.mxu0 0.0
    %4179 = vmatprep.subr.mxu0 0.0
    %4180 = vmatpush2.msra.mxu0 0.0
    %4181 = vmatprep.subr.mxu0 0.0
    %4182 = vmatpush2.msra.mxu0 0.0
    %4183 = vmatprep.subr.mxu0 0.0
    %4184 = vmatpush2.msra.mxu0 0.0
    %4185 = vmatprep.subr.mxu0 0.0
    %4186 = vmatpush2.msra.mxu0 0.0
    %4187 = vmatprep.subr.mxu0 0.0
    %4188 = vmatpush2.msra.mxu0 0.0
    %4189 = vmatprep.subr.mxu0 0.0
    %4190 = vmatpush2.msra.mxu0 0.0
    %4191 = vmatprep.subr.mxu0 0.0
    %4192 = vmatpush2.msra.mxu0 0.0
    %4193 = vmatprep.subr.mxu0 0.0
    %4194 = vmatpush2.msra.mxu0 0.0
    %4195 = vmatprep.subr.mxu0 0.0
    %4196 = vmatpush2.msra.mxu0 0.0
    %4197 = vmatprep.subr.mxu0 0.0
    %4198 = vmatpush2.msra.mxu0 0.0
    %4199 = vmatprep.subr.mxu0 0.0
    %4200 = vmatpush2.msra.mxu0 0.0
    %4201 = vmatprep.subr.mxu0 0.0
    %4202 = vmatpush2.msra.mxu0 0.0
    %4203 = vmatprep.subr.mxu0 0.0
    %4204 = vmatpush2.msra.mxu0 0.0
    %4205 = vmatprep.mubr.f32.mxu0 0.0
    %4206 = vmatmul.mubr.f32.gmra.mxu0 %v4139
    %v4207 = vpop.f32.mrf.mxu0
    %v4208 = vadd.f32 0.0, %v4207
    %v4209 = vpop.f32.mrf.mxu0
    %4210 = vdwg.mxu0
    %4211 = vrot.lane.b32.xlu0 %v3290, 80
    %v4212 = vpop.permute.xlu0 %4211
    %v4215 = vsel %vm131, %v4134, 0
    %4217 = vmatprep.subr.mxu0 0.0
    %4218 = vmatpush1.msra.mxu0 0.0
    %4219 = vmatprep.subr.mxu0 0.0
    %4220 = vmatpush1.msra.mxu0 0.0
    %4221 = vmatprep.subr.mxu0 0.0
    %4222 = vmatpush1.msra.mxu0 0.0
    %4223 = vmatprep.subr.mxu0 0.0
    %4224 = vmatpush1.msra.mxu0 0.0
    %4225 = vmatprep.subr.mxu0 0.0
    %4226 = vmatpush1.msra.mxu0 0.0
    %4227 = vmatprep.subr.mxu0 0.0
    %4228 = vmatpush1.msra.mxu0 0.0
    %4229 = vmatprep.subr.mxu0 0.0
    %4230 = vmatpush1.msra.mxu0 0.0
    %4231 = vmatprep.subr.mxu0 0.0
    %4232 = vmatpush1.msra.mxu0 0.0
    %4233 = vmatprep.subr.mxu0 0.0
    %4234 = vmatpush1.msra.mxu0 0.0
    %4235 = vmatprep.subr.mxu0 0.0
    %4236 = vmatpush1.msra.mxu0 0.0
    %4237 = vmatprep.subr.mxu0 0.0
    %4238 = vmatpush1.msra.mxu0 0.0
    %4239 = vmatprep.subr.mxu0 0.0
    %4240 = vmatpush1.msra.mxu0 0.0
    %4241 = vmatprep.subr.mxu0 0.0
    %4242 = vmatpush1.msra.mxu0 0.0
    %4243 = vmatprep.subr.mxu0 0.0
    %4244 = vmatpush1.msra.mxu0 0.0
    %4245 = vmatprep.subr.mxu0 0.0
    %4246 = vmatpush1.msra.mxu0 0.0
    %4247 = vmatprep.subr.mxu0 0.0
    %4248 = vmatpush1.msra.mxu0 %v4212
    %4249 = vmatprep.subr.mxu0 0.0
    %4250 = vmatpush2.msra.mxu0 0.0
    %4251 = vmatprep.subr.mxu0 0.0
    %4252 = vmatpush2.msra.mxu0 0.0
    %4253 = vmatprep.subr.mxu0 0.0
    %4254 = vmatpush2.msra.mxu0 0.0
    %4255 = vmatprep.subr.mxu0 0.0
    %4256 = vmatpush2.msra.mxu0 0.0
    %4257 = vmatprep.subr.mxu0 0.0
    %4258 = vmatpush2.msra.mxu0 0.0
    %4259 = vmatprep.subr.mxu0 0.0
    %4260 = vmatpush2.msra.mxu0 0.0
    %4261 = vmatprep.subr.mxu0 0.0
    %4262 = vmatpush2.msra.mxu0 0.0
    %4263 = vmatprep.subr.mxu0 0.0
    %4264 = vmatpush2.msra.mxu0 0.0
    %4265 = vmatprep.subr.mxu0 0.0
    %4266 = vmatpush2.msra.mxu0 0.0
    %4267 = vmatprep.subr.mxu0 0.0
    %4268 = vmatpush2.msra.mxu0 0.0
    %4269 = vmatprep.subr.mxu0 0.0
    %4270 = vmatpush2.msra.mxu0 0.0
    %4271 = vmatprep.subr.mxu0 0.0
    %4272 = vmatpush2.msra.mxu0 0.0
    %4273 = vmatprep.subr.mxu0 0.0
    %4274 = vmatpush2.msra.mxu0 0.0
    %4275 = vmatprep.subr.mxu0 0.0
    %4276 = vmatpush2.msra.mxu0 0.0
    %4277 = vmatprep.subr.mxu0 0.0
    %4278 = vmatpush2.msra.mxu0 0.0
    %4279 = vmatprep.subr.mxu0 0.0
    %4280 = vmatpush2.msra.mxu0 0.0
    %4281 = vmatprep.mubr.f32.mxu0 0.0
    %4282 = vmatmul.mubr.f32.gmra.mxu0 %v4215
    %v4283 = vpop.f32.mrf.mxu0
    %v4284 = vadd.f32 0.0, %v4283
    %v4285 = vpop.f32.mrf.mxu0
    %4286 = vdwg.mxu0
    %4289 = vrot.lane.b32.xlu0 %v4208, 16
    %v4290 = vpop.permute.xlu0 %4289
    %4291 = vrot.lane.b32.xlu0 %v4284, 16
    %v4292 = vpop.permute.xlu0 %4291
    %v4295 = vadd.f32 %v3293, %v4290
    %v4296 = vadd.f32 %v3293, %v4292
    %4297 = vrot.lane.b32.xlu0 %v3293, 104
    %v4298 = vpop.permute.xlu0 %4297
    %4299 = vrot.lane.b32.xlu0 %v3285, 104
    %v4300 = vpop.permute.xlu0 %4299
    %v4301 = vsel %vm131, %v4298, 0
    %v4303 = vsel %vm131, %v4300, 0
    %4305 = vmatprep.subr.mxu0 0.0
    %4306 = vmatpush1.xpose.msra.mxu0 0.0
    %4307 = vmatprep.subr.mxu0 0.0
    %4308 = vmatpush1.xpose.msra.mxu0 0.0
    %4309 = vmatprep.subr.mxu0 0.0
    %4310 = vmatpush1.xpose.msra.mxu0 0.0
    %4311 = vmatprep.subr.mxu0 0.0
    %4312 = vmatpush1.xpose.msra.mxu0 0.0
    %4313 = vmatprep.subr.mxu0 0.0
    %4314 = vmatpush1.xpose.msra.mxu0 0.0
    %4315 = vmatprep.subr.mxu0 0.0
    %4316 = vmatpush1.xpose.msra.mxu0 0.0
    %4317 = vmatprep.subr.mxu0 0.0
    %4318 = vmatpush1.xpose.msra.mxu0 0.0
    %4319 = vmatprep.subr.mxu0 0.0
    %4320 = vmatpush1.xpose.msra.mxu0 0.0
    %4321 = vmatprep.subr.mxu0 0.0
    %4322 = vmatpush1.xpose.msra.mxu0 0.0
    %4323 = vmatprep.subr.mxu0 0.0
    %4324 = vmatpush1.xpose.msra.mxu0 0.0
    %4325 = vmatprep.subr.mxu0 0.0
    %4326 = vmatpush1.xpose.msra.mxu0 0.0
    %4327 = vmatprep.subr.mxu0 0.0
    %4328 = vmatpush1.xpose.msra.mxu0 0.0
    %4329 = vmatprep.subr.mxu0 0.0
    %4330 = vmatpush1.xpose.msra.mxu0 0.0
    %4331 = vmatprep.subr.mxu0 0.0
    %4332 = vmatpush1.xpose.msra.mxu0 0.0
    %4333 = vmatprep.subr.mxu0 0.0
    %4334 = vmatpush1.xpose.msra.mxu0 0.0
    %4335 = vmatprep.subr.mxu0 0.0
    %4336 = vmatpush1.xpose.msra.mxu0 %v4303
    %4337 = vmatprep.subr.mxu0 0.0
    %4338 = vmatpush2.xpose.msra.mxu0 0.0
    %4339 = vmatprep.subr.mxu0 0.0
    %4340 = vmatpush2.xpose.msra.mxu0 0.0
    %4341 = vmatprep.subr.mxu0 0.0
    %4342 = vmatpush2.xpose.msra.mxu0 0.0
    %4343 = vmatprep.subr.mxu0 0.0
    %4344 = vmatpush2.xpose.msra.mxu0 0.0
    %4345 = vmatprep.subr.mxu0 0.0
    %4346 = vmatpush2.xpose.msra.mxu0 0.0
    %4347 = vmatprep.subr.mxu0 0.0
    %4348 = vmatpush2.xpose.msra.mxu0 0.0
    %4349 = vmatprep.subr.mxu0 0.0
    %4350 = vmatpush2.xpose.msra.mxu0 0.0
    %4351 = vmatprep.subr.mxu0 0.0
    %4352 = vmatpush2.xpose.msra.mxu0 0.0
    %4353 = vmatprep.subr.mxu0 0.0
    %4354 = vmatpush2.xpose.msra.mxu0 0.0
    %4355 = vmatprep.subr.mxu0 0.0
    %4356 = vmatpush2.xpose.msra.mxu0 0.0
    %4357 = vmatprep.subr.mxu0 0.0
    %4358 = vmatpush2.xpose.msra.mxu0 0.0
    %4359 = vmatprep.subr.mxu0 0.0
    %4360 = vmatpush2.xpose.msra.mxu0 0.0
    %4361 = vmatprep.subr.mxu0 0.0
    %4362 = vmatpush2.xpose.msra.mxu0 0.0
    %4363 = vmatprep.subr.mxu0 0.0
    %4364 = vmatpush2.xpose.msra.mxu0 0.0
    %4365 = vmatprep.subr.mxu0 0.0
    %4366 = vmatpush2.xpose.msra.mxu0 0.0
    %4367 = vmatprep.subr.mxu0 0.0
    %4368 = vmatpush2.xpose.msra.mxu0 0.0
    %4369 = vmatprep.mubr.f32.mxu0 0.0
    %4370 = vmatmul.mubr.f32.gmra.mxu0 %v4301
    %v4371 = vpop.f32.mrf.mxu0
    %v4372 = vadd.f32 0.0, %v4371
    %v4373 = vpop.f32.mrf.mxu0
    %4374 = vdwg.mxu0
    %4375 = vrot.lane.b32.xlu0 %v3290, 104
    %v4376 = vpop.permute.xlu0 %4375
    %v4377 = vsel %vm131, %v4376, 0
    %4379 = vmatprep.subr.mxu0 0.0
    %4380 = vmatpush1.xpose.msra.mxu0 0.0
    %4381 = vmatprep.subr.mxu0 0.0
    %4382 = vmatpush1.xpose.msra.mxu0 0.0
    %4383 = vmatprep.subr.mxu0 0.0
    %4384 = vmatpush1.xpose.msra.mxu0 0.0
    %4385 = vmatprep.subr.mxu0 0.0
    %4386 = vmatpush1.xpose.msra.mxu0 0.0
    %4387 = vmatprep.subr.mxu0 0.0
    %4388 = vmatpush1.xpose.msra.mxu0 0.0
    %4389 = vmatprep.subr.mxu0 0.0
    %4390 = vmatpush1.xpose.msra.mxu0 0.0
    %4391 = vmatprep.subr.mxu0 0.0
    %4392 = vmatpush1.xpose.msra.mxu0 0.0
    %4393 = vmatprep.subr.mxu0 0.0
    %4394 = vmatpush1.xpose.msra.mxu0 0.0
    %4395 = vmatprep.subr.mxu0 0.0
    %4396 = vmatpush1.xpose.msra.mxu0 0.0
    %4397 = vmatprep.subr.mxu0 0.0
    %4398 = vmatpush1.xpose.msra.mxu0 0.0
    %4399 = vmatprep.subr.mxu0 0.0
    %4400 = vmatpush1.xpose.msra.mxu0 0.0
    %4401 = vmatprep.subr.mxu0 0.0
    %4402 = vmatpush1.xpose.msra.mxu0 0.0
    %4403 = vmatprep.subr.mxu0 0.0
    %4404 = vmatpush1.xpose.msra.mxu0 0.0
    %4405 = vmatprep.subr.mxu0 0.0
    %4406 = vmatpush1.xpose.msra.mxu0 0.0
    %4407 = vmatprep.subr.mxu0 0.0
    %4408 = vmatpush1.xpose.msra.mxu0 0.0
    %4409 = vmatprep.subr.mxu0 0.0
    %4410 = vmatpush1.xpose.msra.mxu0 %v4377
    %4411 = vmatprep.subr.mxu0 0.0
    %4412 = vmatpush2.xpose.msra.mxu0 0.0
    %4413 = vmatprep.subr.mxu0 0.0
    %4414 = vmatpush2.xpose.msra.mxu0 0.0
    %4415 = vmatprep.subr.mxu0 0.0
    %4416 = vmatpush2.xpose.msra.mxu0 0.0
    %4417 = vmatprep.subr.mxu0 0.0
    %4418 = vmatpush2.xpose.msra.mxu0 0.0
    %4419 = vmatprep.subr.mxu0 0.0
    %4420 = vmatpush2.xpose.msra.mxu0 0.0
    %4421 = vmatprep.subr.mxu0 0.0
    %4422 = vmatpush2.xpose.msra.mxu0 0.0
    %4423 = vmatprep.subr.mxu0 0.0
    %4424 = vmatpush2.xpose.msra.mxu0 0.0
    %4425 = vmatprep.subr.mxu0 0.0
    %4426 = vmatpush2.xpose.msra.mxu0 0.0
    %4427 = vmatprep.subr.mxu0 0.0
    %4428 = vmatpush2.xpose.msra.mxu0 0.0
    %4429 = vmatprep.subr.mxu0 0.0
    %4430 = vmatpush2.xpose.msra.mxu0 0.0
    %4431 = vmatprep.subr.mxu0 0.0
    %4432 = vmatpush2.xpose.msra.mxu0 0.0
    %4433 = vmatprep.subr.mxu0 0.0
    %4434 = vmatpush2.xpose.msra.mxu0 0.0
    %4435 = vmatprep.subr.mxu0 0.0
    %4436 = vmatpush2.xpose.msra.mxu0 0.0
    %4437 = vmatprep.subr.mxu0 0.0
    %4438 = vmatpush2.xpose.msra.mxu0 0.0
    %4439 = vmatprep.subr.mxu0 0.0
    %4440 = vmatpush2.xpose.msra.mxu0 0.0
    %4441 = vmatprep.subr.mxu0 0.0
    %4442 = vmatpush2.xpose.msra.mxu0 0.0
    %4443 = vmatprep.mubr.f32.mxu0 0.0
    %4444 = vmatmul.mubr.f32.gmra.mxu0 %v4301
    %v4445 = vpop.f32.mrf.mxu0
    %v4446 = vadd.f32 0.0, %v4445
    %v4447 = vpop.f32.mrf.mxu0
    %4448 = vdwg.mxu0
    %v4449 = vmul.f32 %v4372, 0.17677669
    %v4450 = vmul.f32 %v4446, 0.17677669
    %v4451 = vsel %vm131, %v4449, -inf
    %4452 = vmax.xlane.f32.xlu0 %v4451
    %v4453 = vpop.xlane.xlu0 %4452
    %v4454 = vsel %vm131, %v4450, -inf
    %4455 = vmax.xlane.f32.xlu0 %v4454
    %v4456 = vpop.xlane.xlu0 %4455
    %v4457 = vsub.f32 %v4449, %v4453
    %v4458 = vsub.f32 %v4450, %v4456
    %v4459 = vmul.f32 %v4457, 1.442695
    %v4460 = vpow.pop %v4459
    %v4461 = vmul.f32 %v4458, 1.442695
    %v4462 = vpow.pop %v4461
    %v4463 = vsel %vm131, %v4460, 0.0
    %4464 = vadd.xlane.f32.xlu0 %v4463
    %v4465 = vpop.xlane.xlu0 %4464
    %v4466 = vsel %vm131, %v4462, 0.0
    %4467 = vadd.xlane.f32.xlu0 %v4466
    %v4468 = vpop.xlane.xlu0 %4467
    %v4469 = vrcp.pop %v4465
    %v4470 = vmul.f32 %v4460, %v4469
    %v4471 = vrcp.pop %v4468
    %v4472 = vmul.f32 %v4462, %v4471
    %4473 = vrot.lane.b32.xlu0 %v3285, 72
    %v4474 = vpop.permute.xlu0 %4473
    %v4477 = vsel %vm131, %v4470, 0
    %4479 = vmatprep.subr.mxu0 0.0
    %4480 = vmatpush1.msra.mxu0 0.0
    %4481 = vmatprep.subr.mxu0 0.0
    %4482 = vmatpush1.msra.mxu0 0.0
    %4483 = vmatprep.subr.mxu0 0.0
    %4484 = vmatpush1.msra.mxu0 0.0
    %4485 = vmatprep.subr.mxu0 0.0
    %4486 = vmatpush1.msra.mxu0 0.0
    %4487 = vmatprep.subr.mxu0 0.0
    %4488 = vmatpush1.msra.mxu0 0.0
    %4489 = vmatprep.subr.mxu0 0.0
    %4490 = vmatpush1.msra.mxu0 0.0
    %4491 = vmatprep.subr.mxu0 0.0
    %4492 = vmatpush1.msra.mxu0 0.0
    %4493 = vmatprep.subr.mxu0 0.0
    %4494 = vmatpush1.msra.mxu0 0.0
    %4495 = vmatprep.subr.mxu0 0.0
    %4496 = vmatpush1.msra.mxu0 0.0
    %4497 = vmatprep.subr.mxu0 0.0
    %4498 = vmatpush1.msra.mxu0 0.0
    %4499 = vmatprep.subr.mxu0 0.0
    %4500 = vmatpush1.msra.mxu0 0.0
    %4501 = vmatprep.subr.mxu0 0.0
    %4502 = vmatpush1.msra.mxu0 0.0
    %4503 = vmatprep.subr.mxu0 0.0
    %4504 = vmatpush1.msra.mxu0 0.0
    %4505 = vmatprep.subr.mxu0 0.0
    %4506 = vmatpush1.msra.mxu0 0.0
    %4507 = vmatprep.subr.mxu0 0.0
    %4508 = vmatpush1.msra.mxu0 0.0
    %4509 = vmatprep.subr.mxu0 0.0
    %4510 = vmatpush1.msra.mxu0 %v4474
    %4511 = vmatprep.subr.mxu0 0.0
    %4512 = vmatpush2.msra.mxu0 0.0
    %4513 = vmatprep.subr.mxu0 0.0
    %4514 = vmatpush2.msra.mxu0 0.0
    %4515 = vmatprep.subr.mxu0 0.0
    %4516 = vmatpush2.msra.mxu0 0.0
    %4517 = vmatprep.subr.mxu0 0.0
    %4518 = vmatpush2.msra.mxu0 0.0
    %4519 = vmatprep.subr.mxu0 0.0
    %4520 = vmatpush2.msra.mxu0 0.0
    %4521 = vmatprep.subr.mxu0 0.0
    %4522 = vmatpush2.msra.mxu0 0.0
    %4523 = vmatprep.subr.mxu0 0.0
    %4524 = vmatpush2.msra.mxu0 0.0
    %4525 = vmatprep.subr.mxu0 0.0
    %4526 = vmatpush2.msra.mxu0 0.0
    %4527 = vmatprep.subr.mxu0 0.0
    %4528 = vmatpush2.msra.mxu0 0.0
    %4529 = vmatprep.subr.mxu0 0.0
    %4530 = vmatpush2.msra.mxu0 0.0
    %4531 = vmatprep.subr.mxu0 0.0
    %4532 = vmatpush2.msra.mxu0 0.0
    %4533 = vmatprep.subr.mxu0 0.0
    %4534 = vmatpush2.msra.mxu0 0.0
    %4535 = vmatprep.subr.mxu0 0.0
    %4536 = vmatpush2.msra.mxu0 0.0
    %4537 = vmatprep.subr.mxu0 0.0
    %4538 = vmatpush2.msra.mxu0 0.0
    %4539 = vmatprep.subr.mxu0 0.0
    %4540 = vmatpush2.msra.mxu0 0.0
    %4541 = vmatprep.subr.mxu0 0.0
    %4542 = vmatpush2.msra.mxu0 0.0
    %4543 = vmatprep.mubr.f32.mxu0 0.0
    %4544 = vmatmul.mubr.f32.gmra.mxu0 %v4477
    %v4545 = vpop.f32.mrf.mxu0
    %v4546 = vadd.f32 0.0, %v4545
    %v4547 = vpop.f32.mrf.mxu0
    %4548 = vdwg.mxu0
    %4549 = vrot.lane.b32.xlu0 %v3290, 72
    %v4550 = vpop.permute.xlu0 %4549
    %v4553 = vsel %vm131, %v4472, 0
    %4555 = vmatprep.subr.mxu0 0.0
    %4556 = vmatpush1.msra.mxu0 0.0
    %4557 = vmatprep.subr.mxu0 0.0
    %4558 = vmatpush1.msra.mxu0 0.0
    %4559 = vmatprep.subr.mxu0 0.0
    %4560 = vmatpush1.msra.mxu0 0.0
    %4561 = vmatprep.subr.mxu0 0.0
    %4562 = vmatpush1.msra.mxu0 0.0
    %4563 = vmatprep.subr.mxu0 0.0
    %4564 = vmatpush1.msra.mxu0 0.0
    %4565 = vmatprep.subr.mxu0 0.0
    %4566 = vmatpush1.msra.mxu0 0.0
    %4567 = vmatprep.subr.mxu0 0.0
    %4568 = vmatpush1.msra.mxu0 0.0
    %4569 = vmatprep.subr.mxu0 0.0
    %4570 = vmatpush1.msra.mxu0 0.0
    %4571 = vmatprep.subr.mxu0 0.0
    %4572 = vmatpush1.msra.mxu0 0.0
    %4573 = vmatprep.subr.mxu0 0.0
    %4574 = vmatpush1.msra.mxu0 0.0
    %4575 = vmatprep.subr.mxu0 0.0
    %4576 = vmatpush1.msra.mxu0 0.0
    %4577 = vmatprep.subr.mxu0 0.0
    %4578 = vmatpush1.msra.mxu0 0.0
    %4579 = vmatprep.subr.mxu0 0.0
    %4580 = vmatpush1.msra.mxu0 0.0
    %4581 = vmatprep.subr.mxu0 0.0
    %4582 = vmatpush1.msra.mxu0 0.0
    %4583 = vmatprep.subr.mxu0 0.0
    %4584 = vmatpush1.msra.mxu0 0.0
    %4585 = vmatprep.subr.mxu0 0.0
    %4586 = vmatpush1.msra.mxu0 %v4550
    %4587 = vmatprep.subr.mxu0 0.0
    %4588 = vmatpush2.msra.mxu0 0.0
    %4589 = vmatprep.subr.mxu0 0.0
    %4590 = vmatpush2.msra.mxu0 0.0
    %4591 = vmatprep.subr.mxu0 0.0
    %4592 = vmatpush2.msra.mxu0 0.0
    %4593 = vmatprep.subr.mxu0 0.0
    %4594 = vmatpush2.msra.mxu0 0.0
    %4595 = vmatprep.subr.mxu0 0.0
    %4596 = vmatpush2.msra.mxu0 0.0
    %4597 = vmatprep.subr.mxu0 0.0
    %4598 = vmatpush2.msra.mxu0 0.0
    %4599 = vmatprep.subr.mxu0 0.0
    %4600 = vmatpush2.msra.mxu0 0.0
    %4601 = vmatprep.subr.mxu0 0.0
    %4602 = vmatpush2.msra.mxu0 0.0
    %4603 = vmatprep.subr.mxu0 0.0
    %4604 = vmatpush2.msra.mxu0 0.0
    %4605 = vmatprep.subr.mxu0 0.0
    %4606 = vmatpush2.msra.mxu0 0.0
    %4607 = vmatprep.subr.mxu0 0.0
    %4608 = vmatpush2.msra.mxu0 0.0
    %4609 = vmatprep.subr.mxu0 0.0
    %4610 = vmatpush2.msra.mxu0 0.0
    %4611 = vmatprep.subr.mxu0 0.0
    %4612 = vmatpush2.msra.mxu0 0.0
    %4613 = vmatprep.subr.mxu0 0.0
    %4614 = vmatpush2.msra.mxu0 0.0
    %4615 = vmatprep.subr.mxu0 0.0
    %4616 = vmatpush2.msra.mxu0 0.0
    %4617 = vmatprep.subr.mxu0 0.0
    %4618 = vmatpush2.msra.mxu0 0.0
    %4619 = vmatprep.mubr.f32.mxu0 0.0
    %4620 = vmatmul.mubr.f32.gmra.mxu0 %v4553
    %v4621 = vpop.f32.mrf.mxu0
    %v4622 = vadd.f32 0.0, %v4621
    %v4623 = vpop.f32.mrf.mxu0
    %4624 = vdwg.mxu0
    %4627 = vrot.lane.b32.xlu0 %v4546, 24
    %v4628 = vpop.permute.xlu0 %4627
    %4629 = vrot.lane.b32.xlu0 %v4622, 24
    %v4630 = vpop.permute.xlu0 %4629
    %v4633 = vadd.f32 %v3293, %v4628
    %v4634 = vadd.f32 %v3293, %v4630
    %v4635 = vsel %vm131, %v3619, %v3957
    %v4636 = vsel %vm131, %v3620, %v3958
    %v4637 = vsel %vm48, %v4635, %v4295
    %v4638 = vsel %vm48, %v4636, %v4296
    %v4639 = vsel %vm1477, %v4637, %v4633
    %v4640 = vsel %vm1477, %v4638, %v4634
    %v4641 = vld [vmem:[#allocation4 + $0x110] sm:$0xff]
    %v4642 = vld [vmem:[#allocation4 + $0x118] sm:$0xff]
    %v4643 = vld [vmem:[#allocation4 + $0x120] sm:$0xff]
    %v4644 = vld [vmem:[#allocation4 + $0x128] sm:$0xff]
    %v4645 = vld [vmem:[#allocation4 + $0x130] sm:$0x1]
    %v4646 = vlaneseq
    %v4647 = vshrl.u32 %v4646, 7
    %v4648 = vsub.s32 0, %v4647
    %v4649 = vrot.slane %v4645, %v4648
    %v4651 = vsel %vm1489, %v4639, 0
    %v4654 = vsel %vm1489, %v4640, 0
    %4656 = vmatprep.subr.mxu0 0.0
    %4657 = vmatpush1.msra.mxu0 0.0
    %4658 = vmatprep.subr.mxu0 0.0
    %4659 = vmatpush1.msra.mxu0 0.0
    %4660 = vmatprep.subr.mxu0 0.0
    %4661 = vmatpush1.msra.mxu0 0.0
    %4662 = vmatprep.subr.mxu0 0.0
    %4663 = vmatpush1.msra.mxu0 0.0
    %4664 = vmatprep.subr.mxu0 0.0
    %4665 = vmatpush1.msra.mxu0 0.0
    %4666 = vmatprep.subr.mxu0 0.0
    %4667 = vmatpush1.msra.mxu0 0.0
    %4668 = vmatprep.subr.mxu0 0.0
    %4669 = vmatpush1.msra.mxu0 0.0
    %4670 = vmatprep.subr.mxu0 0.0
    %4671 = vmatpush1.msra.mxu0 0.0
    %4672 = vmatprep.subr.mxu0 0.0
    %4673 = vmatpush1.msra.mxu0 0.0
    %4674 = vmatprep.subr.mxu0 0.0
    %4675 = vmatpush1.msra.mxu0 0.0
    %4676 = vmatprep.subr.mxu0 0.0
    %4677 = vmatpush1.msra.mxu0 0.0
    %4678 = vmatprep.subr.mxu0 0.0
    %4679 = vmatpush1.msra.mxu0 0.0
    %4680 = vmatprep.subr.mxu0 0.0
    %4681 = vmatpush1.msra.mxu0 %v4644
    %4682 = vmatprep.subr.mxu0 0.0
    %4683 = vmatpush1.msra.mxu0 %v4643
    %4684 = vmatprep.subr.mxu0 0.0
    %4685 = vmatpush1.msra.mxu0 %v4642
    %4686 = vmatprep.subr.mxu0 0.0
    %4687 = vmatpush1.msra.mxu0 %v4641
    %4688 = vmatprep.subr.mxu0 0.0
    %4689 = vmatpush2.msra.mxu0 0.0
    %4690 = vmatprep.subr.mxu0 0.0
    %4691 = vmatpush2.msra.mxu0 0.0
    %4692 = vmatprep.subr.mxu0 0.0
    %4693 = vmatpush2.msra.mxu0 0.0
    %4694 = vmatprep.subr.mxu0 0.0
    %4695 = vmatpush2.msra.mxu0 0.0
    %4696 = vmatprep.subr.mxu0 0.0
    %4697 = vmatpush2.msra.mxu0 0.0
    %4698 = vmatprep.subr.mxu0 0.0
    %4699 = vmatpush2.msra.mxu0 0.0
    %4700 = vmatprep.subr.mxu0 0.0
    %4701 = vmatpush2.msra.mxu0 0.0
    %4702 = vmatprep.subr.mxu0 0.0
    %4703 = vmatpush2.msra.mxu0 0.0
    %4704 = vmatprep.subr.mxu0 0.0
    %4705 = vmatpush2.msra.mxu0 0.0
    %4706 = vmatprep.subr.mxu0 0.0
    %4707 = vmatpush2.msra.mxu0 0.0
    %4708 = vmatprep.subr.mxu0 0.0
    %4709 = vmatpush2.msra.mxu0 0.0
    %4710 = vmatprep.subr.mxu0 0.0
    %4711 = vmatpush2.msra.mxu0 0.0
    %4712 = vmatprep.subr.mxu0 0.0
    %4713 = vmatpush2.msra.mxu0 0.0
    %4714 = vmatprep.subr.mxu0 0.0
    %4715 = vmatpush2.msra.mxu0 0.0
    %4716 = vmatprep.subr.mxu0 0.0
    %4717 = vmatpush2.msra.mxu0 0.0
    %4718 = vmatprep.subr.mxu0 0.0
    %4719 = vmatpush2.msra.mxu0 0.0
    %4720 = vmatprep.mubr.f32.mxu0 0.0
    %4721 = vmatmul.mubr.f32.gmra.mxu0 %v4651
    %v4722 = vpop.f32.mrf.mxu0
    %v4723 = vadd.f32 %v4649, %v4722
    %v4724 = vpop.f32.mrf.mxu0
    %4725 = vmatprep.mubr.f32.mxu0 0.0
    %4726 = vmatmul.mubr.f32.gmra.mxu0 %v4654
    %v4727 = vpop.f32.mrf.mxu0
    %v4728 = vadd.f32 %v4649, %v4727
    %v4729 = vpop.f32.mrf.mxu0
    %4730 = vdwg.mxu0
    %v4731 = vmax.f32 %v4723, 0.0
    %v4732 = vmax.f32 %v4728, 0.0
    %v4733 = vadd.f32 %v4639, %v4731
    %v4734 = vadd.f32 %v4640, %v4732
    %v4735 = vld [vmem:[#allocation4 + $0x30] sm:$0xff]
    %v4736 = vld [vmem:[#allocation4 + $0x38] sm:$0xff]
    %v4737 = vld [vmem:[#allocation4 + $0x40] sm:$0xff]
    %v4738 = vld [vmem:[#allocation4 + $0x48] sm:$0xff]
    %v4739 = vld [vmem:[#allocation4 + $0x50] sm:$0x1]
    %v4740 = vlaneseq
    %v4741 = vshrl.u32 %v4740, 7
    %v4742 = vsub.s32 0, %v4741
    %v4743 = vrot.slane %v4739, %v4742
    %4744 = vmatprep.subr.mxu0 0.0
    %4745 = vmatpush1.msra.mxu0 0.0
    %4746 = vmatprep.subr.mxu0 0.0
    %4747 = vmatpush1.msra.mxu0 0.0
    %4748 = vmatprep.subr.mxu0 0.0
    %4749 = vmatpush1.msra.mxu0 0.0
    %4750 = vmatprep.subr.mxu0 0.0
    %4751 = vmatpush1.msra.mxu0 0.0
    %4752 = vmatprep.subr.mxu0 0.0
    %4753 = vmatpush1.msra.mxu0 0.0
    %4754 = vmatprep.subr.mxu0 0.0
    %4755 = vmatpush1.msra.mxu0 0.0
    %4756 = vmatprep.subr.mxu0 0.0
    %4757 = vmatpush1.msra.mxu0 0.0
    %4758 = vmatprep.subr.mxu0 0.0
    %4759 = vmatpush1.msra.mxu0 0.0
    %4760 = vmatprep.subr.mxu0 0.0
    %4761 = vmatpush1.msra.mxu0 0.0
    %4762 = vmatprep.subr.mxu0 0.0
    %4763 = vmatpush1.msra.mxu0 0.0
    %4764 = vmatprep.subr.mxu0 0.0
    %4765 = vmatpush1.msra.mxu0 0.0
    %4766 = vmatprep.subr.mxu0 0.0
    %4767 = vmatpush1.msra.mxu0 0.0
    %4768 = vmatprep.subr.mxu0 0.0
    %4769 = vmatpush1.msra.mxu0 %v4738
    %4770 = vmatprep.subr.mxu0 0.0
    %4771 = vmatpush1.msra.mxu0 %v4737
    %4772 = vmatprep.subr.mxu0 0.0
    %4773 = vmatpush1.msra.mxu0 %v4736
    %4774 = vmatprep.subr.mxu0 0.0
    %4775 = vmatpush1.msra.mxu0 %v4735
    %4776 = vmatprep.subr.mxu0 0.0
    %4777 = vmatpush2.msra.mxu0 0.0
    %4778 = vmatprep.subr.mxu0 0.0
    %4779 = vmatpush2.msra.mxu0 0.0
    %4780 = vmatprep.subr.mxu0 0.0
    %4781 = vmatpush2.msra.mxu0 0.0
    %4782 = vmatprep.subr.mxu0 0.0
    %4783 = vmatpush2.msra.mxu0 0.0
    %4784 = vmatprep.subr.mxu0 0.0
    %4785 = vmatpush2.msra.mxu0 0.0
    %4786 = vmatprep.subr.mxu0 0.0
    %4787 = vmatpush2.msra.mxu0 0.0
    %4788 = vmatprep.subr.mxu0 0.0
    %4789 = vmatpush2.msra.mxu0 0.0
    %4790 = vmatprep.subr.mxu0 0.0
    %4791 = vmatpush2.msra.mxu0 0.0
    %4792 = vmatprep.subr.mxu0 0.0
    %4793 = vmatpush2.msra.mxu0 0.0
    %4794 = vmatprep.subr.mxu0 0.0
    %4795 = vmatpush2.msra.mxu0 0.0
    %4796 = vmatprep.subr.mxu0 0.0
    %4797 = vmatpush2.msra.mxu0 0.0
    %4798 = vmatprep.subr.mxu0 0.0
    %4799 = vmatpush2.msra.mxu0 0.0
    %4800 = vmatprep.subr.mxu0 0.0
    %4801 = vmatpush2.msra.mxu0 0.0
    %4802 = vmatprep.subr.mxu0 0.0
    %4803 = vmatpush2.msra.mxu0 0.0
    %4804 = vmatprep.subr.mxu0 0.0
    %4805 = vmatpush2.msra.mxu0 0.0
    %4806 = vmatprep.subr.mxu0 0.0
    %4807 = vmatpush2.msra.mxu0 0.0
    %4808 = vmatprep.mubr.f32.mxu0 0.0
    %4809 = vmatmul.mubr.f32.gmra.mxu0 %v3213
    %v4810 = vpop.f32.mrf.mxu0
    %v4811 = vadd.f32 %v4743, %v4810
    %v4812 = vpop.f32.mrf.mxu0
    %4813 = vmatprep.mubr.f32.mxu0 0.0
    %4814 = vmatmul.mubr.f32.gmra.mxu0 %v3216
    %v4815 = vpop.f32.mrf.mxu0
    %v4816 = vadd.f32 %v4743, %v4815
    %v4817 = vpop.f32.mrf.mxu0
    %4818 = vdwg.mxu0
    %v4819 = vld [vmem:[#allocation4 + $0x138] sm:$0xff]
    %v4820 = vld [vmem:[#allocation4 + $0x140] sm:$0xff]
    %v4821 = vld [vmem:[#allocation4 + $0x148] sm:$0xff]
    %v4822 = vld [vmem:[#allocation4 + $0x150] sm:$0xff]
    %v4823 = vld [vmem:[#allocation4 + $0x158] sm:$0x1]
    %v4824 = vlaneseq
    %v4825 = vshrl.u32 %v4824, 7
    %v4826 = vsub.s32 0, %v4825
    %v4827 = vrot.slane %v4823, %v4826
    %v4829 = vsel %vm1489, %v4733, 0
    %v4832 = vsel %vm1489, %v4734, 0
    %4834 = vmatprep.subr.mxu0 0.0
    %4835 = vmatpush1.msra.mxu0 0.0
    %4836 = vmatprep.subr.mxu0 0.0
    %4837 = vmatpush1.msra.mxu0 0.0
    %4838 = vmatprep.subr.mxu0 0.0
    %4839 = vmatpush1.msra.mxu0 0.0
    %4840 = vmatprep.subr.mxu0 0.0
    %4841 = vmatpush1.msra.mxu0 0.0
    %4842 = vmatprep.subr.mxu0 0.0
    %4843 = vmatpush1.msra.mxu0 0.0
    %4844 = vmatprep.subr.mxu0 0.0
    %4845 = vmatpush1.msra.mxu0 0.0
    %4846 = vmatprep.subr.mxu0 0.0
    %4847 = vmatpush1.msra.mxu0 0.0
    %4848 = vmatprep.subr.mxu0 0.0
    %4849 = vmatpush1.msra.mxu0 0.0
    %4850 = vmatprep.subr.mxu0 0.0
    %4851 = vmatpush1.msra.mxu0 0.0
    %4852 = vmatprep.subr.mxu0 0.0
    %4853 = vmatpush1.msra.mxu0 0.0
    %4854 = vmatprep.subr.mxu0 0.0
    %4855 = vmatpush1.msra.mxu0 0.0
    %4856 = vmatprep.subr.mxu0 0.0
    %4857 = vmatpush1.msra.mxu0 0.0
    %4858 = vmatprep.subr.mxu0 0.0
    %4859 = vmatpush1.msra.mxu0 %v4822
    %4860 = vmatprep.subr.mxu0 0.0
    %4861 = vmatpush1.msra.mxu0 %v4821
    %4862 = vmatprep.subr.mxu0 0.0
    %4863 = vmatpush1.msra.mxu0 %v4820
    %4864 = vmatprep.subr.mxu0 0.0
    %4865 = vmatpush1.msra.mxu0 %v4819
    %4866 = vmatprep.subr.mxu0 0.0
    %4867 = vmatpush2.msra.mxu0 0.0
    %4868 = vmatprep.subr.mxu0 0.0
    %4869 = vmatpush2.msra.mxu0 0.0
    %4870 = vmatprep.subr.mxu0 0.0
    %4871 = vmatpush2.msra.mxu0 0.0
    %4872 = vmatprep.subr.mxu0 0.0
    %4873 = vmatpush2.msra.mxu0 0.0
    %4874 = vmatprep.subr.mxu0 0.0
    %4875 = vmatpush2.msra.mxu0 0.0
    %4876 = vmatprep.subr.mxu0 0.0
    %4877 = vmatpush2.msra.mxu0 0.0
    %4878 = vmatprep.subr.mxu0 0.0
    %4879 = vmatpush2.msra.mxu0 0.0
    %4880 = vmatprep.subr.mxu0 0.0
    %4881 = vmatpush2.msra.mxu0 0.0
    %4882 = vmatprep.subr.mxu0 0.0
    %4883 = vmatpush2.msra.mxu0 0.0
    %4884 = vmatprep.subr.mxu0 0.0
    %4885 = vmatpush2.msra.mxu0 0.0
    %4886 = vmatprep.subr.mxu0 0.0
    %4887 = vmatpush2.msra.mxu0 0.0
    %4888 = vmatprep.subr.mxu0 0.0
    %4889 = vmatpush2.msra.mxu0 0.0
    %4890 = vmatprep.subr.mxu0 0.0
    %4891 = vmatpush2.msra.mxu0 0.0
    %4892 = vmatprep.subr.mxu0 0.0
    %4893 = vmatpush2.msra.mxu0 0.0
    %4894 = vmatprep.subr.mxu0 0.0
    %4895 = vmatpush2.msra.mxu0 0.0
    %4896 = vmatprep.subr.mxu0 0.0
    %4897 = vmatpush2.msra.mxu0 0.0
    %4898 = vmatprep.mubr.f32.mxu0 0.0
    %4899 = vmatmul.mubr.f32.gmra.mxu0 %v4829
    %v4900 = vpop.f32.mrf.mxu0
    %v4901 = vadd.f32 %v4827, %v4900
    %v4902 = vpop.f32.mrf.mxu0
    %4903 = vmatprep.mubr.f32.mxu0 0.0
    %4904 = vmatmul.mubr.f32.gmra.mxu0 %v4832
    %v4905 = vpop.f32.mrf.mxu0
    %v4906 = vadd.f32 %v4827, %v4905
    %v4907 = vpop.f32.mrf.mxu0
    %4908 = vdwg.mxu0
    %v4910 = vsel %vm131, %v4811, 0
    %v4913 = vsel %vm131, %v4901, 0
    %4915 = vmatprep.subr.mxu0 0.0
    %4916 = vmatpush1.xpose.msra.mxu0 0.0
    %4917 = vmatprep.subr.mxu0 0.0
    %4918 = vmatpush1.xpose.msra.mxu0 0.0
    %4919 = vmatprep.subr.mxu0 0.0
    %4920 = vmatpush1.xpose.msra.mxu0 0.0
    %4921 = vmatprep.subr.mxu0 0.0
    %4922 = vmatpush1.xpose.msra.mxu0 0.0
    %4923 = vmatprep.subr.mxu0 0.0
    %4924 = vmatpush1.xpose.msra.mxu0 0.0
    %4925 = vmatprep.subr.mxu0 0.0
    %4926 = vmatpush1.xpose.msra.mxu0 0.0
    %4927 = vmatprep.subr.mxu0 0.0
    %4928 = vmatpush1.xpose.msra.mxu0 0.0
    %4929 = vmatprep.subr.mxu0 0.0
    %4930 = vmatpush1.xpose.msra.mxu0 0.0
    %4931 = vmatprep.subr.mxu0 0.0
    %4932 = vmatpush1.xpose.msra.mxu0 0.0
    %4933 = vmatprep.subr.mxu0 0.0
    %4934 = vmatpush1.xpose.msra.mxu0 0.0
    %4935 = vmatprep.subr.mxu0 0.0
    %4936 = vmatpush1.xpose.msra.mxu0 0.0
    %4937 = vmatprep.subr.mxu0 0.0
    %4938 = vmatpush1.xpose.msra.mxu0 0.0
    %4939 = vmatprep.subr.mxu0 0.0
    %4940 = vmatpush1.xpose.msra.mxu0 0.0
    %4941 = vmatprep.subr.mxu0 0.0
    %4942 = vmatpush1.xpose.msra.mxu0 0.0
    %4943 = vmatprep.subr.mxu0 0.0
    %4944 = vmatpush1.xpose.msra.mxu0 0.0
    %4945 = vmatprep.subr.mxu0 0.0
    %4946 = vmatpush1.xpose.msra.mxu0 %v4913
    %4947 = vmatprep.subr.mxu0 0.0
    %4948 = vmatpush2.xpose.msra.mxu0 0.0
    %4949 = vmatprep.subr.mxu0 0.0
    %4950 = vmatpush2.xpose.msra.mxu0 0.0
    %4951 = vmatprep.subr.mxu0 0.0
    %4952 = vmatpush2.xpose.msra.mxu0 0.0
    %4953 = vmatprep.subr.mxu0 0.0
    %4954 = vmatpush2.xpose.msra.mxu0 0.0
    %4955 = vmatprep.subr.mxu0 0.0
    %4956 = vmatpush2.xpose.msra.mxu0 0.0
    %4957 = vmatprep.subr.mxu0 0.0
    %4958 = vmatpush2.xpose.msra.mxu0 0.0
    %4959 = vmatprep.subr.mxu0 0.0
    %4960 = vmatpush2.xpose.msra.mxu0 0.0
    %4961 = vmatprep.subr.mxu0 0.0
    %4962 = vmatpush2.xpose.msra.mxu0 0.0
    %4963 = vmatprep.subr.mxu0 0.0
    %4964 = vmatpush2.xpose.msra.mxu0 0.0
    %4965 = vmatprep.subr.mxu0 0.0
    %4966 = vmatpush2.xpose.msra.mxu0 0.0
    %4967 = vmatprep.subr.mxu0 0.0
    %4968 = vmatpush2.xpose.msra.mxu0 0.0
    %4969 = vmatprep.subr.mxu0 0.0
    %4970 = vmatpush2.xpose.msra.mxu0 0.0
    %4971 = vmatprep.subr.mxu0 0.0
    %4972 = vmatpush2.xpose.msra.mxu0 0.0
    %4973 = vmatprep.subr.mxu0 0.0
    %4974 = vmatpush2.xpose.msra.mxu0 0.0
    %4975 = vmatprep.subr.mxu0 0.0
    %4976 = vmatpush2.xpose.msra.mxu0 0.0
    %4977 = vmatprep.subr.mxu0 0.0
    %4978 = vmatpush2.xpose.msra.mxu0 0.0
    %4979 = vmatprep.mubr.f32.mxu0 0.0
    %4980 = vmatmul.mubr.f32.gmra.mxu0 %v4910
    %v4981 = vpop.f32.mrf.mxu0
    %v4982 = vadd.f32 0.0, %v4981
    %v4983 = vpop.f32.mrf.mxu0
    %4984 = vdwg.mxu0
    %v4986 = vsel %vm131, %v4816, 0
    %v4989 = vsel %vm131, %v4906, 0
    %4991 = vmatprep.subr.mxu0 0.0
    %4992 = vmatpush1.xpose.msra.mxu0 0.0
    %4993 = vmatprep.subr.mxu0 0.0
    %4994 = vmatpush1.xpose.msra.mxu0 0.0
    %4995 = vmatprep.subr.mxu0 0.0
    %4996 = vmatpush1.xpose.msra.mxu0 0.0
    %4997 = vmatprep.subr.mxu0 0.0
    %4998 = vmatpush1.xpose.msra.mxu0 0.0
    %4999 = vmatprep.subr.mxu0 0.0
    %5000 = vmatpush1.xpose.msra.mxu0 0.0
    %5001 = vmatprep.subr.mxu0 0.0
    %5002 = vmatpush1.xpose.msra.mxu0 0.0
    %5003 = vmatprep.subr.mxu0 0.0
    %5004 = vmatpush1.xpose.msra.mxu0 0.0
    %5005 = vmatprep.subr.mxu0 0.0
    %5006 = vmatpush1.xpose.msra.mxu0 0.0
    %5007 = vmatprep.subr.mxu0 0.0
    %5008 = vmatpush1.xpose.msra.mxu0 0.0
    %5009 = vmatprep.subr.mxu0 0.0
    %5010 = vmatpush1.xpose.msra.mxu0 0.0
    %5011 = vmatprep.subr.mxu0 0.0
    %5012 = vmatpush1.xpose.msra.mxu0 0.0
    %5013 = vmatprep.subr.mxu0 0.0
    %5014 = vmatpush1.xpose.msra.mxu0 0.0
    %5015 = vmatprep.subr.mxu0 0.0
    %5016 = vmatpush1.xpose.msra.mxu0 0.0
    %5017 = vmatprep.subr.mxu0 0.0
    %5018 = vmatpush1.xpose.msra.mxu0 0.0
    %5019 = vmatprep.subr.mxu0 0.0
    %5020 = vmatpush1.xpose.msra.mxu0 0.0
    %5021 = vmatprep.subr.mxu0 0.0
    %5022 = vmatpush1.xpose.msra.mxu0 %v4989
    %5023 = vmatprep.subr.mxu0 0.0
    %5024 = vmatpush2.xpose.msra.mxu0 0.0
    %5025 = vmatprep.subr.mxu0 0.0
    %5026 = vmatpush2.xpose.msra.mxu0 0.0
    %5027 = vmatprep.subr.mxu0 0.0
    %5028 = vmatpush2.xpose.msra.mxu0 0.0
    %5029 = vmatprep.subr.mxu0 0.0
    %5030 = vmatpush2.xpose.msra.mxu0 0.0
    %5031 = vmatprep.subr.mxu0 0.0
    %5032 = vmatpush2.xpose.msra.mxu0 0.0
    %5033 = vmatprep.subr.mxu0 0.0
    %5034 = vmatpush2.xpose.msra.mxu0 0.0
    %5035 = vmatprep.subr.mxu0 0.0
    %5036 = vmatpush2.xpose.msra.mxu0 0.0
    %5037 = vmatprep.subr.mxu0 0.0
    %5038 = vmatpush2.xpose.msra.mxu0 0.0
    %5039 = vmatprep.subr.mxu0 0.0
    %5040 = vmatpush2.xpose.msra.mxu0 0.0
    %5041 = vmatprep.subr.mxu0 0.0
    %5042 = vmatpush2.xpose.msra.mxu0 0.0
    %5043 = vmatprep.subr.mxu0 0.0
    %5044 = vmatpush2.xpose.msra.mxu0 0.0
    %5045 = vmatprep.subr.mxu0 0.0
    %5046 = vmatpush2.xpose.msra.mxu0 0.0
    %5047 = vmatprep.subr.mxu0 0.0
    %5048 = vmatpush2.xpose.msra.mxu0 0.0
    %5049 = vmatprep.subr.mxu0 0.0
    %5050 = vmatpush2.xpose.msra.mxu0 0.0
    %5051 = vmatprep.subr.mxu0 0.0
    %5052 = vmatpush2.xpose.msra.mxu0 0.0
    %5053 = vmatprep.subr.mxu0 0.0
    %5054 = vmatpush2.xpose.msra.mxu0 0.0
    %5055 = vmatprep.mubr.f32.mxu0 0.0
    %5056 = vmatmul.mubr.f32.gmra.mxu0 %v4986
    %v5057 = vpop.f32.mrf.mxu0
    %v5058 = vadd.f32 0.0, %v5057
    %v5059 = vpop.f32.mrf.mxu0
    %5060 = vdwg.mxu0
    %v5061 = vmul.f32 %v4982, 0.17677669
    %v5062 = vmul.f32 %v5058, 0.17677669
    %v5063 = vsel %vm131, %v5061, -inf
    %5064 = vmax.xlane.f32.xlu0 %v5063
    %v5065 = vpop.xlane.xlu0 %5064
    %v5066 = vsel %vm131, %v5062, -inf
    %5067 = vmax.xlane.f32.xlu0 %v5066
    %v5068 = vpop.xlane.xlu0 %5067
    %v5069 = vsub.f32 %v5061, %v5065
    %v5070 = vsub.f32 %v5062, %v5068
    %v5071 = vmul.f32 %v5069, 1.442695
    %v5072 = vpow.pop %v5071
    %v5073 = vmul.f32 %v5070, 1.442695
    %v5074 = vpow.pop %v5073
    %v5075 = vsel %vm131, %v5072, 0.0
    %5076 = vadd.xlane.f32.xlu0 %v5075
    %v5077 = vpop.xlane.xlu0 %5076
    %v5078 = vsel %vm131, %v5074, 0.0
    %5079 = vadd.xlane.f32.xlu0 %v5078
    %v5080 = vpop.xlane.xlu0 %5079
    %v5081 = vrcp.pop %v5077
    %v5082 = vmul.f32 %v5072, %v5081
    %v5083 = vrcp.pop %v5080
    %v5084 = vmul.f32 %v5074, %v5083
    %5085 = vrot.lane.b32.xlu0 %v4901, 96
    %v5086 = vpop.permute.xlu0 %5085
    %v5089 = vsel %vm131, %v5082, 0
    %5091 = vmatprep.subr.mxu0 0.0
    %5092 = vmatpush1.msra.mxu0 0.0
    %5093 = vmatprep.subr.mxu0 0.0
    %5094 = vmatpush1.msra.mxu0 0.0
    %5095 = vmatprep.subr.mxu0 0.0
    %5096 = vmatpush1.msra.mxu0 0.0
    %5097 = vmatprep.subr.mxu0 0.0
    %5098 = vmatpush1.msra.mxu0 0.0
    %5099 = vmatprep.subr.mxu0 0.0
    %5100 = vmatpush1.msra.mxu0 0.0
    %5101 = vmatprep.subr.mxu0 0.0
    %5102 = vmatpush1.msra.mxu0 0.0
    %5103 = vmatprep.subr.mxu0 0.0
    %5104 = vmatpush1.msra.mxu0 0.0
    %5105 = vmatprep.subr.mxu0 0.0
    %5106 = vmatpush1.msra.mxu0 0.0
    %5107 = vmatprep.subr.mxu0 0.0
    %5108 = vmatpush1.msra.mxu0 0.0
    %5109 = vmatprep.subr.mxu0 0.0
    %5110 = vmatpush1.msra.mxu0 0.0
    %5111 = vmatprep.subr.mxu0 0.0
    %5112 = vmatpush1.msra.mxu0 0.0
    %5113 = vmatprep.subr.mxu0 0.0
    %5114 = vmatpush1.msra.mxu0 0.0
    %5115 = vmatprep.subr.mxu0 0.0
    %5116 = vmatpush1.msra.mxu0 0.0
    %5117 = vmatprep.subr.mxu0 0.0
    %5118 = vmatpush1.msra.mxu0 0.0
    %5119 = vmatprep.subr.mxu0 0.0
    %5120 = vmatpush1.msra.mxu0 0.0
    %5121 = vmatprep.subr.mxu0 0.0
    %5122 = vmatpush1.msra.mxu0 %v5086
    %5123 = vmatprep.subr.mxu0 0.0
    %5124 = vmatpush2.msra.mxu0 0.0
    %5125 = vmatprep.subr.mxu0 0.0
    %5126 = vmatpush2.msra.mxu0 0.0
    %5127 = vmatprep.subr.mxu0 0.0
    %5128 = vmatpush2.msra.mxu0 0.0
    %5129 = vmatprep.subr.mxu0 0.0
    %5130 = vmatpush2.msra.mxu0 0.0
    %5131 = vmatprep.subr.mxu0 0.0
    %5132 = vmatpush2.msra.mxu0 0.0
    %5133 = vmatprep.subr.mxu0 0.0
    %5134 = vmatpush2.msra.mxu0 0.0
    %5135 = vmatprep.subr.mxu0 0.0
    %5136 = vmatpush2.msra.mxu0 0.0
    %5137 = vmatprep.subr.mxu0 0.0
    %5138 = vmatpush2.msra.mxu0 0.0
    %5139 = vmatprep.subr.mxu0 0.0
    %5140 = vmatpush2.msra.mxu0 0.0
    %5141 = vmatprep.subr.mxu0 0.0
    %5142 = vmatpush2.msra.mxu0 0.0
    %5143 = vmatprep.subr.mxu0 0.0
    %5144 = vmatpush2.msra.mxu0 0.0
    %5145 = vmatprep.subr.mxu0 0.0
    %5146 = vmatpush2.msra.mxu0 0.0
    %5147 = vmatprep.subr.mxu0 0.0
    %5148 = vmatpush2.msra.mxu0 0.0
    %5149 = vmatprep.subr.mxu0 0.0
    %5150 = vmatpush2.msra.mxu0 0.0
    %5151 = vmatprep.subr.mxu0 0.0
    %5152 = vmatpush2.msra.mxu0 0.0
    %5153 = vmatprep.subr.mxu0 0.0
    %5154 = vmatpush2.msra.mxu0 0.0
    %5155 = vmatprep.mubr.f32.mxu0 0.0
    %5156 = vmatmul.mubr.f32.gmra.mxu0 %v5089
    %v5157 = vpop.f32.mrf.mxu0
    %v5158 = vadd.f32 0.0, %v5157
    %v5159 = vpop.f32.mrf.mxu0
    %5160 = vdwg.mxu0
    %5161 = vrot.lane.b32.xlu0 %v4906, 96
    %v5162 = vpop.permute.xlu0 %5161
    %v5165 = vsel %vm131, %v5084, 0
    %5167 = vmatprep.subr.mxu0 0.0
    %5168 = vmatpush1.msra.mxu0 0.0
    %5169 = vmatprep.subr.mxu0 0.0
    %5170 = vmatpush1.msra.mxu0 0.0
    %5171 = vmatprep.subr.mxu0 0.0
    %5172 = vmatpush1.msra.mxu0 0.0
    %5173 = vmatprep.subr.mxu0 0.0
    %5174 = vmatpush1.msra.mxu0 0.0
    %5175 = vmatprep.subr.mxu0 0.0
    %5176 = vmatpush1.msra.mxu0 0.0
    %5177 = vmatprep.subr.mxu0 0.0
    %5178 = vmatpush1.msra.mxu0 0.0
    %5179 = vmatprep.subr.mxu0 0.0
    %5180 = vmatpush1.msra.mxu0 0.0
    %5181 = vmatprep.subr.mxu0 0.0
    %5182 = vmatpush1.msra.mxu0 0.0
    %5183 = vmatprep.subr.mxu0 0.0
    %5184 = vmatpush1.msra.mxu0 0.0
    %5185 = vmatprep.subr.mxu0 0.0
    %5186 = vmatpush1.msra.mxu0 0.0
    %5187 = vmatprep.subr.mxu0 0.0
    %5188 = vmatpush1.msra.mxu0 0.0
    %5189 = vmatprep.subr.mxu0 0.0
    %5190 = vmatpush1.msra.mxu0 0.0
    %5191 = vmatprep.subr.mxu0 0.0
    %5192 = vmatpush1.msra.mxu0 0.0
    %5193 = vmatprep.subr.mxu0 0.0
    %5194 = vmatpush1.msra.mxu0 0.0
    %5195 = vmatprep.subr.mxu0 0.0
    %5196 = vmatpush1.msra.mxu0 0.0
    %5197 = vmatprep.subr.mxu0 0.0
    %5198 = vmatpush1.msra.mxu0 %v5162
    %5199 = vmatprep.subr.mxu0 0.0
    %5200 = vmatpush2.msra.mxu0 0.0
    %5201 = vmatprep.subr.mxu0 0.0
    %5202 = vmatpush2.msra.mxu0 0.0
    %5203 = vmatprep.subr.mxu0 0.0
    %5204 = vmatpush2.msra.mxu0 0.0
    %5205 = vmatprep.subr.mxu0 0.0
    %5206 = vmatpush2.msra.mxu0 0.0
    %5207 = vmatprep.subr.mxu0 0.0
    %5208 = vmatpush2.msra.mxu0 0.0
    %5209 = vmatprep.subr.mxu0 0.0
    %5210 = vmatpush2.msra.mxu0 0.0
    %5211 = vmatprep.subr.mxu0 0.0
    %5212 = vmatpush2.msra.mxu0 0.0
    %5213 = vmatprep.subr.mxu0 0.0
    %5214 = vmatpush2.msra.mxu0 0.0
    %5215 = vmatprep.subr.mxu0 0.0
    %5216 = vmatpush2.msra.mxu0 0.0
    %5217 = vmatprep.subr.mxu0 0.0
    %5218 = vmatpush2.msra.mxu0 0.0
    %5219 = vmatprep.subr.mxu0 0.0
    %5220 = vmatpush2.msra.mxu0 0.0
    %5221 = vmatprep.subr.mxu0 0.0
    %5222 = vmatpush2.msra.mxu0 0.0
    %5223 = vmatprep.subr.mxu0 0.0
    %5224 = vmatpush2.msra.mxu0 0.0
    %5225 = vmatprep.subr.mxu0 0.0
    %5226 = vmatpush2.msra.mxu0 0.0
    %5227 = vmatprep.subr.mxu0 0.0
    %5228 = vmatpush2.msra.mxu0 0.0
    %5229 = vmatprep.subr.mxu0 0.0
    %5230 = vmatpush2.msra.mxu0 0.0
    %5231 = vmatprep.mubr.f32.mxu0 0.0
    %5232 = vmatmul.mubr.f32.gmra.mxu0 %v5165
    %v5233 = vpop.f32.mrf.mxu0
    %v5234 = vadd.f32 0.0, %v5233
    %v5235 = vpop.f32.mrf.mxu0
    %5236 = vdwg.mxu0
    %v5237 = vadd.f32 %v4811, %v5158
    %v5238 = vadd.f32 %v4816, %v5234
    %5239 = vrot.lane.b32.xlu0 %v4811, 120
    %v5240 = vpop.permute.xlu0 %5239
    %5241 = vrot.lane.b32.xlu0 %v4901, 120
    %v5242 = vpop.permute.xlu0 %5241
    %v5243 = vsel %vm131, %v5240, 0
    %v5245 = vsel %vm131, %v5242, 0
    %5247 = vmatprep.subr.mxu0 0.0
    %5248 = vmatpush1.xpose.msra.mxu0 0.0
    %5249 = vmatprep.subr.mxu0 0.0
    %5250 = vmatpush1.xpose.msra.mxu0 0.0
    %5251 = vmatprep.subr.mxu0 0.0
    %5252 = vmatpush1.xpose.msra.mxu0 0.0
    %5253 = vmatprep.subr.mxu0 0.0
    %5254 = vmatpush1.xpose.msra.mxu0 0.0
    %5255 = vmatprep.subr.mxu0 0.0
    %5256 = vmatpush1.xpose.msra.mxu0 0.0
    %5257 = vmatprep.subr.mxu0 0.0
    %5258 = vmatpush1.xpose.msra.mxu0 0.0
    %5259 = vmatprep.subr.mxu0 0.0
    %5260 = vmatpush1.xpose.msra.mxu0 0.0
    %5261 = vmatprep.subr.mxu0 0.0
    %5262 = vmatpush1.xpose.msra.mxu0 0.0
    %5263 = vmatprep.subr.mxu0 0.0
    %5264 = vmatpush1.xpose.msra.mxu0 0.0
    %5265 = vmatprep.subr.mxu0 0.0
    %5266 = vmatpush1.xpose.msra.mxu0 0.0
    %5267 = vmatprep.subr.mxu0 0.0
    %5268 = vmatpush1.xpose.msra.mxu0 0.0
    %5269 = vmatprep.subr.mxu0 0.0
    %5270 = vmatpush1.xpose.msra.mxu0 0.0
    %5271 = vmatprep.subr.mxu0 0.0
    %5272 = vmatpush1.xpose.msra.mxu0 0.0
    %5273 = vmatprep.subr.mxu0 0.0
    %5274 = vmatpush1.xpose.msra.mxu0 0.0
    %5275 = vmatprep.subr.mxu0 0.0
    %5276 = vmatpush1.xpose.msra.mxu0 0.0
    %5277 = vmatprep.subr.mxu0 0.0
    %5278 = vmatpush1.xpose.msra.mxu0 %v5245
    %5279 = vmatprep.subr.mxu0 0.0
    %5280 = vmatpush2.xpose.msra.mxu0 0.0
    %5281 = vmatprep.subr.mxu0 0.0
    %5282 = vmatpush2.xpose.msra.mxu0 0.0
    %5283 = vmatprep.subr.mxu0 0.0
    %5284 = vmatpush2.xpose.msra.mxu0 0.0
    %5285 = vmatprep.subr.mxu0 0.0
    %5286 = vmatpush2.xpose.msra.mxu0 0.0
    %5287 = vmatprep.subr.mxu0 0.0
    %5288 = vmatpush2.xpose.msra.mxu0 0.0
    %5289 = vmatprep.subr.mxu0 0.0
    %5290 = vmatpush2.xpose.msra.mxu0 0.0
    %5291 = vmatprep.subr.mxu0 0.0
    %5292 = vmatpush2.xpose.msra.mxu0 0.0
    %5293 = vmatprep.subr.mxu0 0.0
    %5294 = vmatpush2.xpose.msra.mxu0 0.0
    %5295 = vmatprep.subr.mxu0 0.0
    %5296 = vmatpush2.xpose.msra.mxu0 0.0
    %5297 = vmatprep.subr.mxu0 0.0
    %5298 = vmatpush2.xpose.msra.mxu0 0.0
    %5299 = vmatprep.subr.mxu0 0.0
    %5300 = vmatpush2.xpose.msra.mxu0 0.0
    %5301 = vmatprep.subr.mxu0 0.0
    %5302 = vmatpush2.xpose.msra.mxu0 0.0
    %5303 = vmatprep.subr.mxu0 0.0
    %5304 = vmatpush2.xpose.msra.mxu0 0.0
    %5305 = vmatprep.subr.mxu0 0.0
    %5306 = vmatpush2.xpose.msra.mxu0 0.0
    %5307 = vmatprep.subr.mxu0 0.0
    %5308 = vmatpush2.xpose.msra.mxu0 0.0
    %5309 = vmatprep.subr.mxu0 0.0
    %5310 = vmatpush2.xpose.msra.mxu0 0.0
    %5311 = vmatprep.mubr.f32.mxu0 0.0
    %5312 = vmatmul.mubr.f32.gmra.mxu0 %v5243
    %v5313 = vpop.f32.mrf.mxu0
    %v5314 = vadd.f32 0.0, %v5313
    %v5315 = vpop.f32.mrf.mxu0
    %5316 = vdwg.mxu0
    %5317 = vrot.lane.b32.xlu0 %v4816, 120
    %v5318 = vpop.permute.xlu0 %5317
    %5319 = vrot.lane.b32.xlu0 %v4906, 120
    %v5320 = vpop.permute.xlu0 %5319
    %v5321 = vsel %vm131, %v5318, 0
    %v5323 = vsel %vm131, %v5320, 0
    %5325 = vmatprep.subr.mxu0 0.0
    %5326 = vmatpush1.xpose.msra.mxu0 0.0
    %5327 = vmatprep.subr.mxu0 0.0
    %5328 = vmatpush1.xpose.msra.mxu0 0.0
    %5329 = vmatprep.subr.mxu0 0.0
    %5330 = vmatpush1.xpose.msra.mxu0 0.0
    %5331 = vmatprep.subr.mxu0 0.0
    %5332 = vmatpush1.xpose.msra.mxu0 0.0
    %5333 = vmatprep.subr.mxu0 0.0
    %5334 = vmatpush1.xpose.msra.mxu0 0.0
    %5335 = vmatprep.subr.mxu0 0.0
    %5336 = vmatpush1.xpose.msra.mxu0 0.0
    %5337 = vmatprep.subr.mxu0 0.0
    %5338 = vmatpush1.xpose.msra.mxu0 0.0
    %5339 = vmatprep.subr.mxu0 0.0
    %5340 = vmatpush1.xpose.msra.mxu0 0.0
    %5341 = vmatprep.subr.mxu0 0.0
    %5342 = vmatpush1.xpose.msra.mxu0 0.0
    %5343 = vmatprep.subr.mxu0 0.0
    %5344 = vmatpush1.xpose.msra.mxu0 0.0
    %5345 = vmatprep.subr.mxu0 0.0
    %5346 = vmatpush1.xpose.msra.mxu0 0.0
    %5347 = vmatprep.subr.mxu0 0.0
    %5348 = vmatpush1.xpose.msra.mxu0 0.0
    %5349 = vmatprep.subr.mxu0 0.0
    %5350 = vmatpush1.xpose.msra.mxu0 0.0
    %5351 = vmatprep.subr.mxu0 0.0
    %5352 = vmatpush1.xpose.msra.mxu0 0.0
    %5353 = vmatprep.subr.mxu0 0.0
    %5354 = vmatpush1.xpose.msra.mxu0 0.0
    %5355 = vmatprep.subr.mxu0 0.0
    %5356 = vmatpush1.xpose.msra.mxu0 %v5323
    %5357 = vmatprep.subr.mxu0 0.0
    %5358 = vmatpush2.xpose.msra.mxu0 0.0
    %5359 = vmatprep.subr.mxu0 0.0
    %5360 = vmatpush2.xpose.msra.mxu0 0.0
    %5361 = vmatprep.subr.mxu0 0.0
    %5362 = vmatpush2.xpose.msra.mxu0 0.0
    %5363 = vmatprep.subr.mxu0 0.0
    %5364 = vmatpush2.xpose.msra.mxu0 0.0
    %5365 = vmatprep.subr.mxu0 0.0
    %5366 = vmatpush2.xpose.msra.mxu0 0.0
    %5367 = vmatprep.subr.mxu0 0.0
    %5368 = vmatpush2.xpose.msra.mxu0 0.0
    %5369 = vmatprep.subr.mxu0 0.0
    %5370 = vmatpush2.xpose.msra.mxu0 0.0
    %5371 = vmatprep.subr.mxu0 0.0
    %5372 = vmatpush2.xpose.msra.mxu0 0.0
    %5373 = vmatprep.subr.mxu0 0.0
    %5374 = vmatpush2.xpose.msra.mxu0 0.0
    %5375 = vmatprep.subr.mxu0 0.0
    %5376 = vmatpush2.xpose.msra.mxu0 0.0
    %5377 = vmatprep.subr.mxu0 0.0
    %5378 = vmatpush2.xpose.msra.mxu0 0.0
    %5379 = vmatprep.subr.mxu0 0.0
    %5380 = vmatpush2.xpose.msra.mxu0 0.0
    %5381 = vmatprep.subr.mxu0 0.0
    %5382 = vmatpush2.xpose.msra.mxu0 0.0
    %5383 = vmatprep.subr.mxu0 0.0
    %5384 = vmatpush2.xpose.msra.mxu0 0.0
    %5385 = vmatprep.subr.mxu0 0.0
    %5386 = vmatpush2.xpose.msra.mxu0 0.0
    %5387 = vmatprep.subr.mxu0 0.0
    %5388 = vmatpush2.xpose.msra.mxu0 0.0
    %5389 = vmatprep.mubr.f32.mxu0 0.0
    %5390 = vmatmul.mubr.f32.gmra.mxu0 %v5321
    %v5391 = vpop.f32.mrf.mxu0
    %v5392 = vadd.f32 0.0, %v5391
    %v5393 = vpop.f32.mrf.mxu0
    %5394 = vdwg.mxu0
    %v5395 = vmul.f32 %v5314, 0.17677669
    %v5396 = vmul.f32 %v5392, 0.17677669
    %v5397 = vsel %vm131, %v5395, -inf
    %5398 = vmax.xlane.f32.xlu0 %v5397
    %v5399 = vpop.xlane.xlu0 %5398
    %v5400 = vsel %vm131, %v5396, -inf
    %5401 = vmax.xlane.f32.xlu0 %v5400
    %v5402 = vpop.xlane.xlu0 %5401
    %v5403 = vsub.f32 %v5395, %v5399
    %v5404 = vsub.f32 %v5396, %v5402
    %v5405 = vmul.f32 %v5403, 1.442695
    %v5406 = vpow.pop %v5405
    %v5407 = vmul.f32 %v5404, 1.442695
    %v5408 = vpow.pop %v5407
    %v5409 = vsel %vm131, %v5406, 0.0
    %5410 = vadd.xlane.f32.xlu0 %v5409
    %v5411 = vpop.xlane.xlu0 %5410
    %v5412 = vsel %vm131, %v5408, 0.0
    %5413 = vadd.xlane.f32.xlu0 %v5412
    %v5414 = vpop.xlane.xlu0 %5413
    %v5415 = vrcp.pop %v5411
    %v5416 = vmul.f32 %v5406, %v5415
    %v5417 = vrcp.pop %v5414
    %v5418 = vmul.f32 %v5408, %v5417
    %5419 = vrot.lane.b32.xlu0 %v4901, 88
    %v5420 = vpop.permute.xlu0 %5419
    %v5423 = vsel %vm131, %v5416, 0
    %5425 = vmatprep.subr.mxu0 0.0
    %5426 = vmatpush1.msra.mxu0 0.0
    %5427 = vmatprep.subr.mxu0 0.0
    %5428 = vmatpush1.msra.mxu0 0.0
    %5429 = vmatprep.subr.mxu0 0.0
    %5430 = vmatpush1.msra.mxu0 0.0
    %5431 = vmatprep.subr.mxu0 0.0
    %5432 = vmatpush1.msra.mxu0 0.0
    %5433 = vmatprep.subr.mxu0 0.0
    %5434 = vmatpush1.msra.mxu0 0.0
    %5435 = vmatprep.subr.mxu0 0.0
    %5436 = vmatpush1.msra.mxu0 0.0
    %5437 = vmatprep.subr.mxu0 0.0
    %5438 = vmatpush1.msra.mxu0 0.0
    %5439 = vmatprep.subr.mxu0 0.0
    %5440 = vmatpush1.msra.mxu0 0.0
    %5441 = vmatprep.subr.mxu0 0.0
    %5442 = vmatpush1.msra.mxu0 0.0
    %5443 = vmatprep.subr.mxu0 0.0
    %5444 = vmatpush1.msra.mxu0 0.0
    %5445 = vmatprep.subr.mxu0 0.0
    %5446 = vmatpush1.msra.mxu0 0.0
    %5447 = vmatprep.subr.mxu0 0.0
    %5448 = vmatpush1.msra.mxu0 0.0
    %5449 = vmatprep.subr.mxu0 0.0
    %5450 = vmatpush1.msra.mxu0 0.0
    %5451 = vmatprep.subr.mxu0 0.0
    %5452 = vmatpush1.msra.mxu0 0.0
    %5453 = vmatprep.subr.mxu0 0.0
    %5454 = vmatpush1.msra.mxu0 0.0
    %5455 = vmatprep.subr.mxu0 0.0
    %5456 = vmatpush1.msra.mxu0 %v5420
    %5457 = vmatprep.subr.mxu0 0.0
    %5458 = vmatpush2.msra.mxu0 0.0
    %5459 = vmatprep.subr.mxu0 0.0
    %5460 = vmatpush2.msra.mxu0 0.0
    %5461 = vmatprep.subr.mxu0 0.0
    %5462 = vmatpush2.msra.mxu0 0.0
    %5463 = vmatprep.subr.mxu0 0.0
    %5464 = vmatpush2.msra.mxu0 0.0
    %5465 = vmatprep.subr.mxu0 0.0
    %5466 = vmatpush2.msra.mxu0 0.0
    %5467 = vmatprep.subr.mxu0 0.0
    %5468 = vmatpush2.msra.mxu0 0.0
    %5469 = vmatprep.subr.mxu0 0.0
    %5470 = vmatpush2.msra.mxu0 0.0
    %5471 = vmatprep.subr.mxu0 0.0
    %5472 = vmatpush2.msra.mxu0 0.0
    %5473 = vmatprep.subr.mxu0 0.0
    %5474 = vmatpush2.msra.mxu0 0.0
    %5475 = vmatprep.subr.mxu0 0.0
    %5476 = vmatpush2.msra.mxu0 0.0
    %5477 = vmatprep.subr.mxu0 0.0
    %5478 = vmatpush2.msra.mxu0 0.0
    %5479 = vmatprep.subr.mxu0 0.0
    %5480 = vmatpush2.msra.mxu0 0.0
    %5481 = vmatprep.subr.mxu0 0.0
    %5482 = vmatpush2.msra.mxu0 0.0
    %5483 = vmatprep.subr.mxu0 0.0
    %5484 = vmatpush2.msra.mxu0 0.0
    %5485 = vmatprep.subr.mxu0 0.0
    %5486 = vmatpush2.msra.mxu0 0.0
    %5487 = vmatprep.subr.mxu0 0.0
    %5488 = vmatpush2.msra.mxu0 0.0
    %5489 = vmatprep.mubr.f32.mxu0 0.0
    %5490 = vmatmul.mubr.f32.gmra.mxu0 %v5423
    %v5491 = vpop.f32.mrf.mxu0
    %v5492 = vadd.f32 0.0, %v5491
    %v5493 = vpop.f32.mrf.mxu0
    %5494 = vdwg.mxu0
    %5495 = vrot.lane.b32.xlu0 %v4906, 88
    %v5496 = vpop.permute.xlu0 %5495
    %v5499 = vsel %vm131, %v5418, 0
    %5501 = vmatprep.subr.mxu0 0.0
    %5502 = vmatpush1.msra.mxu0 0.0
    %5503 = vmatprep.subr.mxu0 0.0
    %5504 = vmatpush1.msra.mxu0 0.0
    %5505 = vmatprep.subr.mxu0 0.0
    %5506 = vmatpush1.msra.mxu0 0.0
    %5507 = vmatprep.subr.mxu0 0.0
    %5508 = vmatpush1.msra.mxu0 0.0
    %5509 = vmatprep.subr.mxu0 0.0
    %5510 = vmatpush1.msra.mxu0 0.0
    %5511 = vmatprep.subr.mxu0 0.0
    %5512 = vmatpush1.msra.mxu0 0.0
    %5513 = vmatprep.subr.mxu0 0.0
    %5514 = vmatpush1.msra.mxu0 0.0
    %5515 = vmatprep.subr.mxu0 0.0
    %5516 = vmatpush1.msra.mxu0 0.0
    %5517 = vmatprep.subr.mxu0 0.0
    %5518 = vmatpush1.msra.mxu0 0.0
    %5519 = vmatprep.subr.mxu0 0.0
    %5520 = vmatpush1.msra.mxu0 0.0
    %5521 = vmatprep.subr.mxu0 0.0
    %5522 = vmatpush1.msra.mxu0 0.0
    %5523 = vmatprep.subr.mxu0 0.0
    %5524 = vmatpush1.msra.mxu0 0.0
    %5525 = vmatprep.subr.mxu0 0.0
    %5526 = vmatpush1.msra.mxu0 0.0
    %5527 = vmatprep.subr.mxu0 0.0
    %5528 = vmatpush1.msra.mxu0 0.0
    %5529 = vmatprep.subr.mxu0 0.0
    %5530 = vmatpush1.msra.mxu0 0.0
    %5531 = vmatprep.subr.mxu0 0.0
    %5532 = vmatpush1.msra.mxu0 %v5496
    %5533 = vmatprep.subr.mxu0 0.0
    %5534 = vmatpush2.msra.mxu0 0.0
    %5535 = vmatprep.subr.mxu0 0.0
    %5536 = vmatpush2.msra.mxu0 0.0
    %5537 = vmatprep.subr.mxu0 0.0
    %5538 = vmatpush2.msra.mxu0 0.0
    %5539 = vmatprep.subr.mxu0 0.0
    %5540 = vmatpush2.msra.mxu0 0.0
    %5541 = vmatprep.subr.mxu0 0.0
    %5542 = vmatpush2.msra.mxu0 0.0
    %5543 = vmatprep.subr.mxu0 0.0
    %5544 = vmatpush2.msra.mxu0 0.0
    %5545 = vmatprep.subr.mxu0 0.0
    %5546 = vmatpush2.msra.mxu0 0.0
    %5547 = vmatprep.subr.mxu0 0.0
    %5548 = vmatpush2.msra.mxu0 0.0
    %5549 = vmatprep.subr.mxu0 0.0
    %5550 = vmatpush2.msra.mxu0 0.0
    %5551 = vmatprep.subr.mxu0 0.0
    %5552 = vmatpush2.msra.mxu0 0.0
    %5553 = vmatprep.subr.mxu0 0.0
    %5554 = vmatpush2.msra.mxu0 0.0
    %5555 = vmatprep.subr.mxu0 0.0
    %5556 = vmatpush2.msra.mxu0 0.0
    %5557 = vmatprep.subr.mxu0 0.0
    %5558 = vmatpush2.msra.mxu0 0.0
    %5559 = vmatprep.subr.mxu0 0.0
    %5560 = vmatpush2.msra.mxu0 0.0
    %5561 = vmatprep.subr.mxu0 0.0
    %5562 = vmatpush2.msra.mxu0 0.0
    %5563 = vmatprep.subr.mxu0 0.0
    %5564 = vmatpush2.msra.mxu0 0.0
    %5565 = vmatprep.mubr.f32.mxu0 0.0
    %5566 = vmatmul.mubr.f32.gmra.mxu0 %v5499
    %v5567 = vpop.f32.mrf.mxu0
    %v5568 = vadd.f32 0.0, %v5567
    %v5569 = vpop.f32.mrf.mxu0
    %5570 = vdwg.mxu0
    %5573 = vrot.lane.b32.xlu0 %v5492, 8
    %v5574 = vpop.permute.xlu0 %5573
    %5575 = vrot.lane.b32.xlu0 %v5568, 8
    %v5576 = vpop.permute.xlu0 %5575
    %v5579 = vadd.f32 %v4811, %v5574
    %v5580 = vadd.f32 %v4816, %v5576
    %5581 = vrot.lane.b32.xlu0 %v4811, 112
    %v5582 = vpop.permute.xlu0 %5581
    %5583 = vrot.lane.b32.xlu0 %v4901, 112
    %v5584 = vpop.permute.xlu0 %5583
    %v5585 = vsel %vm131, %v5582, 0
    %v5587 = vsel %vm131, %v5584, 0
    %5589 = vmatprep.subr.mxu0 0.0
    %5590 = vmatpush1.xpose.msra.mxu0 0.0
    %5591 = vmatprep.subr.mxu0 0.0
    %5592 = vmatpush1.xpose.msra.mxu0 0.0
    %5593 = vmatprep.subr.mxu0 0.0
    %5594 = vmatpush1.xpose.msra.mxu0 0.0
    %5595 = vmatprep.subr.mxu0 0.0
    %5596 = vmatpush1.xpose.msra.mxu0 0.0
    %5597 = vmatprep.subr.mxu0 0.0
    %5598 = vmatpush1.xpose.msra.mxu0 0.0
    %5599 = vmatprep.subr.mxu0 0.0
    %5600 = vmatpush1.xpose.msra.mxu0 0.0
    %5601 = vmatprep.subr.mxu0 0.0
    %5602 = vmatpush1.xpose.msra.mxu0 0.0
    %5603 = vmatprep.subr.mxu0 0.0
    %5604 = vmatpush1.xpose.msra.mxu0 0.0
    %5605 = vmatprep.subr.mxu0 0.0
    %5606 = vmatpush1.xpose.msra.mxu0 0.0
    %5607 = vmatprep.subr.mxu0 0.0
    %5608 = vmatpush1.xpose.msra.mxu0 0.0
    %5609 = vmatprep.subr.mxu0 0.0
    %5610 = vmatpush1.xpose.msra.mxu0 0.0
    %5611 = vmatprep.subr.mxu0 0.0
    %5612 = vmatpush1.xpose.msra.mxu0 0.0
    %5613 = vmatprep.subr.mxu0 0.0
    %5614 = vmatpush1.xpose.msra.mxu0 0.0
    %5615 = vmatprep.subr.mxu0 0.0
    %5616 = vmatpush1.xpose.msra.mxu0 0.0
    %5617 = vmatprep.subr.mxu0 0.0
    %5618 = vmatpush1.xpose.msra.mxu0 0.0
    %5619 = vmatprep.subr.mxu0 0.0
    %5620 = vmatpush1.xpose.msra.mxu0 %v5587
    %5621 = vmatprep.subr.mxu0 0.0
    %5622 = vmatpush2.xpose.msra.mxu0 0.0
    %5623 = vmatprep.subr.mxu0 0.0
    %5624 = vmatpush2.xpose.msra.mxu0 0.0
    %5625 = vmatprep.subr.mxu0 0.0
    %5626 = vmatpush2.xpose.msra.mxu0 0.0
    %5627 = vmatprep.subr.mxu0 0.0
    %5628 = vmatpush2.xpose.msra.mxu0 0.0
    %5629 = vmatprep.subr.mxu0 0.0
    %5630 = vmatpush2.xpose.msra.mxu0 0.0
    %5631 = vmatprep.subr.mxu0 0.0
    %5632 = vmatpush2.xpose.msra.mxu0 0.0
    %5633 = vmatprep.subr.mxu0 0.0
    %5634 = vmatpush2.xpose.msra.mxu0 0.0
    %5635 = vmatprep.subr.mxu0 0.0
    %5636 = vmatpush2.xpose.msra.mxu0 0.0
    %5637 = vmatprep.subr.mxu0 0.0
    %5638 = vmatpush2.xpose.msra.mxu0 0.0
    %5639 = vmatprep.subr.mxu0 0.0
    %5640 = vmatpush2.xpose.msra.mxu0 0.0
    %5641 = vmatprep.subr.mxu0 0.0
    %5642 = vmatpush2.xpose.msra.mxu0 0.0
    %5643 = vmatprep.subr.mxu0 0.0
    %5644 = vmatpush2.xpose.msra.mxu0 0.0
    %5645 = vmatprep.subr.mxu0 0.0
    %5646 = vmatpush2.xpose.msra.mxu0 0.0
    %5647 = vmatprep.subr.mxu0 0.0
    %5648 = vmatpush2.xpose.msra.mxu0 0.0
    %5649 = vmatprep.subr.mxu0 0.0
    %5650 = vmatpush2.xpose.msra.mxu0 0.0
    %5651 = vmatprep.subr.mxu0 0.0
    %5652 = vmatpush2.xpose.msra.mxu0 0.0
    %5653 = vmatprep.mubr.f32.mxu0 0.0
    %5654 = vmatmul.mubr.f32.gmra.mxu0 %v5585
    %v5655 = vpop.f32.mrf.mxu0
    %v5656 = vadd.f32 0.0, %v5655
    %v5657 = vpop.f32.mrf.mxu0
    %5658 = vdwg.mxu0
    %5659 = vrot.lane.b32.xlu0 %v4816, 112
    %v5660 = vpop.permute.xlu0 %5659
    %5661 = vrot.lane.b32.xlu0 %v4906, 112
    %v5662 = vpop.permute.xlu0 %5661
    %v5663 = vsel %vm131, %v5660, 0
    %v5665 = vsel %vm131, %v5662, 0
    %5667 = vmatprep.subr.mxu0 0.0
    %5668 = vmatpush1.xpose.msra.mxu0 0.0
    %5669 = vmatprep.subr.mxu0 0.0
    %5670 = vmatpush1.xpose.msra.mxu0 0.0
    %5671 = vmatprep.subr.mxu0 0.0
    %5672 = vmatpush1.xpose.msra.mxu0 0.0
    %5673 = vmatprep.subr.mxu0 0.0
    %5674 = vmatpush1.xpose.msra.mxu0 0.0
    %5675 = vmatprep.subr.mxu0 0.0
    %5676 = vmatpush1.xpose.msra.mxu0 0.0
    %5677 = vmatprep.subr.mxu0 0.0
    %5678 = vmatpush1.xpose.msra.mxu0 0.0
    %5679 = vmatprep.subr.mxu0 0.0
    %5680 = vmatpush1.xpose.msra.mxu0 0.0
    %5681 = vmatprep.subr.mxu0 0.0
    %5682 = vmatpush1.xpose.msra.mxu0 0.0
    %5683 = vmatprep.subr.mxu0 0.0
    %5684 = vmatpush1.xpose.msra.mxu0 0.0
    %5685 = vmatprep.subr.mxu0 0.0
    %5686 = vmatpush1.xpose.msra.mxu0 0.0
    %5687 = vmatprep.subr.mxu0 0.0
    %5688 = vmatpush1.xpose.msra.mxu0 0.0
    %5689 = vmatprep.subr.mxu0 0.0
    %5690 = vmatpush1.xpose.msra.mxu0 0.0
    %5691 = vmatprep.subr.mxu0 0.0
    %5692 = vmatpush1.xpose.msra.mxu0 0.0
    %5693 = vmatprep.subr.mxu0 0.0
    %5694 = vmatpush1.xpose.msra.mxu0 0.0
    %5695 = vmatprep.subr.mxu0 0.0
    %5696 = vmatpush1.xpose.msra.mxu0 0.0
    %5697 = vmatprep.subr.mxu0 0.0
    %5698 = vmatpush1.xpose.msra.mxu0 %v5665
    %5699 = vmatprep.subr.mxu0 0.0
    %5700 = vmatpush2.xpose.msra.mxu0 0.0
    %5701 = vmatprep.subr.mxu0 0.0
    %5702 = vmatpush2.xpose.msra.mxu0 0.0
    %5703 = vmatprep.subr.mxu0 0.0
    %5704 = vmatpush2.xpose.msra.mxu0 0.0
    %5705 = vmatprep.subr.mxu0 0.0
    %5706 = vmatpush2.xpose.msra.mxu0 0.0
    %5707 = vmatprep.subr.mxu0 0.0
    %5708 = vmatpush2.xpose.msra.mxu0 0.0
    %5709 = vmatprep.subr.mxu0 0.0
    %5710 = vmatpush2.xpose.msra.mxu0 0.0
    %5711 = vmatprep.subr.mxu0 0.0
    %5712 = vmatpush2.xpose.msra.mxu0 0.0
    %5713 = vmatprep.subr.mxu0 0.0
    %5714 = vmatpush2.xpose.msra.mxu0 0.0
    %5715 = vmatprep.subr.mxu0 0.0
    %5716 = vmatpush2.xpose.msra.mxu0 0.0
    %5717 = vmatprep.subr.mxu0 0.0
    %5718 = vmatpush2.xpose.msra.mxu0 0.0
    %5719 = vmatprep.subr.mxu0 0.0
    %5720 = vmatpush2.xpose.msra.mxu0 0.0
    %5721 = vmatprep.subr.mxu0 0.0
    %5722 = vmatpush2.xpose.msra.mxu0 0.0
    %5723 = vmatprep.subr.mxu0 0.0
    %5724 = vmatpush2.xpose.msra.mxu0 0.0
    %5725 = vmatprep.subr.mxu0 0.0
    %5726 = vmatpush2.xpose.msra.mxu0 0.0
    %5727 = vmatprep.subr.mxu0 0.0
    %5728 = vmatpush2.xpose.msra.mxu0 0.0
    %5729 = vmatprep.subr.mxu0 0.0
    %5730 = vmatpush2.xpose.msra.mxu0 0.0
    %5731 = vmatprep.mubr.f32.mxu0 0.0
    %5732 = vmatmul.mubr.f32.gmra.mxu0 %v5663
    %v5733 = vpop.f32.mrf.mxu0
    %v5734 = vadd.f32 0.0, %v5733
    %v5735 = vpop.f32.mrf.mxu0
    %5736 = vdwg.mxu0
    %v5737 = vmul.f32 %v5656, 0.17677669
    %v5738 = vmul.f32 %v5734, 0.17677669
    %v5739 = vsel %vm131, %v5737, -inf
    %5740 = vmax.xlane.f32.xlu0 %v5739
    %v5741 = vpop.xlane.xlu0 %5740
    %v5742 = vsel %vm131, %v5738, -inf
    %5743 = vmax.xlane.f32.xlu0 %v5742
    %v5744 = vpop.xlane.xlu0 %5743
    %v5745 = vsub.f32 %v5737, %v5741
    %v5746 = vsub.f32 %v5738, %v5744
    %v5747 = vmul.f32 %v5745, 1.442695
    %v5748 = vpow.pop %v5747
    %v5749 = vmul.f32 %v5746, 1.442695
    %v5750 = vpow.pop %v5749
    %v5751 = vsel %vm131, %v5748, 0.0
    %5752 = vadd.xlane.f32.xlu0 %v5751
    %v5753 = vpop.xlane.xlu0 %5752
    %v5754 = vsel %vm131, %v5750, 0.0
    %5755 = vadd.xlane.f32.xlu0 %v5754
    %v5756 = vpop.xlane.xlu0 %5755
    %v5757 = vrcp.pop %v5753
    %v5758 = vmul.f32 %v5748, %v5757
    %v5759 = vrcp.pop %v5756
    %v5760 = vmul.f32 %v5750, %v5759
    %5761 = vrot.lane.b32.xlu0 %v4901, 80
    %v5762 = vpop.permute.xlu0 %5761
    %v5765 = vsel %vm131, %v5758, 0
    %5767 = vmatprep.subr.mxu0 0.0
    %5768 = vmatpush1.msra.mxu0 0.0
    %5769 = vmatprep.subr.mxu0 0.0
    %5770 = vmatpush1.msra.mxu0 0.0
    %5771 = vmatprep.subr.mxu0 0.0
    %5772 = vmatpush1.msra.mxu0 0.0
    %5773 = vmatprep.subr.mxu0 0.0
    %5774 = vmatpush1.msra.mxu0 0.0
    %5775 = vmatprep.subr.mxu0 0.0
    %5776 = vmatpush1.msra.mxu0 0.0
    %5777 = vmatprep.subr.mxu0 0.0
    %5778 = vmatpush1.msra.mxu0 0.0
    %5779 = vmatprep.subr.mxu0 0.0
    %5780 = vmatpush1.msra.mxu0 0.0
    %5781 = vmatprep.subr.mxu0 0.0
    %5782 = vmatpush1.msra.mxu0 0.0
    %5783 = vmatprep.subr.mxu0 0.0
    %5784 = vmatpush1.msra.mxu0 0.0
    %5785 = vmatprep.subr.mxu0 0.0
    %5786 = vmatpush1.msra.mxu0 0.0
    %5787 = vmatprep.subr.mxu0 0.0
    %5788 = vmatpush1.msra.mxu0 0.0
    %5789 = vmatprep.subr.mxu0 0.0
    %5790 = vmatpush1.msra.mxu0 0.0
    %5791 = vmatprep.subr.mxu0 0.0
    %5792 = vmatpush1.msra.mxu0 0.0
    %5793 = vmatprep.subr.mxu0 0.0
    %5794 = vmatpush1.msra.mxu0 0.0
    %5795 = vmatprep.subr.mxu0 0.0
    %5796 = vmatpush1.msra.mxu0 0.0
    %5797 = vmatprep.subr.mxu0 0.0
    %5798 = vmatpush1.msra.mxu0 %v5762
    %5799 = vmatprep.subr.mxu0 0.0
    %5800 = vmatpush2.msra.mxu0 0.0
    %5801 = vmatprep.subr.mxu0 0.0
    %5802 = vmatpush2.msra.mxu0 0.0
    %5803 = vmatprep.subr.mxu0 0.0
    %5804 = vmatpush2.msra.mxu0 0.0
    %5805 = vmatprep.subr.mxu0 0.0
    %5806 = vmatpush2.msra.mxu0 0.0
    %5807 = vmatprep.subr.mxu0 0.0
    %5808 = vmatpush2.msra.mxu0 0.0
    %5809 = vmatprep.subr.mxu0 0.0
    %5810 = vmatpush2.msra.mxu0 0.0
    %5811 = vmatprep.subr.mxu0 0.0
    %5812 = vmatpush2.msra.mxu0 0.0
    %5813 = vmatprep.subr.mxu0 0.0
    %5814 = vmatpush2.msra.mxu0 0.0
    %5815 = vmatprep.subr.mxu0 0.0
    %5816 = vmatpush2.msra.mxu0 0.0
    %5817 = vmatprep.subr.mxu0 0.0
    %5818 = vmatpush2.msra.mxu0 0.0
    %5819 = vmatprep.subr.mxu0 0.0
    %5820 = vmatpush2.msra.mxu0 0.0
    %5821 = vmatprep.subr.mxu0 0.0
    %5822 = vmatpush2.msra.mxu0 0.0
    %5823 = vmatprep.subr.mxu0 0.0
    %5824 = vmatpush2.msra.mxu0 0.0
    %5825 = vmatprep.subr.mxu0 0.0
    %5826 = vmatpush2.msra.mxu0 0.0
    %5827 = vmatprep.subr.mxu0 0.0
    %5828 = vmatpush2.msra.mxu0 0.0
    %5829 = vmatprep.subr.mxu0 0.0
    %5830 = vmatpush2.msra.mxu0 0.0
    %5831 = vmatprep.mubr.f32.mxu0 0.0
    %5832 = vmatmul.mubr.f32.gmra.mxu0 %v5765
    %v5833 = vpop.f32.mrf.mxu0
    %v5834 = vadd.f32 0.0, %v5833
    %v5835 = vpop.f32.mrf.mxu0
    %5836 = vdwg.mxu0
    %5837 = vrot.lane.b32.xlu0 %v4906, 80
    %v5838 = vpop.permute.xlu0 %5837
    %v5841 = vsel %vm131, %v5760, 0
    %5843 = vmatprep.subr.mxu0 0.0
    %5844 = vmatpush1.msra.mxu0 0.0
    %5845 = vmatprep.subr.mxu0 0.0
    %5846 = vmatpush1.msra.mxu0 0.0
    %5847 = vmatprep.subr.mxu0 0.0
    %5848 = vmatpush1.msra.mxu0 0.0
    %5849 = vmatprep.subr.mxu0 0.0
    %5850 = vmatpush1.msra.mxu0 0.0
    %5851 = vmatprep.subr.mxu0 0.0
    %5852 = vmatpush1.msra.mxu0 0.0
    %5853 = vmatprep.subr.mxu0 0.0
    %5854 = vmatpush1.msra.mxu0 0.0
    %5855 = vmatprep.subr.mxu0 0.0
    %5856 = vmatpush1.msra.mxu0 0.0
    %5857 = vmatprep.subr.mxu0 0.0
    %5858 = vmatpush1.msra.mxu0 0.0
    %5859 = vmatprep.subr.mxu0 0.0
    %5860 = vmatpush1.msra.mxu0 0.0
    %5861 = vmatprep.subr.mxu0 0.0
    %5862 = vmatpush1.msra.mxu0 0.0
    %5863 = vmatprep.subr.mxu0 0.0
    %5864 = vmatpush1.msra.mxu0 0.0
    %5865 = vmatprep.subr.mxu0 0.0
    %5866 = vmatpush1.msra.mxu0 0.0
    %5867 = vmatprep.subr.mxu0 0.0
    %5868 = vmatpush1.msra.mxu0 0.0
    %5869 = vmatprep.subr.mxu0 0.0
    %5870 = vmatpush1.msra.mxu0 0.0
    %5871 = vmatprep.subr.mxu0 0.0
    %5872 = vmatpush1.msra.mxu0 0.0
    %5873 = vmatprep.subr.mxu0 0.0
    %5874 = vmatpush1.msra.mxu0 %v5838
    %5875 = vmatprep.subr.mxu0 0.0
    %5876 = vmatpush2.msra.mxu0 0.0
    %5877 = vmatprep.subr.mxu0 0.0
    %5878 = vmatpush2.msra.mxu0 0.0
    %5879 = vmatprep.subr.mxu0 0.0
    %5880 = vmatpush2.msra.mxu0 0.0
    %5881 = vmatprep.subr.mxu0 0.0
    %5882 = vmatpush2.msra.mxu0 0.0
    %5883 = vmatprep.subr.mxu0 0.0
    %5884 = vmatpush2.msra.mxu0 0.0
    %5885 = vmatprep.subr.mxu0 0.0
    %5886 = vmatpush2.msra.mxu0 0.0
    %5887 = vmatprep.subr.mxu0 0.0
    %5888 = vmatpush2.msra.mxu0 0.0
    %5889 = vmatprep.subr.mxu0 0.0
    %5890 = vmatpush2.msra.mxu0 0.0
    %5891 = vmatprep.subr.mxu0 0.0
    %5892 = vmatpush2.msra.mxu0 0.0
    %5893 = vmatprep.subr.mxu0 0.0
    %5894 = vmatpush2.msra.mxu0 0.0
    %5895 = vmatprep.subr.mxu0 0.0
    %5896 = vmatpush2.msra.mxu0 0.0
    %5897 = vmatprep.subr.mxu0 0.0
    %5898 = vmatpush2.msra.mxu0 0.0
    %5899 = vmatprep.subr.mxu0 0.0
    %5900 = vmatpush2.msra.mxu0 0.0
    %5901 = vmatprep.subr.mxu0 0.0
    %5902 = vmatpush2.msra.mxu0 0.0
    %5903 = vmatprep.subr.mxu0 0.0
    %5904 = vmatpush2.msra.mxu0 0.0
    %5905 = vmatprep.subr.mxu0 0.0
    %5906 = vmatpush2.msra.mxu0 0.0
    %5907 = vmatprep.mubr.f32.mxu0 0.0
    %5908 = vmatmul.mubr.f32.gmra.mxu0 %v5841
    %v5909 = vpop.f32.mrf.mxu0
    %v5910 = vadd.f32 0.0, %v5909
    %v5911 = vpop.f32.mrf.mxu0
    %5912 = vdwg.mxu0
    %5915 = vrot.lane.b32.xlu0 %v5834, 16
    %v5916 = vpop.permute.xlu0 %5915
    %5917 = vrot.lane.b32.xlu0 %v5910, 16
    %v5918 = vpop.permute.xlu0 %5917
    %v5921 = vadd.f32 %v4811, %v5916
    %v5922 = vadd.f32 %v4816, %v5918
    %5923 = vrot.lane.b32.xlu0 %v4811, 104
    %v5924 = vpop.permute.xlu0 %5923
    %5925 = vrot.lane.b32.xlu0 %v4901, 104
    %v5926 = vpop.permute.xlu0 %5925
    %v5927 = vsel %vm131, %v5924, 0
    %v5929 = vsel %vm131, %v5926, 0
    %5931 = vmatprep.subr.mxu0 0.0
    %5932 = vmatpush1.xpose.msra.mxu0 0.0
    %5933 = vmatprep.subr.mxu0 0.0
    %5934 = vmatpush1.xpose.msra.mxu0 0.0
    %5935 = vmatprep.subr.mxu0 0.0
    %5936 = vmatpush1.xpose.msra.mxu0 0.0
    %5937 = vmatprep.subr.mxu0 0.0
    %5938 = vmatpush1.xpose.msra.mxu0 0.0
    %5939 = vmatprep.subr.mxu0 0.0
    %5940 = vmatpush1.xpose.msra.mxu0 0.0
    %5941 = vmatprep.subr.mxu0 0.0
    %5942 = vmatpush1.xpose.msra.mxu0 0.0
    %5943 = vmatprep.subr.mxu0 0.0
    %5944 = vmatpush1.xpose.msra.mxu0 0.0
    %5945 = vmatprep.subr.mxu0 0.0
    %5946 = vmatpush1.xpose.msra.mxu0 0.0
    %5947 = vmatprep.subr.mxu0 0.0
    %5948 = vmatpush1.xpose.msra.mxu0 0.0
    %5949 = vmatprep.subr.mxu0 0.0
    %5950 = vmatpush1.xpose.msra.mxu0 0.0
    %5951 = vmatprep.subr.mxu0 0.0
    %5952 = vmatpush1.xpose.msra.mxu0 0.0
    %5953 = vmatprep.subr.mxu0 0.0
    %5954 = vmatpush1.xpose.msra.mxu0 0.0
    %5955 = vmatprep.subr.mxu0 0.0
    %5956 = vmatpush1.xpose.msra.mxu0 0.0
    %5957 = vmatprep.subr.mxu0 0.0
    %5958 = vmatpush1.xpose.msra.mxu0 0.0
    %5959 = vmatprep.subr.mxu0 0.0
    %5960 = vmatpush1.xpose.msra.mxu0 0.0
    %5961 = vmatprep.subr.mxu0 0.0
    %5962 = vmatpush1.xpose.msra.mxu0 %v5929
    %5963 = vmatprep.subr.mxu0 0.0
    %5964 = vmatpush2.xpose.msra.mxu0 0.0
    %5965 = vmatprep.subr.mxu0 0.0
    %5966 = vmatpush2.xpose.msra.mxu0 0.0
    %5967 = vmatprep.subr.mxu0 0.0
    %5968 = vmatpush2.xpose.msra.mxu0 0.0
    %5969 = vmatprep.subr.mxu0 0.0
    %5970 = vmatpush2.xpose.msra.mxu0 0.0
    %5971 = vmatprep.subr.mxu0 0.0
    %5972 = vmatpush2.xpose.msra.mxu0 0.0
    %5973 = vmatprep.subr.mxu0 0.0
    %5974 = vmatpush2.xpose.msra.mxu0 0.0
    %5975 = vmatprep.subr.mxu0 0.0
    %5976 = vmatpush2.xpose.msra.mxu0 0.0
    %5977 = vmatprep.subr.mxu0 0.0
    %5978 = vmatpush2.xpose.msra.mxu0 0.0
    %5979 = vmatprep.subr.mxu0 0.0
    %5980 = vmatpush2.xpose.msra.mxu0 0.0
    %5981 = vmatprep.subr.mxu0 0.0
    %5982 = vmatpush2.xpose.msra.mxu0 0.0
    %5983 = vmatprep.subr.mxu0 0.0
    %5984 = vmatpush2.xpose.msra.mxu0 0.0
    %5985 = vmatprep.subr.mxu0 0.0
    %5986 = vmatpush2.xpose.msra.mxu0 0.0
    %5987 = vmatprep.subr.mxu0 0.0
    %5988 = vmatpush2.xpose.msra.mxu0 0.0
    %5989 = vmatprep.subr.mxu0 0.0
    %5990 = vmatpush2.xpose.msra.mxu0 0.0
    %5991 = vmatprep.subr.mxu0 0.0
    %5992 = vmatpush2.xpose.msra.mxu0 0.0
    %5993 = vmatprep.subr.mxu0 0.0
    %5994 = vmatpush2.xpose.msra.mxu0 0.0
    %5995 = vmatprep.mubr.f32.mxu0 0.0
    %5996 = vmatmul.mubr.f32.gmra.mxu0 %v5927
    %v5997 = vpop.f32.mrf.mxu0
    %v5998 = vadd.f32 0.0, %v5997
    %v5999 = vpop.f32.mrf.mxu0
    %6000 = vdwg.mxu0
    %6001 = vrot.lane.b32.xlu0 %v4816, 104
    %v6002 = vpop.permute.xlu0 %6001
    %6003 = vrot.lane.b32.xlu0 %v4906, 104
    %v6004 = vpop.permute.xlu0 %6003
    %v6005 = vsel %vm131, %v6002, 0
    %v6007 = vsel %vm131, %v6004, 0
    %6009 = vmatprep.subr.mxu0 0.0
    %6010 = vmatpush1.xpose.msra.mxu0 0.0
    %6011 = vmatprep.subr.mxu0 0.0
    %6012 = vmatpush1.xpose.msra.mxu0 0.0
    %6013 = vmatprep.subr.mxu0 0.0
    %6014 = vmatpush1.xpose.msra.mxu0 0.0
    %6015 = vmatprep.subr.mxu0 0.0
    %6016 = vmatpush1.xpose.msra.mxu0 0.0
    %6017 = vmatprep.subr.mxu0 0.0
    %6018 = vmatpush1.xpose.msra.mxu0 0.0
    %6019 = vmatprep.subr.mxu0 0.0
    %6020 = vmatpush1.xpose.msra.mxu0 0.0
    %6021 = vmatprep.subr.mxu0 0.0
    %6022 = vmatpush1.xpose.msra.mxu0 0.0
    %6023 = vmatprep.subr.mxu0 0.0
    %6024 = vmatpush1.xpose.msra.mxu0 0.0
    %6025 = vmatprep.subr.mxu0 0.0
    %6026 = vmatpush1.xpose.msra.mxu0 0.0
    %6027 = vmatprep.subr.mxu0 0.0
    %6028 = vmatpush1.xpose.msra.mxu0 0.0
    %6029 = vmatprep.subr.mxu0 0.0
    %6030 = vmatpush1.xpose.msra.mxu0 0.0
    %6031 = vmatprep.subr.mxu0 0.0
    %6032 = vmatpush1.xpose.msra.mxu0 0.0
    %6033 = vmatprep.subr.mxu0 0.0
    %6034 = vmatpush1.xpose.msra.mxu0 0.0
    %6035 = vmatprep.subr.mxu0 0.0
    %6036 = vmatpush1.xpose.msra.mxu0 0.0
    %6037 = vmatprep.subr.mxu0 0.0
    %6038 = vmatpush1.xpose.msra.mxu0 0.0
    %6039 = vmatprep.subr.mxu0 0.0
    %6040 = vmatpush1.xpose.msra.mxu0 %v6007
    %6041 = vmatprep.subr.mxu0 0.0
    %6042 = vmatpush2.xpose.msra.mxu0 0.0
    %6043 = vmatprep.subr.mxu0 0.0
    %6044 = vmatpush2.xpose.msra.mxu0 0.0
    %6045 = vmatprep.subr.mxu0 0.0
    %6046 = vmatpush2.xpose.msra.mxu0 0.0
    %6047 = vmatprep.subr.mxu0 0.0
    %6048 = vmatpush2.xpose.msra.mxu0 0.0
    %6049 = vmatprep.subr.mxu0 0.0
    %6050 = vmatpush2.xpose.msra.mxu0 0.0
    %6051 = vmatprep.subr.mxu0 0.0
    %6052 = vmatpush2.xpose.msra.mxu0 0.0
    %6053 = vmatprep.subr.mxu0 0.0
    %6054 = vmatpush2.xpose.msra.mxu0 0.0
    %6055 = vmatprep.subr.mxu0 0.0
    %6056 = vmatpush2.xpose.msra.mxu0 0.0
    %6057 = vmatprep.subr.mxu0 0.0
    %6058 = vmatpush2.xpose.msra.mxu0 0.0
    %6059 = vmatprep.subr.mxu0 0.0
    %6060 = vmatpush2.xpose.msra.mxu0 0.0
    %6061 = vmatprep.subr.mxu0 0.0
    %6062 = vmatpush2.xpose.msra.mxu0 0.0
    %6063 = vmatprep.subr.mxu0 0.0
    %6064 = vmatpush2.xpose.msra.mxu0 0.0
    %6065 = vmatprep.subr.mxu0 0.0
    %6066 = vmatpush2.xpose.msra.mxu0 0.0
    %6067 = vmatprep.subr.mxu0 0.0
    %6068 = vmatpush2.xpose.msra.mxu0 0.0
    %6069 = vmatprep.subr.mxu0 0.0
    %6070 = vmatpush2.xpose.msra.mxu0 0.0
    %6071 = vmatprep.subr.mxu0 0.0
    %6072 = vmatpush2.xpose.msra.mxu0 0.0
    %6073 = vmatprep.mubr.f32.mxu0 0.0
    %6074 = vmatmul.mubr.f32.gmra.mxu0 %v6005
    %v6075 = vpop.f32.mrf.mxu0
    %v6076 = vadd.f32 0.0, %v6075
    %v6077 = vpop.f32.mrf.mxu0
    %6078 = vdwg.mxu0
    %v6079 = vmul.f32 %v5998, 0.17677669
    %v6080 = vmul.f32 %v6076, 0.17677669
    %v6081 = vsel %vm131, %v6079, -inf
    %6082 = vmax.xlane.f32.xlu0 %v6081
    %v6083 = vpop.xlane.xlu0 %6082
    %v6084 = vsel %vm131, %v6080, -inf
    %6085 = vmax.xlane.f32.xlu0 %v6084
    %v6086 = vpop.xlane.xlu0 %6085
    %v6087 = vsub.f32 %v6079, %v6083
    %v6088 = vsub.f32 %v6080, %v6086
    %v6089 = vmul.f32 %v6087, 1.442695
    %v6090 = vpow.pop %v6089
    %v6091 = vmul.f32 %v6088, 1.442695
    %v6092 = vpow.pop %v6091
    %v6093 = vsel %vm131, %v6090, 0.0
    %6094 = vadd.xlane.f32.xlu0 %v6093
    %v6095 = vpop.xlane.xlu0 %6094
    %v6096 = vsel %vm131, %v6092, 0.0
    %6097 = vadd.xlane.f32.xlu0 %v6096
    %v6098 = vpop.xlane.xlu0 %6097
    %v6099 = vrcp.pop %v6095
    %v6100 = vmul.f32 %v6090, %v6099
    %v6101 = vrcp.pop %v6098
    %v6102 = vmul.f32 %v6092, %v6101
    %6103 = vrot.lane.b32.xlu0 %v4901, 72
    %v6104 = vpop.permute.xlu0 %6103
    %v6107 = vsel %vm131, %v6100, 0
    %6109 = vmatprep.subr.mxu0 0.0
    %6110 = vmatpush1.msra.mxu0 0.0
    %6111 = vmatprep.subr.mxu0 0.0
    %6112 = vmatpush1.msra.mxu0 0.0
    %6113 = vmatprep.subr.mxu0 0.0
    %6114 = vmatpush1.msra.mxu0 0.0
    %6115 = vmatprep.subr.mxu0 0.0
    %6116 = vmatpush1.msra.mxu0 0.0
    %6117 = vmatprep.subr.mxu0 0.0
    %6118 = vmatpush1.msra.mxu0 0.0
    %6119 = vmatprep.subr.mxu0 0.0
    %6120 = vmatpush1.msra.mxu0 0.0
    %6121 = vmatprep.subr.mxu0 0.0
    %6122 = vmatpush1.msra.mxu0 0.0
    %6123 = vmatprep.subr.mxu0 0.0
    %6124 = vmatpush1.msra.mxu0 0.0
    %6125 = vmatprep.subr.mxu0 0.0
    %6126 = vmatpush1.msra.mxu0 0.0
    %6127 = vmatprep.subr.mxu0 0.0
    %6128 = vmatpush1.msra.mxu0 0.0
    %6129 = vmatprep.subr.mxu0 0.0
    %6130 = vmatpush1.msra.mxu0 0.0
    %6131 = vmatprep.subr.mxu0 0.0
    %6132 = vmatpush1.msra.mxu0 0.0
    %6133 = vmatprep.subr.mxu0 0.0
    %6134 = vmatpush1.msra.mxu0 0.0
    %6135 = vmatprep.subr.mxu0 0.0
    %6136 = vmatpush1.msra.mxu0 0.0
    %6137 = vmatprep.subr.mxu0 0.0
    %6138 = vmatpush1.msra.mxu0 0.0
    %6139 = vmatprep.subr.mxu0 0.0
    %6140 = vmatpush1.msra.mxu0 %v6104
    %6141 = vmatprep.subr.mxu0 0.0
    %6142 = vmatpush2.msra.mxu0 0.0
    %6143 = vmatprep.subr.mxu0 0.0
    %6144 = vmatpush2.msra.mxu0 0.0
    %6145 = vmatprep.subr.mxu0 0.0
    %6146 = vmatpush2.msra.mxu0 0.0
    %6147 = vmatprep.subr.mxu0 0.0
    %6148 = vmatpush2.msra.mxu0 0.0
    %6149 = vmatprep.subr.mxu0 0.0
    %6150 = vmatpush2.msra.mxu0 0.0
    %6151 = vmatprep.subr.mxu0 0.0
    %6152 = vmatpush2.msra.mxu0 0.0
    %6153 = vmatprep.subr.mxu0 0.0
    %6154 = vmatpush2.msra.mxu0 0.0
    %6155 = vmatprep.subr.mxu0 0.0
    %6156 = vmatpush2.msra.mxu0 0.0
    %6157 = vmatprep.subr.mxu0 0.0
    %6158 = vmatpush2.msra.mxu0 0.0
    %6159 = vmatprep.subr.mxu0 0.0
    %6160 = vmatpush2.msra.mxu0 0.0
    %6161 = vmatprep.subr.mxu0 0.0
    %6162 = vmatpush2.msra.mxu0 0.0
    %6163 = vmatprep.subr.mxu0 0.0
    %6164 = vmatpush2.msra.mxu0 0.0
    %6165 = vmatprep.subr.mxu0 0.0
    %6166 = vmatpush2.msra.mxu0 0.0
    %6167 = vmatprep.subr.mxu0 0.0
    %6168 = vmatpush2.msra.mxu0 0.0
    %6169 = vmatprep.subr.mxu0 0.0
    %6170 = vmatpush2.msra.mxu0 0.0
    %6171 = vmatprep.subr.mxu0 0.0
    %6172 = vmatpush2.msra.mxu0 0.0
    %6173 = vmatprep.mubr.f32.mxu0 0.0
    %6174 = vmatmul.mubr.f32.gmra.mxu0 %v6107
    %v6175 = vpop.f32.mrf.mxu0
    %v6176 = vadd.f32 0.0, %v6175
    %v6177 = vpop.f32.mrf.mxu0
    %6178 = vdwg.mxu0
    %6179 = vrot.lane.b32.xlu0 %v4906, 72
    %v6180 = vpop.permute.xlu0 %6179
    %v6183 = vsel %vm131, %v6102, 0
    %6185 = vmatprep.subr.mxu0 0.0
    %6186 = vmatpush1.msra.mxu0 0.0
    %6187 = vmatprep.subr.mxu0 0.0
    %6188 = vmatpush1.msra.mxu0 0.0
    %6189 = vmatprep.subr.mxu0 0.0
    %6190 = vmatpush1.msra.mxu0 0.0
    %6191 = vmatprep.subr.mxu0 0.0
    %6192 = vmatpush1.msra.mxu0 0.0
    %6193 = vmatprep.subr.mxu0 0.0
    %6194 = vmatpush1.msra.mxu0 0.0
    %6195 = vmatprep.subr.mxu0 0.0
    %6196 = vmatpush1.msra.mxu0 0.0
    %6197 = vmatprep.subr.mxu0 0.0
    %6198 = vmatpush1.msra.mxu0 0.0
    %6199 = vmatprep.subr.mxu0 0.0
    %6200 = vmatpush1.msra.mxu0 0.0
    %6201 = vmatprep.subr.mxu0 0.0
    %6202 = vmatpush1.msra.mxu0 0.0
    %6203 = vmatprep.subr.mxu0 0.0
    %6204 = vmatpush1.msra.mxu0 0.0
    %6205 = vmatprep.subr.mxu0 0.0
    %6206 = vmatpush1.msra.mxu0 0.0
    %6207 = vmatprep.subr.mxu0 0.0
    %6208 = vmatpush1.msra.mxu0 0.0
    %6209 = vmatprep.subr.mxu0 0.0
    %6210 = vmatpush1.msra.mxu0 0.0
    %6211 = vmatprep.subr.mxu0 0.0
    %6212 = vmatpush1.msra.mxu0 0.0
    %6213 = vmatprep.subr.mxu0 0.0
    %6214 = vmatpush1.msra.mxu0 0.0
    %6215 = vmatprep.subr.mxu0 0.0
    %6216 = vmatpush1.msra.mxu0 %v6180
    %6217 = vmatprep.subr.mxu0 0.0
    %6218 = vmatpush2.msra.mxu0 0.0
    %6219 = vmatprep.subr.mxu0 0.0
    %6220 = vmatpush2.msra.mxu0 0.0
    %6221 = vmatprep.subr.mxu0 0.0
    %6222 = vmatpush2.msra.mxu0 0.0
    %6223 = vmatprep.subr.mxu0 0.0
    %6224 = vmatpush2.msra.mxu0 0.0
    %6225 = vmatprep.subr.mxu0 0.0
    %6226 = vmatpush2.msra.mxu0 0.0
    %6227 = vmatprep.subr.mxu0 0.0
    %6228 = vmatpush2.msra.mxu0 0.0
    %6229 = vmatprep.subr.mxu0 0.0
    %6230 = vmatpush2.msra.mxu0 0.0
    %6231 = vmatprep.subr.mxu0 0.0
    %6232 = vmatpush2.msra.mxu0 0.0
    %6233 = vmatprep.subr.mxu0 0.0
    %6234 = vmatpush2.msra.mxu0 0.0
    %6235 = vmatprep.subr.mxu0 0.0
    %6236 = vmatpush2.msra.mxu0 0.0
    %6237 = vmatprep.subr.mxu0 0.0
    %6238 = vmatpush2.msra.mxu0 0.0
    %6239 = vmatprep.subr.mxu0 0.0
    %6240 = vmatpush2.msra.mxu0 0.0
    %6241 = vmatprep.subr.mxu0 0.0
    %6242 = vmatpush2.msra.mxu0 0.0
    %6243 = vmatprep.subr.mxu0 0.0
    %6244 = vmatpush2.msra.mxu0 0.0
    %6245 = vmatprep.subr.mxu0 0.0
    %6246 = vmatpush2.msra.mxu0 0.0
    %6247 = vmatprep.subr.mxu0 0.0
    %6248 = vmatpush2.msra.mxu0 0.0
    %6249 = vmatprep.mubr.f32.mxu0 0.0
    %6250 = vmatmul.mubr.f32.gmra.mxu0 %v6183
    %v6251 = vpop.f32.mrf.mxu0
    %v6252 = vadd.f32 0.0, %v6251
    %v6253 = vpop.f32.mrf.mxu0
    %6254 = vdwg.mxu0
    %6257 = vrot.lane.b32.xlu0 %v6176, 24
    %v6258 = vpop.permute.xlu0 %6257
    %6259 = vrot.lane.b32.xlu0 %v6252, 24
    %v6260 = vpop.permute.xlu0 %6259
    %v6263 = vadd.f32 %v4811, %v6258
    %v6264 = vadd.f32 %v4816, %v6260
    %v6265 = vsel %vm131, %v5237, %v5579
    %v6266 = vsel %vm131, %v5238, %v5580
    %v6267 = vsel %vm48, %v6265, %v5921
    %v6268 = vsel %vm48, %v6266, %v5922
    %v6269 = vsel %vm1477, %v6267, %v6263
    %v6270 = vsel %vm1477, %v6268, %v6264
    %v6271 = vld [vmem:[#allocation4 + $0x160] sm:$0xff]
    %v6272 = vld [vmem:[#allocation4 + $0x168] sm:$0xff]
    %v6273 = vld [vmem:[#allocation4 + $0x170] sm:$0xff]
    %v6274 = vld [vmem:[#allocation4 + $0x178] sm:$0xff]
    %v6275 = vld [vmem:[#allocation4 + $0x180] sm:$0x1]
    %v6276 = vlaneseq
    %v6277 = vshrl.u32 %v6276, 7
    %v6278 = vsub.s32 0, %v6277
    %v6279 = vrot.slane %v6275, %v6278
    %v6281 = vsel %vm1489, %v6269, 0
    %v6284 = vsel %vm1489, %v6270, 0
    %6286 = vmatprep.subr.mxu0 0.0
    %6287 = vmatpush1.msra.mxu0 0.0
    %6288 = vmatprep.subr.mxu0 0.0
    %6289 = vmatpush1.msra.mxu0 0.0
    %6290 = vmatprep.subr.mxu0 0.0
    %6291 = vmatpush1.msra.mxu0 0.0
    %6292 = vmatprep.subr.mxu0 0.0
    %6293 = vmatpush1.msra.mxu0 0.0
    %6294 = vmatprep.subr.mxu0 0.0
    %6295 = vmatpush1.msra.mxu0 0.0
    %6296 = vmatprep.subr.mxu0 0.0
    %6297 = vmatpush1.msra.mxu0 0.0
    %6298 = vmatprep.subr.mxu0 0.0
    %6299 = vmatpush1.msra.mxu0 0.0
    %6300 = vmatprep.subr.mxu0 0.0
    %6301 = vmatpush1.msra.mxu0 0.0
    %6302 = vmatprep.subr.mxu0 0.0
    %6303 = vmatpush1.msra.mxu0 0.0
    %6304 = vmatprep.subr.mxu0 0.0
    %6305 = vmatpush1.msra.mxu0 0.0
    %6306 = vmatprep.subr.mxu0 0.0
    %6307 = vmatpush1.msra.mxu0 0.0
    %6308 = vmatprep.subr.mxu0 0.0
    %6309 = vmatpush1.msra.mxu0 0.0
    %6310 = vmatprep.subr.mxu0 0.0
    %6311 = vmatpush1.msra.mxu0 %v6274
    %6312 = vmatprep.subr.mxu0 0.0
    %6313 = vmatpush1.msra.mxu0 %v6273
    %6314 = vmatprep.subr.mxu0 0.0
    %6315 = vmatpush1.msra.mxu0 %v6272
    %6316 = vmatprep.subr.mxu0 0.0
    %6317 = vmatpush1.msra.mxu0 %v6271
    %6318 = vmatprep.subr.mxu0 0.0
    %6319 = vmatpush2.msra.mxu0 0.0
    %6320 = vmatprep.subr.mxu0 0.0
    %6321 = vmatpush2.msra.mxu0 0.0
    %6322 = vmatprep.subr.mxu0 0.0
    %6323 = vmatpush2.msra.mxu0 0.0
    %6324 = vmatprep.subr.mxu0 0.0
    %6325 = vmatpush2.msra.mxu0 0.0
    %6326 = vmatprep.subr.mxu0 0.0
    %6327 = vmatpush2.msra.mxu0 0.0
    %6328 = vmatprep.subr.mxu0 0.0
    %6329 = vmatpush2.msra.mxu0 0.0
    %6330 = vmatprep.subr.mxu0 0.0
    %6331 = vmatpush2.msra.mxu0 0.0
    %6332 = vmatprep.subr.mxu0 0.0
    %6333 = vmatpush2.msra.mxu0 0.0
    %6334 = vmatprep.subr.mxu0 0.0
    %6335 = vmatpush2.msra.mxu0 0.0
    %6336 = vmatprep.subr.mxu0 0.0
    %6337 = vmatpush2.msra.mxu0 0.0
    %6338 = vmatprep.subr.mxu0 0.0
    %6339 = vmatpush2.msra.mxu0 0.0
    %6340 = vmatprep.subr.mxu0 0.0
    %6341 = vmatpush2.msra.mxu0 0.0
    %6342 = vmatprep.subr.mxu0 0.0
    %6343 = vmatpush2.msra.mxu0 0.0
    %6344 = vmatprep.subr.mxu0 0.0
    %6345 = vmatpush2.msra.mxu0 0.0
    %6346 = vmatprep.subr.mxu0 0.0
    %6347 = vmatpush2.msra.mxu0 0.0
    %6348 = vmatprep.subr.mxu0 0.0
    %6349 = vmatpush2.msra.mxu0 0.0
    %6350 = vmatprep.mubr.f32.mxu0 0.0
    %6351 = vmatmul.mubr.f32.gmra.mxu0 %v6281
    %v6352 = vpop.f32.mrf.mxu0
    %v6353 = vadd.f32 %v6279, %v6352
    %v6354 = vpop.f32.mrf.mxu0
    %6355 = vmatprep.mubr.f32.mxu0 0.0
    %6356 = vmatmul.mubr.f32.gmra.mxu0 %v6284
    %v6357 = vpop.f32.mrf.mxu0
    %v6358 = vadd.f32 %v6279, %v6357
    %v6359 = vpop.f32.mrf.mxu0
    %6360 = vdwg.mxu0
    %v6361 = vmax.f32 %v6353, 0.0
    %v6362 = vmax.f32 %v6358, 0.0
    %v6363 = vadd.f32 %v6269, %v6361
    %v6364 = vadd.f32 %v6270, %v6362
    %v6365 = vld [vmem:[#allocation4 + $0x188] sm:$0xff]
    %v6366 = vld [vmem:[#allocation4 + $0x190] sm:$0xff]
    %v6367 = vld [vmem:[#allocation4 + $0x198] sm:$0xff]
    %v6368 = vld [vmem:[#allocation4 + $0x1a0] sm:$0xff]
    %v6369 = vld [vmem:[#allocation4 + $0x1a8] sm:$0x1]
    %v6370 = vlaneseq
    %v6371 = vshrl.u32 %v6370, 7
    %v6372 = vsub.s32 0, %v6371
    %v6373 = vrot.slane %v6369, %v6372
    %v6375 = vsel %vm1489, %v6363, 0
    %v6378 = vsel %vm1489, %v6364, 0
    %6380 = vmatprep.subr.mxu0 0.0
    %6381 = vmatpush1.msra.mxu0 0.0
    %6382 = vmatprep.subr.mxu0 0.0
    %6383 = vmatpush1.msra.mxu0 0.0
    %6384 = vmatprep.subr.mxu0 0.0
    %6385 = vmatpush1.msra.mxu0 0.0
    %6386 = vmatprep.subr.mxu0 0.0
    %6387 = vmatpush1.msra.mxu0 0.0
    %6388 = vmatprep.subr.mxu0 0.0
    %6389 = vmatpush1.msra.mxu0 0.0
    %6390 = vmatprep.subr.mxu0 0.0
    %6391 = vmatpush1.msra.mxu0 0.0
    %6392 = vmatprep.subr.mxu0 0.0
    %6393 = vmatpush1.msra.mxu0 0.0
    %6394 = vmatprep.subr.mxu0 0.0
    %6395 = vmatpush1.msra.mxu0 0.0
    %6396 = vmatprep.subr.mxu0 0.0
    %6397 = vmatpush1.msra.mxu0 0.0
    %6398 = vmatprep.subr.mxu0 0.0
    %6399 = vmatpush1.msra.mxu0 0.0
    %6400 = vmatprep.subr.mxu0 0.0
    %6401 = vmatpush1.msra.mxu0 0.0
    %6402 = vmatprep.subr.mxu0 0.0
    %6403 = vmatpush1.msra.mxu0 0.0
    %6404 = vmatprep.subr.mxu0 0.0
    %6405 = vmatpush1.msra.mxu0 %v6368
    %6406 = vmatprep.subr.mxu0 0.0
    %6407 = vmatpush1.msra.mxu0 %v6367
    %6408 = vmatprep.subr.mxu0 0.0
    %6409 = vmatpush1.msra.mxu0 %v6366
    %6410 = vmatprep.subr.mxu0 0.0
    %6411 = vmatpush1.msra.mxu0 %v6365
    %6412 = vmatprep.subr.mxu0 0.0
    %6413 = vmatpush2.msra.mxu0 0.0
    %6414 = vmatprep.subr.mxu0 0.0
    %6415 = vmatpush2.msra.mxu0 0.0
    %6416 = vmatprep.subr.mxu0 0.0
    %6417 = vmatpush2.msra.mxu0 0.0
    %6418 = vmatprep.subr.mxu0 0.0
    %6419 = vmatpush2.msra.mxu0 0.0
    %6420 = vmatprep.subr.mxu0 0.0
    %6421 = vmatpush2.msra.mxu0 0.0
    %6422 = vmatprep.subr.mxu0 0.0
    %6423 = vmatpush2.msra.mxu0 0.0
    %6424 = vmatprep.subr.mxu0 0.0
    %6425 = vmatpush2.msra.mxu0 0.0
    %6426 = vmatprep.subr.mxu0 0.0
    %6427 = vmatpush2.msra.mxu0 0.0
    %6428 = vmatprep.subr.mxu0 0.0
    %6429 = vmatpush2.msra.mxu0 0.0
    %6430 = vmatprep.subr.mxu0 0.0
    %6431 = vmatpush2.msra.mxu0 0.0
    %6432 = vmatprep.subr.mxu0 0.0
    %6433 = vmatpush2.msra.mxu0 0.0
    %6434 = vmatprep.subr.mxu0 0.0
    %6435 = vmatpush2.msra.mxu0 0.0
    %6436 = vmatprep.subr.mxu0 0.0
    %6437 = vmatpush2.msra.mxu0 0.0
    %6438 = vmatprep.subr.mxu0 0.0
    %6439 = vmatpush2.msra.mxu0 0.0
    %6440 = vmatprep.subr.mxu0 0.0
    %6441 = vmatpush2.msra.mxu0 0.0
    %6442 = vmatprep.subr.mxu0 0.0
    %6443 = vmatpush2.msra.mxu0 0.0
    %6444 = vmatprep.mubr.f32.mxu0 0.0
    %6445 = vmatmul.mubr.f32.gmra.mxu0 %v6375
    %v6446 = vpop.f32.mrf.mxu0
    %v6447 = vadd.f32 %v6373, %v6446
    %v6448 = vpop.f32.mrf.mxu0
    %6449 = vmatprep.mubr.f32.mxu0 0.0
    %6450 = vmatmul.mubr.f32.gmra.mxu0 %v6378
    %v6451 = vpop.f32.mrf.mxu0
    %v6452 = vadd.f32 %v6373, %v6451
    %v6453 = vpop.f32.mrf.mxu0
    %6454 = vdwg.mxu0
    %v6455 = vld [vmem:[#allocation4 + $0x10] sm:$0x1]
    %v6457 = vsel %vm131, %v6455, 0
    %v6460 = vsel %vm131, %v6447, 0
    %6462 = vmatprep.subr.mxu0 0.0
    %6463 = vmatpush1.xpose.msra.mxu0 0.0
    %6464 = vmatprep.subr.mxu0 0.0
    %6465 = vmatpush1.xpose.msra.mxu0 0.0
    %6466 = vmatprep.subr.mxu0 0.0
    %6467 = vmatpush1.xpose.msra.mxu0 0.0
    %6468 = vmatprep.subr.mxu0 0.0
    %6469 = vmatpush1.xpose.msra.mxu0 0.0
    %6470 = vmatprep.subr.mxu0 0.0
    %6471 = vmatpush1.xpose.msra.mxu0 0.0
    %6472 = vmatprep.subr.mxu0 0.0
    %6473 = vmatpush1.xpose.msra.mxu0 0.0
    %6474 = vmatprep.subr.mxu0 0.0
    %6475 = vmatpush1.xpose.msra.mxu0 0.0
    %6476 = vmatprep.subr.mxu0 0.0
    %6477 = vmatpush1.xpose.msra.mxu0 0.0
    %6478 = vmatprep.subr.mxu0 0.0
    %6479 = vmatpush1.xpose.msra.mxu0 0.0
    %6480 = vmatprep.subr.mxu0 0.0
    %6481 = vmatpush1.xpose.msra.mxu0 0.0
    %6482 = vmatprep.subr.mxu0 0.0
    %6483 = vmatpush1.xpose.msra.mxu0 0.0
    %6484 = vmatprep.subr.mxu0 0.0
    %6485 = vmatpush1.xpose.msra.mxu0 0.0
    %6486 = vmatprep.subr.mxu0 0.0
    %6487 = vmatpush1.xpose.msra.mxu0 0.0
    %6488 = vmatprep.subr.mxu0 0.0
    %6489 = vmatpush1.xpose.msra.mxu0 0.0
    %6490 = vmatprep.subr.mxu0 0.0
    %6491 = vmatpush1.xpose.msra.mxu0 0.0
    %6492 = vmatprep.subr.mxu0 0.0
    %6493 = vmatpush1.xpose.msra.mxu0 %v6460
    %6494 = vmatprep.subr.mxu0 0.0
    %6495 = vmatpush2.xpose.msra.mxu0 0.0
    %6496 = vmatprep.subr.mxu0 0.0
    %6497 = vmatpush2.xpose.msra.mxu0 0.0
    %6498 = vmatprep.subr.mxu0 0.0
    %6499 = vmatpush2.xpose.msra.mxu0 0.0
    %6500 = vmatprep.subr.mxu0 0.0
    %6501 = vmatpush2.xpose.msra.mxu0 0.0
    %6502 = vmatprep.subr.mxu0 0.0
    %6503 = vmatpush2.xpose.msra.mxu0 0.0
    %6504 = vmatprep.subr.mxu0 0.0
    %6505 = vmatpush2.xpose.msra.mxu0 0.0
    %6506 = vmatprep.subr.mxu0 0.0
    %6507 = vmatpush2.xpose.msra.mxu0 0.0
    %6508 = vmatprep.subr.mxu0 0.0
    %6509 = vmatpush2.xpose.msra.mxu0 0.0
    %6510 = vmatprep.subr.mxu0 0.0
    %6511 = vmatpush2.xpose.msra.mxu0 0.0
    %6512 = vmatprep.subr.mxu0 0.0
    %6513 = vmatpush2.xpose.msra.mxu0 0.0
    %6514 = vmatprep.subr.mxu0 0.0
    %6515 = vmatpush2.xpose.msra.mxu0 0.0
    %6516 = vmatprep.subr.mxu0 0.0
    %6517 = vmatpush2.xpose.msra.mxu0 0.0
    %6518 = vmatprep.subr.mxu0 0.0
    %6519 = vmatpush2.xpose.msra.mxu0 0.0
    %6520 = vmatprep.subr.mxu0 0.0
    %6521 = vmatpush2.xpose.msra.mxu0 0.0
    %6522 = vmatprep.subr.mxu0 0.0
    %6523 = vmatpush2.xpose.msra.mxu0 0.0
    %6524 = vmatprep.subr.mxu0 0.0
    %6525 = vmatpush2.xpose.msra.mxu0 0.0
    %6526 = vmatprep.mubr.f32.mxu0 0.0
    %6527 = vmatmul.mubr.f32.gmra.mxu0 %v6457
    %v6528 = vpop.f32.mrf.mxu0
    %v6529 = vadd.f32 0.0, %v6528
    %v6530 = vpop.f32.mrf.mxu0
    %6531 = vdwg.mxu0
    %v6533 = vsel %vm131, %v6452, 0
    %6535 = vmatprep.subr.mxu0 0.0
    %6536 = vmatpush1.xpose.msra.mxu0 0.0
    %6537 = vmatprep.subr.mxu0 0.0
    %6538 = vmatpush1.xpose.msra.mxu0 0.0
    %6539 = vmatprep.subr.mxu0 0.0
    %6540 = vmatpush1.xpose.msra.mxu0 0.0
    %6541 = vmatprep.subr.mxu0 0.0
    %6542 = vmatpush1.xpose.msra.mxu0 0.0
    %6543 = vmatprep.subr.mxu0 0.0
    %6544 = vmatpush1.xpose.msra.mxu0 0.0
    %6545 = vmatprep.subr.mxu0 0.0
    %6546 = vmatpush1.xpose.msra.mxu0 0.0
    %6547 = vmatprep.subr.mxu0 0.0
    %6548 = vmatpush1.xpose.msra.mxu0 0.0
    %6549 = vmatprep.subr.mxu0 0.0
    %6550 = vmatpush1.xpose.msra.mxu0 0.0
    %6551 = vmatprep.subr.mxu0 0.0
    %6552 = vmatpush1.xpose.msra.mxu0 0.0
    %6553 = vmatprep.subr.mxu0 0.0
    %6554 = vmatpush1.xpose.msra.mxu0 0.0
    %6555 = vmatprep.subr.mxu0 0.0
    %6556 = vmatpush1.xpose.msra.mxu0 0.0
    %6557 = vmatprep.subr.mxu0 0.0
    %6558 = vmatpush1.xpose.msra.mxu0 0.0
    %6559 = vmatprep.subr.mxu0 0.0
    %6560 = vmatpush1.xpose.msra.mxu0 0.0
    %6561 = vmatprep.subr.mxu0 0.0
    %6562 = vmatpush1.xpose.msra.mxu0 0.0
    %6563 = vmatprep.subr.mxu0 0.0
    %6564 = vmatpush1.xpose.msra.mxu0 0.0
    %6565 = vmatprep.subr.mxu0 0.0
    %6566 = vmatpush1.xpose.msra.mxu0 %v6533
    %6567 = vmatprep.subr.mxu0 0.0
    %6568 = vmatpush2.xpose.msra.mxu0 0.0
    %6569 = vmatprep.subr.mxu0 0.0
    %6570 = vmatpush2.xpose.msra.mxu0 0.0
    %6571 = vmatprep.subr.mxu0 0.0
    %6572 = vmatpush2.xpose.msra.mxu0 0.0
    %6573 = vmatprep.subr.mxu0 0.0
    %6574 = vmatpush2.xpose.msra.mxu0 0.0
    %6575 = vmatprep.subr.mxu0 0.0
    %6576 = vmatpush2.xpose.msra.mxu0 0.0
    %6577 = vmatprep.subr.mxu0 0.0
    %6578 = vmatpush2.xpose.msra.mxu0 0.0
    %6579 = vmatprep.subr.mxu0 0.0
    %6580 = vmatpush2.xpose.msra.mxu0 0.0
    %6581 = vmatprep.subr.mxu0 0.0
    %6582 = vmatpush2.xpose.msra.mxu0 0.0
    %6583 = vmatprep.subr.mxu0 0.0
    %6584 = vmatpush2.xpose.msra.mxu0 0.0
    %6585 = vmatprep.subr.mxu0 0.0
    %6586 = vmatpush2.xpose.msra.mxu0 0.0
    %6587 = vmatprep.subr.mxu0 0.0
    %6588 = vmatpush2.xpose.msra.mxu0 0.0
    %6589 = vmatprep.subr.mxu0 0.0
    %6590 = vmatpush2.xpose.msra.mxu0 0.0
    %6591 = vmatprep.subr.mxu0 0.0
    %6592 = vmatpush2.xpose.msra.mxu0 0.0
    %6593 = vmatprep.subr.mxu0 0.0
    %6594 = vmatpush2.xpose.msra.mxu0 0.0
    %6595 = vmatprep.subr.mxu0 0.0
    %6596 = vmatpush2.xpose.msra.mxu0 0.0
    %6597 = vmatprep.subr.mxu0 0.0
    %6598 = vmatpush2.xpose.msra.mxu0 0.0
    %6599 = vmatprep.mubr.f32.mxu0 0.0
    %6600 = vmatmul.mubr.f32.gmra.mxu0 %v6457
    %v6601 = vpop.f32.mrf.mxu0
    %v6602 = vadd.f32 0.0, %v6601
    %v6603 = vpop.f32.mrf.mxu0
    %6604 = vdwg.mxu0
    %v6605 = vmul.f32 %v6529, 0.17677669
    %v6606 = vmul.f32 %v6602, 0.17677669
    %vm6607 = vcmask 57344
    %v6608 = vsel %vm6607, %v6605, -inf
    %6609 = vmax.xlane.f32.xlu0 %v6608
    %v6610 = vpop.xlane.xlu0 %6609
    %v6611 = vsel %vm6607, %v6606, -inf
    %6612 = vmax.xlane.f32.xlu0 %v6611
    %v6613 = vpop.xlane.xlu0 %6612
    %v6614 = vsub.f32 %v6605, %v6610
    %v6615 = vsub.f32 %v6606, %v6613
    %v6616 = vmul.f32 %v6614, 1.442695
    %v6617 = vpow.pop %v6616
    %v6618 = vmul.f32 %v6615, 1.442695
    %v6619 = vpow.pop %v6618
    %v6620 = vsel %vm6607, %v6617, 0.0
    %6621 = vadd.xlane.f32.xlu0 %v6620
    %v6622 = vpop.xlane.xlu0 %6621
    %v6623 = vsel %vm6607, %v6619, 0.0
    %6624 = vadd.xlane.f32.xlu0 %v6623
    %v6625 = vpop.xlane.xlu0 %6624
    %v6626 = vrcp.pop %v6622
    %v6627 = vmul.f32 %v6617, %v6626
    %v6628 = vrcp.pop %v6625
    %v6629 = vmul.f32 %v6619, %v6628
    %6630 = vrot.lane.b32.xlu0 %v6447, 96
    %v6631 = vpop.permute.xlu0 %6630
    %v6634 = vsel %vm131, %v6627, 0
    %6636 = vmatprep.subr.mxu0 0.0
    %6637 = vmatpush1.msra.mxu0 0.0
    %6638 = vmatprep.subr.mxu0 0.0
    %6639 = vmatpush1.msra.mxu0 0.0
    %6640 = vmatprep.subr.mxu0 0.0
    %6641 = vmatpush1.msra.mxu0 0.0
    %6642 = vmatprep.subr.mxu0 0.0
    %6643 = vmatpush1.msra.mxu0 0.0
    %6644 = vmatprep.subr.mxu0 0.0
    %6645 = vmatpush1.msra.mxu0 0.0
    %6646 = vmatprep.subr.mxu0 0.0
    %6647 = vmatpush1.msra.mxu0 0.0
    %6648 = vmatprep.subr.mxu0 0.0
    %6649 = vmatpush1.msra.mxu0 0.0
    %6650 = vmatprep.subr.mxu0 0.0
    %6651 = vmatpush1.msra.mxu0 0.0
    %6652 = vmatprep.subr.mxu0 0.0
    %6653 = vmatpush1.msra.mxu0 0.0
    %6654 = vmatprep.subr.mxu0 0.0
    %6655 = vmatpush1.msra.mxu0 0.0
    %6656 = vmatprep.subr.mxu0 0.0
    %6657 = vmatpush1.msra.mxu0 0.0
    %6658 = vmatprep.subr.mxu0 0.0
    %6659 = vmatpush1.msra.mxu0 0.0
    %6660 = vmatprep.subr.mxu0 0.0
    %6661 = vmatpush1.msra.mxu0 0.0
    %6662 = vmatprep.subr.mxu0 0.0
    %6663 = vmatpush1.msra.mxu0 0.0
    %6664 = vmatprep.subr.mxu0 0.0
    %6665 = vmatpush1.msra.mxu0 0.0
    %6666 = vmatprep.subr.mxu0 0.0
    %6667 = vmatpush1.msra.mxu0 %v6631
    %6668 = vmatprep.subr.mxu0 0.0
    %6669 = vmatpush2.msra.mxu0 0.0
    %6670 = vmatprep.subr.mxu0 0.0
    %6671 = vmatpush2.msra.mxu0 0.0
    %6672 = vmatprep.subr.mxu0 0.0
    %6673 = vmatpush2.msra.mxu0 0.0
    %6674 = vmatprep.subr.mxu0 0.0
    %6675 = vmatpush2.msra.mxu0 0.0
    %6676 = vmatprep.subr.mxu0 0.0
    %6677 = vmatpush2.msra.mxu0 0.0
    %6678 = vmatprep.subr.mxu0 0.0
    %6679 = vmatpush2.msra.mxu0 0.0
    %6680 = vmatprep.subr.mxu0 0.0
    %6681 = vmatpush2.msra.mxu0 0.0
    %6682 = vmatprep.subr.mxu0 0.0
    %6683 = vmatpush2.msra.mxu0 0.0
    %6684 = vmatprep.subr.mxu0 0.0
    %6685 = vmatpush2.msra.mxu0 0.0
    %6686 = vmatprep.subr.mxu0 0.0
    %6687 = vmatpush2.msra.mxu0 0.0
    %6688 = vmatprep.subr.mxu0 0.0
    %6689 = vmatpush2.msra.mxu0 0.0
    %6690 = vmatprep.subr.mxu0 0.0
    %6691 = vmatpush2.msra.mxu0 0.0
    %6692 = vmatprep.subr.mxu0 0.0
    %6693 = vmatpush2.msra.mxu0 0.0
    %6694 = vmatprep.subr.mxu0 0.0
    %6695 = vmatpush2.msra.mxu0 0.0
    %6696 = vmatprep.subr.mxu0 0.0
    %6697 = vmatpush2.msra.mxu0 0.0
    %6698 = vmatprep.subr.mxu0 0.0
    %6699 = vmatpush2.msra.mxu0 0.0
    %6700 = vmatprep.mubr.f32.mxu0 0.0
    %6701 = vmatmul.mubr.f32.gmra.mxu0 %v6634
    %v6702 = vpop.f32.mrf.mxu0
    %v6703 = vadd.f32 0.0, %v6702
    %v6704 = vpop.f32.mrf.mxu0
    %6705 = vdwg.mxu0
    %6706 = vrot.lane.b32.xlu0 %v6452, 96
    %v6707 = vpop.permute.xlu0 %6706
    %v6710 = vsel %vm131, %v6629, 0
    %6712 = vmatprep.subr.mxu0 0.0
    %6713 = vmatpush1.msra.mxu0 0.0
    %6714 = vmatprep.subr.mxu0 0.0
    %6715 = vmatpush1.msra.mxu0 0.0
    %6716 = vmatprep.subr.mxu0 0.0
    %6717 = vmatpush1.msra.mxu0 0.0
    %6718 = vmatprep.subr.mxu0 0.0
    %6719 = vmatpush1.msra.mxu0 0.0
    %6720 = vmatprep.subr.mxu0 0.0
    %6721 = vmatpush1.msra.mxu0 0.0
    %6722 = vmatprep.subr.mxu0 0.0
    %6723 = vmatpush1.msra.mxu0 0.0
    %6724 = vmatprep.subr.mxu0 0.0
    %6725 = vmatpush1.msra.mxu0 0.0
    %6726 = vmatprep.subr.mxu0 0.0
    %6727 = vmatpush1.msra.mxu0 0.0
    %6728 = vmatprep.subr.mxu0 0.0
    %6729 = vmatpush1.msra.mxu0 0.0
    %6730 = vmatprep.subr.mxu0 0.0
    %6731 = vmatpush1.msra.mxu0 0.0
    %6732 = vmatprep.subr.mxu0 0.0
    %6733 = vmatpush1.msra.mxu0 0.0
    %6734 = vmatprep.subr.mxu0 0.0
    %6735 = vmatpush1.msra.mxu0 0.0
    %6736 = vmatprep.subr.mxu0 0.0
    %6737 = vmatpush1.msra.mxu0 0.0
    %6738 = vmatprep.subr.mxu0 0.0
    %6739 = vmatpush1.msra.mxu0 0.0
    %6740 = vmatprep.subr.mxu0 0.0
    %6741 = vmatpush1.msra.mxu0 0.0
    %6742 = vmatprep.subr.mxu0 0.0
    %6743 = vmatpush1.msra.mxu0 %v6707
    %6744 = vmatprep.subr.mxu0 0.0
    %6745 = vmatpush2.msra.mxu0 0.0
    %6746 = vmatprep.subr.mxu0 0.0
    %6747 = vmatpush2.msra.mxu0 0.0
    %6748 = vmatprep.subr.mxu0 0.0
    %6749 = vmatpush2.msra.mxu0 0.0
    %6750 = vmatprep.subr.mxu0 0.0
    %6751 = vmatpush2.msra.mxu0 0.0
    %6752 = vmatprep.subr.mxu0 0.0
    %6753 = vmatpush2.msra.mxu0 0.0
    %6754 = vmatprep.subr.mxu0 0.0
    %6755 = vmatpush2.msra.mxu0 0.0
    %6756 = vmatprep.subr.mxu0 0.0
    %6757 = vmatpush2.msra.mxu0 0.0
    %6758 = vmatprep.subr.mxu0 0.0
    %6759 = vmatpush2.msra.mxu0 0.0
    %6760 = vmatprep.subr.mxu0 0.0
    %6761 = vmatpush2.msra.mxu0 0.0
    %6762 = vmatprep.subr.mxu0 0.0
    %6763 = vmatpush2.msra.mxu0 0.0
    %6764 = vmatprep.subr.mxu0 0.0
    %6765 = vmatpush2.msra.mxu0 0.0
    %6766 = vmatprep.subr.mxu0 0.0
    %6767 = vmatpush2.msra.mxu0 0.0
    %6768 = vmatprep.subr.mxu0 0.0
    %6769 = vmatpush2.msra.mxu0 0.0
    %6770 = vmatprep.subr.mxu0 0.0
    %6771 = vmatpush2.msra.mxu0 0.0
    %6772 = vmatprep.subr.mxu0 0.0
    %6773 = vmatpush2.msra.mxu0 0.0
    %6774 = vmatprep.subr.mxu0 0.0
    %6775 = vmatpush2.msra.mxu0 0.0
    %6776 = vmatprep.mubr.f32.mxu0 0.0
    %6777 = vmatmul.mubr.f32.gmra.mxu0 %v6710
    %v6778 = vpop.f32.mrf.mxu0
    %v6779 = vadd.f32 0.0, %v6778
    %v6780 = vpop.f32.mrf.mxu0
    %6781 = vdwg.mxu0
    %v6782 = vadd.f32 %v6455, %v6703
    %v6783 = vadd.f32 %v6455, %v6779
    %6784 = vrot.lane.b32.xlu0 %v6455, 120
    %v6785 = vpop.permute.xlu0 %6784
    %6786 = vrot.lane.b32.xlu0 %v6447, 120
    %v6787 = vpop.permute.xlu0 %6786
    %v6788 = vsel %vm131, %v6785, 0
    %v6790 = vsel %vm131, %v6787, 0
    %6792 = vmatprep.subr.mxu0 0.0
    %6793 = vmatpush1.xpose.msra.mxu0 0.0
    %6794 = vmatprep.subr.mxu0 0.0
    %6795 = vmatpush1.xpose.msra.mxu0 0.0
    %6796 = vmatprep.subr.mxu0 0.0
    %6797 = vmatpush1.xpose.msra.mxu0 0.0
    %6798 = vmatprep.subr.mxu0 0.0
    %6799 = vmatpush1.xpose.msra.mxu0 0.0
    %6800 = vmatprep.subr.mxu0 0.0
    %6801 = vmatpush1.xpose.msra.mxu0 0.0
    %6802 = vmatprep.subr.mxu0 0.0
    %6803 = vmatpush1.xpose.msra.mxu0 0.0
    %6804 = vmatprep.subr.mxu0 0.0
    %6805 = vmatpush1.xpose.msra.mxu0 0.0
    %6806 = vmatprep.subr.mxu0 0.0
    %6807 = vmatpush1.xpose.msra.mxu0 0.0
    %6808 = vmatprep.subr.mxu0 0.0
    %6809 = vmatpush1.xpose.msra.mxu0 0.0
    %6810 = vmatprep.subr.mxu0 0.0
    %6811 = vmatpush1.xpose.msra.mxu0 0.0
    %6812 = vmatprep.subr.mxu0 0.0
    %6813 = vmatpush1.xpose.msra.mxu0 0.0
    %6814 = vmatprep.subr.mxu0 0.0
    %6815 = vmatpush1.xpose.msra.mxu0 0.0
    %6816 = vmatprep.subr.mxu0 0.0
    %6817 = vmatpush1.xpose.msra.mxu0 0.0
    %6818 = vmatprep.subr.mxu0 0.0
    %6819 = vmatpush1.xpose.msra.mxu0 0.0
    %6820 = vmatprep.subr.mxu0 0.0
    %6821 = vmatpush1.xpose.msra.mxu0 0.0
    %6822 = vmatprep.subr.mxu0 0.0
    %6823 = vmatpush1.xpose.msra.mxu0 %v6790
    %6824 = vmatprep.subr.mxu0 0.0
    %6825 = vmatpush2.xpose.msra.mxu0 0.0
    %6826 = vmatprep.subr.mxu0 0.0
    %6827 = vmatpush2.xpose.msra.mxu0 0.0
    %6828 = vmatprep.subr.mxu0 0.0
    %6829 = vmatpush2.xpose.msra.mxu0 0.0
    %6830 = vmatprep.subr.mxu0 0.0
    %6831 = vmatpush2.xpose.msra.mxu0 0.0
    %6832 = vmatprep.subr.mxu0 0.0
    %6833 = vmatpush2.xpose.msra.mxu0 0.0
    %6834 = vmatprep.subr.mxu0 0.0
    %6835 = vmatpush2.xpose.msra.mxu0 0.0
    %6836 = vmatprep.subr.mxu0 0.0
    %6837 = vmatpush2.xpose.msra.mxu0 0.0
    %6838 = vmatprep.subr.mxu0 0.0
    %6839 = vmatpush2.xpose.msra.mxu0 0.0
    %6840 = vmatprep.subr.mxu0 0.0
    %6841 = vmatpush2.xpose.msra.mxu0 0.0
    %6842 = vmatprep.subr.mxu0 0.0
    %6843 = vmatpush2.xpose.msra.mxu0 0.0
    %6844 = vmatprep.subr.mxu0 0.0
    %6845 = vmatpush2.xpose.msra.mxu0 0.0
    %6846 = vmatprep.subr.mxu0 0.0
    %6847 = vmatpush2.xpose.msra.mxu0 0.0
    %6848 = vmatprep.subr.mxu0 0.0
    %6849 = vmatpush2.xpose.msra.mxu0 0.0
    %6850 = vmatprep.subr.mxu0 0.0
    %6851 = vmatpush2.xpose.msra.mxu0 0.0
    %6852 = vmatprep.subr.mxu0 0.0
    %6853 = vmatpush2.xpose.msra.mxu0 0.0
    %6854 = vmatprep.subr.mxu0 0.0
    %6855 = vmatpush2.xpose.msra.mxu0 0.0
    %6856 = vmatprep.mubr.f32.mxu0 0.0
    %6857 = vmatmul.mubr.f32.gmra.mxu0 %v6788
    %v6858 = vpop.f32.mrf.mxu0
    %v6859 = vadd.f32 0.0, %v6858
    %v6860 = vpop.f32.mrf.mxu0
    %6861 = vdwg.mxu0
    %6862 = vrot.lane.b32.xlu0 %v6452, 120
    %v6863 = vpop.permute.xlu0 %6862
    %v6864 = vsel %vm131, %v6863, 0
    %6866 = vmatprep.subr.mxu0 0.0
    %6867 = vmatpush1.xpose.msra.mxu0 0.0
    %6868 = vmatprep.subr.mxu0 0.0
    %6869 = vmatpush1.xpose.msra.mxu0 0.0
    %6870 = vmatprep.subr.mxu0 0.0
    %6871 = vmatpush1.xpose.msra.mxu0 0.0
    %6872 = vmatprep.subr.mxu0 0.0
    %6873 = vmatpush1.xpose.msra.mxu0 0.0
    %6874 = vmatprep.subr.mxu0 0.0
    %6875 = vmatpush1.xpose.msra.mxu0 0.0
    %6876 = vmatprep.subr.mxu0 0.0
    %6877 = vmatpush1.xpose.msra.mxu0 0.0
    %6878 = vmatprep.subr.mxu0 0.0
    %6879 = vmatpush1.xpose.msra.mxu0 0.0
    %6880 = vmatprep.subr.mxu0 0.0
    %6881 = vmatpush1.xpose.msra.mxu0 0.0
    %6882 = vmatprep.subr.mxu0 0.0
    %6883 = vmatpush1.xpose.msra.mxu0 0.0
    %6884 = vmatprep.subr.mxu0 0.0
    %6885 = vmatpush1.xpose.msra.mxu0 0.0
    %6886 = vmatprep.subr.mxu0 0.0
    %6887 = vmatpush1.xpose.msra.mxu0 0.0
    %6888 = vmatprep.subr.mxu0 0.0
    %6889 = vmatpush1.xpose.msra.mxu0 0.0
    %6890 = vmatprep.subr.mxu0 0.0
    %6891 = vmatpush1.xpose.msra.mxu0 0.0
    %6892 = vmatprep.subr.mxu0 0.0
    %6893 = vmatpush1.xpose.msra.mxu0 0.0
    %6894 = vmatprep.subr.mxu0 0.0
    %6895 = vmatpush1.xpose.msra.mxu0 0.0
    %6896 = vmatprep.subr.mxu0 0.0
    %6897 = vmatpush1.xpose.msra.mxu0 %v6864
    %6898 = vmatprep.subr.mxu0 0.0
    %6899 = vmatpush2.xpose.msra.mxu0 0.0
    %6900 = vmatprep.subr.mxu0 0.0
    %6901 = vmatpush2.xpose.msra.mxu0 0.0
    %6902 = vmatprep.subr.mxu0 0.0
    %6903 = vmatpush2.xpose.msra.mxu0 0.0
    %6904 = vmatprep.subr.mxu0 0.0
    %6905 = vmatpush2.xpose.msra.mxu0 0.0
    %6906 = vmatprep.subr.mxu0 0.0
    %6907 = vmatpush2.xpose.msra.mxu0 0.0
    %6908 = vmatprep.subr.mxu0 0.0
    %6909 = vmatpush2.xpose.msra.mxu0 0.0
    %6910 = vmatprep.subr.mxu0 0.0
    %6911 = vmatpush2.xpose.msra.mxu0 0.0
    %6912 = vmatprep.subr.mxu0 0.0
    %6913 = vmatpush2.xpose.msra.mxu0 0.0
    %6914 = vmatprep.subr.mxu0 0.0
    %6915 = vmatpush2.xpose.msra.mxu0 0.0
    %6916 = vmatprep.subr.mxu0 0.0
    %6917 = vmatpush2.xpose.msra.mxu0 0.0
    %6918 = vmatprep.subr.mxu0 0.0
    %6919 = vmatpush2.xpose.msra.mxu0 0.0
    %6920 = vmatprep.subr.mxu0 0.0
    %6921 = vmatpush2.xpose.msra.mxu0 0.0
    %6922 = vmatprep.subr.mxu0 0.0
    %6923 = vmatpush2.xpose.msra.mxu0 0.0
    %6924 = vmatprep.subr.mxu0 0.0
    %6925 = vmatpush2.xpose.msra.mxu0 0.0
    %6926 = vmatprep.subr.mxu0 0.0
    %6927 = vmatpush2.xpose.msra.mxu0 0.0
    %6928 = vmatprep.subr.mxu0 0.0
    %6929 = vmatpush2.xpose.msra.mxu0 0.0
    %6930 = vmatprep.mubr.f32.mxu0 0.0
    %6931 = vmatmul.mubr.f32.gmra.mxu0 %v6788
    %v6932 = vpop.f32.mrf.mxu0
    %v6933 = vadd.f32 0.0, %v6932
    %v6934 = vpop.f32.mrf.mxu0
    %6935 = vdwg.mxu0
    %v6936 = vmul.f32 %v6859, 0.17677669
    %v6937 = vmul.f32 %v6933, 0.17677669
    %v6938 = vsel %vm6607, %v6936, -inf
    %6939 = vmax.xlane.f32.xlu0 %v6938
    %v6940 = vpop.xlane.xlu0 %6939
    %v6941 = vsel %vm6607, %v6937, -inf
    %6942 = vmax.xlane.f32.xlu0 %v6941
    %v6943 = vpop.xlane.xlu0 %6942
    %v6944 = vsub.f32 %v6936, %v6940
    %v6945 = vsub.f32 %v6937, %v6943
    %v6946 = vmul.f32 %v6944, 1.442695
    %v6947 = vpow.pop %v6946
    %v6948 = vmul.f32 %v6945, 1.442695
    %v6949 = vpow.pop %v6948
    %v6950 = vsel %vm6607, %v6947, 0.0
    %6951 = vadd.xlane.f32.xlu0 %v6950
    %v6952 = vpop.xlane.xlu0 %6951
    %v6953 = vsel %vm6607, %v6949, 0.0
    %6954 = vadd.xlane.f32.xlu0 %v6953
    %v6955 = vpop.xlane.xlu0 %6954
    %v6956 = vrcp.pop %v6952
    %v6957 = vmul.f32 %v6947, %v6956
    %v6958 = vrcp.pop %v6955
    %v6959 = vmul.f32 %v6949, %v6958
    %6960 = vrot.lane.b32.xlu0 %v6447, 88
    %v6961 = vpop.permute.xlu0 %6960
    %v6964 = vsel %vm131, %v6957, 0
    %6966 = vmatprep.subr.mxu0 0.0
    %6967 = vmatpush1.msra.mxu0 0.0
    %6968 = vmatprep.subr.mxu0 0.0
    %6969 = vmatpush1.msra.mxu0 0.0
    %6970 = vmatprep.subr.mxu0 0.0
    %6971 = vmatpush1.msra.mxu0 0.0
    %6972 = vmatprep.subr.mxu0 0.0
    %6973 = vmatpush1.msra.mxu0 0.0
    %6974 = vmatprep.subr.mxu0 0.0
    %6975 = vmatpush1.msra.mxu0 0.0
    %6976 = vmatprep.subr.mxu0 0.0
    %6977 = vmatpush1.msra.mxu0 0.0
    %6978 = vmatprep.subr.mxu0 0.0
    %6979 = vmatpush1.msra.mxu0 0.0
    %6980 = vmatprep.subr.mxu0 0.0
    %6981 = vmatpush1.msra.mxu0 0.0
    %6982 = vmatprep.subr.mxu0 0.0
    %6983 = vmatpush1.msra.mxu0 0.0
    %6984 = vmatprep.subr.mxu0 0.0
    %6985 = vmatpush1.msra.mxu0 0.0
    %6986 = vmatprep.subr.mxu0 0.0
    %6987 = vmatpush1.msra.mxu0 0.0
    %6988 = vmatprep.subr.mxu0 0.0
    %6989 = vmatpush1.msra.mxu0 0.0
    %6990 = vmatprep.subr.mxu0 0.0
    %6991 = vmatpush1.msra.mxu0 0.0
    %6992 = vmatprep.subr.mxu0 0.0
    %6993 = vmatpush1.msra.mxu0 0.0
    %6994 = vmatprep.subr.mxu0 0.0
    %6995 = vmatpush1.msra.mxu0 0.0
    %6996 = vmatprep.subr.mxu0 0.0
    %6997 = vmatpush1.msra.mxu0 %v6961
    %6998 = vmatprep.subr.mxu0 0.0
    %6999 = vmatpush2.msra.mxu0 0.0
    %7000 = vmatprep.subr.mxu0 0.0
    %7001 = vmatpush2.msra.mxu0 0.0
    %7002 = vmatprep.subr.mxu0 0.0
    %7003 = vmatpush2.msra.mxu0 0.0
    %7004 = vmatprep.subr.mxu0 0.0
    %7005 = vmatpush2.msra.mxu0 0.0
    %7006 = vmatprep.subr.mxu0 0.0
    %7007 = vmatpush2.msra.mxu0 0.0
    %7008 = vmatprep.subr.mxu0 0.0
    %7009 = vmatpush2.msra.mxu0 0.0
    %7010 = vmatprep.subr.mxu0 0.0
    %7011 = vmatpush2.msra.mxu0 0.0
    %7012 = vmatprep.subr.mxu0 0.0
    %7013 = vmatpush2.msra.mxu0 0.0
    %7014 = vmatprep.subr.mxu0 0.0
    %7015 = vmatpush2.msra.mxu0 0.0
    %7016 = vmatprep.subr.mxu0 0.0
    %7017 = vmatpush2.msra.mxu0 0.0
    %7018 = vmatprep.subr.mxu0 0.0
    %7019 = vmatpush2.msra.mxu0 0.0
    %7020 = vmatprep.subr.mxu0 0.0
    %7021 = vmatpush2.msra.mxu0 0.0
    %7022 = vmatprep.subr.mxu0 0.0
    %7023 = vmatpush2.msra.mxu0 0.0
    %7024 = vmatprep.subr.mxu0 0.0
    %7025 = vmatpush2.msra.mxu0 0.0
    %7026 = vmatprep.subr.mxu0 0.0
    %7027 = vmatpush2.msra.mxu0 0.0
    %7028 = vmatprep.subr.mxu0 0.0
    %7029 = vmatpush2.msra.mxu0 0.0
    %7030 = vmatprep.mubr.f32.mxu0 0.0
    %7031 = vmatmul.mubr.f32.gmra.mxu0 %v6964
    %v7032 = vpop.f32.mrf.mxu0
    %v7033 = vadd.f32 0.0, %v7032
    %v7034 = vpop.f32.mrf.mxu0
    %7035 = vdwg.mxu0
    %7036 = vrot.lane.b32.xlu0 %v6452, 88
    %v7037 = vpop.permute.xlu0 %7036
    %v7040 = vsel %vm131, %v6959, 0
    %7042 = vmatprep.subr.mxu0 0.0
    %7043 = vmatpush1.msra.mxu0 0.0
    %7044 = vmatprep.subr.mxu0 0.0
    %7045 = vmatpush1.msra.mxu0 0.0
    %7046 = vmatprep.subr.mxu0 0.0
    %7047 = vmatpush1.msra.mxu0 0.0
    %7048 = vmatprep.subr.mxu0 0.0
    %7049 = vmatpush1.msra.mxu0 0.0
    %7050 = vmatprep.subr.mxu0 0.0
    %7051 = vmatpush1.msra.mxu0 0.0
    %7052 = vmatprep.subr.mxu0 0.0
    %7053 = vmatpush1.msra.mxu0 0.0
    %7054 = vmatprep.subr.mxu0 0.0
    %7055 = vmatpush1.msra.mxu0 0.0
    %7056 = vmatprep.subr.mxu0 0.0
    %7057 = vmatpush1.msra.mxu0 0.0
    %7058 = vmatprep.subr.mxu0 0.0
    %7059 = vmatpush1.msra.mxu0 0.0
    %7060 = vmatprep.subr.mxu0 0.0
    %7061 = vmatpush1.msra.mxu0 0.0
    %7062 = vmatprep.subr.mxu0 0.0
    %7063 = vmatpush1.msra.mxu0 0.0
    %7064 = vmatprep.subr.mxu0 0.0
    %7065 = vmatpush1.msra.mxu0 0.0
    %7066 = vmatprep.subr.mxu0 0.0
    %7067 = vmatpush1.msra.mxu0 0.0
    %7068 = vmatprep.subr.mxu0 0.0
    %7069 = vmatpush1.msra.mxu0 0.0
    %7070 = vmatprep.subr.mxu0 0.0
    %7071 = vmatpush1.msra.mxu0 0.0
    %7072 = vmatprep.subr.mxu0 0.0
    %7073 = vmatpush1.msra.mxu0 %v7037
    %7074 = vmatprep.subr.mxu0 0.0
    %7075 = vmatpush2.msra.mxu0 0.0
    %7076 = vmatprep.subr.mxu0 0.0
    %7077 = vmatpush2.msra.mxu0 0.0
    %7078 = vmatprep.subr.mxu0 0.0
    %7079 = vmatpush2.msra.mxu0 0.0
    %7080 = vmatprep.subr.mxu0 0.0
    %7081 = vmatpush2.msra.mxu0 0.0
    %7082 = vmatprep.subr.mxu0 0.0
    %7083 = vmatpush2.msra.mxu0 0.0
    %7084 = vmatprep.subr.mxu0 0.0
    %7085 = vmatpush2.msra.mxu0 0.0
    %7086 = vmatprep.subr.mxu0 0.0
    %7087 = vmatpush2.msra.mxu0 0.0
    %7088 = vmatprep.subr.mxu0 0.0
    %7089 = vmatpush2.msra.mxu0 0.0
    %7090 = vmatprep.subr.mxu0 0.0
    %7091 = vmatpush2.msra.mxu0 0.0
    %7092 = vmatprep.subr.mxu0 0.0
    %7093 = vmatpush2.msra.mxu0 0.0
    %7094 = vmatprep.subr.mxu0 0.0
    %7095 = vmatpush2.msra.mxu0 0.0
    %7096 = vmatprep.subr.mxu0 0.0
    %7097 = vmatpush2.msra.mxu0 0.0
    %7098 = vmatprep.subr.mxu0 0.0
    %7099 = vmatpush2.msra.mxu0 0.0
    %7100 = vmatprep.subr.mxu0 0.0
    %7101 = vmatpush2.msra.mxu0 0.0
    %7102 = vmatprep.subr.mxu0 0.0
    %7103 = vmatpush2.msra.mxu0 0.0
    %7104 = vmatprep.subr.mxu0 0.0
    %7105 = vmatpush2.msra.mxu0 0.0
    %7106 = vmatprep.mubr.f32.mxu0 0.0
    %7107 = vmatmul.mubr.f32.gmra.mxu0 %v7040
    %v7108 = vpop.f32.mrf.mxu0
    %v7109 = vadd.f32 0.0, %v7108
    %v7110 = vpop.f32.mrf.mxu0
    %7111 = vdwg.mxu0
    %7114 = vrot.lane.b32.xlu0 %v7033, 8
    %v7115 = vpop.permute.xlu0 %7114
    %7116 = vrot.lane.b32.xlu0 %v7109, 8
    %v7117 = vpop.permute.xlu0 %7116
    %v7120 = vadd.f32 %v6455, %v7115
    %v7121 = vadd.f32 %v6455, %v7117
    %7122 = vrot.lane.b32.xlu0 %v6455, 112
    %v7123 = vpop.permute.xlu0 %7122
    %7124 = vrot.lane.b32.xlu0 %v6447, 112
    %v7125 = vpop.permute.xlu0 %7124
    %v7126 = vsel %vm131, %v7123, 0
    %v7128 = vsel %vm131, %v7125, 0
    %7130 = vmatprep.subr.mxu0 0.0
    %7131 = vmatpush1.xpose.msra.mxu0 0.0
    %7132 = vmatprep.subr.mxu0 0.0
    %7133 = vmatpush1.xpose.msra.mxu0 0.0
    %7134 = vmatprep.subr.mxu0 0.0
    %7135 = vmatpush1.xpose.msra.mxu0 0.0
    %7136 = vmatprep.subr.mxu0 0.0
    %7137 = vmatpush1.xpose.msra.mxu0 0.0
    %7138 = vmatprep.subr.mxu0 0.0
    %7139 = vmatpush1.xpose.msra.mxu0 0.0
    %7140 = vmatprep.subr.mxu0 0.0
    %7141 = vmatpush1.xpose.msra.mxu0 0.0
    %7142 = vmatprep.subr.mxu0 0.0
    %7143 = vmatpush1.xpose.msra.mxu0 0.0
    %7144 = vmatprep.subr.mxu0 0.0
    %7145 = vmatpush1.xpose.msra.mxu0 0.0
    %7146 = vmatprep.subr.mxu0 0.0
    %7147 = vmatpush1.xpose.msra.mxu0 0.0
    %7148 = vmatprep.subr.mxu0 0.0
    %7149 = vmatpush1.xpose.msra.mxu0 0.0
    %7150 = vmatprep.subr.mxu0 0.0
    %7151 = vmatpush1.xpose.msra.mxu0 0.0
    %7152 = vmatprep.subr.mxu0 0.0
    %7153 = vmatpush1.xpose.msra.mxu0 0.0
    %7154 = vmatprep.subr.mxu0 0.0
    %7155 = vmatpush1.xpose.msra.mxu0 0.0
    %7156 = vmatprep.subr.mxu0 0.0
    %7157 = vmatpush1.xpose.msra.mxu0 0.0
    %7158 = vmatprep.subr.mxu0 0.0
    %7159 = vmatpush1.xpose.msra.mxu0 0.0
    %7160 = vmatprep.subr.mxu0 0.0
    %7161 = vmatpush1.xpose.msra.mxu0 %v7128
    %7162 = vmatprep.subr.mxu0 0.0
    %7163 = vmatpush2.xpose.msra.mxu0 0.0
    %7164 = vmatprep.subr.mxu0 0.0
    %7165 = vmatpush2.xpose.msra.mxu0 0.0
    %7166 = vmatprep.subr.mxu0 0.0
    %7167 = vmatpush2.xpose.msra.mxu0 0.0
    %7168 = vmatprep.subr.mxu0 0.0
    %7169 = vmatpush2.xpose.msra.mxu0 0.0
    %7170 = vmatprep.subr.mxu0 0.0
    %7171 = vmatpush2.xpose.msra.mxu0 0.0
    %7172 = vmatprep.subr.mxu0 0.0
    %7173 = vmatpush2.xpose.msra.mxu0 0.0
    %7174 = vmatprep.subr.mxu0 0.0
    %7175 = vmatpush2.xpose.msra.mxu0 0.0
    %7176 = vmatprep.subr.mxu0 0.0
    %7177 = vmatpush2.xpose.msra.mxu0 0.0
    %7178 = vmatprep.subr.mxu0 0.0
    %7179 = vmatpush2.xpose.msra.mxu0 0.0
    %7180 = vmatprep.subr.mxu0 0.0
    %7181 = vmatpush2.xpose.msra.mxu0 0.0
    %7182 = vmatprep.subr.mxu0 0.0
    %7183 = vmatpush2.xpose.msra.mxu0 0.0
    %7184 = vmatprep.subr.mxu0 0.0
    %7185 = vmatpush2.xpose.msra.mxu0 0.0
    %7186 = vmatprep.subr.mxu0 0.0
    %7187 = vmatpush2.xpose.msra.mxu0 0.0
    %7188 = vmatprep.subr.mxu0 0.0
    %7189 = vmatpush2.xpose.msra.mxu0 0.0
    %7190 = vmatprep.subr.mxu0 0.0
    %7191 = vmatpush2.xpose.msra.mxu0 0.0
    %7192 = vmatprep.subr.mxu0 0.0
    %7193 = vmatpush2.xpose.msra.mxu0 0.0
    %7194 = vmatprep.mubr.f32.mxu0 0.0
    %7195 = vmatmul.mubr.f32.gmra.mxu0 %v7126
    %v7196 = vpop.f32.mrf.mxu0
    %v7197 = vadd.f32 0.0, %v7196
    %v7198 = vpop.f32.mrf.mxu0
    %7199 = vdwg.mxu0
    %7200 = vrot.lane.b32.xlu0 %v6452, 112
    %v7201 = vpop.permute.xlu0 %7200
    %v7202 = vsel %vm131, %v7201, 0
    %7204 = vmatprep.subr.mxu0 0.0
    %7205 = vmatpush1.xpose.msra.mxu0 0.0
    %7206 = vmatprep.subr.mxu0 0.0
    %7207 = vmatpush1.xpose.msra.mxu0 0.0
    %7208 = vmatprep.subr.mxu0 0.0
    %7209 = vmatpush1.xpose.msra.mxu0 0.0
    %7210 = vmatprep.subr.mxu0 0.0
    %7211 = vmatpush1.xpose.msra.mxu0 0.0
    %7212 = vmatprep.subr.mxu0 0.0
    %7213 = vmatpush1.xpose.msra.mxu0 0.0
    %7214 = vmatprep.subr.mxu0 0.0
    %7215 = vmatpush1.xpose.msra.mxu0 0.0
    %7216 = vmatprep.subr.mxu0 0.0
    %7217 = vmatpush1.xpose.msra.mxu0 0.0
    %7218 = vmatprep.subr.mxu0 0.0
    %7219 = vmatpush1.xpose.msra.mxu0 0.0
    %7220 = vmatprep.subr.mxu0 0.0
    %7221 = vmatpush1.xpose.msra.mxu0 0.0
    %7222 = vmatprep.subr.mxu0 0.0
    %7223 = vmatpush1.xpose.msra.mxu0 0.0
    %7224 = vmatprep.subr.mxu0 0.0
    %7225 = vmatpush1.xpose.msra.mxu0 0.0
    %7226 = vmatprep.subr.mxu0 0.0
    %7227 = vmatpush1.xpose.msra.mxu0 0.0
    %7228 = vmatprep.subr.mxu0 0.0
    %7229 = vmatpush1.xpose.msra.mxu0 0.0
    %7230 = vmatprep.subr.mxu0 0.0
    %7231 = vmatpush1.xpose.msra.mxu0 0.0
    %7232 = vmatprep.subr.mxu0 0.0
    %7233 = vmatpush1.xpose.msra.mxu0 0.0
    %7234 = vmatprep.subr.mxu0 0.0
    %7235 = vmatpush1.xpose.msra.mxu0 %v7202
    %7236 = vmatprep.subr.mxu0 0.0
    %7237 = vmatpush2.xpose.msra.mxu0 0.0
    %7238 = vmatprep.subr.mxu0 0.0
    %7239 = vmatpush2.xpose.msra.mxu0 0.0
    %7240 = vmatprep.subr.mxu0 0.0
    %7241 = vmatpush2.xpose.msra.mxu0 0.0
    %7242 = vmatprep.subr.mxu0 0.0
    %7243 = vmatpush2.xpose.msra.mxu0 0.0
    %7244 = vmatprep.subr.mxu0 0.0
    %7245 = vmatpush2.xpose.msra.mxu0 0.0
    %7246 = vmatprep.subr.mxu0 0.0
    %7247 = vmatpush2.xpose.msra.mxu0 0.0
    %7248 = vmatprep.subr.mxu0 0.0
    %7249 = vmatpush2.xpose.msra.mxu0 0.0
    %7250 = vmatprep.subr.mxu0 0.0
    %7251 = vmatpush2.xpose.msra.mxu0 0.0
    %7252 = vmatprep.subr.mxu0 0.0
    %7253 = vmatpush2.xpose.msra.mxu0 0.0
    %7254 = vmatprep.subr.mxu0 0.0
    %7255 = vmatpush2.xpose.msra.mxu0 0.0
    %7256 = vmatprep.subr.mxu0 0.0
    %7257 = vmatpush2.xpose.msra.mxu0 0.0
    %7258 = vmatprep.subr.mxu0 0.0
    %7259 = vmatpush2.xpose.msra.mxu0 0.0
    %7260 = vmatprep.subr.mxu0 0.0
    %7261 = vmatpush2.xpose.msra.mxu0 0.0
    %7262 = vmatprep.subr.mxu0 0.0
    %7263 = vmatpush2.xpose.msra.mxu0 0.0
    %7264 = vmatprep.subr.mxu0 0.0
    %7265 = vmatpush2.xpose.msra.mxu0 0.0
    %7266 = vmatprep.subr.mxu0 0.0
    %7267 = vmatpush2.xpose.msra.mxu0 0.0
    %7268 = vmatprep.mubr.f32.mxu0 0.0
    %7269 = vmatmul.mubr.f32.gmra.mxu0 %v7126
    %v7270 = vpop.f32.mrf.mxu0
    %v7271 = vadd.f32 0.0, %v7270
    %v7272 = vpop.f32.mrf.mxu0
    %7273 = vdwg.mxu0
    %v7274 = vmul.f32 %v7197, 0.17677669
    %v7275 = vmul.f32 %v7271, 0.17677669
    %v7276 = vsel %vm6607, %v7274, -inf
    %7277 = vmax.xlane.f32.xlu0 %v7276
    %v7278 = vpop.xlane.xlu0 %7277
    %v7279 = vsel %vm6607, %v7275, -inf
    %7280 = vmax.xlane.f32.xlu0 %v7279
    %v7281 = vpop.xlane.xlu0 %7280
    %v7282 = vsub.f32 %v7274, %v7278
    %v7283 = vsub.f32 %v7275, %v7281
    %v7284 = vmul.f32 %v7282, 1.442695
    %v7285 = vpow.pop %v7284
    %v7286 = vmul.f32 %v7283, 1.442695
    %v7287 = vpow.pop %v7286
    %v7288 = vsel %vm6607, %v7285, 0.0
    %7289 = vadd.xlane.f32.xlu0 %v7288
    %v7290 = vpop.xlane.xlu0 %7289
    %v7291 = vsel %vm6607, %v7287, 0.0
    %7292 = vadd.xlane.f32.xlu0 %v7291
    %v7293 = vpop.xlane.xlu0 %7292
    %v7294 = vrcp.pop %v7290
    %v7295 = vmul.f32 %v7285, %v7294
    %v7296 = vrcp.pop %v7293
    %v7297 = vmul.f32 %v7287, %v7296
    %7298 = vrot.lane.b32.xlu0 %v6447, 80
    %v7299 = vpop.permute.xlu0 %7298
    %v7302 = vsel %vm131, %v7295, 0
    %7304 = vmatprep.subr.mxu0 0.0
    %7305 = vmatpush1.msra.mxu0 0.0
    %7306 = vmatprep.subr.mxu0 0.0
    %7307 = vmatpush1.msra.mxu0 0.0
    %7308 = vmatprep.subr.mxu0 0.0
    %7309 = vmatpush1.msra.mxu0 0.0
    %7310 = vmatprep.subr.mxu0 0.0
    %7311 = vmatpush1.msra.mxu0 0.0
    %7312 = vmatprep.subr.mxu0 0.0
    %7313 = vmatpush1.msra.mxu0 0.0
    %7314 = vmatprep.subr.mxu0 0.0
    %7315 = vmatpush1.msra.mxu0 0.0
    %7316 = vmatprep.subr.mxu0 0.0
    %7317 = vmatpush1.msra.mxu0 0.0
    %7318 = vmatprep.subr.mxu0 0.0
    %7319 = vmatpush1.msra.mxu0 0.0
    %7320 = vmatprep.subr.mxu0 0.0
    %7321 = vmatpush1.msra.mxu0 0.0
    %7322 = vmatprep.subr.mxu0 0.0
    %7323 = vmatpush1.msra.mxu0 0.0
    %7324 = vmatprep.subr.mxu0 0.0
    %7325 = vmatpush1.msra.mxu0 0.0
    %7326 = vmatprep.subr.mxu0 0.0
    %7327 = vmatpush1.msra.mxu0 0.0
    %7328 = vmatprep.subr.mxu0 0.0
    %7329 = vmatpush1.msra.mxu0 0.0
    %7330 = vmatprep.subr.mxu0 0.0
    %7331 = vmatpush1.msra.mxu0 0.0
    %7332 = vmatprep.subr.mxu0 0.0
    %7333 = vmatpush1.msra.mxu0 0.0
    %7334 = vmatprep.subr.mxu0 0.0
    %7335 = vmatpush1.msra.mxu0 %v7299
    %7336 = vmatprep.subr.mxu0 0.0
    %7337 = vmatpush2.msra.mxu0 0.0
    %7338 = vmatprep.subr.mxu0 0.0
    %7339 = vmatpush2.msra.mxu0 0.0
    %7340 = vmatprep.subr.mxu0 0.0
    %7341 = vmatpush2.msra.mxu0 0.0
    %7342 = vmatprep.subr.mxu0 0.0
    %7343 = vmatpush2.msra.mxu0 0.0
    %7344 = vmatprep.subr.mxu0 0.0
    %7345 = vmatpush2.msra.mxu0 0.0
    %7346 = vmatprep.subr.mxu0 0.0
    %7347 = vmatpush2.msra.mxu0 0.0
    %7348 = vmatprep.subr.mxu0 0.0
    %7349 = vmatpush2.msra.mxu0 0.0
    %7350 = vmatprep.subr.mxu0 0.0
    %7351 = vmatpush2.msra.mxu0 0.0
    %7352 = vmatprep.subr.mxu0 0.0
    %7353 = vmatpush2.msra.mxu0 0.0
    %7354 = vmatprep.subr.mxu0 0.0
    %7355 = vmatpush2.msra.mxu0 0.0
    %7356 = vmatprep.subr.mxu0 0.0
    %7357 = vmatpush2.msra.mxu0 0.0
    %7358 = vmatprep.subr.mxu0 0.0
    %7359 = vmatpush2.msra.mxu0 0.0
    %7360 = vmatprep.subr.mxu0 0.0
    %7361 = vmatpush2.msra.mxu0 0.0
    %7362 = vmatprep.subr.mxu0 0.0
    %7363 = vmatpush2.msra.mxu0 0.0
    %7364 = vmatprep.subr.mxu0 0.0
    %7365 = vmatpush2.msra.mxu0 0.0
    %7366 = vmatprep.subr.mxu0 0.0
    %7367 = vmatpush2.msra.mxu0 0.0
    %7368 = vmatprep.mubr.f32.mxu0 0.0
    %7369 = vmatmul.mubr.f32.gmra.mxu0 %v7302
    %v7370 = vpop.f32.mrf.mxu0
    %v7371 = vadd.f32 0.0, %v7370
    %v7372 = vpop.f32.mrf.mxu0
    %7373 = vdwg.mxu0
    %7374 = vrot.lane.b32.xlu0 %v6452, 80
    %v7375 = vpop.permute.xlu0 %7374
    %v7378 = vsel %vm131, %v7297, 0
    %7380 = vmatprep.subr.mxu0 0.0
    %7381 = vmatpush1.msra.mxu0 0.0
    %7382 = vmatprep.subr.mxu0 0.0
    %7383 = vmatpush1.msra.mxu0 0.0
    %7384 = vmatprep.subr.mxu0 0.0
    %7385 = vmatpush1.msra.mxu0 0.0
    %7386 = vmatprep.subr.mxu0 0.0
    %7387 = vmatpush1.msra.mxu0 0.0
    %7388 = vmatprep.subr.mxu0 0.0
    %7389 = vmatpush1.msra.mxu0 0.0
    %7390 = vmatprep.subr.mxu0 0.0
    %7391 = vmatpush1.msra.mxu0 0.0
    %7392 = vmatprep.subr.mxu0 0.0
    %7393 = vmatpush1.msra.mxu0 0.0
    %7394 = vmatprep.subr.mxu0 0.0
    %7395 = vmatpush1.msra.mxu0 0.0
    %7396 = vmatprep.subr.mxu0 0.0
    %7397 = vmatpush1.msra.mxu0 0.0
    %7398 = vmatprep.subr.mxu0 0.0
    %7399 = vmatpush1.msra.mxu0 0.0
    %7400 = vmatprep.subr.mxu0 0.0
    %7401 = vmatpush1.msra.mxu0 0.0
    %7402 = vmatprep.subr.mxu0 0.0
    %7403 = vmatpush1.msra.mxu0 0.0
    %7404 = vmatprep.subr.mxu0 0.0
    %7405 = vmatpush1.msra.mxu0 0.0
    %7406 = vmatprep.subr.mxu0 0.0
    %7407 = vmatpush1.msra.mxu0 0.0
    %7408 = vmatprep.subr.mxu0 0.0
    %7409 = vmatpush1.msra.mxu0 0.0
    %7410 = vmatprep.subr.mxu0 0.0
    %7411 = vmatpush1.msra.mxu0 %v7375
    %7412 = vmatprep.subr.mxu0 0.0
    %7413 = vmatpush2.msra.mxu0 0.0
    %7414 = vmatprep.subr.mxu0 0.0
    %7415 = vmatpush2.msra.mxu0 0.0
    %7416 = vmatprep.subr.mxu0 0.0
    %7417 = vmatpush2.msra.mxu0 0.0
    %7418 = vmatprep.subr.mxu0 0.0
    %7419 = vmatpush2.msra.mxu0 0.0
    %7420 = vmatprep.subr.mxu0 0.0
    %7421 = vmatpush2.msra.mxu0 0.0
    %7422 = vmatprep.subr.mxu0 0.0
    %7423 = vmatpush2.msra.mxu0 0.0
    %7424 = vmatprep.subr.mxu0 0.0
    %7425 = vmatpush2.msra.mxu0 0.0
    %7426 = vmatprep.subr.mxu0 0.0
    %7427 = vmatpush2.msra.mxu0 0.0
    %7428 = vmatprep.subr.mxu0 0.0
    %7429 = vmatpush2.msra.mxu0 0.0
    %7430 = vmatprep.subr.mxu0 0.0
    %7431 = vmatpush2.msra.mxu0 0.0
    %7432 = vmatprep.subr.mxu0 0.0
    %7433 = vmatpush2.msra.mxu0 0.0
    %7434 = vmatprep.subr.mxu0 0.0
    %7435 = vmatpush2.msra.mxu0 0.0
    %7436 = vmatprep.subr.mxu0 0.0
    %7437 = vmatpush2.msra.mxu0 0.0
    %7438 = vmatprep.subr.mxu0 0.0
    %7439 = vmatpush2.msra.mxu0 0.0
    %7440 = vmatprep.subr.mxu0 0.0
    %7441 = vmatpush2.msra.mxu0 0.0
    %7442 = vmatprep.subr.mxu0 0.0
    %7443 = vmatpush2.msra.mxu0 0.0
    %7444 = vmatprep.mubr.f32.mxu0 0.0
    %7445 = vmatmul.mubr.f32.gmra.mxu0 %v7378
    %v7446 = vpop.f32.mrf.mxu0
    %v7447 = vadd.f32 0.0, %v7446
    %v7448 = vpop.f32.mrf.mxu0
    %7449 = vdwg.mxu0
    %7452 = vrot.lane.b32.xlu0 %v7371, 16
    %v7453 = vpop.permute.xlu0 %7452
    %7454 = vrot.lane.b32.xlu0 %v7447, 16
    %v7455 = vpop.permute.xlu0 %7454
    %v7458 = vadd.f32 %v6455, %v7453
    %v7459 = vadd.f32 %v6455, %v7455
    %7460 = vrot.lane.b32.xlu0 %v6455, 104
    %v7461 = vpop.permute.xlu0 %7460
    %7462 = vrot.lane.b32.xlu0 %v6447, 104
    %v7463 = vpop.permute.xlu0 %7462
    %v7464 = vsel %vm131, %v7461, 0
    %v7466 = vsel %vm131, %v7463, 0
    %7468 = vmatprep.subr.mxu0 0.0
    %7469 = vmatpush1.xpose.msra.mxu0 0.0
    %7470 = vmatprep.subr.mxu0 0.0
    %7471 = vmatpush1.xpose.msra.mxu0 0.0
    %7472 = vmatprep.subr.mxu0 0.0
    %7473 = vmatpush1.xpose.msra.mxu0 0.0
    %7474 = vmatprep.subr.mxu0 0.0
    %7475 = vmatpush1.xpose.msra.mxu0 0.0
    %7476 = vmatprep.subr.mxu0 0.0
    %7477 = vmatpush1.xpose.msra.mxu0 0.0
    %7478 = vmatprep.subr.mxu0 0.0
    %7479 = vmatpush1.xpose.msra.mxu0 0.0
    %7480 = vmatprep.subr.mxu0 0.0
    %7481 = vmatpush1.xpose.msra.mxu0 0.0
    %7482 = vmatprep.subr.mxu0 0.0
    %7483 = vmatpush1.xpose.msra.mxu0 0.0
    %7484 = vmatprep.subr.mxu0 0.0
    %7485 = vmatpush1.xpose.msra.mxu0 0.0
    %7486 = vmatprep.subr.mxu0 0.0
    %7487 = vmatpush1.xpose.msra.mxu0 0.0
    %7488 = vmatprep.subr.mxu0 0.0
    %7489 = vmatpush1.xpose.msra.mxu0 0.0
    %7490 = vmatprep.subr.mxu0 0.0
    %7491 = vmatpush1.xpose.msra.mxu0 0.0
    %7492 = vmatprep.subr.mxu0 0.0
    %7493 = vmatpush1.xpose.msra.mxu0 0.0
    %7494 = vmatprep.subr.mxu0 0.0
    %7495 = vmatpush1.xpose.msra.mxu0 0.0
    %7496 = vmatprep.subr.mxu0 0.0
    %7497 = vmatpush1.xpose.msra.mxu0 0.0
    %7498 = vmatprep.subr.mxu0 0.0
    %7499 = vmatpush1.xpose.msra.mxu0 %v7466
    %7500 = vmatprep.subr.mxu0 0.0
    %7501 = vmatpush2.xpose.msra.mxu0 0.0
    %7502 = vmatprep.subr.mxu0 0.0
    %7503 = vmatpush2.xpose.msra.mxu0 0.0
    %7504 = vmatprep.subr.mxu0 0.0
    %7505 = vmatpush2.xpose.msra.mxu0 0.0
    %7506 = vmatprep.subr.mxu0 0.0
    %7507 = vmatpush2.xpose.msra.mxu0 0.0
    %7508 = vmatprep.subr.mxu0 0.0
    %7509 = vmatpush2.xpose.msra.mxu0 0.0
    %7510 = vmatprep.subr.mxu0 0.0
    %7511 = vmatpush2.xpose.msra.mxu0 0.0
    %7512 = vmatprep.subr.mxu0 0.0
    %7513 = vmatpush2.xpose.msra.mxu0 0.0
    %7514 = vmatprep.subr.mxu0 0.0
    %7515 = vmatpush2.xpose.msra.mxu0 0.0
    %7516 = vmatprep.subr.mxu0 0.0
    %7517 = vmatpush2.xpose.msra.mxu0 0.0
    %7518 = vmatprep.subr.mxu0 0.0
    %7519 = vmatpush2.xpose.msra.mxu0 0.0
    %7520 = vmatprep.subr.mxu0 0.0
    %7521 = vmatpush2.xpose.msra.mxu0 0.0
    %7522 = vmatprep.subr.mxu0 0.0
    %7523 = vmatpush2.xpose.msra.mxu0 0.0
    %7524 = vmatprep.subr.mxu0 0.0
    %7525 = vmatpush2.xpose.msra.mxu0 0.0
    %7526 = vmatprep.subr.mxu0 0.0
    %7527 = vmatpush2.xpose.msra.mxu0 0.0
    %7528 = vmatprep.subr.mxu0 0.0
    %7529 = vmatpush2.xpose.msra.mxu0 0.0
    %7530 = vmatprep.subr.mxu0 0.0
    %7531 = vmatpush2.xpose.msra.mxu0 0.0
    %7532 = vmatprep.mubr.f32.mxu0 0.0
    %7533 = vmatmul.mubr.f32.gmra.mxu0 %v7464
    %v7534 = vpop.f32.mrf.mxu0
    %v7535 = vadd.f32 0.0, %v7534
    %v7536 = vpop.f32.mrf.mxu0
    %7537 = vdwg.mxu0
    %7538 = vrot.lane.b32.xlu0 %v6452, 104
    %v7539 = vpop.permute.xlu0 %7538
    %v7540 = vsel %vm131, %v7539, 0
    %7542 = vmatprep.subr.mxu0 0.0
    %7543 = vmatpush1.xpose.msra.mxu0 0.0
    %7544 = vmatprep.subr.mxu0 0.0
    %7545 = vmatpush1.xpose.msra.mxu0 0.0
    %7546 = vmatprep.subr.mxu0 0.0
    %7547 = vmatpush1.xpose.msra.mxu0 0.0
    %7548 = vmatprep.subr.mxu0 0.0
    %7549 = vmatpush1.xpose.msra.mxu0 0.0
    %7550 = vmatprep.subr.mxu0 0.0
    %7551 = vmatpush1.xpose.msra.mxu0 0.0
    %7552 = vmatprep.subr.mxu0 0.0
    %7553 = vmatpush1.xpose.msra.mxu0 0.0
    %7554 = vmatprep.subr.mxu0 0.0
    %7555 = vmatpush1.xpose.msra.mxu0 0.0
    %7556 = vmatprep.subr.mxu0 0.0
    %7557 = vmatpush1.xpose.msra.mxu0 0.0
    %7558 = vmatprep.subr.mxu0 0.0
    %7559 = vmatpush1.xpose.msra.mxu0 0.0
    %7560 = vmatprep.subr.mxu0 0.0
    %7561 = vmatpush1.xpose.msra.mxu0 0.0
    %7562 = vmatprep.subr.mxu0 0.0
    %7563 = vmatpush1.xpose.msra.mxu0 0.0
    %7564 = vmatprep.subr.mxu0 0.0
    %7565 = vmatpush1.xpose.msra.mxu0 0.0
    %7566 = vmatprep.subr.mxu0 0.0
    %7567 = vmatpush1.xpose.msra.mxu0 0.0
    %7568 = vmatprep.subr.mxu0 0.0
    %7569 = vmatpush1.xpose.msra.mxu0 0.0
    %7570 = vmatprep.subr.mxu0 0.0
    %7571 = vmatpush1.xpose.msra.mxu0 0.0
    %7572 = vmatprep.subr.mxu0 0.0
    %7573 = vmatpush1.xpose.msra.mxu0 %v7540
    %7574 = vmatprep.subr.mxu0 0.0
    %7575 = vmatpush2.xpose.msra.mxu0 0.0
    %7576 = vmatprep.subr.mxu0 0.0
    %7577 = vmatpush2.xpose.msra.mxu0 0.0
    %7578 = vmatprep.subr.mxu0 0.0
    %7579 = vmatpush2.xpose.msra.mxu0 0.0
    %7580 = vmatprep.subr.mxu0 0.0
    %7581 = vmatpush2.xpose.msra.mxu0 0.0
    %7582 = vmatprep.subr.mxu0 0.0
    %7583 = vmatpush2.xpose.msra.mxu0 0.0
    %7584 = vmatprep.subr.mxu0 0.0
    %7585 = vmatpush2.xpose.msra.mxu0 0.0
    %7586 = vmatprep.subr.mxu0 0.0
    %7587 = vmatpush2.xpose.msra.mxu0 0.0
    %7588 = vmatprep.subr.mxu0 0.0
    %7589 = vmatpush2.xpose.msra.mxu0 0.0
    %7590 = vmatprep.subr.mxu0 0.0
    %7591 = vmatpush2.xpose.msra.mxu0 0.0
    %7592 = vmatprep.subr.mxu0 0.0
    %7593 = vmatpush2.xpose.msra.mxu0 0.0
    %7594 = vmatprep.subr.mxu0 0.0
    %7595 = vmatpush2.xpose.msra.mxu0 0.0
    %7596 = vmatprep.subr.mxu0 0.0
    %7597 = vmatpush2.xpose.msra.mxu0 0.0
    %7598 = vmatprep.subr.mxu0 0.0
    %7599 = vmatpush2.xpose.msra.mxu0 0.0
    %7600 = vmatprep.subr.mxu0 0.0
    %7601 = vmatpush2.xpose.msra.mxu0 0.0
    %7602 = vmatprep.subr.mxu0 0.0
    %7603 = vmatpush2.xpose.msra.mxu0 0.0
    %7604 = vmatprep.subr.mxu0 0.0
    %7605 = vmatpush2.xpose.msra.mxu0 0.0
    %7606 = vmatprep.mubr.f32.mxu0 0.0
    %7607 = vmatmul.mubr.f32.gmra.mxu0 %v7464
    %v7608 = vpop.f32.mrf.mxu0
    %v7609 = vadd.f32 0.0, %v7608
    %v7610 = vpop.f32.mrf.mxu0
    %7611 = vdwg.mxu0
    %v7612 = vmul.f32 %v7535, 0.17677669
    %v7613 = vmul.f32 %v7609, 0.17677669
    %v7614 = vsel %vm6607, %v7612, -inf
    %7615 = vmax.xlane.f32.xlu0 %v7614
    %v7616 = vpop.xlane.xlu0 %7615
    %v7617 = vsel %vm6607, %v7613, -inf
    %7618 = vmax.xlane.f32.xlu0 %v7617
    %v7619 = vpop.xlane.xlu0 %7618
    %v7620 = vsub.f32 %v7612, %v7616
    %v7621 = vsub.f32 %v7613, %v7619
    %v7622 = vmul.f32 %v7620, 1.442695
    %v7623 = vpow.pop %v7622
    %v7624 = vmul.f32 %v7621, 1.442695
    %v7625 = vpow.pop %v7624
    %v7626 = vsel %vm6607, %v7623, 0.0
    %7627 = vadd.xlane.f32.xlu0 %v7626
    %v7628 = vpop.xlane.xlu0 %7627
    %v7629 = vsel %vm6607, %v7625, 0.0
    %7630 = vadd.xlane.f32.xlu0 %v7629
    %v7631 = vpop.xlane.xlu0 %7630
    %v7632 = vrcp.pop %v7628
    %v7633 = vmul.f32 %v7623, %v7632
    %v7634 = vrcp.pop %v7631
    %v7635 = vmul.f32 %v7625, %v7634
    %7636 = vrot.lane.b32.xlu0 %v6447, 72
    %v7637 = vpop.permute.xlu0 %7636
    %v7640 = vsel %vm131, %v7633, 0
    %7642 = vmatprep.subr.mxu0 0.0
    %7643 = vmatpush1.msra.mxu0 0.0
    %7644 = vmatprep.subr.mxu0 0.0
    %7645 = vmatpush1.msra.mxu0 0.0
    %7646 = vmatprep.subr.mxu0 0.0
    %7647 = vmatpush1.msra.mxu0 0.0
    %7648 = vmatprep.subr.mxu0 0.0
    %7649 = vmatpush1.msra.mxu0 0.0
    %7650 = vmatprep.subr.mxu0 0.0
    %7651 = vmatpush1.msra.mxu0 0.0
    %7652 = vmatprep.subr.mxu0 0.0
    %7653 = vmatpush1.msra.mxu0 0.0
    %7654 = vmatprep.subr.mxu0 0.0
    %7655 = vmatpush1.msra.mxu0 0.0
    %7656 = vmatprep.subr.mxu0 0.0
    %7657 = vmatpush1.msra.mxu0 0.0
    %7658 = vmatprep.subr.mxu0 0.0
    %7659 = vmatpush1.msra.mxu0 0.0
    %7660 = vmatprep.subr.mxu0 0.0
    %7661 = vmatpush1.msra.mxu0 0.0
    %7662 = vmatprep.subr.mxu0 0.0
    %7663 = vmatpush1.msra.mxu0 0.0
    %7664 = vmatprep.subr.mxu0 0.0
    %7665 = vmatpush1.msra.mxu0 0.0
    %7666 = vmatprep.subr.mxu0 0.0
    %7667 = vmatpush1.msra.mxu0 0.0
    %7668 = vmatprep.subr.mxu0 0.0
    %7669 = vmatpush1.msra.mxu0 0.0
    %7670 = vmatprep.subr.mxu0 0.0
    %7671 = vmatpush1.msra.mxu0 0.0
    %7672 = vmatprep.subr.mxu0 0.0
    %7673 = vmatpush1.msra.mxu0 %v7637
    %7674 = vmatprep.subr.mxu0 0.0
    %7675 = vmatpush2.msra.mxu0 0.0
    %7676 = vmatprep.subr.mxu0 0.0
    %7677 = vmatpush2.msra.mxu0 0.0
    %7678 = vmatprep.subr.mxu0 0.0
    %7679 = vmatpush2.msra.mxu0 0.0
    %7680 = vmatprep.subr.mxu0 0.0
    %7681 = vmatpush2.msra.mxu0 0.0
    %7682 = vmatprep.subr.mxu0 0.0
    %7683 = vmatpush2.msra.mxu0 0.0
    %7684 = vmatprep.subr.mxu0 0.0
    %7685 = vmatpush2.msra.mxu0 0.0
    %7686 = vmatprep.subr.mxu0 0.0
    %7687 = vmatpush2.msra.mxu0 0.0
    %7688 = vmatprep.subr.mxu0 0.0
    %7689 = vmatpush2.msra.mxu0 0.0
    %7690 = vmatprep.subr.mxu0 0.0
    %7691 = vmatpush2.msra.mxu0 0.0
    %7692 = vmatprep.subr.mxu0 0.0
    %7693 = vmatpush2.msra.mxu0 0.0
    %7694 = vmatprep.subr.mxu0 0.0
    %7695 = vmatpush2.msra.mxu0 0.0
    %7696 = vmatprep.subr.mxu0 0.0
    %7697 = vmatpush2.msra.mxu0 0.0
    %7698 = vmatprep.subr.mxu0 0.0
    %7699 = vmatpush2.msra.mxu0 0.0
    %7700 = vmatprep.subr.mxu0 0.0
    %7701 = vmatpush2.msra.mxu0 0.0
    %7702 = vmatprep.subr.mxu0 0.0
    %7703 = vmatpush2.msra.mxu0 0.0
    %7704 = vmatprep.subr.mxu0 0.0
    %7705 = vmatpush2.msra.mxu0 0.0
    %7706 = vmatprep.mubr.f32.mxu0 0.0
    %7707 = vmatmul.mubr.f32.gmra.mxu0 %v7640
    %v7708 = vpop.f32.mrf.mxu0
    %v7709 = vadd.f32 0.0, %v7708
    %v7710 = vpop.f32.mrf.mxu0
    %7711 = vdwg.mxu0
    %7712 = vrot.lane.b32.xlu0 %v6452, 72
    %v7713 = vpop.permute.xlu0 %7712
    %v7716 = vsel %vm131, %v7635, 0
    %7718 = vmatprep.subr.mxu0 0.0
    %7719 = vmatpush1.msra.mxu0 0.0
    %7720 = vmatprep.subr.mxu0 0.0
    %7721 = vmatpush1.msra.mxu0 0.0
    %7722 = vmatprep.subr.mxu0 0.0
    %7723 = vmatpush1.msra.mxu0 0.0
    %7724 = vmatprep.subr.mxu0 0.0
    %7725 = vmatpush1.msra.mxu0 0.0
    %7726 = vmatprep.subr.mxu0 0.0
    %7727 = vmatpush1.msra.mxu0 0.0
    %7728 = vmatprep.subr.mxu0 0.0
    %7729 = vmatpush1.msra.mxu0 0.0
    %7730 = vmatprep.subr.mxu0 0.0
    %7731 = vmatpush1.msra.mxu0 0.0
    %7732 = vmatprep.subr.mxu0 0.0
    %7733 = vmatpush1.msra.mxu0 0.0
    %7734 = vmatprep.subr.mxu0 0.0
    %7735 = vmatpush1.msra.mxu0 0.0
    %7736 = vmatprep.subr.mxu0 0.0
    %7737 = vmatpush1.msra.mxu0 0.0
    %7738 = vmatprep.subr.mxu0 0.0
    %7739 = vmatpush1.msra.mxu0 0.0
    %7740 = vmatprep.subr.mxu0 0.0
    %7741 = vmatpush1.msra.mxu0 0.0
    %7742 = vmatprep.subr.mxu0 0.0
    %7743 = vmatpush1.msra.mxu0 0.0
    %7744 = vmatprep.subr.mxu0 0.0
    %7745 = vmatpush1.msra.mxu0 0.0
    %7746 = vmatprep.subr.mxu0 0.0
    %7747 = vmatpush1.msra.mxu0 0.0
    %7748 = vmatprep.subr.mxu0 0.0
    %7749 = vmatpush1.msra.mxu0 %v7713
    %7750 = vmatprep.subr.mxu0 0.0
    %7751 = vmatpush2.msra.mxu0 0.0
    %7752 = vmatprep.subr.mxu0 0.0
    %7753 = vmatpush2.msra.mxu0 0.0
    %7754 = vmatprep.subr.mxu0 0.0
    %7755 = vmatpush2.msra.mxu0 0.0
    %7756 = vmatprep.subr.mxu0 0.0
    %7757 = vmatpush2.msra.mxu0 0.0
    %7758 = vmatprep.subr.mxu0 0.0
    %7759 = vmatpush2.msra.mxu0 0.0
    %7760 = vmatprep.subr.mxu0 0.0
    %7761 = vmatpush2.msra.mxu0 0.0
    %7762 = vmatprep.subr.mxu0 0.0
    %7763 = vmatpush2.msra.mxu0 0.0
    %7764 = vmatprep.subr.mxu0 0.0
    %7765 = vmatpush2.msra.mxu0 0.0
    %7766 = vmatprep.subr.mxu0 0.0
    %7767 = vmatpush2.msra.mxu0 0.0
    %7768 = vmatprep.subr.mxu0 0.0
    %7769 = vmatpush2.msra.mxu0 0.0
    %7770 = vmatprep.subr.mxu0 0.0
    %7771 = vmatpush2.msra.mxu0 0.0
    %7772 = vmatprep.subr.mxu0 0.0
    %7773 = vmatpush2.msra.mxu0 0.0
    %7774 = vmatprep.subr.mxu0 0.0
    %7775 = vmatpush2.msra.mxu0 0.0
    %7776 = vmatprep.subr.mxu0 0.0
    %7777 = vmatpush2.msra.mxu0 0.0
    %7778 = vmatprep.subr.mxu0 0.0
    %7779 = vmatpush2.msra.mxu0 0.0
    %7780 = vmatprep.subr.mxu0 0.0
    %7781 = vmatpush2.msra.mxu0 0.0
    %7782 = vmatprep.mubr.f32.mxu0 0.0
    %7783 = vmatmul.mubr.f32.gmra.mxu0 %v7716
    %v7784 = vpop.f32.mrf.mxu0
    %v7785 = vadd.f32 0.0, %v7784
    %v7786 = vpop.f32.mrf.mxu0
    %7787 = vdwg.mxu0
    %7790 = vrot.lane.b32.xlu0 %v7709, 24
    %v7791 = vpop.permute.xlu0 %7790
    %7792 = vrot.lane.b32.xlu0 %v7785, 24
    %v7793 = vpop.permute.xlu0 %7792
    %v7796 = vadd.f32 %v6455, %v7791
    %v7797 = vadd.f32 %v6455, %v7793
    %v7798 = vsel %vm131, %v6782, %v7120
    %v7799 = vsel %vm131, %v6783, %v7121
    %v7800 = vsel %vm48, %v7798, %v7458
    %v7801 = vsel %vm48, %v7799, %v7459
    %v7802 = vsel %vm1477, %v7800, %v7796
    %v7803 = vsel %vm1477, %v7801, %v7797
    %v7804 = vld [vmem:[#allocation4 + $0x1b0] sm:$0xff]
    %v7805 = vld [vmem:[#allocation4 + $0x1b8] sm:$0xff]
    %v7806 = vld [vmem:[#allocation4 + $0x1c0] sm:$0xff]
    %v7807 = vld [vmem:[#allocation4 + $0x1c8] sm:$0xff]
    %v7808 = vld [vmem:[#allocation4 + $0x1d0] sm:$0x1]
    %v7809 = vlaneseq
    %v7810 = vshrl.u32 %v7809, 7
    %v7811 = vsub.s32 0, %v7810
    %v7812 = vrot.slane %v7808, %v7811
    %v7815 = vrot.slane %v7803, 7
    %vm7816 = vcmask 1041409
    %v7817 = vsel %vm7816, %v7815, %v7802
    %v7818 = vsel %vm1489, %v7817, 0
    %7820 = vmatprep.subr.mxu0 0.0
    %7821 = vmatpush1.msra.mxu0 0.0
    %7822 = vmatprep.subr.mxu0 0.0
    %7823 = vmatpush1.msra.mxu0 0.0
    %7824 = vmatprep.subr.mxu0 0.0
    %7825 = vmatpush1.msra.mxu0 0.0
    %7826 = vmatprep.subr.mxu0 0.0
    %7827 = vmatpush1.msra.mxu0 0.0
    %7828 = vmatprep.subr.mxu0 0.0
    %7829 = vmatpush1.msra.mxu0 0.0
    %7830 = vmatprep.subr.mxu0 0.0
    %7831 = vmatpush1.msra.mxu0 0.0
    %7832 = vmatprep.subr.mxu0 0.0
    %7833 = vmatpush1.msra.mxu0 0.0
    %7834 = vmatprep.subr.mxu0 0.0
    %7835 = vmatpush1.msra.mxu0 0.0
    %7836 = vmatprep.subr.mxu0 0.0
    %7837 = vmatpush1.msra.mxu0 0.0
    %7838 = vmatprep.subr.mxu0 0.0
    %7839 = vmatpush1.msra.mxu0 0.0
    %7840 = vmatprep.subr.mxu0 0.0
    %7841 = vmatpush1.msra.mxu0 0.0
    %7842 = vmatprep.subr.mxu0 0.0
    %7843 = vmatpush1.msra.mxu0 0.0
    %7844 = vmatprep.subr.mxu0 0.0
    %7845 = vmatpush1.msra.mxu0 %v7807
    %7846 = vmatprep.subr.mxu0 0.0
    %7847 = vmatpush1.msra.mxu0 %v7806
    %7848 = vmatprep.subr.mxu0 0.0
    %7849 = vmatpush1.msra.mxu0 %v7805
    %7850 = vmatprep.subr.mxu0 0.0
    %7851 = vmatpush1.msra.mxu0 %v7804
    %7852 = vmatprep.subr.mxu0 0.0
    %7853 = vmatpush2.msra.mxu0 0.0
    %7854 = vmatprep.subr.mxu0 0.0
    %7855 = vmatpush2.msra.mxu0 0.0
    %7856 = vmatprep.subr.mxu0 0.0
    %7857 = vmatpush2.msra.mxu0 0.0
    %7858 = vmatprep.subr.mxu0 0.0
    %7859 = vmatpush2.msra.mxu0 0.0
    %7860 = vmatprep.subr.mxu0 0.0
    %7861 = vmatpush2.msra.mxu0 0.0
    %7862 = vmatprep.subr.mxu0 0.0
    %7863 = vmatpush2.msra.mxu0 0.0
    %7864 = vmatprep.subr.mxu0 0.0
    %7865 = vmatpush2.msra.mxu0 0.0
    %7866 = vmatprep.subr.mxu0 0.0
    %7867 = vmatpush2.msra.mxu0 0.0
    %7868 = vmatprep.subr.mxu0 0.0
    %7869 = vmatpush2.msra.mxu0 0.0
    %7870 = vmatprep.subr.mxu0 0.0
    %7871 = vmatpush2.msra.mxu0 0.0
    %7872 = vmatprep.subr.mxu0 0.0
    %7873 = vmatpush2.msra.mxu0 0.0
    %7874 = vmatprep.subr.mxu0 0.0
    %7875 = vmatpush2.msra.mxu0 0.0
    %7876 = vmatprep.subr.mxu0 0.0
    %7877 = vmatpush2.msra.mxu0 0.0
    %7878 = vmatprep.subr.mxu0 0.0
    %7879 = vmatpush2.msra.mxu0 0.0
    %7880 = vmatprep.subr.mxu0 0.0
    %7881 = vmatpush2.msra.mxu0 0.0
    %7882 = vmatprep.subr.mxu0 0.0
    %7883 = vmatpush2.msra.mxu0 0.0
    %7884 = vmatprep.mubr.f32.mxu0 0.0
    %7885 = vmatmul.mubr.f32.gmra.mxu0 %v7818
    %v7886 = vpop.f32.mrf.mxu0
    %v7887 = vadd.f32 %v7812, %v7886
    %v7888 = vpop.f32.mrf.mxu0
    %7889 = vdwg.mxu0
    %v7890 = vmax.f32 %v7887, 0.0
    %v7892 = vrot.slane %v7890, 1
    %v7895 = vadd.f32 %v7802, %v7890
    %v7896 = vadd.f32 %v7803, %v7892
    %v7897 = vld [vmem:[#allocation4 + $0x1d8] sm:$0xff]
    %v7898 = vld [vmem:[#allocation4 + $0x1e0] sm:$0xff]
    %v7899 = vld [vmem:[#allocation4 + $0x1e8] sm:$0xff]
    %v7900 = vld [vmem:[#allocation4 + $0x1f0] sm:$0xff]
    %v7901 = vld [vmem:[#allocation4 + $0x1f8] sm:$0x1]
    %v7902 = vlaneseq
    %v7903 = vshrl.u32 %v7902, 7
    %v7904 = vsub.s32 0, %v7903
    %v7905 = vrot.slane %v7901, %v7904
    %v7908 = vrot.slane %v7896, 7
    %v7909 = vsel %vm7816, %v7908, %v7895
    %v7910 = vsel %vm1489, %v7909, 0
    %7912 = vmatprep.subr.mxu0 0.0
    %7913 = vmatpush1.msra.mxu0 0.0
    %7914 = vmatprep.subr.mxu0 0.0
    %7915 = vmatpush1.msra.mxu0 0.0
    %7916 = vmatprep.subr.mxu0 0.0
    %7917 = vmatpush1.msra.mxu0 0.0
    %7918 = vmatprep.subr.mxu0 0.0
    %7919 = vmatpush1.msra.mxu0 0.0
    %7920 = vmatprep.subr.mxu0 0.0
    %7921 = vmatpush1.msra.mxu0 0.0
    %7922 = vmatprep.subr.mxu0 0.0
    %7923 = vmatpush1.msra.mxu0 0.0
    %7924 = vmatprep.subr.mxu0 0.0
    %7925 = vmatpush1.msra.mxu0 0.0
    %7926 = vmatprep.subr.mxu0 0.0
    %7927 = vmatpush1.msra.mxu0 0.0
    %7928 = vmatprep.subr.mxu0 0.0
    %7929 = vmatpush1.msra.mxu0 0.0
    %7930 = vmatprep.subr.mxu0 0.0
    %7931 = vmatpush1.msra.mxu0 0.0
    %7932 = vmatprep.subr.mxu0 0.0
    %7933 = vmatpush1.msra.mxu0 0.0
    %7934 = vmatprep.subr.mxu0 0.0
    %7935 = vmatpush1.msra.mxu0 0.0
    %7936 = vmatprep.subr.mxu0 0.0
    %7937 = vmatpush1.msra.mxu0 %v7900
    %7938 = vmatprep.subr.mxu0 0.0
    %7939 = vmatpush1.msra.mxu0 %v7899
    %7940 = vmatprep.subr.mxu0 0.0
    %7941 = vmatpush1.msra.mxu0 %v7898
    %7942 = vmatprep.subr.mxu0 0.0
    %7943 = vmatpush1.msra.mxu0 %v7897
    %7944 = vmatprep.subr.mxu0 0.0
    %7945 = vmatpush2.msra.mxu0 0.0
    %7946 = vmatprep.subr.mxu0 0.0
    %7947 = vmatpush2.msra.mxu0 0.0
    %7948 = vmatprep.subr.mxu0 0.0
    %7949 = vmatpush2.msra.mxu0 0.0
    %7950 = vmatprep.subr.mxu0 0.0
    %7951 = vmatpush2.msra.mxu0 0.0
    %7952 = vmatprep.subr.mxu0 0.0
    %7953 = vmatpush2.msra.mxu0 0.0
    %7954 = vmatprep.subr.mxu0 0.0
    %7955 = vmatpush2.msra.mxu0 0.0
    %7956 = vmatprep.subr.mxu0 0.0
    %7957 = vmatpush2.msra.mxu0 0.0
    %7958 = vmatprep.subr.mxu0 0.0
    %7959 = vmatpush2.msra.mxu0 0.0
    %7960 = vmatprep.subr.mxu0 0.0
    %7961 = vmatpush2.msra.mxu0 0.0
    %7962 = vmatprep.subr.mxu0 0.0
    %7963 = vmatpush2.msra.mxu0 0.0
    %7964 = vmatprep.subr.mxu0 0.0
    %7965 = vmatpush2.msra.mxu0 0.0
    %7966 = vmatprep.subr.mxu0 0.0
    %7967 = vmatpush2.msra.mxu0 0.0
    %7968 = vmatprep.subr.mxu0 0.0
    %7969 = vmatpush2.msra.mxu0 0.0
    %7970 = vmatprep.subr.mxu0 0.0
    %7971 = vmatpush2.msra.mxu0 0.0
    %7972 = vmatprep.subr.mxu0 0.0
    %7973 = vmatpush2.msra.mxu0 0.0
    %7974 = vmatprep.subr.mxu0 0.0
    %7975 = vmatpush2.msra.mxu0 0.0
    %7976 = vmatprep.mubr.f32.mxu0 0.0
    %7977 = vmatmul.mubr.f32.gmra.mxu0 %v7910
    %v7978 = vpop.f32.mrf.mxu0
    %v7979 = vadd.f32 %v7905, %v7978
    %v7980 = vpop.f32.mrf.mxu0
    %7981 = vdwg.mxu0
    %v7984 = vunpack.c.l.s4 1966171168
    %v7985 = vunpack.c.0.s8 %v7984
    %v7986 = vlaneseq
    %v7987 = vshrl.u32 %v7986, 7
    %v7988 = vsub.s32 %v7985, %v7987
    %v7989 = vrot.slane %v7979, %v7988
    %v7990 = vcombine.high %v7989, %v7989
    %v7992 = vunpack.c.l.s4 1966171168
    %v7993 = vunpack.c.0.s8 %v7992
    %v7994 = vlaneseq
    %v7995 = vshrl.u32 %v7994, 7
    %v7996 = vsub.s32 %v7993, %v7995
    %v7997 = vrot.slane %v7989, %v7996
    %v7999 = vunpack.c.l.s4 1966171168
    %v8000 = vunpack.c.0.s8 %v7999
    %v8001 = vlaneseq
    %v8002 = vshrl.u32 %v8001, 7
    %v8003 = vsub.s32 %v8000, %v8002
    %v8004 = vrot.slane %v7990, %v8003
    %8007 = vrot.lane.b32.xlu0 %v7997, 96
    %v8008 = vpop.permute.xlu0 %8007
    %v8010 = vmul.f32 %v7997, %v8008
    %v8011 = vsel %vm6607, %v8010, 0.0
    %8012 = vadd.xlane.f32.xlu0 %v8011
    %v8013 = vpop.xlane.xlu0 %8012
    %8014 = vrot.lane.b32.xlu0 %v8004, 96
    %v8015 = vpop.permute.xlu0 %8014
    %v8017 = vmul.f32 %v8004, %v8015
    %v8018 = vsel %vm6607, %v8017, 0.0
    %8019 = vadd.xlane.f32.xlu0 %v8018
    %v8020 = vpop.xlane.xlu0 %8019
    %v8021 = vmul.f32 %v8013, 0.17677669
    %v8022 = vmul.f32 %v8020, 0.17677669
    %v8023 = vsub.f32 %v8021, %v8021
    %v8024 = vsub.f32 %v8022, %v8022
    %v8025 = vmul.f32 %v8023, 1.442695
    %v8026 = vpow.pop %v8025
    %v8027 = vmul.f32 %v8024, 1.442695
    %v8028 = vpow.pop %v8027
    %v8029 = vadd.f32 %v8026, 0.0
    %v8030 = vadd.f32 %v8028, 0.0
    %v8031 = vrcp.pop %v8029
    %v8032 = vmul.f32 %v8026, %v8031
    %v8033 = vrcp.pop %v8030
    %v8034 = vmul.f32 %v8028, %v8033
    %v8035 = vlaneseq
    %v8036 = vshrl.u32 %v8035, 7
    %v8037 = vsub.s32 0, %v8036
    %v8038 = vrot.slane %v7997, %v8037
    %8039 = vrot.lane.b32.xlu0 %v8038, 64
    %v8040 = vpop.permute.xlu0 %8039
    %vm8041 = vcmask 7168
    %v8043 = vsel %vm8041, %v8032, 0
    %vm8045 = vcmask 1040384
    %v8046 = vsel %vm8045, %v8040, 0
    %8048 = vmatprep.subr.mxu0 0.0
    %8049 = vmatpush1.msra.mxu0 0.0
    %8050 = vmatprep.subr.mxu0 0.0
    %8051 = vmatpush1.msra.mxu0 0.0
    %8052 = vmatprep.subr.mxu0 0.0
    %8053 = vmatpush1.msra.mxu0 0.0
    %8054 = vmatprep.subr.mxu0 0.0
    %8055 = vmatpush1.msra.mxu0 0.0
    %8056 = vmatprep.subr.mxu0 0.0
    %8057 = vmatpush1.msra.mxu0 0.0
    %8058 = vmatprep.subr.mxu0 0.0
    %8059 = vmatpush1.msra.mxu0 0.0
    %8060 = vmatprep.subr.mxu0 0.0
    %8061 = vmatpush1.msra.mxu0 0.0
    %8062 = vmatprep.subr.mxu0 0.0
    %8063 = vmatpush1.msra.mxu0 0.0
    %8064 = vmatprep.subr.mxu0 0.0
    %8065 = vmatpush1.msra.mxu0 0.0
    %8066 = vmatprep.subr.mxu0 0.0
    %8067 = vmatpush1.msra.mxu0 0.0
    %8068 = vmatprep.subr.mxu0 0.0
    %8069 = vmatpush1.msra.mxu0 0.0
    %8070 = vmatprep.subr.mxu0 0.0
    %8071 = vmatpush1.msra.mxu0 0.0
    %8072 = vmatprep.subr.mxu0 0.0
    %8073 = vmatpush1.msra.mxu0 0.0
    %8074 = vmatprep.subr.mxu0 0.0
    %8075 = vmatpush1.msra.mxu0 0.0
    %8076 = vmatprep.subr.mxu0 0.0
    %8077 = vmatpush1.msra.mxu0 0.0
    %8078 = vmatprep.subr.mxu0 0.0
    %8079 = vmatpush1.msra.mxu0 %v8046
    %8080 = vmatprep.subr.mxu0 0.0
    %8081 = vmatpush2.msra.mxu0 0.0
    %8082 = vmatprep.subr.mxu0 0.0
    %8083 = vmatpush2.msra.mxu0 0.0
    %8084 = vmatprep.subr.mxu0 0.0
    %8085 = vmatpush2.msra.mxu0 0.0
    %8086 = vmatprep.subr.mxu0 0.0
    %8087 = vmatpush2.msra.mxu0 0.0
    %8088 = vmatprep.subr.mxu0 0.0
    %8089 = vmatpush2.msra.mxu0 0.0
    %8090 = vmatprep.subr.mxu0 0.0
    %8091 = vmatpush2.msra.mxu0 0.0
    %8092 = vmatprep.subr.mxu0 0.0
    %8093 = vmatpush2.msra.mxu0 0.0
    %8094 = vmatprep.subr.mxu0 0.0
    %8095 = vmatpush2.msra.mxu0 0.0
    %8096 = vmatprep.subr.mxu0 0.0
    %8097 = vmatpush2.msra.mxu0 0.0
    %8098 = vmatprep.subr.mxu0 0.0
    %8099 = vmatpush2.msra.mxu0 0.0
    %8100 = vmatprep.subr.mxu0 0.0
    %8101 = vmatpush2.msra.mxu0 0.0
    %8102 = vmatprep.subr.mxu0 0.0
    %8103 = vmatpush2.msra.mxu0 0.0
    %8104 = vmatprep.subr.mxu0 0.0
    %8105 = vmatpush2.msra.mxu0 0.0
    %8106 = vmatprep.subr.mxu0 0.0
    %8107 = vmatpush2.msra.mxu0 0.0
    %8108 = vmatprep.subr.mxu0 0.0
    %8109 = vmatpush2.msra.mxu0 0.0
    %8110 = vmatprep.subr.mxu0 0.0
    %8111 = vmatpush2.msra.mxu0 0.0
    %8112 = vmatprep.mubr.f32.mxu0 0.0
    %8113 = vmatmul.mubr.f32.gmra.mxu0 %v8043
    %v8114 = vpop.f32.mrf.mxu0
    %v8115 = vadd.f32 0.0, %v8114
    %v8116 = vpop.f32.mrf.mxu0
    %8117 = vdwg.mxu0
    %v8118 = vlaneseq
    %v8119 = vshrl.u32 %v8118, 7
    %v8120 = vsub.s32 0, %v8119
    %v8121 = vrot.slane %v8004, %v8120
    %8122 = vrot.lane.b32.xlu0 %v8121, 64
    %v8123 = vpop.permute.xlu0 %8122
    %v8125 = vsel %vm8041, %v8034, 0
    %v8127 = vsel %vm8045, %v8123, 0
    %8129 = vmatprep.subr.mxu0 0.0
    %8130 = vmatpush1.msra.mxu0 0.0
    %8131 = vmatprep.subr.mxu0 0.0
    %8132 = vmatpush1.msra.mxu0 0.0
    %8133 = vmatprep.subr.mxu0 0.0
    %8134 = vmatpush1.msra.mxu0 0.0
    %8135 = vmatprep.subr.mxu0 0.0
    %8136 = vmatpush1.msra.mxu0 0.0
    %8137 = vmatprep.subr.mxu0 0.0
    %8138 = vmatpush1.msra.mxu0 0.0
    %8139 = vmatprep.subr.mxu0 0.0
    %8140 = vmatpush1.msra.mxu0 0.0
    %8141 = vmatprep.subr.mxu0 0.0
    %8142 = vmatpush1.msra.mxu0 0.0
    %8143 = vmatprep.subr.mxu0 0.0
    %8144 = vmatpush1.msra.mxu0 0.0
    %8145 = vmatprep.subr.mxu0 0.0
    %8146 = vmatpush1.msra.mxu0 0.0
    %8147 = vmatprep.subr.mxu0 0.0
    %8148 = vmatpush1.msra.mxu0 0.0
    %8149 = vmatprep.subr.mxu0 0.0
    %8150 = vmatpush1.msra.mxu0 0.0
    %8151 = vmatprep.subr.mxu0 0.0
    %8152 = vmatpush1.msra.mxu0 0.0
    %8153 = vmatprep.subr.mxu0 0.0
    %8154 = vmatpush1.msra.mxu0 0.0
    %8155 = vmatprep.subr.mxu0 0.0
    %8156 = vmatpush1.msra.mxu0 0.0
    %8157 = vmatprep.subr.mxu0 0.0
    %8158 = vmatpush1.msra.mxu0 0.0
    %8159 = vmatprep.subr.mxu0 0.0
    %8160 = vmatpush1.msra.mxu0 %v8127
    %8161 = vmatprep.subr.mxu0 0.0
    %8162 = vmatpush2.msra.mxu0 0.0
    %8163 = vmatprep.subr.mxu0 0.0
    %8164 = vmatpush2.msra.mxu0 0.0
    %8165 = vmatprep.subr.mxu0 0.0
    %8166 = vmatpush2.msra.mxu0 0.0
    %8167 = vmatprep.subr.mxu0 0.0
    %8168 = vmatpush2.msra.mxu0 0.0
    %8169 = vmatprep.subr.mxu0 0.0
    %8170 = vmatpush2.msra.mxu0 0.0
    %8171 = vmatprep.subr.mxu0 0.0
    %8172 = vmatpush2.msra.mxu0 0.0
    %8173 = vmatprep.subr.mxu0 0.0
    %8174 = vmatpush2.msra.mxu0 0.0
    %8175 = vmatprep.subr.mxu0 0.0
    %8176 = vmatpush2.msra.mxu0 0.0
    %8177 = vmatprep.subr.mxu0 0.0
    %8178 = vmatpush2.msra.mxu0 0.0
    %8179 = vmatprep.subr.mxu0 0.0
    %8180 = vmatpush2.msra.mxu0 0.0
    %8181 = vmatprep.subr.mxu0 0.0
    %8182 = vmatpush2.msra.mxu0 0.0
    %8183 = vmatprep.subr.mxu0 0.0
    %8184 = vmatpush2.msra.mxu0 0.0
    %8185 = vmatprep.subr.mxu0 0.0
    %8186 = vmatpush2.msra.mxu0 0.0
    %8187 = vmatprep.subr.mxu0 0.0
    %8188 = vmatpush2.msra.mxu0 0.0
    %8189 = vmatprep.subr.mxu0 0.0
    %8190 = vmatpush2.msra.mxu0 0.0
    %8191 = vmatprep.subr.mxu0 0.0
    %8192 = vmatpush2.msra.mxu0 0.0
    %8193 = vmatprep.mubr.f32.mxu0 0.0
    %8194 = vmatmul.mubr.f32.gmra.mxu0 %v8125
    %v8195 = vpop.f32.mrf.mxu0
    %v8196 = vadd.f32 0.0, %v8195
    %v8197 = vpop.f32.mrf.mxu0
    %8198 = vdwg.mxu0
    %v8199 = vadd.f32 %v7997, %v8115
    %v8200 = vadd.f32 %v8004, %v8196
    %v8202 = vlaneseq
    %v8203 = vshrl.u32 %v8202, 7
    %v8204 = vsub.s32 0, %v8203
    %v8205 = vrot.slane %v8010, %v8204
    %8206 = vrot.lane.b32.xlu0 %v8205, 120
    %v8207 = vpop.permute.xlu0 %8206
    %v8209 = vsel %vm6607, %v8207, 0.0
    %8210 = vadd.xlane.f32.xlu0 %v8209
    %v8211 = vpop.xlane.xlu0 %8210
    %v8213 = vlaneseq
    %v8214 = vshrl.u32 %v8213, 7
    %v8215 = vsub.s32 0, %v8214
    %v8216 = vrot.slane %v8017, %v8215
    %8217 = vrot.lane.b32.xlu0 %v8216, 120
    %v8218 = vpop.permute.xlu0 %8217
    %v8220 = vsel %vm6607, %v8218, 0.0
    %8221 = vadd.xlane.f32.xlu0 %v8220
    %v8222 = vpop.xlane.xlu0 %8221
    %v8223 = vmul.f32 %v8211, 0.17677669
    %v8224 = vmul.f32 %v8222, 0.17677669
    %v8225 = vsub.f32 %v8223, %v8223
    %v8226 = vsub.f32 %v8224, %v8224
    %v8227 = vmul.f32 %v8225, 1.442695
    %v8228 = vpow.pop %v8227
    %v8229 = vmul.f32 %v8226, 1.442695
    %v8230 = vpow.pop %v8229
    %v8231 = vadd.f32 %v8228, 0.0
    %v8232 = vadd.f32 %v8230, 0.0
    %v8233 = vrcp.pop %v8231
    %v8234 = vmul.f32 %v8228, %v8233
    %v8235 = vrcp.pop %v8232
    %v8236 = vmul.f32 %v8230, %v8235
    %8237 = vrot.lane.b32.xlu0 %v8038, 56
    %v8238 = vpop.permute.xlu0 %8237
    %v8240 = vsel %vm8041, %v8234, 0
    %v8242 = vsel %vm8045, %v8238, 0
    %8244 = vmatprep.subr.mxu0 0.0
    %8245 = vmatpush1.msra.mxu0 0.0
    %8246 = vmatprep.subr.mxu0 0.0
    %8247 = vmatpush1.msra.mxu0 0.0
    %8248 = vmatprep.subr.mxu0 0.0
    %8249 = vmatpush1.msra.mxu0 0.0
    %8250 = vmatprep.subr.mxu0 0.0
    %8251 = vmatpush1.msra.mxu0 0.0
    %8252 = vmatprep.subr.mxu0 0.0
    %8253 = vmatpush1.msra.mxu0 0.0
    %8254 = vmatprep.subr.mxu0 0.0
    %8255 = vmatpush1.msra.mxu0 0.0
    %8256 = vmatprep.subr.mxu0 0.0
    %8257 = vmatpush1.msra.mxu0 0.0
    %8258 = vmatprep.subr.mxu0 0.0
    %8259 = vmatpush1.msra.mxu0 0.0
    %8260 = vmatprep.subr.mxu0 0.0
    %8261 = vmatpush1.msra.mxu0 0.0
    %8262 = vmatprep.subr.mxu0 0.0
    %8263 = vmatpush1.msra.mxu0 0.0
    %8264 = vmatprep.subr.mxu0 0.0
    %8265 = vmatpush1.msra.mxu0 0.0
    %8266 = vmatprep.subr.mxu0 0.0
    %8267 = vmatpush1.msra.mxu0 0.0
    %8268 = vmatprep.subr.mxu0 0.0
    %8269 = vmatpush1.msra.mxu0 0.0
    %8270 = vmatprep.subr.mxu0 0.0
    %8271 = vmatpush1.msra.mxu0 0.0
    %8272 = vmatprep.subr.mxu0 0.0
    %8273 = vmatpush1.msra.mxu0 0.0
    %8274 = vmatprep.subr.mxu0 0.0
    %8275 = vmatpush1.msra.mxu0 %v8242
    %8276 = vmatprep.subr.mxu0 0.0
    %8277 = vmatpush2.msra.mxu0 0.0
    %8278 = vmatprep.subr.mxu0 0.0
    %8279 = vmatpush2.msra.mxu0 0.0
    %8280 = vmatprep.subr.mxu0 0.0
    %8281 = vmatpush2.msra.mxu0 0.0
    %8282 = vmatprep.subr.mxu0 0.0
    %8283 = vmatpush2.msra.mxu0 0.0
    %8284 = vmatprep.subr.mxu0 0.0
    %8285 = vmatpush2.msra.mxu0 0.0
    %8286 = vmatprep.subr.mxu0 0.0
    %8287 = vmatpush2.msra.mxu0 0.0
    %8288 = vmatprep.subr.mxu0 0.0
    %8289 = vmatpush2.msra.mxu0 0.0
    %8290 = vmatprep.subr.mxu0 0.0
    %8291 = vmatpush2.msra.mxu0 0.0
    %8292 = vmatprep.subr.mxu0 0.0
    %8293 = vmatpush2.msra.mxu0 0.0
    %8294 = vmatprep.subr.mxu0 0.0
    %8295 = vmatpush2.msra.mxu0 0.0
    %8296 = vmatprep.subr.mxu0 0.0
    %8297 = vmatpush2.msra.mxu0 0.0
    %8298 = vmatprep.subr.mxu0 0.0
    %8299 = vmatpush2.msra.mxu0 0.0
    %8300 = vmatprep.subr.mxu0 0.0
    %8301 = vmatpush2.msra.mxu0 0.0
    %8302 = vmatprep.subr.mxu0 0.0
    %8303 = vmatpush2.msra.mxu0 0.0
    %8304 = vmatprep.subr.mxu0 0.0
    %8305 = vmatpush2.msra.mxu0 0.0
    %8306 = vmatprep.subr.mxu0 0.0
    %8307 = vmatpush2.msra.mxu0 0.0
    %8308 = vmatprep.mubr.f32.mxu0 0.0
    %8309 = vmatmul.mubr.f32.gmra.mxu0 %v8240
    %v8310 = vpop.f32.mrf.mxu0
    %v8311 = vadd.f32 0.0, %v8310
    %v8312 = vpop.f32.mrf.mxu0
    %8313 = vdwg.mxu0
    %8314 = vrot.lane.b32.xlu0 %v8121, 56
    %v8315 = vpop.permute.xlu0 %8314
    %v8317 = vsel %vm8041, %v8236, 0
    %v8319 = vsel %vm8045, %v8315, 0
    %8321 = vmatprep.subr.mxu0 0.0
    %8322 = vmatpush1.msra.mxu0 0.0
    %8323 = vmatprep.subr.mxu0 0.0
    %8324 = vmatpush1.msra.mxu0 0.0
    %8325 = vmatprep.subr.mxu0 0.0
    %8326 = vmatpush1.msra.mxu0 0.0
    %8327 = vmatprep.subr.mxu0 0.0
    %8328 = vmatpush1.msra.mxu0 0.0
    %8329 = vmatprep.subr.mxu0 0.0
    %8330 = vmatpush1.msra.mxu0 0.0
    %8331 = vmatprep.subr.mxu0 0.0
    %8332 = vmatpush1.msra.mxu0 0.0
    %8333 = vmatprep.subr.mxu0 0.0
    %8334 = vmatpush1.msra.mxu0 0.0
    %8335 = vmatprep.subr.mxu0 0.0
    %8336 = vmatpush1.msra.mxu0 0.0
    %8337 = vmatprep.subr.mxu0 0.0
    %8338 = vmatpush1.msra.mxu0 0.0
    %8339 = vmatprep.subr.mxu0 0.0
    %8340 = vmatpush1.msra.mxu0 0.0
    %8341 = vmatprep.subr.mxu0 0.0
    %8342 = vmatpush1.msra.mxu0 0.0
    %8343 = vmatprep.subr.mxu0 0.0
    %8344 = vmatpush1.msra.mxu0 0.0
    %8345 = vmatprep.subr.mxu0 0.0
    %8346 = vmatpush1.msra.mxu0 0.0
    %8347 = vmatprep.subr.mxu0 0.0
    %8348 = vmatpush1.msra.mxu0 0.0
    %8349 = vmatprep.subr.mxu0 0.0
    %8350 = vmatpush1.msra.mxu0 0.0
    %8351 = vmatprep.subr.mxu0 0.0
    %8352 = vmatpush1.msra.mxu0 %v8319
    %8353 = vmatprep.subr.mxu0 0.0
    %8354 = vmatpush2.msra.mxu0 0.0
    %8355 = vmatprep.subr.mxu0 0.0
    %8356 = vmatpush2.msra.mxu0 0.0
    %8357 = vmatprep.subr.mxu0 0.0
    %8358 = vmatpush2.msra.mxu0 0.0
    %8359 = vmatprep.subr.mxu0 0.0
    %8360 = vmatpush2.msra.mxu0 0.0
    %8361 = vmatprep.subr.mxu0 0.0
    %8362 = vmatpush2.msra.mxu0 0.0
    %8363 = vmatprep.subr.mxu0 0.0
    %8364 = vmatpush2.msra.mxu0 0.0
    %8365 = vmatprep.subr.mxu0 0.0
    %8366 = vmatpush2.msra.mxu0 0.0
    %8367 = vmatprep.subr.mxu0 0.0
    %8368 = vmatpush2.msra.mxu0 0.0
    %8369 = vmatprep.subr.mxu0 0.0
    %8370 = vmatpush2.msra.mxu0 0.0
    %8371 = vmatprep.subr.mxu0 0.0
    %8372 = vmatpush2.msra.mxu0 0.0
    %8373 = vmatprep.subr.mxu0 0.0
    %8374 = vmatpush2.msra.mxu0 0.0
    %8375 = vmatprep.subr.mxu0 0.0
    %8376 = vmatpush2.msra.mxu0 0.0
    %8377 = vmatprep.subr.mxu0 0.0
    %8378 = vmatpush2.msra.mxu0 0.0
    %8379 = vmatprep.subr.mxu0 0.0
    %8380 = vmatpush2.msra.mxu0 0.0
    %8381 = vmatprep.subr.mxu0 0.0
    %8382 = vmatpush2.msra.mxu0 0.0
    %8383 = vmatprep.subr.mxu0 0.0
    %8384 = vmatpush2.msra.mxu0 0.0
    %8385 = vmatprep.mubr.f32.mxu0 0.0
    %8386 = vmatmul.mubr.f32.gmra.mxu0 %v8317
    %v8387 = vpop.f32.mrf.mxu0
    %v8388 = vadd.f32 0.0, %v8387
    %v8389 = vpop.f32.mrf.mxu0
    %8390 = vdwg.mxu0
    %v8394 = vunpack.c.l.s4 1966171168
    %v8395 = vunpack.c.0.s8 %v8394
    %v8396 = vlaneseq
    %v8397 = vshrl.u32 %v8396, 7
    %v8398 = vsub.s32 %v8395, %v8397
    %v8399 = vrot.slane %v8311, %v8398
    %v8401 = vunpack.c.l.s4 1966171168
    %v8402 = vunpack.c.0.s8 %v8401
    %v8403 = vlaneseq
    %v8404 = vshrl.u32 %v8403, 7
    %v8405 = vsub.s32 %v8402, %v8404
    %v8406 = vrot.slane %v8399, %v8405
    %v8408 = vunpack.c.l.s4 1966171168
    %v8409 = vunpack.c.0.s8 %v8408
    %v8410 = vlaneseq
    %v8411 = vshrl.u32 %v8410, 7
    %v8412 = vsub.s32 %v8409, %v8411
    %v8413 = vrot.slane %v8388, %v8412
    %v8415 = vunpack.c.l.s4 1966171168
    %v8416 = vunpack.c.0.s8 %v8415
    %v8417 = vlaneseq
    %v8418 = vshrl.u32 %v8417, 7
    %v8419 = vsub.s32 %v8416, %v8418
    %v8420 = vrot.slane %v8413, %v8419
    %8421 = vrot.lane.b32.xlu0 %v8406, 8
    %v8422 = vpop.permute.xlu0 %8421
    %8423 = vrot.lane.b32.xlu0 %v8420, 8
    %v8424 = vpop.permute.xlu0 %8423
    %v8427 = vadd.f32 %v7997, %v8422
    %v8428 = vadd.f32 %v8004, %v8424
    %8429 = vrot.lane.b32.xlu0 %v8205, 112
    %v8430 = vpop.permute.xlu0 %8429
    %v8432 = vsel %vm6607, %v8430, 0.0
    %8433 = vadd.xlane.f32.xlu0 %v8432
    %v8434 = vpop.xlane.xlu0 %8433
    %8435 = vrot.lane.b32.xlu0 %v8216, 112
    %v8436 = vpop.permute.xlu0 %8435
    %v8438 = vsel %vm6607, %v8436, 0.0
    %8439 = vadd.xlane.f32.xlu0 %v8438
    %v8440 = vpop.xlane.xlu0 %8439
    %v8441 = vmul.f32 %v8434, 0.17677669
    %v8442 = vmul.f32 %v8440, 0.17677669
    %v8443 = vsub.f32 %v8441, %v8441
    %v8444 = vsub.f32 %v8442, %v8442
    %v8445 = vmul.f32 %v8443, 1.442695
    %v8446 = vpow.pop %v8445
    %v8447 = vmul.f32 %v8444, 1.442695
    %v8448 = vpow.pop %v8447
    %v8449 = vadd.f32 %v8446, 0.0
    %v8450 = vadd.f32 %v8448, 0.0
    %v8451 = vrcp.pop %v8449
    %v8452 = vmul.f32 %v8446, %v8451
    %v8453 = vrcp.pop %v8450
    %v8454 = vmul.f32 %v8448, %v8453
    %8455 = vrot.lane.b32.xlu0 %v8038, 48
    %v8456 = vpop.permute.xlu0 %8455
    %v8458 = vsel %vm8041, %v8452, 0
    %v8460 = vsel %vm8045, %v8456, 0
    %8462 = vmatprep.subr.mxu0 0.0
    %8463 = vmatpush1.msra.mxu0 0.0
    %8464 = vmatprep.subr.mxu0 0.0
    %8465 = vmatpush1.msra.mxu0 0.0
    %8466 = vmatprep.subr.mxu0 0.0
    %8467 = vmatpush1.msra.mxu0 0.0
    %8468 = vmatprep.subr.mxu0 0.0
    %8469 = vmatpush1.msra.mxu0 0.0
    %8470 = vmatprep.subr.mxu0 0.0
    %8471 = vmatpush1.msra.mxu0 0.0
    %8472 = vmatprep.subr.mxu0 0.0
    %8473 = vmatpush1.msra.mxu0 0.0
    %8474 = vmatprep.subr.mxu0 0.0
    %8475 = vmatpush1.msra.mxu0 0.0
    %8476 = vmatprep.subr.mxu0 0.0
    %8477 = vmatpush1.msra.mxu0 0.0
    %8478 = vmatprep.subr.mxu0 0.0
    %8479 = vmatpush1.msra.mxu0 0.0
    %8480 = vmatprep.subr.mxu0 0.0
    %8481 = vmatpush1.msra.mxu0 0.0
    %8482 = vmatprep.subr.mxu0 0.0
    %8483 = vmatpush1.msra.mxu0 0.0
    %8484 = vmatprep.subr.mxu0 0.0
    %8485 = vmatpush1.msra.mxu0 0.0
    %8486 = vmatprep.subr.mxu0 0.0
    %8487 = vmatpush1.msra.mxu0 0.0
    %8488 = vmatprep.subr.mxu0 0.0
    %8489 = vmatpush1.msra.mxu0 0.0
    %8490 = vmatprep.subr.mxu0 0.0
    %8491 = vmatpush1.msra.mxu0 0.0
    %8492 = vmatprep.subr.mxu0 0.0
    %8493 = vmatpush1.msra.mxu0 %v8460
    %8494 = vmatprep.subr.mxu0 0.0
    %8495 = vmatpush2.msra.mxu0 0.0
    %8496 = vmatprep.subr.mxu0 0.0
    %8497 = vmatpush2.msra.mxu0 0.0
    %8498 = vmatprep.subr.mxu0 0.0
    %8499 = vmatpush2.msra.mxu0 0.0
    %8500 = vmatprep.subr.mxu0 0.0
    %8501 = vmatpush2.msra.mxu0 0.0
    %8502 = vmatprep.subr.mxu0 0.0
    %8503 = vmatpush2.msra.mxu0 0.0
    %8504 = vmatprep.subr.mxu0 0.0
    %8505 = vmatpush2.msra.mxu0 0.0
    %8506 = vmatprep.subr.mxu0 0.0
    %8507 = vmatpush2.msra.mxu0 0.0
    %8508 = vmatprep.subr.mxu0 0.0
    %8509 = vmatpush2.msra.mxu0 0.0
    %8510 = vmatprep.subr.mxu0 0.0
    %8511 = vmatpush2.msra.mxu0 0.0
    %8512 = vmatprep.subr.mxu0 0.0
    %8513 = vmatpush2.msra.mxu0 0.0
    %8514 = vmatprep.subr.mxu0 0.0
    %8515 = vmatpush2.msra.mxu0 0.0
    %8516 = vmatprep.subr.mxu0 0.0
    %8517 = vmatpush2.msra.mxu0 0.0
    %8518 = vmatprep.subr.mxu0 0.0
    %8519 = vmatpush2.msra.mxu0 0.0
    %8520 = vmatprep.subr.mxu0 0.0
    %8521 = vmatpush2.msra.mxu0 0.0
    %8522 = vmatprep.subr.mxu0 0.0
    %8523 = vmatpush2.msra.mxu0 0.0
    %8524 = vmatprep.subr.mxu0 0.0
    %8525 = vmatpush2.msra.mxu0 0.0
    %8526 = vmatprep.mubr.f32.mxu0 0.0
    %8527 = vmatmul.mubr.f32.gmra.mxu0 %v8458
    %v8528 = vpop.f32.mrf.mxu0
    %v8529 = vadd.f32 0.0, %v8528
    %v8530 = vpop.f32.mrf.mxu0
    %8531 = vdwg.mxu0
    %8532 = vrot.lane.b32.xlu0 %v8121, 48
    %v8533 = vpop.permute.xlu0 %8532
    %v8535 = vsel %vm8041, %v8454, 0
    %v8537 = vsel %vm8045, %v8533, 0
    %8539 = vmatprep.subr.mxu0 0.0
    %8540 = vmatpush1.msra.mxu0 0.0
    %8541 = vmatprep.subr.mxu0 0.0
    %8542 = vmatpush1.msra.mxu0 0.0
    %8543 = vmatprep.subr.mxu0 0.0
    %8544 = vmatpush1.msra.mxu0 0.0
    %8545 = vmatprep.subr.mxu0 0.0
    %8546 = vmatpush1.msra.mxu0 0.0
    %8547 = vmatprep.subr.mxu0 0.0
    %8548 = vmatpush1.msra.mxu0 0.0
    %8549 = vmatprep.subr.mxu0 0.0
    %8550 = vmatpush1.msra.mxu0 0.0
    %8551 = vmatprep.subr.mxu0 0.0
    %8552 = vmatpush1.msra.mxu0 0.0
    %8553 = vmatprep.subr.mxu0 0.0
    %8554 = vmatpush1.msra.mxu0 0.0
    %8555 = vmatprep.subr.mxu0 0.0
    %8556 = vmatpush1.msra.mxu0 0.0
    %8557 = vmatprep.subr.mxu0 0.0
    %8558 = vmatpush1.msra.mxu0 0.0
    %8559 = vmatprep.subr.mxu0 0.0
    %8560 = vmatpush1.msra.mxu0 0.0
    %8561 = vmatprep.subr.mxu0 0.0
    %8562 = vmatpush1.msra.mxu0 0.0
    %8563 = vmatprep.subr.mxu0 0.0
    %8564 = vmatpush1.msra.mxu0 0.0
    %8565 = vmatprep.subr.mxu0 0.0
    %8566 = vmatpush1.msra.mxu0 0.0
    %8567 = vmatprep.subr.mxu0 0.0
    %8568 = vmatpush1.msra.mxu0 0.0
    %8569 = vmatprep.subr.mxu0 0.0
    %8570 = vmatpush1.msra.mxu0 %v8537
    %8571 = vmatprep.subr.mxu0 0.0
    %8572 = vmatpush2.msra.mxu0 0.0
    %8573 = vmatprep.subr.mxu0 0.0
    %8574 = vmatpush2.msra.mxu0 0.0
    %8575 = vmatprep.subr.mxu0 0.0
    %8576 = vmatpush2.msra.mxu0 0.0
    %8577 = vmatprep.subr.mxu0 0.0
    %8578 = vmatpush2.msra.mxu0 0.0
    %8579 = vmatprep.subr.mxu0 0.0
    %8580 = vmatpush2.msra.mxu0 0.0
    %8581 = vmatprep.subr.mxu0 0.0
    %8582 = vmatpush2.msra.mxu0 0.0
    %8583 = vmatprep.subr.mxu0 0.0
    %8584 = vmatpush2.msra.mxu0 0.0
    %8585 = vmatprep.subr.mxu0 0.0
    %8586 = vmatpush2.msra.mxu0 0.0
    %8587 = vmatprep.subr.mxu0 0.0
    %8588 = vmatpush2.msra.mxu0 0.0
    %8589 = vmatprep.subr.mxu0 0.0
    %8590 = vmatpush2.msra.mxu0 0.0
    %8591 = vmatprep.subr.mxu0 0.0
    %8592 = vmatpush2.msra.mxu0 0.0
    %8593 = vmatprep.subr.mxu0 0.0
    %8594 = vmatpush2.msra.mxu0 0.0
    %8595 = vmatprep.subr.mxu0 0.0
    %8596 = vmatpush2.msra.mxu0 0.0
    %8597 = vmatprep.subr.mxu0 0.0
    %8598 = vmatpush2.msra.mxu0 0.0
    %8599 = vmatprep.subr.mxu0 0.0
    %8600 = vmatpush2.msra.mxu0 0.0
    %8601 = vmatprep.subr.mxu0 0.0
    %8602 = vmatpush2.msra.mxu0 0.0
    %8603 = vmatprep.mubr.f32.mxu0 0.0
    %8604 = vmatmul.mubr.f32.gmra.mxu0 %v8535
    %v8605 = vpop.f32.mrf.mxu0
    %v8606 = vadd.f32 0.0, %v8605
    %v8607 = vpop.f32.mrf.mxu0
    %8608 = vdwg.mxu0
    %v8612 = vunpack.c.l.s4 1966171168
    %v8613 = vunpack.c.0.s8 %v8612
    %v8614 = vlaneseq
    %v8615 = vshrl.u32 %v8614, 7
    %v8616 = vsub.s32 %v8613, %v8615
    %v8617 = vrot.slane %v8529, %v8616
    %v8619 = vunpack.c.l.s4 1966171168
    %v8620 = vunpack.c.0.s8 %v8619
    %v8621 = vlaneseq
    %v8622 = vshrl.u32 %v8621, 7
    %v8623 = vsub.s32 %v8620, %v8622
    %v8624 = vrot.slane %v8617, %v8623
    %v8626 = vunpack.c.l.s4 1966171168
    %v8627 = vunpack.c.0.s8 %v8626
    %v8628 = vlaneseq
    %v8629 = vshrl.u32 %v8628, 7
    %v8630 = vsub.s32 %v8627, %v8629
    %v8631 = vrot.slane %v8606, %v8630
    %v8633 = vunpack.c.l.s4 1966171168
    %v8634 = vunpack.c.0.s8 %v8633
    %v8635 = vlaneseq
    %v8636 = vshrl.u32 %v8635, 7
    %v8637 = vsub.s32 %v8634, %v8636
    %v8638 = vrot.slane %v8631, %v8637
    %8639 = vrot.lane.b32.xlu0 %v8624, 16
    %v8640 = vpop.permute.xlu0 %8639
    %8641 = vrot.lane.b32.xlu0 %v8638, 16
    %v8642 = vpop.permute.xlu0 %8641
    %v8645 = vadd.f32 %v7997, %v8640
    %v8646 = vadd.f32 %v8004, %v8642
    %8647 = vrot.lane.b32.xlu0 %v8205, 104
    %v8648 = vpop.permute.xlu0 %8647
    %v8650 = vsel %vm6607, %v8648, 0.0
    %8651 = vadd.xlane.f32.xlu0 %v8650
    %v8652 = vpop.xlane.xlu0 %8651
    %8653 = vrot.lane.b32.xlu0 %v8216, 104
    %v8654 = vpop.permute.xlu0 %8653
    %v8656 = vsel %vm6607, %v8654, 0.0
    %8657 = vadd.xlane.f32.xlu0 %v8656
    %v8658 = vpop.xlane.xlu0 %8657
    %v8659 = vmul.f32 %v8652, 0.17677669
    %v8660 = vmul.f32 %v8658, 0.17677669
    %v8661 = vsub.f32 %v8659, %v8659
    %v8662 = vsub.f32 %v8660, %v8660
    %v8663 = vmul.f32 %v8661, 1.442695
    %v8664 = vpow.pop %v8663
    %v8665 = vmul.f32 %v8662, 1.442695
    %v8666 = vpow.pop %v8665
    %v8667 = vadd.f32 %v8664, 0.0
    %v8668 = vadd.f32 %v8666, 0.0
    %v8669 = vrcp.pop %v8667
    %v8670 = vmul.f32 %v8664, %v8669
    %v8671 = vrcp.pop %v8668
    %v8672 = vmul.f32 %v8666, %v8671
    %8673 = vrot.lane.b32.xlu0 %v8038, 40
    %v8674 = vpop.permute.xlu0 %8673
    %v8676 = vsel %vm8041, %v8670, 0
    %v8678 = vsel %vm8045, %v8674, 0
    %8680 = vmatprep.subr.mxu0 0.0
    %8681 = vmatpush1.msra.mxu0 0.0
    %8682 = vmatprep.subr.mxu0 0.0
    %8683 = vmatpush1.msra.mxu0 0.0
    %8684 = vmatprep.subr.mxu0 0.0
    %8685 = vmatpush1.msra.mxu0 0.0
    %8686 = vmatprep.subr.mxu0 0.0
    %8687 = vmatpush1.msra.mxu0 0.0
    %8688 = vmatprep.subr.mxu0 0.0
    %8689 = vmatpush1.msra.mxu0 0.0
    %8690 = vmatprep.subr.mxu0 0.0
    %8691 = vmatpush1.msra.mxu0 0.0
    %8692 = vmatprep.subr.mxu0 0.0
    %8693 = vmatpush1.msra.mxu0 0.0
    %8694 = vmatprep.subr.mxu0 0.0
    %8695 = vmatpush1.msra.mxu0 0.0
    %8696 = vmatprep.subr.mxu0 0.0
    %8697 = vmatpush1.msra.mxu0 0.0
    %8698 = vmatprep.subr.mxu0 0.0
    %8699 = vmatpush1.msra.mxu0 0.0
    %8700 = vmatprep.subr.mxu0 0.0
    %8701 = vmatpush1.msra.mxu0 0.0
    %8702 = vmatprep.subr.mxu0 0.0
    %8703 = vmatpush1.msra.mxu0 0.0
    %8704 = vmatprep.subr.mxu0 0.0
    %8705 = vmatpush1.msra.mxu0 0.0
    %8706 = vmatprep.subr.mxu0 0.0
    %8707 = vmatpush1.msra.mxu0 0.0
    %8708 = vmatprep.subr.mxu0 0.0
    %8709 = vmatpush1.msra.mxu0 0.0
    %8710 = vmatprep.subr.mxu0 0.0
    %8711 = vmatpush1.msra.mxu0 %v8678
    %8712 = vmatprep.subr.mxu0 0.0
    %8713 = vmatpush2.msra.mxu0 0.0
    %8714 = vmatprep.subr.mxu0 0.0
    %8715 = vmatpush2.msra.mxu0 0.0
    %8716 = vmatprep.subr.mxu0 0.0
    %8717 = vmatpush2.msra.mxu0 0.0
    %8718 = vmatprep.subr.mxu0 0.0
    %8719 = vmatpush2.msra.mxu0 0.0
    %8720 = vmatprep.subr.mxu0 0.0
    %8721 = vmatpush2.msra.mxu0 0.0
    %8722 = vmatprep.subr.mxu0 0.0
    %8723 = vmatpush2.msra.mxu0 0.0
    %8724 = vmatprep.subr.mxu0 0.0
    %8725 = vmatpush2.msra.mxu0 0.0
    %8726 = vmatprep.subr.mxu0 0.0
    %8727 = vmatpush2.msra.mxu0 0.0
    %8728 = vmatprep.subr.mxu0 0.0
    %8729 = vmatpush2.msra.mxu0 0.0
    %8730 = vmatprep.subr.mxu0 0.0
    %8731 = vmatpush2.msra.mxu0 0.0
    %8732 = vmatprep.subr.mxu0 0.0
    %8733 = vmatpush2.msra.mxu0 0.0
    %8734 = vmatprep.subr.mxu0 0.0
    %8735 = vmatpush2.msra.mxu0 0.0
    %8736 = vmatprep.subr.mxu0 0.0
    %8737 = vmatpush2.msra.mxu0 0.0
    %8738 = vmatprep.subr.mxu0 0.0
    %8739 = vmatpush2.msra.mxu0 0.0
    %8740 = vmatprep.subr.mxu0 0.0
    %8741 = vmatpush2.msra.mxu0 0.0
    %8742 = vmatprep.subr.mxu0 0.0
    %8743 = vmatpush2.msra.mxu0 0.0
    %8744 = vmatprep.mubr.f32.mxu0 0.0
    %8745 = vmatmul.mubr.f32.gmra.mxu0 %v8676
    %v8746 = vpop.f32.mrf.mxu0
    %v8747 = vadd.f32 0.0, %v8746
    %v8748 = vpop.f32.mrf.mxu0
    %8749 = vdwg.mxu0
    %8750 = vrot.lane.b32.xlu0 %v8121, 40
    %v8751 = vpop.permute.xlu0 %8750
    %v8753 = vsel %vm8041, %v8672, 0
    %v8755 = vsel %vm8045, %v8751, 0
    %8757 = vmatprep.subr.mxu0 0.0
    %8758 = vmatpush1.msra.mxu0 0.0
    %8759 = vmatprep.subr.mxu0 0.0
    %8760 = vmatpush1.msra.mxu0 0.0
    %8761 = vmatprep.subr.mxu0 0.0
    %8762 = vmatpush1.msra.mxu0 0.0
    %8763 = vmatprep.subr.mxu0 0.0
    %8764 = vmatpush1.msra.mxu0 0.0
    %8765 = vmatprep.subr.mxu0 0.0
    %8766 = vmatpush1.msra.mxu0 0.0
    %8767 = vmatprep.subr.mxu0 0.0
    %8768 = vmatpush1.msra.mxu0 0.0
    %8769 = vmatprep.subr.mxu0 0.0
    %8770 = vmatpush1.msra.mxu0 0.0
    %8771 = vmatprep.subr.mxu0 0.0
    %8772 = vmatpush1.msra.mxu0 0.0
    %8773 = vmatprep.subr.mxu0 0.0
    %8774 = vmatpush1.msra.mxu0 0.0
    %8775 = vmatprep.subr.mxu0 0.0
    %8776 = vmatpush1.msra.mxu0 0.0
    %8777 = vmatprep.subr.mxu0 0.0
    %8778 = vmatpush1.msra.mxu0 0.0
    %8779 = vmatprep.subr.mxu0 0.0
    %8780 = vmatpush1.msra.mxu0 0.0
    %8781 = vmatprep.subr.mxu0 0.0
    %8782 = vmatpush1.msra.mxu0 0.0
    %8783 = vmatprep.subr.mxu0 0.0
    %8784 = vmatpush1.msra.mxu0 0.0
    %8785 = vmatprep.subr.mxu0 0.0
    %8786 = vmatpush1.msra.mxu0 0.0
    %8787 = vmatprep.subr.mxu0 0.0
    %8788 = vmatpush1.msra.mxu0 %v8755
    %8789 = vmatprep.subr.mxu0 0.0
    %8790 = vmatpush2.msra.mxu0 0.0
    %8791 = vmatprep.subr.mxu0 0.0
    %8792 = vmatpush2.msra.mxu0 0.0
    %8793 = vmatprep.subr.mxu0 0.0
    %8794 = vmatpush2.msra.mxu0 0.0
    %8795 = vmatprep.subr.mxu0 0.0
    %8796 = vmatpush2.msra.mxu0 0.0
    %8797 = vmatprep.subr.mxu0 0.0
    %8798 = vmatpush2.msra.mxu0 0.0
    %8799 = vmatprep.subr.mxu0 0.0
    %8800 = vmatpush2.msra.mxu0 0.0
    %8801 = vmatprep.subr.mxu0 0.0
    %8802 = vmatpush2.msra.mxu0 0.0
    %8803 = vmatprep.subr.mxu0 0.0
    %8804 = vmatpush2.msra.mxu0 0.0
    %8805 = vmatprep.subr.mxu0 0.0
    %8806 = vmatpush2.msra.mxu0 0.0
    %8807 = vmatprep.subr.mxu0 0.0
    %8808 = vmatpush2.msra.mxu0 0.0
    %8809 = vmatprep.subr.mxu0 0.0
    %8810 = vmatpush2.msra.mxu0 0.0
    %8811 = vmatprep.subr.mxu0 0.0
    %8812 = vmatpush2.msra.mxu0 0.0
    %8813 = vmatprep.subr.mxu0 0.0
    %8814 = vmatpush2.msra.mxu0 0.0
    %8815 = vmatprep.subr.mxu0 0.0
    %8816 = vmatpush2.msra.mxu0 0.0
    %8817 = vmatprep.subr.mxu0 0.0
    %8818 = vmatpush2.msra.mxu0 0.0
    %8819 = vmatprep.subr.mxu0 0.0
    %8820 = vmatpush2.msra.mxu0 0.0
    %8821 = vmatprep.mubr.f32.mxu0 0.0
    %8822 = vmatmul.mubr.f32.gmra.mxu0 %v8753
    %v8823 = vpop.f32.mrf.mxu0
    %v8824 = vadd.f32 0.0, %v8823
    %v8825 = vpop.f32.mrf.mxu0
    %8826 = vdwg.mxu0
    %v8830 = vunpack.c.l.s4 1966171168
    %v8831 = vunpack.c.0.s8 %v8830
    %v8832 = vlaneseq
    %v8833 = vshrl.u32 %v8832, 7
    %v8834 = vsub.s32 %v8831, %v8833
    %v8835 = vrot.slane %v8747, %v8834
    %v8837 = vunpack.c.l.s4 1966171168
    %v8838 = vunpack.c.0.s8 %v8837
    %v8839 = vlaneseq
    %v8840 = vshrl.u32 %v8839, 7
    %v8841 = vsub.s32 %v8838, %v8840
    %v8842 = vrot.slane %v8835, %v8841
    %v8844 = vunpack.c.l.s4 1966171168
    %v8845 = vunpack.c.0.s8 %v8844
    %v8846 = vlaneseq
    %v8847 = vshrl.u32 %v8846, 7
    %v8848 = vsub.s32 %v8845, %v8847
    %v8849 = vrot.slane %v8824, %v8848
    %v8851 = vunpack.c.l.s4 1966171168
    %v8852 = vunpack.c.0.s8 %v8851
    %v8853 = vlaneseq
    %v8854 = vshrl.u32 %v8853, 7
    %v8855 = vsub.s32 %v8852, %v8854
    %v8856 = vrot.slane %v8849, %v8855
    %8857 = vrot.lane.b32.xlu0 %v8842, 24
    %v8858 = vpop.permute.xlu0 %8857
    %8859 = vrot.lane.b32.xlu0 %v8856, 24
    %v8860 = vpop.permute.xlu0 %8859
    %v8863 = vadd.f32 %v7997, %v8858
    %v8864 = vadd.f32 %v8004, %v8860
    %v8865 = vsel %vm131, %v8199, %v8427
    %v8866 = vsel %vm131, %v8200, %v8428
    %v8867 = vsel %vm48, %v8865, %v8645
    %v8868 = vsel %vm48, %v8866, %v8646
    %v8869 = vsel %vm1477, %v8867, %v8863
    %v8870 = vsel %vm1477, %v8868, %v8864
    %v8871 = vld [vmem:[#allocation4 + $0x200] sm:$0xff]
    %v8872 = vld [vmem:[#allocation4 + $0x208] sm:$0xff]
    %v8873 = vld [vmem:[#allocation4 + $0x210] sm:$0xff]
    %v8874 = vld [vmem:[#allocation4 + $0x218] sm:$0xff]
    %v8875 = vld [vmem:[#allocation4 + $0x220] sm:$0x1]
    %v8876 = vlaneseq
    %v8877 = vshrl.u32 %v8876, 7
    %v8878 = vsub.s32 0, %v8877
    %v8879 = vrot.slane %v8875, %v8878
    %v8882 = vrot.slane %v8870, 7
    %v8883 = vsel %vm7816, %v8882, %v8869
    %v8884 = vsel %vm1489, %v8883, 0
    %8886 = vmatprep.subr.mxu0 0.0
    %8887 = vmatpush1.msra.mxu0 0.0
    %8888 = vmatprep.subr.mxu0 0.0
    %8889 = vmatpush1.msra.mxu0 0.0
    %8890 = vmatprep.subr.mxu0 0.0
    %8891 = vmatpush1.msra.mxu0 0.0
    %8892 = vmatprep.subr.mxu0 0.0
    %8893 = vmatpush1.msra.mxu0 0.0
    %8894 = vmatprep.subr.mxu0 0.0
    %8895 = vmatpush1.msra.mxu0 0.0
    %8896 = vmatprep.subr.mxu0 0.0
    %8897 = vmatpush1.msra.mxu0 0.0
    %8898 = vmatprep.subr.mxu0 0.0
    %8899 = vmatpush1.msra.mxu0 0.0
    %8900 = vmatprep.subr.mxu0 0.0
    %8901 = vmatpush1.msra.mxu0 0.0
    %8902 = vmatprep.subr.mxu0 0.0
    %8903 = vmatpush1.msra.mxu0 0.0
    %8904 = vmatprep.subr.mxu0 0.0
    %8905 = vmatpush1.msra.mxu0 0.0
    %8906 = vmatprep.subr.mxu0 0.0
    %8907 = vmatpush1.msra.mxu0 0.0
    %8908 = vmatprep.subr.mxu0 0.0
    %8909 = vmatpush1.msra.mxu0 0.0
    %8910 = vmatprep.subr.mxu0 0.0
    %8911 = vmatpush1.msra.mxu0 %v8874
    %8912 = vmatprep.subr.mxu0 0.0
    %8913 = vmatpush1.msra.mxu0 %v8873
    %8914 = vmatprep.subr.mxu0 0.0
    %8915 = vmatpush1.msra.mxu0 %v8872
    %8916 = vmatprep.subr.mxu0 0.0
    %8917 = vmatpush1.msra.mxu0 %v8871
    %8918 = vmatprep.subr.mxu0 0.0
    %8919 = vmatpush2.msra.mxu0 0.0
    %8920 = vmatprep.subr.mxu0 0.0
    %8921 = vmatpush2.msra.mxu0 0.0
    %8922 = vmatprep.subr.mxu0 0.0
    %8923 = vmatpush2.msra.mxu0 0.0
    %8924 = vmatprep.subr.mxu0 0.0
    %8925 = vmatpush2.msra.mxu0 0.0
    %8926 = vmatprep.subr.mxu0 0.0
    %8927 = vmatpush2.msra.mxu0 0.0
    %8928 = vmatprep.subr.mxu0 0.0
    %8929 = vmatpush2.msra.mxu0 0.0
    %8930 = vmatprep.subr.mxu0 0.0
    %8931 = vmatpush2.msra.mxu0 0.0
    %8932 = vmatprep.subr.mxu0 0.0
    %8933 = vmatpush2.msra.mxu0 0.0
    %8934 = vmatprep.subr.mxu0 0.0
    %8935 = vmatpush2.msra.mxu0 0.0
    %8936 = vmatprep.subr.mxu0 0.0
    %8937 = vmatpush2.msra.mxu0 0.0
    %8938 = vmatprep.subr.mxu0 0.0
    %8939 = vmatpush2.msra.mxu0 0.0
    %8940 = vmatprep.subr.mxu0 0.0
    %8941 = vmatpush2.msra.mxu0 0.0
    %8942 = vmatprep.subr.mxu0 0.0
    %8943 = vmatpush2.msra.mxu0 0.0
    %8944 = vmatprep.subr.mxu0 0.0
    %8945 = vmatpush2.msra.mxu0 0.0
    %8946 = vmatprep.subr.mxu0 0.0
    %8947 = vmatpush2.msra.mxu0 0.0
    %8948 = vmatprep.subr.mxu0 0.0
    %8949 = vmatpush2.msra.mxu0 0.0
    %8950 = vmatprep.mubr.f32.mxu0 0.0
    %8951 = vmatmul.mubr.f32.gmra.mxu0 %v8884
    %v8952 = vpop.f32.mrf.mxu0
    %v8953 = vadd.f32 %v8879, %v8952
    %v8954 = vpop.f32.mrf.mxu0
    %8955 = vdwg.mxu0
    %v8956 = vmax.f32 %v8953, 0.0
    %v8958 = vrot.slane %v8956, 1
    %v8961 = vadd.f32 %v8869, %v8956
    %v8962 = vadd.f32 %v8870, %v8958
    %v8963 = vld [vmem:[#allocation4 + $0x228] sm:$0xff]
    %v8964 = vld [vmem:[#allocation4 + $0x230] sm:$0xff]
    %v8965 = vld [vmem:[#allocation4 + $0x238] sm:$0xff]
    %v8966 = vld [vmem:[#allocation4 + $0x240] sm:$0xff]
    %v8967 = vld [vmem:[#allocation4 + $0x248] sm:$0x1]
    %v8968 = vlaneseq
    %v8969 = vshrl.u32 %v8968, 7
    %v8970 = vsub.s32 0, %v8969
    %v8971 = vrot.slane %v8967, %v8970
    %v8974 = vrot.slane %v8962, 7
    %v8975 = vsel %vm7816, %v8974, %v8961
    %v8976 = vsel %vm1489, %v8975, 0
    %8978 = vmatprep.subr.mxu0 0.0
    %8979 = vmatpush1.msra.mxu0 0.0
    %8980 = vmatprep.subr.mxu0 0.0
    %8981 = vmatpush1.msra.mxu0 0.0
    %8982 = vmatprep.subr.mxu0 0.0
    %8983 = vmatpush1.msra.mxu0 0.0
    %8984 = vmatprep.subr.mxu0 0.0
    %8985 = vmatpush1.msra.mxu0 0.0
    %8986 = vmatprep.subr.mxu0 0.0
    %8987 = vmatpush1.msra.mxu0 0.0
    %8988 = vmatprep.subr.mxu0 0.0
    %8989 = vmatpush1.msra.mxu0 0.0
    %8990 = vmatprep.subr.mxu0 0.0
    %8991 = vmatpush1.msra.mxu0 0.0
    %8992 = vmatprep.subr.mxu0 0.0
    %8993 = vmatpush1.msra.mxu0 0.0
    %8994 = vmatprep.subr.mxu0 0.0
    %8995 = vmatpush1.msra.mxu0 0.0
    %8996 = vmatprep.subr.mxu0 0.0
    %8997 = vmatpush1.msra.mxu0 0.0
    %8998 = vmatprep.subr.mxu0 0.0
    %8999 = vmatpush1.msra.mxu0 0.0
    %9000 = vmatprep.subr.mxu0 0.0
    %9001 = vmatpush1.msra.mxu0 0.0
    %9002 = vmatprep.subr.mxu0 0.0
    %9003 = vmatpush1.msra.mxu0 %v8966
    %9004 = vmatprep.subr.mxu0 0.0
    %9005 = vmatpush1.msra.mxu0 %v8965
    %9006 = vmatprep.subr.mxu0 0.0
    %9007 = vmatpush1.msra.mxu0 %v8964
    %9008 = vmatprep.subr.mxu0 0.0
    %9009 = vmatpush1.msra.mxu0 %v8963
    %9010 = vmatprep.subr.mxu0 0.0
    %9011 = vmatpush2.msra.mxu0 0.0
    %9012 = vmatprep.subr.mxu0 0.0
    %9013 = vmatpush2.msra.mxu0 0.0
    %9014 = vmatprep.subr.mxu0 0.0
    %9015 = vmatpush2.msra.mxu0 0.0
    %9016 = vmatprep.subr.mxu0 0.0
    %9017 = vmatpush2.msra.mxu0 0.0
    %9018 = vmatprep.subr.mxu0 0.0
    %9019 = vmatpush2.msra.mxu0 0.0
    %9020 = vmatprep.subr.mxu0 0.0
    %9021 = vmatpush2.msra.mxu0 0.0
    %9022 = vmatprep.subr.mxu0 0.0
    %9023 = vmatpush2.msra.mxu0 0.0
    %9024 = vmatprep.subr.mxu0 0.0
    %9025 = vmatpush2.msra.mxu0 0.0
    %9026 = vmatprep.subr.mxu0 0.0
    %9027 = vmatpush2.msra.mxu0 0.0
    %9028 = vmatprep.subr.mxu0 0.0
    %9029 = vmatpush2.msra.mxu0 0.0
    %9030 = vmatprep.subr.mxu0 0.0
    %9031 = vmatpush2.msra.mxu0 0.0
    %9032 = vmatprep.subr.mxu0 0.0
    %9033 = vmatpush2.msra.mxu0 0.0
    %9034 = vmatprep.subr.mxu0 0.0
    %9035 = vmatpush2.msra.mxu0 0.0
    %9036 = vmatprep.subr.mxu0 0.0
    %9037 = vmatpush2.msra.mxu0 0.0
    %9038 = vmatprep.subr.mxu0 0.0
    %9039 = vmatpush2.msra.mxu0 0.0
    %9040 = vmatprep.subr.mxu0 0.0
    %9041 = vmatpush2.msra.mxu0 0.0
    %9042 = vmatprep.mubr.f32.mxu0 0.0
    %9043 = vmatmul.mubr.f32.gmra.mxu0 %v8976
    %v9044 = vpop.f32.mrf.mxu0
    %v9045 = vadd.f32 %v8971, %v9044
    %v9046 = vpop.f32.mrf.mxu0
    %9047 = vdwg.mxu0
    %v9050 = vunpack.c.l.s4 1966171168
    %v9051 = vunpack.c.0.s8 %v9050
    %v9052 = vlaneseq
    %v9053 = vshrl.u32 %v9052, 7
    %v9054 = vsub.s32 %v9051, %v9053
    %v9055 = vrot.slane %v9045, %v9054
    %v9056 = vcombine.high %v9055, %v9055
    %v9058 = vunpack.c.l.s4 1966171168
    %v9059 = vunpack.c.0.s8 %v9058
    %v9060 = vlaneseq
    %v9061 = vshrl.u32 %v9060, 7
    %v9062 = vsub.s32 %v9059, %v9061
    %v9063 = vrot.slane %v9055, %v9062
    %v9065 = vunpack.c.l.s4 1966171168
    %v9066 = vunpack.c.0.s8 %v9065
    %v9067 = vlaneseq
    %v9068 = vshrl.u32 %v9067, 7
    %v9069 = vsub.s32 %v9066, %v9068
    %v9070 = vrot.slane %v9056, %v9069
    %9073 = vrot.lane.b32.xlu0 %v9063, 96
    %v9074 = vpop.permute.xlu0 %9073
    %v9076 = vmul.f32 %v9063, %v9074
    %v9077 = vsel %vm6607, %v9076, 0.0
    %9078 = vadd.xlane.f32.xlu0 %v9077
    %v9079 = vpop.xlane.xlu0 %9078
    %9080 = vrot.lane.b32.xlu0 %v9070, 96
    %v9081 = vpop.permute.xlu0 %9080
    %v9083 = vmul.f32 %v9070, %v9081
    %v9084 = vsel %vm6607, %v9083, 0.0
    %9085 = vadd.xlane.f32.xlu0 %v9084
    %v9086 = vpop.xlane.xlu0 %9085
    %v9087 = vmul.f32 %v9079, 0.17677669
    %v9088 = vmul.f32 %v9086, 0.17677669
    %v9089 = vsub.f32 %v9087, %v9087
    %v9090 = vsub.f32 %v9088, %v9088
    %v9091 = vmul.f32 %v9089, 1.442695
    %v9092 = vpow.pop %v9091
    %v9093 = vmul.f32 %v9090, 1.442695
    %v9094 = vpow.pop %v9093
    %v9095 = vadd.f32 %v9092, 0.0
    %v9096 = vadd.f32 %v9094, 0.0
    %v9097 = vrcp.pop %v9095
    %v9098 = vmul.f32 %v9092, %v9097
    %v9099 = vrcp.pop %v9096
    %v9100 = vmul.f32 %v9094, %v9099
    %v9101 = vlaneseq
    %v9102 = vshrl.u32 %v9101, 7
    %v9103 = vsub.s32 0, %v9102
    %v9104 = vrot.slane %v9063, %v9103
    %9105 = vrot.lane.b32.xlu0 %v9104, 64
    %v9106 = vpop.permute.xlu0 %9105
    %v9108 = vsel %vm8041, %v9098, 0
    %v9110 = vsel %vm8045, %v9106, 0
    %9112 = vmatprep.subr.mxu0 0.0
    %9113 = vmatpush1.msra.mxu0 0.0
    %9114 = vmatprep.subr.mxu0 0.0
    %9115 = vmatpush1.msra.mxu0 0.0
    %9116 = vmatprep.subr.mxu0 0.0
    %9117 = vmatpush1.msra.mxu0 0.0
    %9118 = vmatprep.subr.mxu0 0.0
    %9119 = vmatpush1.msra.mxu0 0.0
    %9120 = vmatprep.subr.mxu0 0.0
    %9121 = vmatpush1.msra.mxu0 0.0
    %9122 = vmatprep.subr.mxu0 0.0
    %9123 = vmatpush1.msra.mxu0 0.0
    %9124 = vmatprep.subr.mxu0 0.0
    %9125 = vmatpush1.msra.mxu0 0.0
    %9126 = vmatprep.subr.mxu0 0.0
    %9127 = vmatpush1.msra.mxu0 0.0
    %9128 = vmatprep.subr.mxu0 0.0
    %9129 = vmatpush1.msra.mxu0 0.0
    %9130 = vmatprep.subr.mxu0 0.0
    %9131 = vmatpush1.msra.mxu0 0.0
    %9132 = vmatprep.subr.mxu0 0.0
    %9133 = vmatpush1.msra.mxu0 0.0
    %9134 = vmatprep.subr.mxu0 0.0
    %9135 = vmatpush1.msra.mxu0 0.0
    %9136 = vmatprep.subr.mxu0 0.0
    %9137 = vmatpush1.msra.mxu0 0.0
    %9138 = vmatprep.subr.mxu0 0.0
    %9139 = vmatpush1.msra.mxu0 0.0
    %9140 = vmatprep.subr.mxu0 0.0
    %9141 = vmatpush1.msra.mxu0 0.0
    %9142 = vmatprep.subr.mxu0 0.0
    %9143 = vmatpush1.msra.mxu0 %v9110
    %9144 = vmatprep.subr.mxu0 0.0
    %9145 = vmatpush2.msra.mxu0 0.0
    %9146 = vmatprep.subr.mxu0 0.0
    %9147 = vmatpush2.msra.mxu0 0.0
    %9148 = vmatprep.subr.mxu0 0.0
    %9149 = vmatpush2.msra.mxu0 0.0
    %9150 = vmatprep.subr.mxu0 0.0
    %9151 = vmatpush2.msra.mxu0 0.0
    %9152 = vmatprep.subr.mxu0 0.0
    %9153 = vmatpush2.msra.mxu0 0.0
    %9154 = vmatprep.subr.mxu0 0.0
    %9155 = vmatpush2.msra.mxu0 0.0
    %9156 = vmatprep.subr.mxu0 0.0
    %9157 = vmatpush2.msra.mxu0 0.0
    %9158 = vmatprep.subr.mxu0 0.0
    %9159 = vmatpush2.msra.mxu0 0.0
    %9160 = vmatprep.subr.mxu0 0.0
    %9161 = vmatpush2.msra.mxu0 0.0
    %9162 = vmatprep.subr.mxu0 0.0
    %9163 = vmatpush2.msra.mxu0 0.0
    %9164 = vmatprep.subr.mxu0 0.0
    %9165 = vmatpush2.msra.mxu0 0.0
    %9166 = vmatprep.subr.mxu0 0.0
    %9167 = vmatpush2.msra.mxu0 0.0
    %9168 = vmatprep.subr.mxu0 0.0
    %9169 = vmatpush2.msra.mxu0 0.0
    %9170 = vmatprep.subr.mxu0 0.0
    %9171 = vmatpush2.msra.mxu0 0.0
    %9172 = vmatprep.subr.mxu0 0.0
    %9173 = vmatpush2.msra.mxu0 0.0
    %9174 = vmatprep.subr.mxu0 0.0
    %9175 = vmatpush2.msra.mxu0 0.0
    %9176 = vmatprep.mubr.f32.mxu0 0.0
    %9177 = vmatmul.mubr.f32.gmra.mxu0 %v9108
    %v9178 = vpop.f32.mrf.mxu0
    %v9179 = vadd.f32 0.0, %v9178
    %v9180 = vpop.f32.mrf.mxu0
    %9181 = vdwg.mxu0
    %v9182 = vlaneseq
    %v9183 = vshrl.u32 %v9182, 7
    %v9184 = vsub.s32 0, %v9183
    %v9185 = vrot.slane %v9070, %v9184
    %9186 = vrot.lane.b32.xlu0 %v9185, 64
    %v9187 = vpop.permute.xlu0 %9186
    %v9189 = vsel %vm8041, %v9100, 0
    %v9191 = vsel %vm8045, %v9187, 0
    %9193 = vmatprep.subr.mxu0 0.0
    %9194 = vmatpush1.msra.mxu0 0.0
    %9195 = vmatprep.subr.mxu0 0.0
    %9196 = vmatpush1.msra.mxu0 0.0
    %9197 = vmatprep.subr.mxu0 0.0
    %9198 = vmatpush1.msra.mxu0 0.0
    %9199 = vmatprep.subr.mxu0 0.0
    %9200 = vmatpush1.msra.mxu0 0.0
    %9201 = vmatprep.subr.mxu0 0.0
    %9202 = vmatpush1.msra.mxu0 0.0
    %9203 = vmatprep.subr.mxu0 0.0
    %9204 = vmatpush1.msra.mxu0 0.0
    %9205 = vmatprep.subr.mxu0 0.0
    %9206 = vmatpush1.msra.mxu0 0.0
    %9207 = vmatprep.subr.mxu0 0.0
    %9208 = vmatpush1.msra.mxu0 0.0
    %9209 = vmatprep.subr.mxu0 0.0
    %9210 = vmatpush1.msra.mxu0 0.0
    %9211 = vmatprep.subr.mxu0 0.0
    %9212 = vmatpush1.msra.mxu0 0.0
    %9213 = vmatprep.subr.mxu0 0.0
    %9214 = vmatpush1.msra.mxu0 0.0
    %9215 = vmatprep.subr.mxu0 0.0
    %9216 = vmatpush1.msra.mxu0 0.0
    %9217 = vmatprep.subr.mxu0 0.0
    %9218 = vmatpush1.msra.mxu0 0.0
    %9219 = vmatprep.subr.mxu0 0.0
    %9220 = vmatpush1.msra.mxu0 0.0
    %9221 = vmatprep.subr.mxu0 0.0
    %9222 = vmatpush1.msra.mxu0 0.0
    %9223 = vmatprep.subr.mxu0 0.0
    %9224 = vmatpush1.msra.mxu0 %v9191
    %9225 = vmatprep.subr.mxu0 0.0
    %9226 = vmatpush2.msra.mxu0 0.0
    %9227 = vmatprep.subr.mxu0 0.0
    %9228 = vmatpush2.msra.mxu0 0.0
    %9229 = vmatprep.subr.mxu0 0.0
    %9230 = vmatpush2.msra.mxu0 0.0
    %9231 = vmatprep.subr.mxu0 0.0
    %9232 = vmatpush2.msra.mxu0 0.0
    %9233 = vmatprep.subr.mxu0 0.0
    %9234 = vmatpush2.msra.mxu0 0.0
    %9235 = vmatprep.subr.mxu0 0.0
    %9236 = vmatpush2.msra.mxu0 0.0
    %9237 = vmatprep.subr.mxu0 0.0
    %9238 = vmatpush2.msra.mxu0 0.0
    %9239 = vmatprep.subr.mxu0 0.0
    %9240 = vmatpush2.msra.mxu0 0.0
    %9241 = vmatprep.subr.mxu0 0.0
    %9242 = vmatpush2.msra.mxu0 0.0
    %9243 = vmatprep.subr.mxu0 0.0
    %9244 = vmatpush2.msra.mxu0 0.0
    %9245 = vmatprep.subr.mxu0 0.0
    %9246 = vmatpush2.msra.mxu0 0.0
    %9247 = vmatprep.subr.mxu0 0.0
    %9248 = vmatpush2.msra.mxu0 0.0
    %9249 = vmatprep.subr.mxu0 0.0
    %9250 = vmatpush2.msra.mxu0 0.0
    %9251 = vmatprep.subr.mxu0 0.0
    %9252 = vmatpush2.msra.mxu0 0.0
    %9253 = vmatprep.subr.mxu0 0.0
    %9254 = vmatpush2.msra.mxu0 0.0
    %9255 = vmatprep.subr.mxu0 0.0
    %9256 = vmatpush2.msra.mxu0 0.0
    %9257 = vmatprep.mubr.f32.mxu0 0.0
    %9258 = vmatmul.mubr.f32.gmra.mxu0 %v9189
    %v9259 = vpop.f32.mrf.mxu0
    %v9260 = vadd.f32 0.0, %v9259
    %v9261 = vpop.f32.mrf.mxu0
    %9262 = vdwg.mxu0
    %v9263 = vadd.f32 %v9063, %v9179
    %v9264 = vadd.f32 %v9070, %v9260
    %v9266 = vlaneseq
    %v9267 = vshrl.u32 %v9266, 7
    %v9268 = vsub.s32 0, %v9267
    %v9269 = vrot.slane %v9076, %v9268
    %9270 = vrot.lane.b32.xlu0 %v9269, 120
    %v9271 = vpop.permute.xlu0 %9270
    %v9273 = vsel %vm6607, %v9271, 0.0
    %9274 = vadd.xlane.f32.xlu0 %v9273
    %v9275 = vpop.xlane.xlu0 %9274
    %v9277 = vlaneseq
    %v9278 = vshrl.u32 %v9277, 7
    %v9279 = vsub.s32 0, %v9278
    %v9280 = vrot.slane %v9083, %v9279
    %9281 = vrot.lane.b32.xlu0 %v9280, 120
    %v9282 = vpop.permute.xlu0 %9281
    %v9284 = vsel %vm6607, %v9282, 0.0
    %9285 = vadd.xlane.f32.xlu0 %v9284
    %v9286 = vpop.xlane.xlu0 %9285
    %v9287 = vmul.f32 %v9275, 0.17677669
    %v9288 = vmul.f32 %v9286, 0.17677669
    %v9289 = vsub.f32 %v9287, %v9287
    %v9290 = vsub.f32 %v9288, %v9288
    %v9291 = vmul.f32 %v9289, 1.442695
    %v9292 = vpow.pop %v9291
    %v9293 = vmul.f32 %v9290, 1.442695
    %v9294 = vpow.pop %v9293
    %v9295 = vadd.f32 %v9292, 0.0
    %v9296 = vadd.f32 %v9294, 0.0
    %v9297 = vrcp.pop %v9295
    %v9298 = vmul.f32 %v9292, %v9297
    %v9299 = vrcp.pop %v9296
    %v9300 = vmul.f32 %v9294, %v9299
    %9301 = vrot.lane.b32.xlu0 %v9104, 56
    %v9302 = vpop.permute.xlu0 %9301
    %v9304 = vsel %vm8041, %v9298, 0
    %v9306 = vsel %vm8045, %v9302, 0
    %9308 = vmatprep.subr.mxu0 0.0
    %9309 = vmatpush1.msra.mxu0 0.0
    %9310 = vmatprep.subr.mxu0 0.0
    %9311 = vmatpush1.msra.mxu0 0.0
    %9312 = vmatprep.subr.mxu0 0.0
    %9313 = vmatpush1.msra.mxu0 0.0
    %9314 = vmatprep.subr.mxu0 0.0
    %9315 = vmatpush1.msra.mxu0 0.0
    %9316 = vmatprep.subr.mxu0 0.0
    %9317 = vmatpush1.msra.mxu0 0.0
    %9318 = vmatprep.subr.mxu0 0.0
    %9319 = vmatpush1.msra.mxu0 0.0
    %9320 = vmatprep.subr.mxu0 0.0
    %9321 = vmatpush1.msra.mxu0 0.0
    %9322 = vmatprep.subr.mxu0 0.0
    %9323 = vmatpush1.msra.mxu0 0.0
    %9324 = vmatprep.subr.mxu0 0.0
    %9325 = vmatpush1.msra.mxu0 0.0
    %9326 = vmatprep.subr.mxu0 0.0
    %9327 = vmatpush1.msra.mxu0 0.0
    %9328 = vmatprep.subr.mxu0 0.0
    %9329 = vmatpush1.msra.mxu0 0.0
    %9330 = vmatprep.subr.mxu0 0.0
    %9331 = vmatpush1.msra.mxu0 0.0
    %9332 = vmatprep.subr.mxu0 0.0
    %9333 = vmatpush1.msra.mxu0 0.0
    %9334 = vmatprep.subr.mxu0 0.0
    %9335 = vmatpush1.msra.mxu0 0.0
    %9336 = vmatprep.subr.mxu0 0.0
    %9337 = vmatpush1.msra.mxu0 0.0
    %9338 = vmatprep.subr.mxu0 0.0
    %9339 = vmatpush1.msra.mxu0 %v9306
    %9340 = vmatprep.subr.mxu0 0.0
    %9341 = vmatpush2.msra.mxu0 0.0
    %9342 = vmatprep.subr.mxu0 0.0
    %9343 = vmatpush2.msra.mxu0 0.0
    %9344 = vmatprep.subr.mxu0 0.0
    %9345 = vmatpush2.msra.mxu0 0.0
    %9346 = vmatprep.subr.mxu0 0.0
    %9347 = vmatpush2.msra.mxu0 0.0
    %9348 = vmatprep.subr.mxu0 0.0
    %9349 = vmatpush2.msra.mxu0 0.0
    %9350 = vmatprep.subr.mxu0 0.0
    %9351 = vmatpush2.msra.mxu0 0.0
    %9352 = vmatprep.subr.mxu0 0.0
    %9353 = vmatpush2.msra.mxu0 0.0
    %9354 = vmatprep.subr.mxu0 0.0
    %9355 = vmatpush2.msra.mxu0 0.0
    %9356 = vmatprep.subr.mxu0 0.0
    %9357 = vmatpush2.msra.mxu0 0.0
    %9358 = vmatprep.subr.mxu0 0.0
    %9359 = vmatpush2.msra.mxu0 0.0
    %9360 = vmatprep.subr.mxu0 0.0
    %9361 = vmatpush2.msra.mxu0 0.0
    %9362 = vmatprep.subr.mxu0 0.0
    %9363 = vmatpush2.msra.mxu0 0.0
    %9364 = vmatprep.subr.mxu0 0.0
    %9365 = vmatpush2.msra.mxu0 0.0
    %9366 = vmatprep.subr.mxu0 0.0
    %9367 = vmatpush2.msra.mxu0 0.0
    %9368 = vmatprep.subr.mxu0 0.0
    %9369 = vmatpush2.msra.mxu0 0.0
    %9370 = vmatprep.subr.mxu0 0.0
    %9371 = vmatpush2.msra.mxu0 0.0
    %9372 = vmatprep.mubr.f32.mxu0 0.0
    %9373 = vmatmul.mubr.f32.gmra.mxu0 %v9304
    %v9374 = vpop.f32.mrf.mxu0
    %v9375 = vadd.f32 0.0, %v9374
    %v9376 = vpop.f32.mrf.mxu0
    %9377 = vdwg.mxu0
    %9378 = vrot.lane.b32.xlu0 %v9185, 56
    %v9379 = vpop.permute.xlu0 %9378
    %v9381 = vsel %vm8041, %v9300, 0
    %v9383 = vsel %vm8045, %v9379, 0
    %9385 = vmatprep.subr.mxu0 0.0
    %9386 = vmatpush1.msra.mxu0 0.0
    %9387 = vmatprep.subr.mxu0 0.0
    %9388 = vmatpush1.msra.mxu0 0.0
    %9389 = vmatprep.subr.mxu0 0.0
    %9390 = vmatpush1.msra.mxu0 0.0
    %9391 = vmatprep.subr.mxu0 0.0
    %9392 = vmatpush1.msra.mxu0 0.0
    %9393 = vmatprep.subr.mxu0 0.0
    %9394 = vmatpush1.msra.mxu0 0.0
    %9395 = vmatprep.subr.mxu0 0.0
    %9396 = vmatpush1.msra.mxu0 0.0
    %9397 = vmatprep.subr.mxu0 0.0
    %9398 = vmatpush1.msra.mxu0 0.0
    %9399 = vmatprep.subr.mxu0 0.0
    %9400 = vmatpush1.msra.mxu0 0.0
    %9401 = vmatprep.subr.mxu0 0.0
    %9402 = vmatpush1.msra.mxu0 0.0
    %9403 = vmatprep.subr.mxu0 0.0
    %9404 = vmatpush1.msra.mxu0 0.0
    %9405 = vmatprep.subr.mxu0 0.0
    %9406 = vmatpush1.msra.mxu0 0.0
    %9407 = vmatprep.subr.mxu0 0.0
    %9408 = vmatpush1.msra.mxu0 0.0
    %9409 = vmatprep.subr.mxu0 0.0
    %9410 = vmatpush1.msra.mxu0 0.0
    %9411 = vmatprep.subr.mxu0 0.0
    %9412 = vmatpush1.msra.mxu0 0.0
    %9413 = vmatprep.subr.mxu0 0.0
    %9414 = vmatpush1.msra.mxu0 0.0
    %9415 = vmatprep.subr.mxu0 0.0
    %9416 = vmatpush1.msra.mxu0 %v9383
    %9417 = vmatprep.subr.mxu0 0.0
    %9418 = vmatpush2.msra.mxu0 0.0
    %9419 = vmatprep.subr.mxu0 0.0
    %9420 = vmatpush2.msra.mxu0 0.0
    %9421 = vmatprep.subr.mxu0 0.0
    %9422 = vmatpush2.msra.mxu0 0.0
    %9423 = vmatprep.subr.mxu0 0.0
    %9424 = vmatpush2.msra.mxu0 0.0
    %9425 = vmatprep.subr.mxu0 0.0
    %9426 = vmatpush2.msra.mxu0 0.0
    %9427 = vmatprep.subr.mxu0 0.0
    %9428 = vmatpush2.msra.mxu0 0.0
    %9429 = vmatprep.subr.mxu0 0.0
    %9430 = vmatpush2.msra.mxu0 0.0
    %9431 = vmatprep.subr.mxu0 0.0
    %9432 = vmatpush2.msra.mxu0 0.0
    %9433 = vmatprep.subr.mxu0 0.0
    %9434 = vmatpush2.msra.mxu0 0.0
    %9435 = vmatprep.subr.mxu0 0.0
    %9436 = vmatpush2.msra.mxu0 0.0
    %9437 = vmatprep.subr.mxu0 0.0
    %9438 = vmatpush2.msra.mxu0 0.0
    %9439 = vmatprep.subr.mxu0 0.0
    %9440 = vmatpush2.msra.mxu0 0.0
    %9441 = vmatprep.subr.mxu0 0.0
    %9442 = vmatpush2.msra.mxu0 0.0
    %9443 = vmatprep.subr.mxu0 0.0
    %9444 = vmatpush2.msra.mxu0 0.0
    %9445 = vmatprep.subr.mxu0 0.0
    %9446 = vmatpush2.msra.mxu0 0.0
    %9447 = vmatprep.subr.mxu0 0.0
    %9448 = vmatpush2.msra.mxu0 0.0
    %9449 = vmatprep.mubr.f32.mxu0 0.0
    %9450 = vmatmul.mubr.f32.gmra.mxu0 %v9381
    %v9451 = vpop.f32.mrf.mxu0
    %v9452 = vadd.f32 0.0, %v9451
    %v9453 = vpop.f32.mrf.mxu0
    %9454 = vdwg.mxu0
    %v9458 = vunpack.c.l.s4 1966171168
    %v9459 = vunpack.c.0.s8 %v9458
    %v9460 = vlaneseq
    %v9461 = vshrl.u32 %v9460, 7
    %v9462 = vsub.s32 %v9459, %v9461
    %v9463 = vrot.slane %v9375, %v9462
    %v9465 = vunpack.c.l.s4 1966171168
    %v9466 = vunpack.c.0.s8 %v9465
    %v9467 = vlaneseq
    %v9468 = vshrl.u32 %v9467, 7
    %v9469 = vsub.s32 %v9466, %v9468
    %v9470 = vrot.slane %v9463, %v9469
    %v9472 = vunpack.c.l.s4 1966171168
    %v9473 = vunpack.c.0.s8 %v9472
    %v9474 = vlaneseq
    %v9475 = vshrl.u32 %v9474, 7
    %v9476 = vsub.s32 %v9473, %v9475
    %v9477 = vrot.slane %v9452, %v9476
    %v9479 = vunpack.c.l.s4 1966171168
    %v9480 = vunpack.c.0.s8 %v9479
    %v9481 = vlaneseq
    %v9482 = vshrl.u32 %v9481, 7
    %v9483 = vsub.s32 %v9480, %v9482
    %v9484 = vrot.slane %v9477, %v9483
    %9485 = vrot.lane.b32.xlu0 %v9470, 8
    %v9486 = vpop.permute.xlu0 %9485
    %9487 = vrot.lane.b32.xlu0 %v9484, 8
    %v9488 = vpop.permute.xlu0 %9487
    %v9491 = vadd.f32 %v9063, %v9486
    %v9492 = vadd.f32 %v9070, %v9488
    %9493 = vrot.lane.b32.xlu0 %v9269, 112
    %v9494 = vpop.permute.xlu0 %9493
    %v9496 = vsel %vm6607, %v9494, 0.0
    %9497 = vadd.xlane.f32.xlu0 %v9496
    %v9498 = vpop.xlane.xlu0 %9497
    %9499 = vrot.lane.b32.xlu0 %v9280, 112
    %v9500 = vpop.permute.xlu0 %9499
    %v9502 = vsel %vm6607, %v9500, 0.0
    %9503 = vadd.xlane.f32.xlu0 %v9502
    %v9504 = vpop.xlane.xlu0 %9503
    %v9505 = vmul.f32 %v9498, 0.17677669
    %v9506 = vmul.f32 %v9504, 0.17677669
    %v9507 = vsub.f32 %v9505, %v9505
    %v9508 = vsub.f32 %v9506, %v9506
    %v9509 = vmul.f32 %v9507, 1.442695
    %v9510 = vpow.pop %v9509
    %v9511 = vmul.f32 %v9508, 1.442695
    %v9512 = vpow.pop %v9511
    %v9513 = vadd.f32 %v9510, 0.0
    %v9514 = vadd.f32 %v9512, 0.0
    %v9515 = vrcp.pop %v9513
    %v9516 = vmul.f32 %v9510, %v9515
    %v9517 = vrcp.pop %v9514
    %v9518 = vmul.f32 %v9512, %v9517
    %9519 = vrot.lane.b32.xlu0 %v9104, 48
    %v9520 = vpop.permute.xlu0 %9519
    %v9522 = vsel %vm8041, %v9516, 0
    %v9524 = vsel %vm8045, %v9520, 0
    %9526 = vmatprep.subr.mxu0 0.0
    %9527 = vmatpush1.msra.mxu0 0.0
    %9528 = vmatprep.subr.mxu0 0.0
    %9529 = vmatpush1.msra.mxu0 0.0
    %9530 = vmatprep.subr.mxu0 0.0
    %9531 = vmatpush1.msra.mxu0 0.0
    %9532 = vmatprep.subr.mxu0 0.0
    %9533 = vmatpush1.msra.mxu0 0.0
    %9534 = vmatprep.subr.mxu0 0.0
    %9535 = vmatpush1.msra.mxu0 0.0
    %9536 = vmatprep.subr.mxu0 0.0
    %9537 = vmatpush1.msra.mxu0 0.0
    %9538 = vmatprep.subr.mxu0 0.0
    %9539 = vmatpush1.msra.mxu0 0.0
    %9540 = vmatprep.subr.mxu0 0.0
    %9541 = vmatpush1.msra.mxu0 0.0
    %9542 = vmatprep.subr.mxu0 0.0
    %9543 = vmatpush1.msra.mxu0 0.0
    %9544 = vmatprep.subr.mxu0 0.0
    %9545 = vmatpush1.msra.mxu0 0.0
    %9546 = vmatprep.subr.mxu0 0.0
    %9547 = vmatpush1.msra.mxu0 0.0
    %9548 = vmatprep.subr.mxu0 0.0
    %9549 = vmatpush1.msra.mxu0 0.0
    %9550 = vmatprep.subr.mxu0 0.0
    %9551 = vmatpush1.msra.mxu0 0.0
    %9552 = vmatprep.subr.mxu0 0.0
    %9553 = vmatpush1.msra.mxu0 0.0
    %9554 = vmatprep.subr.mxu0 0.0
    %9555 = vmatpush1.msra.mxu0 0.0
    %9556 = vmatprep.subr.mxu0 0.0
    %9557 = vmatpush1.msra.mxu0 %v9524
    %9558 = vmatprep.subr.mxu0 0.0
    %9559 = vmatpush2.msra.mxu0 0.0
    %9560 = vmatprep.subr.mxu0 0.0
    %9561 = vmatpush2.msra.mxu0 0.0
    %9562 = vmatprep.subr.mxu0 0.0
    %9563 = vmatpush2.msra.mxu0 0.0
    %9564 = vmatprep.subr.mxu0 0.0
    %9565 = vmatpush2.msra.mxu0 0.0
    %9566 = vmatprep.subr.mxu0 0.0
    %9567 = vmatpush2.msra.mxu0 0.0
    %9568 = vmatprep.subr.mxu0 0.0
    %9569 = vmatpush2.msra.mxu0 0.0
    %9570 = vmatprep.subr.mxu0 0.0
    %9571 = vmatpush2.msra.mxu0 0.0
    %9572 = vmatprep.subr.mxu0 0.0
    %9573 = vmatpush2.msra.mxu0 0.0
    %9574 = vmatprep.subr.mxu0 0.0
    %9575 = vmatpush2.msra.mxu0 0.0
    %9576 = vmatprep.subr.mxu0 0.0
    %9577 = vmatpush2.msra.mxu0 0.0
    %9578 = vmatprep.subr.mxu0 0.0
    %9579 = vmatpush2.msra.mxu0 0.0
    %9580 = vmatprep.subr.mxu0 0.0
    %9581 = vmatpush2.msra.mxu0 0.0
    %9582 = vmatprep.subr.mxu0 0.0
    %9583 = vmatpush2.msra.mxu0 0.0
    %9584 = vmatprep.subr.mxu0 0.0
    %9585 = vmatpush2.msra.mxu0 0.0
    %9586 = vmatprep.subr.mxu0 0.0
    %9587 = vmatpush2.msra.mxu0 0.0
    %9588 = vmatprep.subr.mxu0 0.0
    %9589 = vmatpush2.msra.mxu0 0.0
    %9590 = vmatprep.mubr.f32.mxu0 0.0
    %9591 = vmatmul.mubr.f32.gmra.mxu0 %v9522
    %v9592 = vpop.f32.mrf.mxu0
    %v9593 = vadd.f32 0.0, %v9592
    %v9594 = vpop.f32.mrf.mxu0
    %9595 = vdwg.mxu0
    %9596 = vrot.lane.b32.xlu0 %v9185, 48
    %v9597 = vpop.permute.xlu0 %9596
    %v9599 = vsel %vm8041, %v9518, 0
    %v9601 = vsel %vm8045, %v9597, 0
    %9603 = vmatprep.subr.mxu0 0.0
    %9604 = vmatpush1.msra.mxu0 0.0
    %9605 = vmatprep.subr.mxu0 0.0
    %9606 = vmatpush1.msra.mxu0 0.0
    %9607 = vmatprep.subr.mxu0 0.0
    %9608 = vmatpush1.msra.mxu0 0.0
    %9609 = vmatprep.subr.mxu0 0.0
    %9610 = vmatpush1.msra.mxu0 0.0
    %9611 = vmatprep.subr.mxu0 0.0
    %9612 = vmatpush1.msra.mxu0 0.0
    %9613 = vmatprep.subr.mxu0 0.0
    %9614 = vmatpush1.msra.mxu0 0.0
    %9615 = vmatprep.subr.mxu0 0.0
    %9616 = vmatpush1.msra.mxu0 0.0
    %9617 = vmatprep.subr.mxu0 0.0
    %9618 = vmatpush1.msra.mxu0 0.0
    %9619 = vmatprep.subr.mxu0 0.0
    %9620 = vmatpush1.msra.mxu0 0.0
    %9621 = vmatprep.subr.mxu0 0.0
    %9622 = vmatpush1.msra.mxu0 0.0
    %9623 = vmatprep.subr.mxu0 0.0
    %9624 = vmatpush1.msra.mxu0 0.0
    %9625 = vmatprep.subr.mxu0 0.0
    %9626 = vmatpush1.msra.mxu0 0.0
    %9627 = vmatprep.subr.mxu0 0.0
    %9628 = vmatpush1.msra.mxu0 0.0
    %9629 = vmatprep.subr.mxu0 0.0
    %9630 = vmatpush1.msra.mxu0 0.0
    %9631 = vmatprep.subr.mxu0 0.0
    %9632 = vmatpush1.msra.mxu0 0.0
    %9633 = vmatprep.subr.mxu0 0.0
    %9634 = vmatpush1.msra.mxu0 %v9601
    %9635 = vmatprep.subr.mxu0 0.0
    %9636 = vmatpush2.msra.mxu0 0.0
    %9637 = vmatprep.subr.mxu0 0.0
    %9638 = vmatpush2.msra.mxu0 0.0
    %9639 = vmatprep.subr.mxu0 0.0
    %9640 = vmatpush2.msra.mxu0 0.0
    %9641 = vmatprep.subr.mxu0 0.0
    %9642 = vmatpush2.msra.mxu0 0.0
    %9643 = vmatprep.subr.mxu0 0.0
    %9644 = vmatpush2.msra.mxu0 0.0
    %9645 = vmatprep.subr.mxu0 0.0
    %9646 = vmatpush2.msra.mxu0 0.0
    %9647 = vmatprep.subr.mxu0 0.0
    %9648 = vmatpush2.msra.mxu0 0.0
    %9649 = vmatprep.subr.mxu0 0.0
    %9650 = vmatpush2.msra.mxu0 0.0
    %9651 = vmatprep.subr.mxu0 0.0
    %9652 = vmatpush2.msra.mxu0 0.0
    %9653 = vmatprep.subr.mxu0 0.0
    %9654 = vmatpush2.msra.mxu0 0.0
    %9655 = vmatprep.subr.mxu0 0.0
    %9656 = vmatpush2.msra.mxu0 0.0
    %9657 = vmatprep.subr.mxu0 0.0
    %9658 = vmatpush2.msra.mxu0 0.0
    %9659 = vmatprep.subr.mxu0 0.0
    %9660 = vmatpush2.msra.mxu0 0.0
    %9661 = vmatprep.subr.mxu0 0.0
    %9662 = vmatpush2.msra.mxu0 0.0
    %9663 = vmatprep.subr.mxu0 0.0
    %9664 = vmatpush2.msra.mxu0 0.0
    %9665 = vmatprep.subr.mxu0 0.0
    %9666 = vmatpush2.msra.mxu0 0.0
    %9667 = vmatprep.mubr.f32.mxu0 0.0
    %9668 = vmatmul.mubr.f32.gmra.mxu0 %v9599
    %v9669 = vpop.f32.mrf.mxu0
    %v9670 = vadd.f32 0.0, %v9669
    %v9671 = vpop.f32.mrf.mxu0
    %9672 = vdwg.mxu0
    %v9676 = vunpack.c.l.s4 1966171168
    %v9677 = vunpack.c.0.s8 %v9676
    %v9678 = vlaneseq
    %v9679 = vshrl.u32 %v9678, 7
    %v9680 = vsub.s32 %v9677, %v9679
    %v9681 = vrot.slane %v9593, %v9680
    %v9683 = vunpack.c.l.s4 1966171168
    %v9684 = vunpack.c.0.s8 %v9683
    %v9685 = vlaneseq
    %v9686 = vshrl.u32 %v9685, 7
    %v9687 = vsub.s32 %v9684, %v9686
    %v9688 = vrot.slane %v9681, %v9687
    %v9690 = vunpack.c.l.s4 1966171168
    %v9691 = vunpack.c.0.s8 %v9690
    %v9692 = vlaneseq
    %v9693 = vshrl.u32 %v9692, 7
    %v9694 = vsub.s32 %v9691, %v9693
    %v9695 = vrot.slane %v9670, %v9694
    %v9697 = vunpack.c.l.s4 1966171168
    %v9698 = vunpack.c.0.s8 %v9697
    %v9699 = vlaneseq
    %v9700 = vshrl.u32 %v9699, 7
    %v9701 = vsub.s32 %v9698, %v9700
    %v9702 = vrot.slane %v9695, %v9701
    %9703 = vrot.lane.b32.xlu0 %v9688, 16
    %v9704 = vpop.permute.xlu0 %9703
    %9705 = vrot.lane.b32.xlu0 %v9702, 16
    %v9706 = vpop.permute.xlu0 %9705
    %v9709 = vadd.f32 %v9063, %v9704
    %v9710 = vadd.f32 %v9070, %v9706
    %9711 = vrot.lane.b32.xlu0 %v9269, 104
    %v9712 = vpop.permute.xlu0 %9711
    %v9714 = vsel %vm6607, %v9712, 0.0
    %9715 = vadd.xlane.f32.xlu0 %v9714
    %v9716 = vpop.xlane.xlu0 %9715
    %9717 = vrot.lane.b32.xlu0 %v9280, 104
    %v9718 = vpop.permute.xlu0 %9717
    %v9720 = vsel %vm6607, %v9718, 0.0
    %9721 = vadd.xlane.f32.xlu0 %v9720
    %v9722 = vpop.xlane.xlu0 %9721
    %v9723 = vmul.f32 %v9716, 0.17677669
    %v9724 = vmul.f32 %v9722, 0.17677669
    %v9725 = vsub.f32 %v9723, %v9723
    %v9726 = vsub.f32 %v9724, %v9724
    %v9727 = vmul.f32 %v9725, 1.442695
    %v9728 = vpow.pop %v9727
    %v9729 = vmul.f32 %v9726, 1.442695
    %v9730 = vpow.pop %v9729
    %v9731 = vadd.f32 %v9728, 0.0
    %v9732 = vadd.f32 %v9730, 0.0
    %v9733 = vrcp.pop %v9731
    %v9734 = vmul.f32 %v9728, %v9733
    %v9735 = vrcp.pop %v9732
    %v9736 = vmul.f32 %v9730, %v9735
    %9737 = vrot.lane.b32.xlu0 %v9104, 40
    %v9738 = vpop.permute.xlu0 %9737
    %v9740 = vsel %vm8041, %v9734, 0
    %v9742 = vsel %vm8045, %v9738, 0
    %9744 = vmatprep.subr.mxu0 0.0
    %9745 = vmatpush1.msra.mxu0 0.0
    %9746 = vmatprep.subr.mxu0 0.0
    %9747 = vmatpush1.msra.mxu0 0.0
    %9748 = vmatprep.subr.mxu0 0.0
    %9749 = vmatpush1.msra.mxu0 0.0
    %9750 = vmatprep.subr.mxu0 0.0
    %9751 = vmatpush1.msra.mxu0 0.0
    %9752 = vmatprep.subr.mxu0 0.0
    %9753 = vmatpush1.msra.mxu0 0.0
    %9754 = vmatprep.subr.mxu0 0.0
    %9755 = vmatpush1.msra.mxu0 0.0
    %9756 = vmatprep.subr.mxu0 0.0
    %9757 = vmatpush1.msra.mxu0 0.0
    %9758 = vmatprep.subr.mxu0 0.0
    %9759 = vmatpush1.msra.mxu0 0.0
    %9760 = vmatprep.subr.mxu0 0.0
    %9761 = vmatpush1.msra.mxu0 0.0
    %9762 = vmatprep.subr.mxu0 0.0
    %9763 = vmatpush1.msra.mxu0 0.0
    %9764 = vmatprep.subr.mxu0 0.0
    %9765 = vmatpush1.msra.mxu0 0.0
    %9766 = vmatprep.subr.mxu0 0.0
    %9767 = vmatpush1.msra.mxu0 0.0
    %9768 = vmatprep.subr.mxu0 0.0
    %9769 = vmatpush1.msra.mxu0 0.0
    %9770 = vmatprep.subr.mxu0 0.0
    %9771 = vmatpush1.msra.mxu0 0.0
    %9772 = vmatprep.subr.mxu0 0.0
    %9773 = vmatpush1.msra.mxu0 0.0
    %9774 = vmatprep.subr.mxu0 0.0
    %9775 = vmatpush1.msra.mxu0 %v9742
    %9776 = vmatprep.subr.mxu0 0.0
    %9777 = vmatpush2.msra.mxu0 0.0
    %9778 = vmatprep.subr.mxu0 0.0
    %9779 = vmatpush2.msra.mxu0 0.0
    %9780 = vmatprep.subr.mxu0 0.0
    %9781 = vmatpush2.msra.mxu0 0.0
    %9782 = vmatprep.subr.mxu0 0.0
    %9783 = vmatpush2.msra.mxu0 0.0
    %9784 = vmatprep.subr.mxu0 0.0
    %9785 = vmatpush2.msra.mxu0 0.0
    %9786 = vmatprep.subr.mxu0 0.0
    %9787 = vmatpush2.msra.mxu0 0.0
    %9788 = vmatprep.subr.mxu0 0.0
    %9789 = vmatpush2.msra.mxu0 0.0
    %9790 = vmatprep.subr.mxu0 0.0
    %9791 = vmatpush2.msra.mxu0 0.0
    %9792 = vmatprep.subr.mxu0 0.0
    %9793 = vmatpush2.msra.mxu0 0.0
    %9794 = vmatprep.subr.mxu0 0.0
    %9795 = vmatpush2.msra.mxu0 0.0
    %9796 = vmatprep.subr.mxu0 0.0
    %9797 = vmatpush2.msra.mxu0 0.0
    %9798 = vmatprep.subr.mxu0 0.0
    %9799 = vmatpush2.msra.mxu0 0.0
    %9800 = vmatprep.subr.mxu0 0.0
    %9801 = vmatpush2.msra.mxu0 0.0
    %9802 = vmatprep.subr.mxu0 0.0
    %9803 = vmatpush2.msra.mxu0 0.0
    %9804 = vmatprep.subr.mxu0 0.0
    %9805 = vmatpush2.msra.mxu0 0.0
    %9806 = vmatprep.subr.mxu0 0.0
    %9807 = vmatpush2.msra.mxu0 0.0
    %9808 = vmatprep.mubr.f32.mxu0 0.0
    %9809 = vmatmul.mubr.f32.gmra.mxu0 %v9740
    %v9810 = vpop.f32.mrf.mxu0
    %v9811 = vadd.f32 0.0, %v9810
    %v9812 = vpop.f32.mrf.mxu0
    %9813 = vdwg.mxu0
    %9814 = vrot.lane.b32.xlu0 %v9185, 40
    %v9815 = vpop.permute.xlu0 %9814
    %v9817 = vsel %vm8041, %v9736, 0
    %v9819 = vsel %vm8045, %v9815, 0
    %9821 = vmatprep.subr.mxu0 0.0
    %9822 = vmatpush1.msra.mxu0 0.0
    %9823 = vmatprep.subr.mxu0 0.0
    %9824 = vmatpush1.msra.mxu0 0.0
    %9825 = vmatprep.subr.mxu0 0.0
    %9826 = vmatpush1.msra.mxu0 0.0
    %9827 = vmatprep.subr.mxu0 0.0
    %9828 = vmatpush1.msra.mxu0 0.0
    %9829 = vmatprep.subr.mxu0 0.0
    %9830 = vmatpush1.msra.mxu0 0.0
    %9831 = vmatprep.subr.mxu0 0.0
    %9832 = vmatpush1.msra.mxu0 0.0
    %9833 = vmatprep.subr.mxu0 0.0
    %9834 = vmatpush1.msra.mxu0 0.0
    %9835 = vmatprep.subr.mxu0 0.0
    %9836 = vmatpush1.msra.mxu0 0.0
    %9837 = vmatprep.subr.mxu0 0.0
    %9838 = vmatpush1.msra.mxu0 0.0
    %9839 = vmatprep.subr.mxu0 0.0
    %9840 = vmatpush1.msra.mxu0 0.0
    %9841 = vmatprep.subr.mxu0 0.0
    %9842 = vmatpush1.msra.mxu0 0.0
    %9843 = vmatprep.subr.mxu0 0.0
    %9844 = vmatpush1.msra.mxu0 0.0
    %9845 = vmatprep.subr.mxu0 0.0
    %9846 = vmatpush1.msra.mxu0 0.0
    %9847 = vmatprep.subr.mxu0 0.0
    %9848 = vmatpush1.msra.mxu0 0.0
    %9849 = vmatprep.subr.mxu0 0.0
    %9850 = vmatpush1.msra.mxu0 0.0
    %9851 = vmatprep.subr.mxu0 0.0
    %9852 = vmatpush1.msra.mxu0 %v9819
    %9853 = vmatprep.subr.mxu0 0.0
    %9854 = vmatpush2.msra.mxu0 0.0
    %9855 = vmatprep.subr.mxu0 0.0
    %9856 = vmatpush2.msra.mxu0 0.0
    %9857 = vmatprep.subr.mxu0 0.0
    %9858 = vmatpush2.msra.mxu0 0.0
    %9859 = vmatprep.subr.mxu0 0.0
    %9860 = vmatpush2.msra.mxu0 0.0
    %9861 = vmatprep.subr.mxu0 0.0
    %9862 = vmatpush2.msra.mxu0 0.0
    %9863 = vmatprep.subr.mxu0 0.0
    %9864 = vmatpush2.msra.mxu0 0.0
    %9865 = vmatprep.subr.mxu0 0.0
    %9866 = vmatpush2.msra.mxu0 0.0
    %9867 = vmatprep.subr.mxu0 0.0
    %9868 = vmatpush2.msra.mxu0 0.0
    %9869 = vmatprep.subr.mxu0 0.0
    %9870 = vmatpush2.msra.mxu0 0.0
    %9871 = vmatprep.subr.mxu0 0.0
    %9872 = vmatpush2.msra.mxu0 0.0
    %9873 = vmatprep.subr.mxu0 0.0
    %9874 = vmatpush2.msra.mxu0 0.0
    %9875 = vmatprep.subr.mxu0 0.0
    %9876 = vmatpush2.msra.mxu0 0.0
    %9877 = vmatprep.subr.mxu0 0.0
    %9878 = vmatpush2.msra.mxu0 0.0
    %9879 = vmatprep.subr.mxu0 0.0
    %9880 = vmatpush2.msra.mxu0 0.0
    %9881 = vmatprep.subr.mxu0 0.0
    %9882 = vmatpush2.msra.mxu0 0.0
    %9883 = vmatprep.subr.mxu0 0.0
    %9884 = vmatpush2.msra.mxu0 0.0
    %9885 = vmatprep.mubr.f32.mxu0 0.0
    %9886 = vmatmul.mubr.f32.gmra.mxu0 %v9817
    %v9887 = vpop.f32.mrf.mxu0
    %v9888 = vadd.f32 0.0, %v9887
    %v9889 = vpop.f32.mrf.mxu0
    %9890 = vdwg.mxu0
    %v9894 = vunpack.c.l.s4 1966171168
    %v9895 = vunpack.c.0.s8 %v9894
    %v9896 = vlaneseq
    %v9897 = vshrl.u32 %v9896, 7
    %v9898 = vsub.s32 %v9895, %v9897
    %v9899 = vrot.slane %v9811, %v9898
    %v9901 = vunpack.c.l.s4 1966171168
    %v9902 = vunpack.c.0.s8 %v9901
    %v9903 = vlaneseq
    %v9904 = vshrl.u32 %v9903, 7
    %v9905 = vsub.s32 %v9902, %v9904
    %v9906 = vrot.slane %v9899, %v9905
    %v9908 = vunpack.c.l.s4 1966171168
    %v9909 = vunpack.c.0.s8 %v9908
    %v9910 = vlaneseq
    %v9911 = vshrl.u32 %v9910, 7
    %v9912 = vsub.s32 %v9909, %v9911
    %v9913 = vrot.slane %v9888, %v9912
    %v9915 = vunpack.c.l.s4 1966171168
    %v9916 = vunpack.c.0.s8 %v9915
    %v9917 = vlaneseq
    %v9918 = vshrl.u32 %v9917, 7
    %v9919 = vsub.s32 %v9916, %v9918
    %v9920 = vrot.slane %v9913, %v9919
    %9921 = vrot.lane.b32.xlu0 %v9906, 24
    %v9922 = vpop.permute.xlu0 %9921
    %9923 = vrot.lane.b32.xlu0 %v9920, 24
    %v9924 = vpop.permute.xlu0 %9923
    %v9927 = vadd.f32 %v9063, %v9922
    %v9928 = vadd.f32 %v9070, %v9924
    %v9929 = vsel %vm131, %v9263, %v9491
    %v9930 = vsel %vm131, %v9264, %v9492
    %v9931 = vsel %vm48, %v9929, %v9709
    %v9932 = vsel %vm48, %v9930, %v9710
    %v9933 = vsel %vm1477, %v9931, %v9927
    %v9934 = vsel %vm1477, %v9932, %v9928
    %v9935 = vld [vmem:[#allocation4 + $0x250] sm:$0xff]
    %v9936 = vld [vmem:[#allocation4 + $0x258] sm:$0xff]
    %v9937 = vld [vmem:[#allocation4 + $0x260] sm:$0xff]
    %v9938 = vld [vmem:[#allocation4 + $0x268] sm:$0xff]
    %v9939 = vld [vmem:[#allocation4 + $0x270] sm:$0x1]
    %v9940 = vlaneseq
    %v9941 = vshrl.u32 %v9940, 7
    %v9942 = vsub.s32 0, %v9941
    %v9943 = vrot.slane %v9939, %v9942
    %v9946 = vrot.slane %v9934, 7
    %v9947 = vsel %vm7816, %v9946, %v9933
    %v9948 = vsel %vm1489, %v9947, 0
    %9950 = vmatprep.subr.mxu0 0.0
    %9951 = vmatpush1.msra.mxu0 0.0
    %9952 = vmatprep.subr.mxu0 0.0
    %9953 = vmatpush1.msra.mxu0 0.0
    %9954 = vmatprep.subr.mxu0 0.0
    %9955 = vmatpush1.msra.mxu0 0.0
    %9956 = vmatprep.subr.mxu0 0.0
    %9957 = vmatpush1.msra.mxu0 0.0
    %9958 = vmatprep.subr.mxu0 0.0
    %9959 = vmatpush1.msra.mxu0 0.0
    %9960 = vmatprep.subr.mxu0 0.0
    %9961 = vmatpush1.msra.mxu0 0.0
    %9962 = vmatprep.subr.mxu0 0.0
    %9963 = vmatpush1.msra.mxu0 0.0
    %9964 = vmatprep.subr.mxu0 0.0
    %9965 = vmatpush1.msra.mxu0 0.0
    %9966 = vmatprep.subr.mxu0 0.0
    %9967 = vmatpush1.msra.mxu0 0.0
    %9968 = vmatprep.subr.mxu0 0.0
    %9969 = vmatpush1.msra.mxu0 0.0
    %9970 = vmatprep.subr.mxu0 0.0
    %9971 = vmatpush1.msra.mxu0 0.0
    %9972 = vmatprep.subr.mxu0 0.0
    %9973 = vmatpush1.msra.mxu0 0.0
    %9974 = vmatprep.subr.mxu0 0.0
    %9975 = vmatpush1.msra.mxu0 %v9938
    %9976 = vmatprep.subr.mxu0 0.0
    %9977 = vmatpush1.msra.mxu0 %v9937
    %9978 = vmatprep.subr.mxu0 0.0
    %9979 = vmatpush1.msra.mxu0 %v9936
    %9980 = vmatprep.subr.mxu0 0.0
    %9981 = vmatpush1.msra.mxu0 %v9935
    %9982 = vmatprep.subr.mxu0 0.0
    %9983 = vmatpush2.msra.mxu0 0.0
    %9984 = vmatprep.subr.mxu0 0.0
    %9985 = vmatpush2.msra.mxu0 0.0
    %9986 = vmatprep.subr.mxu0 0.0
    %9987 = vmatpush2.msra.mxu0 0.0
    %9988 = vmatprep.subr.mxu0 0.0
    %9989 = vmatpush2.msra.mxu0 0.0
    %9990 = vmatprep.subr.mxu0 0.0
    %9991 = vmatpush2.msra.mxu0 0.0
    %9992 = vmatprep.subr.mxu0 0.0
    %9993 = vmatpush2.msra.mxu0 0.0
    %9994 = vmatprep.subr.mxu0 0.0
    %9995 = vmatpush2.msra.mxu0 0.0
    %9996 = vmatprep.subr.mxu0 0.0
    %9997 = vmatpush2.msra.mxu0 0.0
    %9998 = vmatprep.subr.mxu0 0.0
    %9999 = vmatpush2.msra.mxu0 0.0
    %10000 = vmatprep.subr.mxu0 0.0
    %10001 = vmatpush2.msra.mxu0 0.0
    %10002 = vmatprep.subr.mxu0 0.0
    %10003 = vmatpush2.msra.mxu0 0.0
    %10004 = vmatprep.subr.mxu0 0.0
    %10005 = vmatpush2.msra.mxu0 0.0
    %10006 = vmatprep.subr.mxu0 0.0
    %10007 = vmatpush2.msra.mxu0 0.0
    %10008 = vmatprep.subr.mxu0 0.0
    %10009 = vmatpush2.msra.mxu0 0.0
    %10010 = vmatprep.subr.mxu0 0.0
    %10011 = vmatpush2.msra.mxu0 0.0
    %10012 = vmatprep.subr.mxu0 0.0
    %10013 = vmatpush2.msra.mxu0 0.0
    %10014 = vmatprep.mubr.f32.mxu0 0.0
    %10015 = vmatmul.mubr.f32.gmra.mxu0 %v9948
    %v10016 = vpop.f32.mrf.mxu0
    %v10017 = vadd.f32 %v9943, %v10016
    %v10018 = vpop.f32.mrf.mxu0
    %10019 = vdwg.mxu0
    %v10020 = vmax.f32 %v10017, 0.0
    %v10022 = vrot.slane %v10020, 1
    %v10025 = vadd.f32 %v9933, %v10020
    %v10026 = vadd.f32 %v9934, %v10022
    %v10027 = vld [vmem:[#allocation4 + $0x278] sm:$0xff]
    %v10028 = vld [vmem:[#allocation4 + $0x280] sm:$0xff]
    %v10029 = vld [vmem:[#allocation4 + $0x288] sm:$0xff]
    %v10030 = vld [vmem:[#allocation4 + $0x290] sm:$0xff]
    %v10031 = vld [vmem:[#allocation4 + $0x298] sm:$0x1]
    %v10032 = vlaneseq
    %v10033 = vshrl.u32 %v10032, 7
    %v10034 = vsub.s32 0, %v10033
    %v10035 = vrot.slane %v10031, %v10034
    %v10038 = vrot.slane %v10026, 7
    %v10039 = vsel %vm7816, %v10038, %v10025
    %v10040 = vsel %vm1489, %v10039, 0
    %10042 = vmatprep.subr.mxu0 0.0
    %10043 = vmatpush1.msra.mxu0 0.0
    %10044 = vmatprep.subr.mxu0 0.0
    %10045 = vmatpush1.msra.mxu0 0.0
    %10046 = vmatprep.subr.mxu0 0.0
    %10047 = vmatpush1.msra.mxu0 0.0
    %10048 = vmatprep.subr.mxu0 0.0
    %10049 = vmatpush1.msra.mxu0 0.0
    %10050 = vmatprep.subr.mxu0 0.0
    %10051 = vmatpush1.msra.mxu0 0.0
    %10052 = vmatprep.subr.mxu0 0.0
    %10053 = vmatpush1.msra.mxu0 0.0
    %10054 = vmatprep.subr.mxu0 0.0
    %10055 = vmatpush1.msra.mxu0 0.0
    %10056 = vmatprep.subr.mxu0 0.0
    %10057 = vmatpush1.msra.mxu0 0.0
    %10058 = vmatprep.subr.mxu0 0.0
    %10059 = vmatpush1.msra.mxu0 0.0
    %10060 = vmatprep.subr.mxu0 0.0
    %10061 = vmatpush1.msra.mxu0 0.0
    %10062 = vmatprep.subr.mxu0 0.0
    %10063 = vmatpush1.msra.mxu0 0.0
    %10064 = vmatprep.subr.mxu0 0.0
    %10065 = vmatpush1.msra.mxu0 0.0
    %10066 = vmatprep.subr.mxu0 0.0
    %10067 = vmatpush1.msra.mxu0 %v10030
    %10068 = vmatprep.subr.mxu0 0.0
    %10069 = vmatpush1.msra.mxu0 %v10029
    %10070 = vmatprep.subr.mxu0 0.0
    %10071 = vmatpush1.msra.mxu0 %v10028
    %10072 = vmatprep.subr.mxu0 0.0
    %10073 = vmatpush1.msra.mxu0 %v10027
    %10074 = vmatprep.subr.mxu0 0.0
    %10075 = vmatpush2.msra.mxu0 0.0
    %10076 = vmatprep.subr.mxu0 0.0
    %10077 = vmatpush2.msra.mxu0 0.0
    %10078 = vmatprep.subr.mxu0 0.0
    %10079 = vmatpush2.msra.mxu0 0.0
    %10080 = vmatprep.subr.mxu0 0.0
    %10081 = vmatpush2.msra.mxu0 0.0
    %10082 = vmatprep.subr.mxu0 0.0
    %10083 = vmatpush2.msra.mxu0 0.0
    %10084 = vmatprep.subr.mxu0 0.0
    %10085 = vmatpush2.msra.mxu0 0.0
    %10086 = vmatprep.subr.mxu0 0.0
    %10087 = vmatpush2.msra.mxu0 0.0
    %10088 = vmatprep.subr.mxu0 0.0
    %10089 = vmatpush2.msra.mxu0 0.0
    %10090 = vmatprep.subr.mxu0 0.0
    %10091 = vmatpush2.msra.mxu0 0.0
    %10092 = vmatprep.subr.mxu0 0.0
    %10093 = vmatpush2.msra.mxu0 0.0
    %10094 = vmatprep.subr.mxu0 0.0
    %10095 = vmatpush2.msra.mxu0 0.0
    %10096 = vmatprep.subr.mxu0 0.0
    %10097 = vmatpush2.msra.mxu0 0.0
    %10098 = vmatprep.subr.mxu0 0.0
    %10099 = vmatpush2.msra.mxu0 0.0
    %10100 = vmatprep.subr.mxu0 0.0
    %10101 = vmatpush2.msra.mxu0 0.0
    %10102 = vmatprep.subr.mxu0 0.0
    %10103 = vmatpush2.msra.mxu0 0.0
    %10104 = vmatprep.subr.mxu0 0.0
    %10105 = vmatpush2.msra.mxu0 0.0
    %10106 = vmatprep.mubr.f32.mxu0 0.0
    %10107 = vmatmul.mubr.f32.gmra.mxu0 %v10040
    %v10108 = vpop.f32.mrf.mxu0
    %v10109 = vadd.f32 %v10035, %v10108
    %v10110 = vpop.f32.mrf.mxu0
    %10111 = vdwg.mxu0
    %v10112 = vld [vmem:[#allocation4 + $0x2a0] sm:$0xff]
    %v10113 = vld [vmem:[#allocation4 + $0x2a8] sm:$0xff]
    %v10114 = vld [vmem:[#allocation4 + $0x2b0] sm:$0xff]
    %v10115 = vld [vmem:[#allocation4 + $0x2b8] sm:$0xff]
    %v10116 = vld [vmem:[#allocation4 + $0x2c0] sm:$0x1]
    %v10117 = vlaneseq
    %v10118 = vshrl.u32 %v10117, 7
    %v10119 = vsub.s32 0, %v10118
    %v10120 = vrot.slane %v10116, %v10119
    %v10122 = vsel %vm1489, %v10109, 0
    %10124 = vmatprep.subr.mxu0 0.0
    %10125 = vmatpush1.msra.mxu0 0.0
    %10126 = vmatprep.subr.mxu0 0.0
    %10127 = vmatpush1.msra.mxu0 0.0
    %10128 = vmatprep.subr.mxu0 0.0
    %10129 = vmatpush1.msra.mxu0 0.0
    %10130 = vmatprep.subr.mxu0 0.0
    %10131 = vmatpush1.msra.mxu0 0.0
    %10132 = vmatprep.subr.mxu0 0.0
    %10133 = vmatpush1.msra.mxu0 0.0
    %10134 = vmatprep.subr.mxu0 0.0
    %10135 = vmatpush1.msra.mxu0 0.0
    %10136 = vmatprep.subr.mxu0 0.0
    %10137 = vmatpush1.msra.mxu0 0.0
    %10138 = vmatprep.subr.mxu0 0.0
    %10139 = vmatpush1.msra.mxu0 0.0
    %10140 = vmatprep.subr.mxu0 0.0
    %10141 = vmatpush1.msra.mxu0 0.0
    %10142 = vmatprep.subr.mxu0 0.0
    %10143 = vmatpush1.msra.mxu0 0.0
    %10144 = vmatprep.subr.mxu0 0.0
    %10145 = vmatpush1.msra.mxu0 0.0
    %10146 = vmatprep.subr.mxu0 0.0
    %10147 = vmatpush1.msra.mxu0 0.0
    %10148 = vmatprep.subr.mxu0 0.0
    %10149 = vmatpush1.msra.mxu0 %v10115
    %10150 = vmatprep.subr.mxu0 0.0
    %10151 = vmatpush1.msra.mxu0 %v10114
    %10152 = vmatprep.subr.mxu0 0.0
    %10153 = vmatpush1.msra.mxu0 %v10113
    %10154 = vmatprep.subr.mxu0 0.0
    %10155 = vmatpush1.msra.mxu0 %v10112
    %10156 = vmatprep.subr.mxu0 0.0
    %10157 = vmatpush2.msra.mxu0 0.0
    %10158 = vmatprep.subr.mxu0 0.0
    %10159 = vmatpush2.msra.mxu0 0.0
    %10160 = vmatprep.subr.mxu0 0.0
    %10161 = vmatpush2.msra.mxu0 0.0
    %10162 = vmatprep.subr.mxu0 0.0
    %10163 = vmatpush2.msra.mxu0 0.0
    %10164 = vmatprep.subr.mxu0 0.0
    %10165 = vmatpush2.msra.mxu0 0.0
    %10166 = vmatprep.subr.mxu0 0.0
    %10167 = vmatpush2.msra.mxu0 0.0
    %10168 = vmatprep.subr.mxu0 0.0
    %10169 = vmatpush2.msra.mxu0 0.0
    %10170 = vmatprep.subr.mxu0 0.0
    %10171 = vmatpush2.msra.mxu0 0.0
    %10172 = vmatprep.subr.mxu0 0.0
    %10173 = vmatpush2.msra.mxu0 0.0
    %10174 = vmatprep.subr.mxu0 0.0
    %10175 = vmatpush2.msra.mxu0 0.0
    %10176 = vmatprep.subr.mxu0 0.0
    %10177 = vmatpush2.msra.mxu0 0.0
    %10178 = vmatprep.subr.mxu0 0.0
    %10179 = vmatpush2.msra.mxu0 0.0
    %10180 = vmatprep.subr.mxu0 0.0
    %10181 = vmatpush2.msra.mxu0 0.0
    %10182 = vmatprep.subr.mxu0 0.0
    %10183 = vmatpush2.msra.mxu0 0.0
    %10184 = vmatprep.subr.mxu0 0.0
    %10185 = vmatpush2.msra.mxu0 0.0
    %10186 = vmatprep.subr.mxu0 0.0
    %10187 = vmatpush2.msra.mxu0 0.0
    %10188 = vmatprep.mubr.f32.mxu0 0.0
    %10189 = vmatmul.mubr.f32.gmra.mxu0 %v10122
    %v10190 = vpop.f32.mrf.mxu0
    %v10191 = vadd.f32 %v10120, %v10190
    %v10192 = vpop.f32.mrf.mxu0
    %10193 = vdwg.mxu0
    %v10194 = vmax.f32 %v10191, 0.0
    %v10195 = vld [vmem:[#allocation4 + $0x2c8] sm:$0xff]
    %v10196 = vld [vmem:[#allocation4 + $0x2d0] sm:$0xff]
    %v10197 = vld [vmem:[#allocation4 + $0x2d8] sm:$0xff]
    %v10198 = vld [vmem:[#allocation4 + $0x2e0] sm:$0xff]
    %v10199 = vld [vmem:[#allocation4 + $0x2e8] sm:$0x1]
    %v10200 = vlaneseq
    %v10201 = vshrl.u32 %v10200, 7
    %v10202 = vsub.s32 0, %v10201
    %v10203 = vrot.slane %v10199, %v10202
    %v10205 = vsel %vm1489, %v10194, 0
    %10207 = vmatprep.subr.mxu0 0.0
    %10208 = vmatpush1.msra.mxu0 0.0
    %10209 = vmatprep.subr.mxu0 0.0
    %10210 = vmatpush1.msra.mxu0 0.0
    %10211 = vmatprep.subr.mxu0 0.0
    %10212 = vmatpush1.msra.mxu0 0.0
    %10213 = vmatprep.subr.mxu0 0.0
    %10214 = vmatpush1.msra.mxu0 0.0
    %10215 = vmatprep.subr.mxu0 0.0
    %10216 = vmatpush1.msra.mxu0 0.0
    %10217 = vmatprep.subr.mxu0 0.0
    %10218 = vmatpush1.msra.mxu0 0.0
    %10219 = vmatprep.subr.mxu0 0.0
    %10220 = vmatpush1.msra.mxu0 0.0
    %10221 = vmatprep.subr.mxu0 0.0
    %10222 = vmatpush1.msra.mxu0 0.0
    %10223 = vmatprep.subr.mxu0 0.0
    %10224 = vmatpush1.msra.mxu0 0.0
    %10225 = vmatprep.subr.mxu0 0.0
    %10226 = vmatpush1.msra.mxu0 0.0
    %10227 = vmatprep.subr.mxu0 0.0
    %10228 = vmatpush1.msra.mxu0 0.0
    %10229 = vmatprep.subr.mxu0 0.0
    %10230 = vmatpush1.msra.mxu0 0.0
    %10231 = vmatprep.subr.mxu0 0.0
    %10232 = vmatpush1.msra.mxu0 %v10198
    %10233 = vmatprep.subr.mxu0 0.0
    %10234 = vmatpush1.msra.mxu0 %v10197
    %10235 = vmatprep.subr.mxu0 0.0
    %10236 = vmatpush1.msra.mxu0 %v10196
    %10237 = vmatprep.subr.mxu0 0.0
    %10238 = vmatpush1.msra.mxu0 %v10195
    %10239 = vmatprep.subr.mxu0 0.0
    %10240 = vmatpush2.msra.mxu0 0.0
    %10241 = vmatprep.subr.mxu0 0.0
    %10242 = vmatpush2.msra.mxu0 0.0
    %10243 = vmatprep.subr.mxu0 0.0
    %10244 = vmatpush2.msra.mxu0 0.0
    %10245 = vmatprep.subr.mxu0 0.0
    %10246 = vmatpush2.msra.mxu0 0.0
    %10247 = vmatprep.subr.mxu0 0.0
    %10248 = vmatpush2.msra.mxu0 0.0
    %10249 = vmatprep.subr.mxu0 0.0
    %10250 = vmatpush2.msra.mxu0 0.0
    %10251 = vmatprep.subr.mxu0 0.0
    %10252 = vmatpush2.msra.mxu0 0.0
    %10253 = vmatprep.subr.mxu0 0.0
    %10254 = vmatpush2.msra.mxu0 0.0
    %10255 = vmatprep.subr.mxu0 0.0
    %10256 = vmatpush2.msra.mxu0 0.0
    %10257 = vmatprep.subr.mxu0 0.0
    %10258 = vmatpush2.msra.mxu0 0.0
    %10259 = vmatprep.subr.mxu0 0.0
    %10260 = vmatpush2.msra.mxu0 0.0
    %10261 = vmatprep.subr.mxu0 0.0
    %10262 = vmatpush2.msra.mxu0 0.0
    %10263 = vmatprep.subr.mxu0 0.0
    %10264 = vmatpush2.msra.mxu0 0.0
    %10265 = vmatprep.subr.mxu0 0.0
    %10266 = vmatpush2.msra.mxu0 0.0
    %10267 = vmatprep.subr.mxu0 0.0
    %10268 = vmatpush2.msra.mxu0 0.0
    %10269 = vmatprep.subr.mxu0 0.0
    %10270 = vmatpush2.msra.mxu0 0.0
    %10271 = vmatprep.mubr.f32.mxu0 0.0
    %10272 = vmatmul.mubr.f32.gmra.mxu0 %v10205
    %v10273 = vpop.f32.mrf.mxu0
    %v10274 = vadd.f32 %v10203, %v10273
    %v10275 = vpop.f32.mrf.mxu0
    %10276 = vdwg.mxu0
    %v10277 = vmax.f32 %v10274, 0.0
    %v10278 = vld [vmem:[#allocation4 + $0x2f0] sm:$0xff]
    %v10279 = vld [vmem:[#allocation4 + $0x2f8] sm:$0xff]
    %v10280 = vld [vmem:[#allocation4 + $0x300] sm:$0xff]
    %v10281 = vld [vmem:[#allocation4 + $0x308] sm:$0xff]
    %v10282 = vld [vmem:[#allocation4 + $0x310] sm:$0x1]
    %v10283 = vlaneseq
    %v10284 = vshrl.u32 %v10283, 7
    %v10285 = vsub.s32 0, %v10284
    %v10286 = vrot.slane %v10282, %v10285
    %v10288 = vsel %vm1489, %v10277, 0
    %10290 = vmatprep.subr.mxu0 0.0
    %10291 = vmatpush1.msra.mxu0 0.0
    %10292 = vmatprep.subr.mxu0 0.0
    %10293 = vmatpush1.msra.mxu0 0.0
    %10294 = vmatprep.subr.mxu0 0.0
    %10295 = vmatpush1.msra.mxu0 0.0
    %10296 = vmatprep.subr.mxu0 0.0
    %10297 = vmatpush1.msra.mxu0 0.0
    %10298 = vmatprep.subr.mxu0 0.0
    %10299 = vmatpush1.msra.mxu0 0.0
    %10300 = vmatprep.subr.mxu0 0.0
    %10301 = vmatpush1.msra.mxu0 0.0
    %10302 = vmatprep.subr.mxu0 0.0
    %10303 = vmatpush1.msra.mxu0 0.0
    %10304 = vmatprep.subr.mxu0 0.0
    %10305 = vmatpush1.msra.mxu0 0.0
    %10306 = vmatprep.subr.mxu0 0.0
    %10307 = vmatpush1.msra.mxu0 0.0
    %10308 = vmatprep.subr.mxu0 0.0
    %10309 = vmatpush1.msra.mxu0 0.0
    %10310 = vmatprep.subr.mxu0 0.0
    %10311 = vmatpush1.msra.mxu0 0.0
    %10312 = vmatprep.subr.mxu0 0.0
    %10313 = vmatpush1.msra.mxu0 0.0
    %10314 = vmatprep.subr.mxu0 0.0
    %10315 = vmatpush1.msra.mxu0 %v10281
    %10316 = vmatprep.subr.mxu0 0.0
    %10317 = vmatpush1.msra.mxu0 %v10280
    %10318 = vmatprep.subr.mxu0 0.0
    %10319 = vmatpush1.msra.mxu0 %v10279
    %10320 = vmatprep.subr.mxu0 0.0
    %10321 = vmatpush1.msra.mxu0 %v10278
    %10322 = vmatprep.subr.mxu0 0.0
    %10323 = vmatpush2.msra.mxu0 0.0
    %10324 = vmatprep.subr.mxu0 0.0
    %10325 = vmatpush2.msra.mxu0 0.0
    %10326 = vmatprep.subr.mxu0 0.0
    %10327 = vmatpush2.msra.mxu0 0.0
    %10328 = vmatprep.subr.mxu0 0.0
    %10329 = vmatpush2.msra.mxu0 0.0
    %10330 = vmatprep.subr.mxu0 0.0
    %10331 = vmatpush2.msra.mxu0 0.0
    %10332 = vmatprep.subr.mxu0 0.0
    %10333 = vmatpush2.msra.mxu0 0.0
    %10334 = vmatprep.subr.mxu0 0.0
    %10335 = vmatpush2.msra.mxu0 0.0
    %10336 = vmatprep.subr.mxu0 0.0
    %10337 = vmatpush2.msra.mxu0 0.0
    %10338 = vmatprep.subr.mxu0 0.0
    %10339 = vmatpush2.msra.mxu0 0.0
    %10340 = vmatprep.subr.mxu0 0.0
    %10341 = vmatpush2.msra.mxu0 0.0
    %10342 = vmatprep.subr.mxu0 0.0
    %10343 = vmatpush2.msra.mxu0 0.0
    %10344 = vmatprep.subr.mxu0 0.0
    %10345 = vmatpush2.msra.mxu0 0.0
    %10346 = vmatprep.subr.mxu0 0.0
    %10347 = vmatpush2.msra.mxu0 0.0
    %10348 = vmatprep.subr.mxu0 0.0
    %10349 = vmatpush2.msra.mxu0 0.0
    %10350 = vmatprep.subr.mxu0 0.0
    %10351 = vmatpush2.msra.mxu0 0.0
    %10352 = vmatprep.subr.mxu0 0.0
    %10353 = vmatpush2.msra.mxu0 0.0
    %10354 = vmatprep.mubr.f32.mxu0 0.0
    %10355 = vmatmul.mubr.f32.gmra.mxu0 %v10288
    %v10356 = vpop.f32.mrf.mxu0
    %v10357 = vadd.f32 %v10286, %v10356
    %v10358 = vpop.f32.mrf.mxu0
    %10359 = vdwg.mxu0
    %v10360 = vmax.f32 %v10357, 0.0
    %v10361 = vld [vmem:[#allocation4 + $0x318] sm:$0xff]
    %v10362 = vld [vmem:[#allocation4 + $0x320] sm:$0xff]
    %v10363 = vld [vmem:[#allocation4 + $0x328] sm:$0xff]
    %v10364 = vld [vmem:[#allocation4 + $0x330] sm:$0xff]
    %v10365 = vld [vmem:[#allocation4 + $0x338] sm:$0x1]
    %v10366 = vlaneseq
    %v10367 = vshrl.u32 %v10366, 7
    %v10368 = vsub.s32 0, %v10367
    %v10369 = vrot.slane %v10365, %v10368
    %v10371 = vsel %vm1489, %v10360, 0
    %10373 = vmatprep.subr.mxu0 0.0
    %10374 = vmatpush1.msra.mxu0 0.0
    %10375 = vmatprep.subr.mxu0 0.0
    %10376 = vmatpush1.msra.mxu0 0.0
    %10377 = vmatprep.subr.mxu0 0.0
    %10378 = vmatpush1.msra.mxu0 0.0
    %10379 = vmatprep.subr.mxu0 0.0
    %10380 = vmatpush1.msra.mxu0 0.0
    %10381 = vmatprep.subr.mxu0 0.0
    %10382 = vmatpush1.msra.mxu0 0.0
    %10383 = vmatprep.subr.mxu0 0.0
    %10384 = vmatpush1.msra.mxu0 0.0
    %10385 = vmatprep.subr.mxu0 0.0
    %10386 = vmatpush1.msra.mxu0 0.0
    %10387 = vmatprep.subr.mxu0 0.0
    %10388 = vmatpush1.msra.mxu0 0.0
    %10389 = vmatprep.subr.mxu0 0.0
    %10390 = vmatpush1.msra.mxu0 0.0
    %10391 = vmatprep.subr.mxu0 0.0
    %10392 = vmatpush1.msra.mxu0 0.0
    %10393 = vmatprep.subr.mxu0 0.0
    %10394 = vmatpush1.msra.mxu0 0.0
    %10395 = vmatprep.subr.mxu0 0.0
    %10396 = vmatpush1.msra.mxu0 0.0
    %10397 = vmatprep.subr.mxu0 0.0
    %10398 = vmatpush1.msra.mxu0 %v10364
    %10399 = vmatprep.subr.mxu0 0.0
    %10400 = vmatpush1.msra.mxu0 %v10363
    %10401 = vmatprep.subr.mxu0 0.0
    %10402 = vmatpush1.msra.mxu0 %v10362
    %10403 = vmatprep.subr.mxu0 0.0
    %10404 = vmatpush1.msra.mxu0 %v10361
    %10405 = vmatprep.subr.mxu0 0.0
    %10406 = vmatpush2.msra.mxu0 0.0
    %10407 = vmatprep.subr.mxu0 0.0
    %10408 = vmatpush2.msra.mxu0 0.0
    %10409 = vmatprep.subr.mxu0 0.0
    %10410 = vmatpush2.msra.mxu0 0.0
    %10411 = vmatprep.subr.mxu0 0.0
    %10412 = vmatpush2.msra.mxu0 0.0
    %10413 = vmatprep.subr.mxu0 0.0
    %10414 = vmatpush2.msra.mxu0 0.0
    %10415 = vmatprep.subr.mxu0 0.0
    %10416 = vmatpush2.msra.mxu0 0.0
    %10417 = vmatprep.subr.mxu0 0.0
    %10418 = vmatpush2.msra.mxu0 0.0
    %10419 = vmatprep.subr.mxu0 0.0
    %10420 = vmatpush2.msra.mxu0 0.0
    %10421 = vmatprep.subr.mxu0 0.0
    %10422 = vmatpush2.msra.mxu0 0.0
    %10423 = vmatprep.subr.mxu0 0.0
    %10424 = vmatpush2.msra.mxu0 0.0
    %10425 = vmatprep.subr.mxu0 0.0
    %10426 = vmatpush2.msra.mxu0 0.0
    %10427 = vmatprep.subr.mxu0 0.0
    %10428 = vmatpush2.msra.mxu0 0.0
    %10429 = vmatprep.subr.mxu0 0.0
    %10430 = vmatpush2.msra.mxu0 0.0
    %10431 = vmatprep.subr.mxu0 0.0
    %10432 = vmatpush2.msra.mxu0 0.0
    %10433 = vmatprep.subr.mxu0 0.0
    %10434 = vmatpush2.msra.mxu0 0.0
    %10435 = vmatprep.subr.mxu0 0.0
    %10436 = vmatpush2.msra.mxu0 0.0
    %10437 = vmatprep.mubr.f32.mxu0 0.0
    %10438 = vmatmul.mubr.f32.gmra.mxu0 %v10371
    %v10439 = vpop.f32.mrf.mxu0
    %v10440 = vadd.f32 %v10369, %v10439
    %v10441 = vpop.f32.mrf.mxu0
    %10442 = vdwg.mxu0
    %v10443 = vmax.f32 %v10440, 0.0
    %v10444 = vld [vmem:[#allocation4 + $0x340] sm:$0xff]
    %v10445 = vld [vmem:[#allocation4 + $0x348] sm:$0xff]
    %v10446 = vld [vmem:[#allocation4 + $0x350] sm:$0xff]
    %v10447 = vld [vmem:[#allocation4 + $0x358] sm:$0xff]
    %v10448 = vld [vmem:[#allocation4 + $0x360] sm:$0x1]
    %v10449 = vlaneseq
    %v10450 = vshrl.u32 %v10449, 7
    %v10451 = vsub.s32 0, %v10450
    %v10452 = vrot.slane %v10448, %v10451
    %v10454 = vsel %vm1489, %v10443, 0
    %10456 = vmatprep.subr.mxu0 0.0
    %10457 = vmatpush1.msra.mxu0 0.0
    %10458 = vmatprep.subr.mxu0 0.0
    %10459 = vmatpush1.msra.mxu0 0.0
    %10460 = vmatprep.subr.mxu0 0.0
    %10461 = vmatpush1.msra.mxu0 0.0
    %10462 = vmatprep.subr.mxu0 0.0
    %10463 = vmatpush1.msra.mxu0 0.0
    %10464 = vmatprep.subr.mxu0 0.0
    %10465 = vmatpush1.msra.mxu0 0.0
    %10466 = vmatprep.subr.mxu0 0.0
    %10467 = vmatpush1.msra.mxu0 0.0
    %10468 = vmatprep.subr.mxu0 0.0
    %10469 = vmatpush1.msra.mxu0 0.0
    %10470 = vmatprep.subr.mxu0 0.0
    %10471 = vmatpush1.msra.mxu0 0.0
    %10472 = vmatprep.subr.mxu0 0.0
    %10473 = vmatpush1.msra.mxu0 0.0
    %10474 = vmatprep.subr.mxu0 0.0
    %10475 = vmatpush1.msra.mxu0 0.0
    %10476 = vmatprep.subr.mxu0 0.0
    %10477 = vmatpush1.msra.mxu0 0.0
    %10478 = vmatprep.subr.mxu0 0.0
    %10479 = vmatpush1.msra.mxu0 0.0
    %10480 = vmatprep.subr.mxu0 0.0
    %10481 = vmatpush1.msra.mxu0 %v10447
    %10482 = vmatprep.subr.mxu0 0.0
    %10483 = vmatpush1.msra.mxu0 %v10446
    %10484 = vmatprep.subr.mxu0 0.0
    %10485 = vmatpush1.msra.mxu0 %v10445
    %10486 = vmatprep.subr.mxu0 0.0
    %10487 = vmatpush1.msra.mxu0 %v10444
    %10488 = vmatprep.subr.mxu0 0.0
    %10489 = vmatpush2.msra.mxu0 0.0
    %10490 = vmatprep.subr.mxu0 0.0
    %10491 = vmatpush2.msra.mxu0 0.0
    %10492 = vmatprep.subr.mxu0 0.0
    %10493 = vmatpush2.msra.mxu0 0.0
    %10494 = vmatprep.subr.mxu0 0.0
    %10495 = vmatpush2.msra.mxu0 0.0
    %10496 = vmatprep.subr.mxu0 0.0
    %10497 = vmatpush2.msra.mxu0 0.0
    %10498 = vmatprep.subr.mxu0 0.0
    %10499 = vmatpush2.msra.mxu0 0.0
    %10500 = vmatprep.subr.mxu0 0.0
    %10501 = vmatpush2.msra.mxu0 0.0
    %10502 = vmatprep.subr.mxu0 0.0
    %10503 = vmatpush2.msra.mxu0 0.0
    %10504 = vmatprep.subr.mxu0 0.0
    %10505 = vmatpush2.msra.mxu0 0.0
    %10506 = vmatprep.subr.mxu0 0.0
    %10507 = vmatpush2.msra.mxu0 0.0
    %10508 = vmatprep.subr.mxu0 0.0
    %10509 = vmatpush2.msra.mxu0 0.0
    %10510 = vmatprep.subr.mxu0 0.0
    %10511 = vmatpush2.msra.mxu0 0.0
    %10512 = vmatprep.subr.mxu0 0.0
    %10513 = vmatpush2.msra.mxu0 0.0
    %10514 = vmatprep.subr.mxu0 0.0
    %10515 = vmatpush2.msra.mxu0 0.0
    %10516 = vmatprep.subr.mxu0 0.0
    %10517 = vmatpush2.msra.mxu0 0.0
    %10518 = vmatprep.subr.mxu0 0.0
    %10519 = vmatpush2.msra.mxu0 0.0
    %10520 = vmatprep.mubr.f32.mxu0 0.0
    %10521 = vmatmul.mubr.f32.gmra.mxu0 %v10454
    %v10522 = vpop.f32.mrf.mxu0
    %v10523 = vadd.f32 %v10452, %v10522
    %v10524 = vpop.f32.mrf.mxu0
    %10525 = vdwg.mxu0
    %v10526 = vmax.f32 %v10523, 0.0
    %v10527 = vld [vmem:[#allocation4 + $0x368] sm:$0xff]
    %v10528 = vld [vmem:[#allocation4 + $0x370] sm:$0xff]
    %v10529 = vld [vmem:[#allocation4 + $0x378] sm:$0xff]
    %v10530 = vld [vmem:[#allocation4 + $0x380] sm:$0xff]
    %v10531 = vld [vmem:[#allocation4 + $0x388] sm:$0x1]
    %v10532 = vlaneseq
    %v10533 = vshrl.u32 %v10532, 7
    %v10534 = vsub.s32 0, %v10533
    %v10535 = vrot.slane %v10531, %v10534
    %v10537 = vsel %vm1489, %v10526, 0
    %10539 = vmatprep.subr.mxu0 0.0
    %10540 = vmatpush1.msra.mxu0 0.0
    %10541 = vmatprep.subr.mxu0 0.0
    %10542 = vmatpush1.msra.mxu0 0.0
    %10543 = vmatprep.subr.mxu0 0.0
    %10544 = vmatpush1.msra.mxu0 0.0
    %10545 = vmatprep.subr.mxu0 0.0
    %10546 = vmatpush1.msra.mxu0 0.0
    %10547 = vmatprep.subr.mxu0 0.0
    %10548 = vmatpush1.msra.mxu0 0.0
    %10549 = vmatprep.subr.mxu0 0.0
    %10550 = vmatpush1.msra.mxu0 0.0
    %10551 = vmatprep.subr.mxu0 0.0
    %10552 = vmatpush1.msra.mxu0 0.0
    %10553 = vmatprep.subr.mxu0 0.0
    %10554 = vmatpush1.msra.mxu0 0.0
    %10555 = vmatprep.subr.mxu0 0.0
    %10556 = vmatpush1.msra.mxu0 0.0
    %10557 = vmatprep.subr.mxu0 0.0
    %10558 = vmatpush1.msra.mxu0 0.0
    %10559 = vmatprep.subr.mxu0 0.0
    %10560 = vmatpush1.msra.mxu0 0.0
    %10561 = vmatprep.subr.mxu0 0.0
    %10562 = vmatpush1.msra.mxu0 0.0
    %10563 = vmatprep.subr.mxu0 0.0
    %10564 = vmatpush1.msra.mxu0 %v10530
    %10565 = vmatprep.subr.mxu0 0.0
    %10566 = vmatpush1.msra.mxu0 %v10529
    %10567 = vmatprep.subr.mxu0 0.0
    %10568 = vmatpush1.msra.mxu0 %v10528
    %10569 = vmatprep.subr.mxu0 0.0
    %10570 = vmatpush1.msra.mxu0 %v10527
    %10571 = vmatprep.subr.mxu0 0.0
    %10572 = vmatpush2.msra.mxu0 0.0
    %10573 = vmatprep.subr.mxu0 0.0
    %10574 = vmatpush2.msra.mxu0 0.0
    %10575 = vmatprep.subr.mxu0 0.0
    %10576 = vmatpush2.msra.mxu0 0.0
    %10577 = vmatprep.subr.mxu0 0.0
    %10578 = vmatpush2.msra.mxu0 0.0
    %10579 = vmatprep.subr.mxu0 0.0
    %10580 = vmatpush2.msra.mxu0 0.0
    %10581 = vmatprep.subr.mxu0 0.0
    %10582 = vmatpush2.msra.mxu0 0.0
    %10583 = vmatprep.subr.mxu0 0.0
    %10584 = vmatpush2.msra.mxu0 0.0
    %10585 = vmatprep.subr.mxu0 0.0
    %10586 = vmatpush2.msra.mxu0 0.0
    %10587 = vmatprep.subr.mxu0 0.0
    %10588 = vmatpush2.msra.mxu0 0.0
    %10589 = vmatprep.subr.mxu0 0.0
    %10590 = vmatpush2.msra.mxu0 0.0
    %10591 = vmatprep.subr.mxu0 0.0
    %10592 = vmatpush2.msra.mxu0 0.0
    %10593 = vmatprep.subr.mxu0 0.0
    %10594 = vmatpush2.msra.mxu0 0.0
    %10595 = vmatprep.subr.mxu0 0.0
    %10596 = vmatpush2.msra.mxu0 0.0
    %10597 = vmatprep.subr.mxu0 0.0
    %10598 = vmatpush2.msra.mxu0 0.0
    %10599 = vmatprep.subr.mxu0 0.0
    %10600 = vmatpush2.msra.mxu0 0.0
    %10601 = vmatprep.subr.mxu0 0.0
    %10602 = vmatpush2.msra.mxu0 0.0
    %10603 = vmatprep.mubr.f32.mxu0 0.0
    %10604 = vmatmul.mubr.f32.gmra.mxu0 %v10537
    %v10605 = vpop.f32.mrf.mxu0
    %v10606 = vadd.f32 %v10535, %v10605
    %v10607 = vpop.f32.mrf.mxu0
    %10608 = vdwg.mxu0
    %v10609 = vmax.f32 %v10606, 0.0
    %v10610 = vld [vmem:[#allocation4 + $0x390] sm:$0xff]
    %v10611 = vld [vmem:[#allocation4 + $0x398] sm:$0xff]
    %v10612 = vld [vmem:[#allocation4 + $0x3a0] sm:$0xff]
    %v10613 = vld [vmem:[#allocation4 + $0x3a8] sm:$0xff]
    %v10614 = vld [vmem:[#allocation4 + $0x3b0] sm:$0x1]
    %v10615 = vlaneseq
    %v10616 = vshrl.u32 %v10615, 7
    %v10617 = vsub.s32 0, %v10616
    %v10618 = vrot.slane %v10614, %v10617
    %v10620 = vsel %vm1489, %v10609, 0
    %10622 = vmatprep.subr.mxu0 0.0
    %10623 = vmatpush1.msra.mxu0 0.0
    %10624 = vmatprep.subr.mxu0 0.0
    %10625 = vmatpush1.msra.mxu0 0.0
    %10626 = vmatprep.subr.mxu0 0.0
    %10627 = vmatpush1.msra.mxu0 0.0
    %10628 = vmatprep.subr.mxu0 0.0
    %10629 = vmatpush1.msra.mxu0 0.0
    %10630 = vmatprep.subr.mxu0 0.0
    %10631 = vmatpush1.msra.mxu0 0.0
    %10632 = vmatprep.subr.mxu0 0.0
    %10633 = vmatpush1.msra.mxu0 0.0
    %10634 = vmatprep.subr.mxu0 0.0
    %10635 = vmatpush1.msra.mxu0 0.0
    %10636 = vmatprep.subr.mxu0 0.0
    %10637 = vmatpush1.msra.mxu0 0.0
    %10638 = vmatprep.subr.mxu0 0.0
    %10639 = vmatpush1.msra.mxu0 0.0
    %10640 = vmatprep.subr.mxu0 0.0
    %10641 = vmatpush1.msra.mxu0 0.0
    %10642 = vmatprep.subr.mxu0 0.0
    %10643 = vmatpush1.msra.mxu0 0.0
    %10644 = vmatprep.subr.mxu0 0.0
    %10645 = vmatpush1.msra.mxu0 0.0
    %10646 = vmatprep.subr.mxu0 0.0
    %10647 = vmatpush1.msra.mxu0 %v10613
    %10648 = vmatprep.subr.mxu0 0.0
    %10649 = vmatpush1.msra.mxu0 %v10612
    %10650 = vmatprep.subr.mxu0 0.0
    %10651 = vmatpush1.msra.mxu0 %v10611
    %10652 = vmatprep.subr.mxu0 0.0
    %10653 = vmatpush1.msra.mxu0 %v10610
    %10654 = vmatprep.subr.mxu0 0.0
    %10655 = vmatpush2.msra.mxu0 0.0
    %10656 = vmatprep.subr.mxu0 0.0
    %10657 = vmatpush2.msra.mxu0 0.0
    %10658 = vmatprep.subr.mxu0 0.0
    %10659 = vmatpush2.msra.mxu0 0.0
    %10660 = vmatprep.subr.mxu0 0.0
    %10661 = vmatpush2.msra.mxu0 0.0
    %10662 = vmatprep.subr.mxu0 0.0
    %10663 = vmatpush2.msra.mxu0 0.0
    %10664 = vmatprep.subr.mxu0 0.0
    %10665 = vmatpush2.msra.mxu0 0.0
    %10666 = vmatprep.subr.mxu0 0.0
    %10667 = vmatpush2.msra.mxu0 0.0
    %10668 = vmatprep.subr.mxu0 0.0
    %10669 = vmatpush2.msra.mxu0 0.0
    %10670 = vmatprep.subr.mxu0 0.0
    %10671 = vmatpush2.msra.mxu0 0.0
    %10672 = vmatprep.subr.mxu0 0.0
    %10673 = vmatpush2.msra.mxu0 0.0
    %10674 = vmatprep.subr.mxu0 0.0
    %10675 = vmatpush2.msra.mxu0 0.0
    %10676 = vmatprep.subr.mxu0 0.0
    %10677 = vmatpush2.msra.mxu0 0.0
    %10678 = vmatprep.subr.mxu0 0.0
    %10679 = vmatpush2.msra.mxu0 0.0
    %10680 = vmatprep.subr.mxu0 0.0
    %10681 = vmatpush2.msra.mxu0 0.0
    %10682 = vmatprep.subr.mxu0 0.0
    %10683 = vmatpush2.msra.mxu0 0.0
    %10684 = vmatprep.subr.mxu0 0.0
    %10685 = vmatpush2.msra.mxu0 0.0
    %10686 = vmatprep.mubr.f32.mxu0 0.0
    %10687 = vmatmul.mubr.f32.gmra.mxu0 %v10620
    %v10688 = vpop.f32.mrf.mxu0
    %v10689 = vadd.f32 %v10618, %v10688
    %v10690 = vpop.f32.mrf.mxu0
    %10691 = vdwg.mxu0
    %v10692 = vmax.f32 %v10689, 0.0
    %v10693 = vld [vmem:[#allocation4 + $0x3b8] sm:$0xff]
    %v10694 = vld [vmem:[#allocation4 + $0x3c0] sm:$0xff]
    %v10695 = vld [vmem:[#allocation4 + $0x3c8] sm:$0xff]
    %v10696 = vld [vmem:[#allocation4 + $0x3d0] sm:$0xff]
    %v10697 = vld [vmem:[#allocation4 + $0x3d8] sm:$0x1]
    %v10698 = vlaneseq
    %v10699 = vshrl.u32 %v10698, 7
    %v10700 = vsub.s32 0, %v10699
    %v10701 = vrot.slane %v10697, %v10700
    %v10703 = vsel %vm1489, %v10692, 0
    %10705 = vmatprep.subr.mxu0 0.0
    %10706 = vmatpush1.msra.mxu0 0.0
    %10707 = vmatprep.subr.mxu0 0.0
    %10708 = vmatpush1.msra.mxu0 0.0
    %10709 = vmatprep.subr.mxu0 0.0
    %10710 = vmatpush1.msra.mxu0 0.0
    %10711 = vmatprep.subr.mxu0 0.0
    %10712 = vmatpush1.msra.mxu0 0.0
    %10713 = vmatprep.subr.mxu0 0.0
    %10714 = vmatpush1.msra.mxu0 0.0
    %10715 = vmatprep.subr.mxu0 0.0
    %10716 = vmatpush1.msra.mxu0 0.0
    %10717 = vmatprep.subr.mxu0 0.0
    %10718 = vmatpush1.msra.mxu0 0.0
    %10719 = vmatprep.subr.mxu0 0.0
    %10720 = vmatpush1.msra.mxu0 0.0
    %10721 = vmatprep.subr.mxu0 0.0
    %10722 = vmatpush1.msra.mxu0 0.0
    %10723 = vmatprep.subr.mxu0 0.0
    %10724 = vmatpush1.msra.mxu0 0.0
    %10725 = vmatprep.subr.mxu0 0.0
    %10726 = vmatpush1.msra.mxu0 0.0
    %10727 = vmatprep.subr.mxu0 0.0
    %10728 = vmatpush1.msra.mxu0 0.0
    %10729 = vmatprep.subr.mxu0 0.0
    %10730 = vmatpush1.msra.mxu0 %v10696
    %10731 = vmatprep.subr.mxu0 0.0
    %10732 = vmatpush1.msra.mxu0 %v10695
    %10733 = vmatprep.subr.mxu0 0.0
    %10734 = vmatpush1.msra.mxu0 %v10694
    %10735 = vmatprep.subr.mxu0 0.0
    %10736 = vmatpush1.msra.mxu0 %v10693
    %10737 = vmatprep.subr.mxu0 0.0
    %10738 = vmatpush2.msra.mxu0 0.0
    %10739 = vmatprep.subr.mxu0 0.0
    %10740 = vmatpush2.msra.mxu0 0.0
    %10741 = vmatprep.subr.mxu0 0.0
    %10742 = vmatpush2.msra.mxu0 0.0
    %10743 = vmatprep.subr.mxu0 0.0
    %10744 = vmatpush2.msra.mxu0 0.0
    %10745 = vmatprep.subr.mxu0 0.0
    %10746 = vmatpush2.msra.mxu0 0.0
    %10747 = vmatprep.subr.mxu0 0.0
    %10748 = vmatpush2.msra.mxu0 0.0
    %10749 = vmatprep.subr.mxu0 0.0
    %10750 = vmatpush2.msra.mxu0 0.0
    %10751 = vmatprep.subr.mxu0 0.0
    %10752 = vmatpush2.msra.mxu0 0.0
    %10753 = vmatprep.subr.mxu0 0.0
    %10754 = vmatpush2.msra.mxu0 0.0
    %10755 = vmatprep.subr.mxu0 0.0
    %10756 = vmatpush2.msra.mxu0 0.0
    %10757 = vmatprep.subr.mxu0 0.0
    %10758 = vmatpush2.msra.mxu0 0.0
    %10759 = vmatprep.subr.mxu0 0.0
    %10760 = vmatpush2.msra.mxu0 0.0
    %10761 = vmatprep.subr.mxu0 0.0
    %10762 = vmatpush2.msra.mxu0 0.0
    %10763 = vmatprep.subr.mxu0 0.0
    %10764 = vmatpush2.msra.mxu0 0.0
    %10765 = vmatprep.subr.mxu0 0.0
    %10766 = vmatpush2.msra.mxu0 0.0
    %10767 = vmatprep.subr.mxu0 0.0
    %10768 = vmatpush2.msra.mxu0 0.0
    %10769 = vmatprep.mubr.f32.mxu0 0.0
    %10770 = vmatmul.mubr.f32.gmra.mxu0 %v10703
    %v10771 = vpop.f32.mrf.mxu0
    %v10772 = vadd.f32 %v10701, %v10771
    %v10773 = vpop.f32.mrf.mxu0
    %10774 = vdwg.mxu0
    %v10775 = vmax.f32 %v10772, 0.0
    %v10776 = vld [vmem:[#allocation4 + $0x3e0] sm:$0xff]
    %v10777 = vld [vmem:[#allocation4 + $0x3e8] sm:$0xff]
    %v10778 = vld [vmem:[#allocation4 + $0x3f0] sm:$0xff]
    %v10779 = vld [vmem:[#allocation4 + $0x3f8] sm:$0xff]
    %v10780 = vld [vmem:[#allocation4 + $0x400] sm:$0x1]
    %v10781 = vlaneseq
    %v10782 = vshrl.u32 %v10781, 7
    %v10783 = vsub.s32 0, %v10782
    %v10784 = vrot.slane %v10780, %v10783
    %v10786 = vsel %vm1489, %v10775, 0
    %10788 = vmatprep.subr.mxu0 0.0
    %10789 = vmatpush1.msra.mxu0 0.0
    %10790 = vmatprep.subr.mxu0 0.0
    %10791 = vmatpush1.msra.mxu0 0.0
    %10792 = vmatprep.subr.mxu0 0.0
    %10793 = vmatpush1.msra.mxu0 0.0
    %10794 = vmatprep.subr.mxu0 0.0
    %10795 = vmatpush1.msra.mxu0 0.0
    %10796 = vmatprep.subr.mxu0 0.0
    %10797 = vmatpush1.msra.mxu0 0.0
    %10798 = vmatprep.subr.mxu0 0.0
    %10799 = vmatpush1.msra.mxu0 0.0
    %10800 = vmatprep.subr.mxu0 0.0
    %10801 = vmatpush1.msra.mxu0 0.0
    %10802 = vmatprep.subr.mxu0 0.0
    %10803 = vmatpush1.msra.mxu0 0.0
    %10804 = vmatprep.subr.mxu0 0.0
    %10805 = vmatpush1.msra.mxu0 0.0
    %10806 = vmatprep.subr.mxu0 0.0
    %10807 = vmatpush1.msra.mxu0 0.0
    %10808 = vmatprep.subr.mxu0 0.0
    %10809 = vmatpush1.msra.mxu0 0.0
    %10810 = vmatprep.subr.mxu0 0.0
    %10811 = vmatpush1.msra.mxu0 0.0
    %10812 = vmatprep.subr.mxu0 0.0
    %10813 = vmatpush1.msra.mxu0 %v10779
    %10814 = vmatprep.subr.mxu0 0.0
    %10815 = vmatpush1.msra.mxu0 %v10778
    %10816 = vmatprep.subr.mxu0 0.0
    %10817 = vmatpush1.msra.mxu0 %v10777
    %10818 = vmatprep.subr.mxu0 0.0
    %10819 = vmatpush1.msra.mxu0 %v10776
    %10820 = vmatprep.subr.mxu0 0.0
    %10821 = vmatpush2.msra.mxu0 0.0
    %10822 = vmatprep.subr.mxu0 0.0
    %10823 = vmatpush2.msra.mxu0 0.0
    %10824 = vmatprep.subr.mxu0 0.0
    %10825 = vmatpush2.msra.mxu0 0.0
    %10826 = vmatprep.subr.mxu0 0.0
    %10827 = vmatpush2.msra.mxu0 0.0
    %10828 = vmatprep.subr.mxu0 0.0
    %10829 = vmatpush2.msra.mxu0 0.0
    %10830 = vmatprep.subr.mxu0 0.0
    %10831 = vmatpush2.msra.mxu0 0.0
    %10832 = vmatprep.subr.mxu0 0.0
    %10833 = vmatpush2.msra.mxu0 0.0
    %10834 = vmatprep.subr.mxu0 0.0
    %10835 = vmatpush2.msra.mxu0 0.0
    %10836 = vmatprep.subr.mxu0 0.0
    %10837 = vmatpush2.msra.mxu0 0.0
    %10838 = vmatprep.subr.mxu0 0.0
    %10839 = vmatpush2.msra.mxu0 0.0
    %10840 = vmatprep.subr.mxu0 0.0
    %10841 = vmatpush2.msra.mxu0 0.0
    %10842 = vmatprep.subr.mxu0 0.0
    %10843 = vmatpush2.msra.mxu0 0.0
    %10844 = vmatprep.subr.mxu0 0.0
    %10845 = vmatpush2.msra.mxu0 0.0
    %10846 = vmatprep.subr.mxu0 0.0
    %10847 = vmatpush2.msra.mxu0 0.0
    %10848 = vmatprep.subr.mxu0 0.0
    %10849 = vmatpush2.msra.mxu0 0.0
    %10850 = vmatprep.subr.mxu0 0.0
    %10851 = vmatpush2.msra.mxu0 0.0
    %10852 = vmatprep.mubr.f32.mxu0 0.0
    %10853 = vmatmul.mubr.f32.gmra.mxu0 %v10786
    %v10854 = vpop.f32.mrf.mxu0
    %v10855 = vadd.f32 %v10784, %v10854
    %v10856 = vpop.f32.mrf.mxu0
    %10857 = vdwg.mxu0
    %v10858 = vsub.f32 0.0, %v10855
    %v10859 = vmul.f32 %v10858, 1.442695
    %v10860 = vpow.pop %v10859
    %v10861 = vadd.f32 %v10860, 1.0
    %v10862 = vrcp.pop %v10861
    %v10863 = vmul.f32 1.0, %v10862
    %vm10864 = vcmask 1024
    %10865 = vst.msk [vmem:[%s2] sm:$0x3] %vm10864, %v10863
    // Predicated region
    $region18: #{approximanet_forward.1} parent=1 // pred_check
      _
    $region19: #{approximanet_forward.1} parent=1 // pred_check_branch
      %10867 = sbr.rel (0) target = $region21
    $region20: #{approximanet_forward.1} parent=1 // pred_region
      _
    $region21: #{approximanet_forward.1} parent=1 // pred_fallthru
      _
    // Predicated region
    $region22: #{approximanet_forward.1} parent=1 // pred_check
      _
    $region23: #{approximanet_forward.1} parent=1 // pred_check_branch
      %10869 = sbr.rel (0) target = $region25
    $region24: #{approximanet_forward.1} parent=1 // pred_region
      _
    $region25: #{approximanet_forward.1} parent=1 // pred_fallthru
      _
    %10870 = vsyncpa [#allocation3], 1
    %10871 = vsyncpa [#allocation5], 1

</llo_original>
